<compile_context>
chip_gen: v7x
topology: tpu7x:2x2x1
jax: 0.10.0
libtpu: 0.0.40
codegen_flags: <defaults>
</compile_context>

<pallas_src>
import functools

import jax
import jax.numpy as jnp
import numpy as np
from jax.experimental import pallas as pl
from jax.experimental.pallas import tpu as pltpu


COMPUTE_DTYPE = jnp.bfloat16          # MXU operand dtype; f32 accumulation everywhere.

CONV_KERNELS = [8, 4, 3]
CONV_CHANNELS = [32, 64, 64]
CONV_STRIDES = [4, 2, 1]
MLP_HIDDEN = [512, 256]


def _round_up(x, m):
    return (x + m - 1) // m * m


# ----------------------------------------------------------------------------
# The single fused kernel
# ----------------------------------------------------------------------------
def _fused_state_value_kernel(*refs, stage_meta, compute_dtype):
    """refs = (x, w_0, b_0, ..., w_{S-1}, b_{S-1}, w_out, b_out, o).

    x     : (H, bt, W*C) compute_dtype  -- batch tile, batch on the sublane axis.
    w_s   : (ktaps, F_in, F_out) compute_dtype row-Toeplitz weights.
    b_s   : (1, F_out) f32.   w_out: (1, F_last) f32, b_out: (1, 1) f32.
    stage_meta[s] = (ktaps, stride, n_out_rows).

    Each stage maps a list of (bt, F_in) rows to output rows:
        out[oy] = relu( sum_dy in[oy*stride + dy] @ w_s[dy] + b_s )
    (conv layers = row-Toeplitz matmuls, MLP layers = the n_out == 1 case).
    All activations stay in vregs/VMEM; only the (bt, 1) value leaves the chip.
    """
    x_ref, o_ref = refs[0], refs[-1]
    prm = refs[1:-1]

    prev_rows = None                      # None => stage 0 reads rows from x_ref
    final_f32 = None
    for si, (ktaps, stride, n_out) in enumerate(stage_meta):
        w_ref, b_ref = prm[2 * si], prm[2 * si + 1]
        bias = b_ref[...]                 # (1, F_out) f32

        def in_row(r, rows=prev_rows):
            if rows is None:
                return x_ref[r].astype(compute_dtype)   # contiguous (bt, W*C) load
            return rows[r]

        out_rows = []
        for oy in range(n_out):           # static unroll (<= 8 rows per stage)
            acc = None
            for dy in range(ktaps):
                part = jnp.dot(in_row(oy * stride + dy), w_ref[dy],
                               preferred_element_type=jnp.float32)
                acc = part if acc is None else acc + part
            act = jnp.maximum(acc + bias, 0.0)           # f32 epilogue (v5e-safe)
            final_f32 = act
            out_rows.append(act.astype(compute_dtype))
        prev_rows = out_rows

    h = final_f32                         # (bt, F_last) f32 (last stage has n_out == 1)
    w_out = prm[-2][...]                  # (1, F_last) f32
    b_out = prm[-1][...]                  # (1, 1) f32
    v = jnp.sum(h * w_out, axis=-1, keepdims=True) + b_out   # VPU + lane reduce
    o_ref[...] = v.astype(o_ref.dtype)


# ----------------------------------------------------------------------------
# Forward pass: one pallas_call over balanced batch tiles
# ----------------------------------------------------------------------------
def state_value_forward(obs_nhwc, prepped, bt_max=128):
    """obs: (B, H, W, C) f32 -> (B, 1) f32 via ONE fused Pallas kernel."""
    H, W, C = prepped["in_shape"]
    B = obs_nhwc.shape[0]
    cdt = prepped["compute_dtype"]

    # Single XLA prologue op: bf16 cast fused with the transpose that puts the
    # batch on the sublane axis so in-kernel per-row loads are contiguous.
    # TODO(synk): absorb this (H, B, W*C) relayout into the kernel's input DMA
    # if/when BlockSpec supports transposed windows; it is the only extra HBM
    # pass left outside the pallas_call.
    x = jnp.transpose(obs_nhwc.astype(cdt).reshape(B, H, W * C), (1, 0, 2))

    # Balanced, 16-row-aligned batch tiling; >=2 tiles when possible so both
    # v7x TensorCores get work under dimension_semantics=("parallel",).
    Bp = _round_up(B, 16)
    n_tiles = max(pl.cdiv(Bp, bt_max), 2 if Bp >= 32 else 1)
    bt = _round_up(pl.cdiv(Bp, n_tiles), 16)
    Bp = n_tiles * bt
    if Bp != B:
        x = jnp.pad(x, ((0, 0), (0, Bp - B), (0, 0)))

    stages = prepped["stages"]
    args = [x]
    in_specs = [pl.BlockSpec((H, bt, W * C), lambda i: (0, i, 0))]
    for st in stages:
        args += [st["w"], st["b"]]
        in_specs += [pl.BlockSpec(st["w"].shape, lambda i: (0, 0, 0)),
                     pl.BlockSpec(st["b"].shape, lambda i: (0, 0))]
    w_out, b_out = prepped["out"]
    args += [w_out, b_out]
    in_specs += [pl.BlockSpec(w_out.shape, lambda i: (0, 0)),
                 pl.BlockSpec(b_out.shape, lambda i: (0, 0))]

    kern = functools.partial(
        _fused_state_value_kernel,
        stage_meta=tuple((st["ktaps"], st["stride"], st["n_out"]) for st in stages),
        compute_dtype=cdt)
    out = pl.pallas_call(
        kern,
        out_shape=jax.ShapeDtypeStruct((Bp, 1), jnp.float32),
        grid=(n_tiles,),
        in_specs=in_specs,
        out_specs=pl.BlockSpec((bt, 1), lambda i: (i, 0)),
        compiler_params=pltpu.CompilerParams(
            dimension_semantics=("parallel",),
            vmem_limit_bytes=40 * 1024 * 1024),
    )(*args)
    return out[:B] if Bp != B else out


# ----------------------------------------------------------------------------
# Parameters
# ----------------------------------------------------------------------------
def _uniform(key, shape, fan_in):
    bound = 1.0 / np.sqrt(fan_in)
    return jax.random.uniform(key, shape, jnp.float32, -bound, bound)


def init_params(key, obs_dim):
    """PyTorch-layout parameters (conv: OIHW, linear: (in, out))."""
    H, W, C_in = obs_dim
    params = {"conv": [], "mlp": []}
    in_c, h, w = C_in, H, W
    for k, c, s in zip(CONV_KERNELS, CONV_CHANNELS, CONV_STRIDES):
        key, kw_, kb_ = jax.random.split(key, 3)
        fan_in = in_c * k * k
        params["conv"].append(dict(w=_uniform(kw_, (c, in_c, k, k), fan_in),
                                   b=_uniform(kb_, (c,), fan_in),
                                   stride=s))
        h = (h - k) // s + 1
        w = (w - k) // s + 1
        in_c = c
    conv_num_dims = in_c * h * w
    sizes = [conv_num_dims] + MLP_HIDDEN + [1]
    for j in range(len(sizes) - 1):
        key, kw_, kb_ = jax.random.split(key, 3)
        params["mlp"].append(dict(w=_uniform(kw_, (sizes[j], sizes[j + 1]), sizes[j]),
                                  b=_uniform(kb_, (sizes[j + 1],), sizes[j])))
    return params


def prepare_params(params, obs_dim, compute_dtype=COMPUTE_DTYPE):
    """Build kernel-ready row-Toeplitz weights ONCE (host-side numpy).

    Stage s weight has shape (ktaps, F_in, F_out):
      conv layer   : F_in = W_in*C_in, F_out = OW*OC, ktaps = KH
      first linear : NCHW flatten permutation folded in, ktaps = conv3 OH
      hidden linear: ktaps = 1
    Biases stored as (1, F_out) f32; the final (F, 1) layer as a (1, F) f32 row
    for the in-kernel VPU reduction.
    """
    H, W, C = obs_dim
    stages = []
    h_in, w_in, c_in = H, W, C
    for layer in params["conv"]:
        w_oihw = np.asarray(layer["w"], np.float32)           # (OC, IC, KH, KW)
        bias = np.asarray(layer["b"], np.float32)
        s = layer["stride"]
        oc_n, ic_n, kh, kw = w_oihw.shape
        oh = (h_in - kh) // s + 1
        ow = (w_in - kw) // s + 1
        w_row = np.zeros((kh, w_in * ic_n, ow * oc_n), np.float32)
        for dy in range(kh):
            for ox in range(ow):
                for dx in range(kw):
                    wi = ox * s + dx
                    w_row[dy, wi * ic_n:(wi + 1) * ic_n,
                          ox * oc_n:(ox + 1) * oc_n] = w_oihw[:, :, dy, dx].T
        stages.append(dict(w=jnp.asarray(w_row, compute_dtype),
                           b=jnp.asarray(np.tile(bias, ow).reshape(1, ow * oc_n),
                                         jnp.float32),
                           ktaps=kh, stride=s, n_out=oh))
        h_in, w_in, c_in = oh, ow, oc_n

    # First linear layer: fold the PyTorch NCHW flatten (c, h, w ordering).
    w0 = np.asarray(params["mlp"][0]["w"], np.float32)        # (c*h*w, N0)
    b0 = np.asarray(params["mlp"][0]["b"], np.float32)
    n0 = w0.shape[1]
    w0_row = np.zeros((h_in, w_in * c_in, n0), np.float32)
    for oy in range(h_in):
        for ox in range(w_in):
            for oc in range(c_in):
                w0_row[oy, ox * c_in + oc, :] = w0[(oc * h_in + oy) * w_in + ox, :]
    stages.append(dict(w=jnp.asarray(w0_row, compute_dtype),
                       b=jnp.asarray(b0.reshape(1, n0), jnp.float32),
                       ktaps=h_in, stride=1, n_out=1))

    # Remaining hidden linears (all but the last layer).
    for layer in params["mlp"][1:-1]:
        wl = np.asarray(layer["w"], np.float32)
        bl = np.asarray(layer["b"], np.float32)
        stages.append(dict(w=jnp.asarray(wl[None], compute_dtype),
                           b=jnp.asarray(bl.reshape(1, -1), jnp.float32),
                           ktaps=1, stride=1, n_out=1))

    # Output layer (identity activation): (1, F) row for the VPU reduce, f32.
    w_last = np.asarray(params["mlp"][-1]["w"], np.float32)   # (F, 1)
    b_last = np.asarray(params["mlp"][-1]["b"], np.float32)   # (1,)
    out = (jnp.asarray(w_last.reshape(1, -1), jnp.float32),
           jnp.asarray(b_last.reshape(1, 1), jnp.float32))
    return {"stages": stages, "out": out, "in_shape": (H, W, C),
            "compute_dtype": compute_dtype}


# ----------------------------------------------------------------------------
# Pure-JAX f32 reference (lax.conv) for the correctness check
# ----------------------------------------------------------------------------
def state_value_reference(obs_nhwc, params):
    x = obs_nhwc
    for layer in params["conv"]:
        w_hwio = jnp.transpose(layer["w"], (2, 3, 1, 0))
        s = layer["stride"]
        x = jax.lax.conv_general_dilated(
            x, w_hwio, window_strides=(s, s), padding="VALID",
            dimension_numbers=("NHWC", "HWIO", "NHWC"))
        x = jnp.maximum(x + layer["b"], 0.0)
    feat = jnp.transpose(x, (0, 3, 1, 2)).reshape(x.shape[0], -1)   # NCHW flatten
    n_mlp = len(params["mlp"])
    for j, layer in enumerate(params["mlp"]):
        feat = feat @ layer["w"] + layer["b"]
        if j < n_mlp - 1:
            feat = jnp.maximum(feat, 0.0)
    return feat


# ----------------------------------------------------------------------------
if __name__ == "__main__":
    key = jax.random.PRNGKey(0)
    obs_dim = (36, 36, 4)      # smallest H/W that survives kernels 8/4/3, strides 4/2/1
    batch = 2

    k_obs, k_par = jax.random.split(key)
    obs = jax.random.normal(k_obs, (batch,) + obs_dim, jnp.float32)
    params = init_params(k_par, obs_dim)
    prepped = prepare_params(params, obs_dim)   # row-Toeplitz layouts built once

    fwd = jax.jit(lambda o: state_value_forward(o, prepped))
    out = jax.block_until_ready(fwd(obs))
    assert out.shape == (batch, 1), out.shape

    ref = jax.block_until_ready(state_value_reference(obs, params))
    np.testing.assert_allclose(np.asarray(out), np.asarray(ref), rtol=2e-2, atol=2e-2)

    print("KERNEL_OK")
</pallas_src>

<mosaic_0001>
module attributes {stable_mosaic.version = 11 : i64} {
  func.func @_fused_state_value_kernel(%arg0: i32, %arg1: memref<36x16x144xbf16, #tpu.memory_space<vmem>>, %arg2: memref<8x144x256xbf16, #tpu.memory_space<vmem>>, %arg3: memref<1x256xf32, #tpu.memory_space<vmem>>, %arg4: memref<4x256x192xbf16, #tpu.memory_space<vmem>>, %arg5: memref<1x192xf32, #tpu.memory_space<vmem>>, %arg6: memref<3x192x64xbf16, #tpu.memory_space<vmem>>, %arg7: memref<1x64xf32, #tpu.memory_space<vmem>>, %arg8: memref<1x64x512xbf16, #tpu.memory_space<vmem>>, %arg9: memref<1x512xf32, #tpu.memory_space<vmem>>, %arg10: memref<1x512x256xbf16, #tpu.memory_space<vmem>>, %arg11: memref<1x256xf32, #tpu.memory_space<vmem>>, %arg12: memref<1x256xf32, #tpu.memory_space<vmem>>, %arg13: memref<1x1xf32, #tpu.memory_space<vmem>>, %arg14: memref<16x1xf32, #tpu.memory_space<vmem>>) attributes {dimension_semantics = [#tpu.dimension_semantics<parallel>], iteration_bounds = array<i64: 1>, scalar_prefetch = 0 : i64, scratch_operands = 0 : i64, tpu.core_type = #tpu.core_type<tc>, window_params = [{transform_indices = @transform_0, window_bounds = array<i64: 36, 16, 144>}, {pipeline_mode = #tpu.pipeline_mode<synchronous>, transform_indices = @transform_1, window_bounds = array<i64: 8, 144, 256>}, {pipeline_mode = #tpu.pipeline_mode<synchronous>, transform_indices = @transform_2, window_bounds = array<i64: 1, 256>}, {pipeline_mode = #tpu.pipeline_mode<synchronous>, transform_indices = @transform_3, window_bounds = array<i64: 4, 256, 192>}, {pipeline_mode = #tpu.pipeline_mode<synchronous>, transform_indices = @transform_4, window_bounds = array<i64: 1, 192>}, {pipeline_mode = #tpu.pipeline_mode<synchronous>, transform_indices = @transform_5, window_bounds = array<i64: 3, 192, 64>}, {pipeline_mode = #tpu.pipeline_mode<synchronous>, transform_indices = @transform_6, window_bounds = array<i64: 1, 64>}, {pipeline_mode = #tpu.pipeline_mode<synchronous>, transform_indices = @transform_7, window_bounds = array<i64: 1, 64, 512>}, {pipeline_mode = #tpu.pipeline_mode<synchronous>, transform_indices = @transform_8, window_bounds = array<i64: 1, 512>}, {pipeline_mode = #tpu.pipeline_mode<synchronous>, transform_indices = @transform_9, window_bounds = array<i64: 1, 512, 256>}, {pipeline_mode = #tpu.pipeline_mode<synchronous>, transform_indices = @transform_10, window_bounds = array<i64: 1, 256>}, {pipeline_mode = #tpu.pipeline_mode<synchronous>, transform_indices = @transform_11, window_bounds = array<i64: 1, 256>}, {pipeline_mode = #tpu.pipeline_mode<synchronous>, transform_indices = @transform_12, window_bounds = array<i64: 1, 1>}, {transform_indices = @transform_13, window_bounds = array<i64: 16, 1>}]} {
    %c0 = arith.constant 0 : index
    %c0_0 = arith.constant 0 : index
    %0 = vector.load %arg3[%c0, %c0_0] : memref<1x256xf32, #tpu.memory_space<vmem>>, vector<1x256xf32>
    %c0_1 = arith.constant 0 : index
    %c0_2 = arith.constant 0 : index
    %c0_3 = arith.constant 0 : index
    %1 = vector.load %arg1[%c0_1, %c0_2, %c0_3] : memref<36x16x144xbf16, #tpu.memory_space<vmem>>, vector<1x16x144xbf16>
    %2 = vector.shape_cast %1 : vector<1x16x144xbf16> to vector<16x144xbf16>
    %c0_4 = arith.constant 0 : index
    %c0_5 = arith.constant 0 : index
    %c0_6 = arith.constant 0 : index
    %3 = vector.load %arg2[%c0_4, %c0_5, %c0_6] : memref<8x144x256xbf16, #tpu.memory_space<vmem>>, vector<1x144x256xbf16>
    %4 = vector.shape_cast %3 : vector<1x144x256xbf16> to vector<144x256xbf16>
    %cst = arith.constant dense<0.000000e+00> : vector<16x256xf32>
    %5 = tpu.matmul %2, %4, %cst {dimension_numbers = #tpu.dot_dimension_numbers<[1], [0], [0], [1], [0, 0, 1, 1], [], []>} : vector<16x144xbf16>, vector<144x256xbf16>, vector<16x256xf32> -> vector<16x256xf32>
    %c1 = arith.constant 1 : index
    %c0_7 = arith.constant 0 : index
    %c0_8 = arith.constant 0 : index
    %6 = vector.load %arg1[%c1, %c0_7, %c0_8] : memref<36x16x144xbf16, #tpu.memory_space<vmem>>, vector<1x16x144xbf16>
    %7 = vector.shape_cast %6 : vector<1x16x144xbf16> to vector<16x144xbf16>
    %c1_9 = arith.constant 1 : index
    %c0_10 = arith.constant 0 : index
    %c0_11 = arith.constant 0 : index
    %8 = vector.load %arg2[%c1_9, %c0_10, %c0_11] : memref<8x144x256xbf16, #tpu.memory_space<vmem>>, vector<1x144x256xbf16>
    %9 = vector.shape_cast %8 : vector<1x144x256xbf16> to vector<144x256xbf16>
    %cst_12 = arith.constant dense<0.000000e+00> : vector<16x256xf32>
    %10 = tpu.matmul %7, %9, %cst_12 {dimension_numbers = #tpu.dot_dimension_numbers<[1], [0], [0], [1], [0, 0, 1, 1], [], []>} : vector<16x144xbf16>, vector<144x256xbf16>, vector<16x256xf32> -> vector<16x256xf32>
    %11 = arith.addf %5, %10 : vector<16x256xf32>
    %c2 = arith.constant 2 : index
    %c0_13 = arith.constant 0 : index
    %c0_14 = arith.constant 0 : index
    %12 = vector.load %arg1[%c2, %c0_13, %c0_14] : memref<36x16x144xbf16, #tpu.memory_space<vmem>>, vector<1x16x144xbf16>
    %13 = vector.shape_cast %12 : vector<1x16x144xbf16> to vector<16x144xbf16>
    %c2_15 = arith.constant 2 : index
    %c0_16 = arith.constant 0 : index
    %c0_17 = arith.constant 0 : index
    %14 = vector.load %arg2[%c2_15, %c0_16, %c0_17] : memref<8x144x256xbf16, #tpu.memory_space<vmem>>, vector<1x144x256xbf16>
    %15 = vector.shape_cast %14 : vector<1x144x256xbf16> to vector<144x256xbf16>
    %cst_18 = arith.constant dense<0.000000e+00> : vector<16x256xf32>
    %16 = tpu.matmul %13, %15, %cst_18 {dimension_numbers = #tpu.dot_dimension_numbers<[1], [0], [0], [1], [0, 0, 1, 1], [], []>} : vector<16x144xbf16>, vector<144x256xbf16>, vector<16x256xf32> -> vector<16x256xf32>
    %17 = arith.addf %11, %16 : vector<16x256xf32>
    %c3 = arith.constant 3 : index
    %c0_19 = arith.constant 0 : index
    %c0_20 = arith.constant 0 : index
    %18 = vector.load %arg1[%c3, %c0_19, %c0_20] : memref<36x16x144xbf16, #tpu.memory_space<vmem>>, vector<1x16x144xbf16>
    %19 = vector.shape_cast %18 : vector<1x16x144xbf16> to vector<16x144xbf16>
    %c3_21 = arith.constant 3 : index
    %c0_22 = arith.constant 0 : index
    %c0_23 = arith.constant 0 : index
    %20 = vector.load %arg2[%c3_21, %c0_22, %c0_23] : memref<8x144x256xbf16, #tpu.memory_space<vmem>>, vector<1x144x256xbf16>
    %21 = vector.shape_cast %20 : vector<1x144x256xbf16> to vector<144x256xbf16>
    %cst_24 = arith.constant dense<0.000000e+00> : vector<16x256xf32>
    %22 = tpu.matmul %19, %21, %cst_24 {dimension_numbers = #tpu.dot_dimension_numbers<[1], [0], [0], [1], [0, 0, 1, 1], [], []>} : vector<16x144xbf16>, vector<144x256xbf16>, vector<16x256xf32> -> vector<16x256xf32>
    %23 = arith.addf %17, %22 : vector<16x256xf32>
    %c4 = arith.constant 4 : index
    %c0_25 = arith.constant 0 : index
    %c0_26 = arith.constant 0 : index
    %24 = vector.load %arg1[%c4, %c0_25, %c0_26] : memref<36x16x144xbf16, #tpu.memory_space<vmem>>, vector<1x16x144xbf16>
    %25 = vector.shape_cast %24 : vector<1x16x144xbf16> to vector<16x144xbf16>
    %c4_27 = arith.constant 4 : index
    %c0_28 = arith.constant 0 : index
    %c0_29 = arith.constant 0 : index
    %26 = vector.load %arg2[%c4_27, %c0_28, %c0_29] : memref<8x144x256xbf16, #tpu.memory_space<vmem>>, vector<1x144x256xbf16>
    %27 = vector.shape_cast %26 : vector<1x144x256xbf16> to vector<144x256xbf16>
    %cst_30 = arith.constant dense<0.000000e+00> : vector<16x256xf32>
    %28 = tpu.matmul %25, %27, %cst_30 {dimension_numbers = #tpu.dot_dimension_numbers<[1], [0], [0], [1], [0, 0, 1, 1], [], []>} : vector<16x144xbf16>, vector<144x256xbf16>, vector<16x256xf32> -> vector<16x256xf32>
    %29 = arith.addf %23, %28 : vector<16x256xf32>
    %c5 = arith.constant 5 : index
    %c0_31 = arith.constant 0 : index
    %c0_32 = arith.constant 0 : index
    %30 = vector.load %arg1[%c5, %c0_31, %c0_32] : memref<36x16x144xbf16, #tpu.memory_space<vmem>>, vector<1x16x144xbf16>
    %31 = vector.shape_cast %30 : vector<1x16x144xbf16> to vector<16x144xbf16>
    %c5_33 = arith.constant 5 : index
    %c0_34 = arith.constant 0 : index
    %c0_35 = arith.constant 0 : index
    %32 = vector.load %arg2[%c5_33, %c0_34, %c0_35] : memref<8x144x256xbf16, #tpu.memory_space<vmem>>, vector<1x144x256xbf16>
    %33 = vector.shape_cast %32 : vector<1x144x256xbf16> to vector<144x256xbf16>
    %cst_36 = arith.constant dense<0.000000e+00> : vector<16x256xf32>
    %34 = tpu.matmul %31, %33, %cst_36 {dimension_numbers = #tpu.dot_dimension_numbers<[1], [0], [0], [1], [0, 0, 1, 1], [], []>} : vector<16x144xbf16>, vector<144x256xbf16>, vector<16x256xf32> -> vector<16x256xf32>
    %35 = arith.addf %29, %34 : vector<16x256xf32>
    %c6 = arith.constant 6 : index
    %c0_37 = arith.constant 0 : index
    %c0_38 = arith.constant 0 : index
    %36 = vector.load %arg1[%c6, %c0_37, %c0_38] : memref<36x16x144xbf16, #tpu.memory_space<vmem>>, vector<1x16x144xbf16>
    %37 = vector.shape_cast %36 : vector<1x16x144xbf16> to vector<16x144xbf16>
    %c6_39 = arith.constant 6 : index
    %c0_40 = arith.constant 0 : index
    %c0_41 = arith.constant 0 : index
    %38 = vector.load %arg2[%c6_39, %c0_40, %c0_41] : memref<8x144x256xbf16, #tpu.memory_space<vmem>>, vector<1x144x256xbf16>
    %39 = vector.shape_cast %38 : vector<1x144x256xbf16> to vector<144x256xbf16>
    %cst_42 = arith.constant dense<0.000000e+00> : vector<16x256xf32>
    %40 = tpu.matmul %37, %39, %cst_42 {dimension_numbers = #tpu.dot_dimension_numbers<[1], [0], [0], [1], [0, 0, 1, 1], [], []>} : vector<16x144xbf16>, vector<144x256xbf16>, vector<16x256xf32> -> vector<16x256xf32>
    %41 = arith.addf %35, %40 : vector<16x256xf32>
    %c7 = arith.constant 7 : index
    %c0_43 = arith.constant 0 : index
    %c0_44 = arith.constant 0 : index
    %42 = vector.load %arg1[%c7, %c0_43, %c0_44] : memref<36x16x144xbf16, #tpu.memory_space<vmem>>, vector<1x16x144xbf16>
    %43 = vector.shape_cast %42 : vector<1x16x144xbf16> to vector<16x144xbf16>
    %c7_45 = arith.constant 7 : index
    %c0_46 = arith.constant 0 : index
    %c0_47 = arith.constant 0 : index
    %44 = vector.load %arg2[%c7_45, %c0_46, %c0_47] : memref<8x144x256xbf16, #tpu.memory_space<vmem>>, vector<1x144x256xbf16>
    %45 = vector.shape_cast %44 : vector<1x144x256xbf16> to vector<144x256xbf16>
    %cst_48 = arith.constant dense<0.000000e+00> : vector<16x256xf32>
    %46 = tpu.matmul %43, %45, %cst_48 {dimension_numbers = #tpu.dot_dimension_numbers<[1], [0], [0], [1], [0, 0, 1, 1], [], []>} : vector<16x144xbf16>, vector<144x256xbf16>, vector<16x256xf32> -> vector<16x256xf32>
    %47 = arith.addf %41, %46 : vector<16x256xf32>
    %48 = vector.broadcast %0 : vector<1x256xf32> to vector<16x256xf32>
    %49 = arith.addf %47, %48 : vector<16x256xf32>
    %cst_49 = arith.constant 0.000000e+00 : f32
    %50 = vector.broadcast %cst_49 : f32 to vector<16x256xf32>
    %51 = arith.maximumf %49, %50 : vector<16x256xf32>
    %52 = arith.truncf %51 : vector<16x256xf32> to vector<16x256xbf16>
    %c4_50 = arith.constant 4 : index
    %c0_51 = arith.constant 0 : index
    %c0_52 = arith.constant 0 : index
    %53 = vector.load %arg1[%c4_50, %c0_51, %c0_52] : memref<36x16x144xbf16, #tpu.memory_space<vmem>>, vector<1x16x144xbf16>
    %54 = vector.shape_cast %53 : vector<1x16x144xbf16> to vector<16x144xbf16>
    %c0_53 = arith.constant 0 : index
    %c0_54 = arith.constant 0 : index
    %c0_55 = arith.constant 0 : index
    %55 = vector.load %arg2[%c0_53, %c0_54, %c0_55] : memref<8x144x256xbf16, #tpu.memory_space<vmem>>, vector<1x144x256xbf16>
    %56 = vector.shape_cast %55 : vector<1x144x256xbf16> to vector<144x256xbf16>
    %cst_56 = arith.constant dense<0.000000e+00> : vector<16x256xf32>
    %57 = tpu.matmul %54, %56, %cst_56 {dimension_numbers = #tpu.dot_dimension_numbers<[1], [0], [0], [1], [0, 0, 1, 1], [], []>} : vector<16x144xbf16>, vector<144x256xbf16>, vector<16x256xf32> -> vector<16x256xf32>
    %c5_57 = arith.constant 5 : index
    %c0_58 = arith.constant 0 : index
    %c0_59 = arith.constant 0 : index
    %58 = vector.load %arg1[%c5_57, %c0_58, %c0_59] : memref<36x16x144xbf16, #tpu.memory_space<vmem>>, vector<1x16x144xbf16>
    %59 = vector.shape_cast %58 : vector<1x16x144xbf16> to vector<16x144xbf16>
    %c1_60 = arith.constant 1 : index
    %c0_61 = arith.constant 0 : index
    %c0_62 = arith.constant 0 : index
    %60 = vector.load %arg2[%c1_60, %c0_61, %c0_62] : memref<8x144x256xbf16, #tpu.memory_space<vmem>>, vector<1x144x256xbf16>
    %61 = vector.shape_cast %60 : vector<1x144x256xbf16> to vector<144x256xbf16>
    %cst_63 = arith.constant dense<0.000000e+00> : vector<16x256xf32>
    %62 = tpu.matmul %59, %61, %cst_63 {dimension_numbers = #tpu.dot_dimension_numbers<[1], [0], [0], [1], [0, 0, 1, 1], [], []>} : vector<16x144xbf16>, vector<144x256xbf16>, vector<16x256xf32> -> vector<16x256xf32>
    %63 = arith.addf %57, %62 : vector<16x256xf32>
    %c6_64 = arith.constant 6 : index
    %c0_65 = arith.constant 0 : index
    %c0_66 = arith.constant 0 : index
    %64 = vector.load %arg1[%c6_64, %c0_65, %c0_66] : memref<36x16x144xbf16, #tpu.memory_space<vmem>>, vector<1x16x144xbf16>
    %65 = vector.shape_cast %64 : vector<1x16x144xbf16> to vector<16x144xbf16>
    %c2_67 = arith.constant 2 : index
    %c0_68 = arith.constant 0 : index
    %c0_69 = arith.constant 0 : index
    %66 = vector.load %arg2[%c2_67, %c0_68, %c0_69] : memref<8x144x256xbf16, #tpu.memory_space<vmem>>, vector<1x144x256xbf16>
    %67 = vector.shape_cast %66 : vector<1x144x256xbf16> to vector<144x256xbf16>
    %cst_70 = arith.constant dense<0.000000e+00> : vector<16x256xf32>
    %68 = tpu.matmul %65, %67, %cst_70 {dimension_numbers = #tpu.dot_dimension_numbers<[1], [0], [0], [1], [0, 0, 1, 1], [], []>} : vector<16x144xbf16>, vector<144x256xbf16>, vector<16x256xf32> -> vector<16x256xf32>
    %69 = arith.addf %63, %68 : vector<16x256xf32>
    %c7_71 = arith.constant 7 : index
    %c0_72 = arith.constant 0 : index
    %c0_73 = arith.constant 0 : index
    %70 = vector.load %arg1[%c7_71, %c0_72, %c0_73] : memref<36x16x144xbf16, #tpu.memory_space<vmem>>, vector<1x16x144xbf16>
    %71 = vector.shape_cast %70 : vector<1x16x144xbf16> to vector<16x144xbf16>
    %c3_74 = arith.constant 3 : index
    %c0_75 = arith.constant 0 : index
    %c0_76 = arith.constant 0 : index
    %72 = vector.load %arg2[%c3_74, %c0_75, %c0_76] : memref<8x144x256xbf16, #tpu.memory_space<vmem>>, vector<1x144x256xbf16>
    %73 = vector.shape_cast %72 : vector<1x144x256xbf16> to vector<144x256xbf16>
    %cst_77 = arith.constant dense<0.000000e+00> : vector<16x256xf32>
    %74 = tpu.matmul %71, %73, %cst_77 {dimension_numbers = #tpu.dot_dimension_numbers<[1], [0], [0], [1], [0, 0, 1, 1], [], []>} : vector<16x144xbf16>, vector<144x256xbf16>, vector<16x256xf32> -> vector<16x256xf32>
    %75 = arith.addf %69, %74 : vector<16x256xf32>
    %c8 = arith.constant 8 : index
    %c0_78 = arith.constant 0 : index
    %c0_79 = arith.constant 0 : index
    %76 = vector.load %arg1[%c8, %c0_78, %c0_79] : memref<36x16x144xbf16, #tpu.memory_space<vmem>>, vector<1x16x144xbf16>
    %77 = vector.shape_cast %76 : vector<1x16x144xbf16> to vector<16x144xbf16>
    %c4_80 = arith.constant 4 : index
    %c0_81 = arith.constant 0 : index
    %c0_82 = arith.constant 0 : index
    %78 = vector.load %arg2[%c4_80, %c0_81, %c0_82] : memref<8x144x256xbf16, #tpu.memory_space<vmem>>, vector<1x144x256xbf16>
    %79 = vector.shape_cast %78 : vector<1x144x256xbf16> to vector<144x256xbf16>
    %cst_83 = arith.constant dense<0.000000e+00> : vector<16x256xf32>
    %80 = tpu.matmul %77, %79, %cst_83 {dimension_numbers = #tpu.dot_dimension_numbers<[1], [0], [0], [1], [0, 0, 1, 1], [], []>} : vector<16x144xbf16>, vector<144x256xbf16>, vector<16x256xf32> -> vector<16x256xf32>
    %81 = arith.addf %75, %80 : vector<16x256xf32>
    %c9 = arith.constant 9 : index
    %c0_84 = arith.constant 0 : index
    %c0_85 = arith.constant 0 : index
    %82 = vector.load %arg1[%c9, %c0_84, %c0_85] : memref<36x16x144xbf16, #tpu.memory_space<vmem>>, vector<1x16x144xbf16>
    %83 = vector.shape_cast %82 : vector<1x16x144xbf16> to vector<16x144xbf16>
    %c5_86 = arith.constant 5 : index
    %c0_87 = arith.constant 0 : index
    %c0_88 = arith.constant 0 : index
    %84 = vector.load %arg2[%c5_86, %c0_87, %c0_88] : memref<8x144x256xbf16, #tpu.memory_space<vmem>>, vector<1x144x256xbf16>
    %85 = vector.shape_cast %84 : vector<1x144x256xbf16> to vector<144x256xbf16>
    %cst_89 = arith.constant dense<0.000000e+00> : vector<16x256xf32>
    %86 = tpu.matmul %83, %85, %cst_89 {dimension_numbers = #tpu.dot_dimension_numbers<[1], [0], [0], [1], [0, 0, 1, 1], [], []>} : vector<16x144xbf16>, vector<144x256xbf16>, vector<16x256xf32> -> vector<16x256xf32>
    %87 = arith.addf %81, %86 : vector<16x256xf32>
    %c10 = arith.constant 10 : index
    %c0_90 = arith.constant 0 : index
    %c0_91 = arith.constant 0 : index
    %88 = vector.load %arg1[%c10, %c0_90, %c0_91] : memref<36x16x144xbf16, #tpu.memory_space<vmem>>, vector<1x16x144xbf16>
    %89 = vector.shape_cast %88 : vector<1x16x144xbf16> to vector<16x144xbf16>
    %c6_92 = arith.constant 6 : index
    %c0_93 = arith.constant 0 : index
    %c0_94 = arith.constant 0 : index
    %90 = vector.load %arg2[%c6_92, %c0_93, %c0_94] : memref<8x144x256xbf16, #tpu.memory_space<vmem>>, vector<1x144x256xbf16>
    %91 = vector.shape_cast %90 : vector<1x144x256xbf16> to vector<144x256xbf16>
    %cst_95 = arith.constant dense<0.000000e+00> : vector<16x256xf32>
    %92 = tpu.matmul %89, %91, %cst_95 {dimension_numbers = #tpu.dot_dimension_numbers<[1], [0], [0], [1], [0, 0, 1, 1], [], []>} : vector<16x144xbf16>, vector<144x256xbf16>, vector<16x256xf32> -> vector<16x256xf32>
    %93 = arith.addf %87, %92 : vector<16x256xf32>
    %c11 = arith.constant 11 : index
    %c0_96 = arith.constant 0 : index
    %c0_97 = arith.constant 0 : index
    %94 = vector.load %arg1[%c11, %c0_96, %c0_97] : memref<36x16x144xbf16, #tpu.memory_space<vmem>>, vector<1x16x144xbf16>
    %95 = vector.shape_cast %94 : vector<1x16x144xbf16> to vector<16x144xbf16>
    %c7_98 = arith.constant 7 : index
    %c0_99 = arith.constant 0 : index
    %c0_100 = arith.constant 0 : index
    %96 = vector.load %arg2[%c7_98, %c0_99, %c0_100] : memref<8x144x256xbf16, #tpu.memory_space<vmem>>, vector<1x144x256xbf16>
    %97 = vector.shape_cast %96 : vector<1x144x256xbf16> to vector<144x256xbf16>
    %cst_101 = arith.constant dense<0.000000e+00> : vector<16x256xf32>
    %98 = tpu.matmul %95, %97, %cst_101 {dimension_numbers = #tpu.dot_dimension_numbers<[1], [0], [0], [1], [0, 0, 1, 1], [], []>} : vector<16x144xbf16>, vector<144x256xbf16>, vector<16x256xf32> -> vector<16x256xf32>
    %99 = arith.addf %93, %98 : vector<16x256xf32>
    %100 = vector.broadcast %0 : vector<1x256xf32> to vector<16x256xf32>
    %101 = arith.addf %99, %100 : vector<16x256xf32>
    %cst_102 = arith.constant 0.000000e+00 : f32
    %102 = vector.broadcast %cst_102 : f32 to vector<16x256xf32>
    %103 = arith.maximumf %101, %102 : vector<16x256xf32>
    %104 = arith.truncf %103 : vector<16x256xf32> to vector<16x256xbf16>
    %c8_103 = arith.constant 8 : index
    %c0_104 = arith.constant 0 : index
    %c0_105 = arith.constant 0 : index
    %105 = vector.load %arg1[%c8_103, %c0_104, %c0_105] : memref<36x16x144xbf16, #tpu.memory_space<vmem>>, vector<1x16x144xbf16>
    %106 = vector.shape_cast %105 : vector<1x16x144xbf16> to vector<16x144xbf16>
    %c0_106 = arith.constant 0 : index
    %c0_107 = arith.constant 0 : index
    %c0_108 = arith.constant 0 : index
    %107 = vector.load %arg2[%c0_106, %c0_107, %c0_108] : memref<8x144x256xbf16, #tpu.memory_space<vmem>>, vector<1x144x256xbf16>
    %108 = vector.shape_cast %107 : vector<1x144x256xbf16> to vector<144x256xbf16>
    %cst_109 = arith.constant dense<0.000000e+00> : vector<16x256xf32>
    %109 = tpu.matmul %106, %108, %cst_109 {dimension_numbers = #tpu.dot_dimension_numbers<[1], [0], [0], [1], [0, 0, 1, 1], [], []>} : vector<16x144xbf16>, vector<144x256xbf16>, vector<16x256xf32> -> vector<16x256xf32>
    %c9_110 = arith.constant 9 : index
    %c0_111 = arith.constant 0 : index
    %c0_112 = arith.constant 0 : index
    %110 = vector.load %arg1[%c9_110, %c0_111, %c0_112] : memref<36x16x144xbf16, #tpu.memory_space<vmem>>, vector<1x16x144xbf16>
    %111 = vector.shape_cast %110 : vector<1x16x144xbf16> to vector<16x144xbf16>
    %c1_113 = arith.constant 1 : index
    %c0_114 = arith.constant 0 : index
    %c0_115 = arith.constant 0 : index
    %112 = vector.load %arg2[%c1_113, %c0_114, %c0_115] : memref<8x144x256xbf16, #tpu.memory_space<vmem>>, vector<1x144x256xbf16>
    %113 = vector.shape_cast %112 : vector<1x144x256xbf16> to vector<144x256xbf16>
    %cst_116 = arith.constant dense<0.000000e+00> : vector<16x256xf32>
    %114 = tpu.matmul %111, %113, %cst_116 {dimension_numbers = #tpu.dot_dimension_numbers<[1], [0], [0], [1], [0, 0, 1, 1], [], []>} : vector<16x144xbf16>, vector<144x256xbf16>, vector<16x256xf32> -> vector<16x256xf32>
    %115 = arith.addf %109, %114 : vector<16x256xf32>
    %c10_117 = arith.constant 10 : index
    %c0_118 = arith.constant 0 : index
    %c0_119 = arith.constant 0 : index
    %116 = vector.load %arg1[%c10_117, %c0_118, %c0_119] : memref<36x16x144xbf16, #tpu.memory_space<vmem>>, vector<1x16x144xbf16>
    %117 = vector.shape_cast %116 : vector<1x16x144xbf16> to vector<16x144xbf16>
    %c2_120 = arith.constant 2 : index
    %c0_121 = arith.constant 0 : index
    %c0_122 = arith.constant 0 : index
    %118 = vector.load %arg2[%c2_120, %c0_121, %c0_122] : memref<8x144x256xbf16, #tpu.memory_space<vmem>>, vector<1x144x256xbf16>
    %119 = vector.shape_cast %118 : vector<1x144x256xbf16> to vector<144x256xbf16>
    %cst_123 = arith.constant dense<0.000000e+00> : vector<16x256xf32>
    %120 = tpu.matmul %117, %119, %cst_123 {dimension_numbers = #tpu.dot_dimension_numbers<[1], [0], [0], [1], [0, 0, 1, 1], [], []>} : vector<16x144xbf16>, vector<144x256xbf16>, vector<16x256xf32> -> vector<16x256xf32>
    %121 = arith.addf %115, %120 : vector<16x256xf32>
    %c11_124 = arith.constant 11 : index
    %c0_125 = arith.constant 0 : index
    %c0_126 = arith.constant 0 : index
    %122 = vector.load %arg1[%c11_124, %c0_125, %c0_126] : memref<36x16x144xbf16, #tpu.memory_space<vmem>>, vector<1x16x144xbf16>
    %123 = vector.shape_cast %122 : vector<1x16x144xbf16> to vector<16x144xbf16>
    %c3_127 = arith.constant 3 : index
    %c0_128 = arith.constant 0 : index
    %c0_129 = arith.constant 0 : index
    %124 = vector.load %arg2[%c3_127, %c0_128, %c0_129] : memref<8x144x256xbf16, #tpu.memory_space<vmem>>, vector<1x144x256xbf16>
    %125 = vector.shape_cast %124 : vector<1x144x256xbf16> to vector<144x256xbf16>
    %cst_130 = arith.constant dense<0.000000e+00> : vector<16x256xf32>
    %126 = tpu.matmul %123, %125, %cst_130 {dimension_numbers = #tpu.dot_dimension_numbers<[1], [0], [0], [1], [0, 0, 1, 1], [], []>} : vector<16x144xbf16>, vector<144x256xbf16>, vector<16x256xf32> -> vector<16x256xf32>
    %127 = arith.addf %121, %126 : vector<16x256xf32>
    %c12 = arith.constant 12 : index
    %c0_131 = arith.constant 0 : index
    %c0_132 = arith.constant 0 : index
    %128 = vector.load %arg1[%c12, %c0_131, %c0_132] : memref<36x16x144xbf16, #tpu.memory_space<vmem>>, vector<1x16x144xbf16>
    %129 = vector.shape_cast %128 : vector<1x16x144xbf16> to vector<16x144xbf16>
    %c4_133 = arith.constant 4 : index
    %c0_134 = arith.constant 0 : index
    %c0_135 = arith.constant 0 : index
    %130 = vector.load %arg2[%c4_133, %c0_134, %c0_135] : memref<8x144x256xbf16, #tpu.memory_space<vmem>>, vector<1x144x256xbf16>
    %131 = vector.shape_cast %130 : vector<1x144x256xbf16> to vector<144x256xbf16>
    %cst_136 = arith.constant dense<0.000000e+00> : vector<16x256xf32>
    %132 = tpu.matmul %129, %131, %cst_136 {dimension_numbers = #tpu.dot_dimension_numbers<[1], [0], [0], [1], [0, 0, 1, 1], [], []>} : vector<16x144xbf16>, vector<144x256xbf16>, vector<16x256xf32> -> vector<16x256xf32>
    %133 = arith.addf %127, %132 : vector<16x256xf32>
    %c13 = arith.constant 13 : index
    %c0_137 = arith.constant 0 : index
    %c0_138 = arith.constant 0 : index
    %134 = vector.load %arg1[%c13, %c0_137, %c0_138] : memref<36x16x144xbf16, #tpu.memory_space<vmem>>, vector<1x16x144xbf16>
    %135 = vector.shape_cast %134 : vector<1x16x144xbf16> to vector<16x144xbf16>
    %c5_139 = arith.constant 5 : index
    %c0_140 = arith.constant 0 : index
    %c0_141 = arith.constant 0 : index
    %136 = vector.load %arg2[%c5_139, %c0_140, %c0_141] : memref<8x144x256xbf16, #tpu.memory_space<vmem>>, vector<1x144x256xbf16>
    %137 = vector.shape_cast %136 : vector<1x144x256xbf16> to vector<144x256xbf16>
    %cst_142 = arith.constant dense<0.000000e+00> : vector<16x256xf32>
    %138 = tpu.matmul %135, %137, %cst_142 {dimension_numbers = #tpu.dot_dimension_numbers<[1], [0], [0], [1], [0, 0, 1, 1], [], []>} : vector<16x144xbf16>, vector<144x256xbf16>, vector<16x256xf32> -> vector<16x256xf32>
    %139 = arith.addf %133, %138 : vector<16x256xf32>
    %c14 = arith.constant 14 : index
    %c0_143 = arith.constant 0 : index
    %c0_144 = arith.constant 0 : index
    %140 = vector.load %arg1[%c14, %c0_143, %c0_144] : memref<36x16x144xbf16, #tpu.memory_space<vmem>>, vector<1x16x144xbf16>
    %141 = vector.shape_cast %140 : vector<1x16x144xbf16> to vector<16x144xbf16>
    %c6_145 = arith.constant 6 : index
    %c0_146 = arith.constant 0 : index
    %c0_147 = arith.constant 0 : index
    %142 = vector.load %arg2[%c6_145, %c0_146, %c0_147] : memref<8x144x256xbf16, #tpu.memory_space<vmem>>, vector<1x144x256xbf16>
    %143 = vector.shape_cast %142 : vector<1x144x256xbf16> to vector<144x256xbf16>
    %cst_148 = arith.constant dense<0.000000e+00> : vector<16x256xf32>
    %144 = tpu.matmul %141, %143, %cst_148 {dimension_numbers = #tpu.dot_dimension_numbers<[1], [0], [0], [1], [0, 0, 1, 1], [], []>} : vector<16x144xbf16>, vector<144x256xbf16>, vector<16x256xf32> -> vector<16x256xf32>
    %145 = arith.addf %139, %144 : vector<16x256xf32>
    %c15 = arith.constant 15 : index
    %c0_149 = arith.constant 0 : index
    %c0_150 = arith.constant 0 : index
    %146 = vector.load %arg1[%c15, %c0_149, %c0_150] : memref<36x16x144xbf16, #tpu.memory_space<vmem>>, vector<1x16x144xbf16>
    %147 = vector.shape_cast %146 : vector<1x16x144xbf16> to vector<16x144xbf16>
    %c7_151 = arith.constant 7 : index
    %c0_152 = arith.constant 0 : index
    %c0_153 = arith.constant 0 : index
    %148 = vector.load %arg2[%c7_151, %c0_152, %c0_153] : memref<8x144x256xbf16, #tpu.memory_space<vmem>>, vector<1x144x256xbf16>
    %149 = vector.shape_cast %148 : vector<1x144x256xbf16> to vector<144x256xbf16>
    %cst_154 = arith.constant dense<0.000000e+00> : vector<16x256xf32>
    %150 = tpu.matmul %147, %149, %cst_154 {dimension_numbers = #tpu.dot_dimension_numbers<[1], [0], [0], [1], [0, 0, 1, 1], [], []>} : vector<16x144xbf16>, vector<144x256xbf16>, vector<16x256xf32> -> vector<16x256xf32>
    %151 = arith.addf %145, %150 : vector<16x256xf32>
    %152 = vector.broadcast %0 : vector<1x256xf32> to vector<16x256xf32>
    %153 = arith.addf %151, %152 : vector<16x256xf32>
    %cst_155 = arith.constant 0.000000e+00 : f32
    %154 = vector.broadcast %cst_155 : f32 to vector<16x256xf32>
    %155 = arith.maximumf %153, %154 : vector<16x256xf32>
    %156 = arith.truncf %155 : vector<16x256xf32> to vector<16x256xbf16>
    %c12_156 = arith.constant 12 : index
    %c0_157 = arith.constant 0 : index
    %c0_158 = arith.constant 0 : index
    %157 = vector.load %arg1[%c12_156, %c0_157, %c0_158] : memref<36x16x144xbf16, #tpu.memory_space<vmem>>, vector<1x16x144xbf16>
    %158 = vector.shape_cast %157 : vector<1x16x144xbf16> to vector<16x144xbf16>
    %c0_159 = arith.constant 0 : index
    %c0_160 = arith.constant 0 : index
    %c0_161 = arith.constant 0 : index
    %159 = vector.load %arg2[%c0_159, %c0_160, %c0_161] : memref<8x144x256xbf16, #tpu.memory_space<vmem>>, vector<1x144x256xbf16>
    %160 = vector.shape_cast %159 : vector<1x144x256xbf16> to vector<144x256xbf16>
    %cst_162 = arith.constant dense<0.000000e+00> : vector<16x256xf32>
    %161 = tpu.matmul %158, %160, %cst_162 {dimension_numbers = #tpu.dot_dimension_numbers<[1], [0], [0], [1], [0, 0, 1, 1], [], []>} : vector<16x144xbf16>, vector<144x256xbf16>, vector<16x256xf32> -> vector<16x256xf32>
    %c13_163 = arith.constant 13 : index
    %c0_164 = arith.constant 0 : index
    %c0_165 = arith.constant 0 : index
    %162 = vector.load %arg1[%c13_163, %c0_164, %c0_165] : memref<36x16x144xbf16, #tpu.memory_space<vmem>>, vector<1x16x144xbf16>
    %163 = vector.shape_cast %162 : vector<1x16x144xbf16> to vector<16x144xbf16>
    %c1_166 = arith.constant 1 : index
    %c0_167 = arith.constant 0 : index
    %c0_168 = arith.constant 0 : index
    %164 = vector.load %arg2[%c1_166, %c0_167, %c0_168] : memref<8x144x256xbf16, #tpu.memory_space<vmem>>, vector<1x144x256xbf16>
    %165 = vector.shape_cast %164 : vector<1x144x256xbf16> to vector<144x256xbf16>
    %cst_169 = arith.constant dense<0.000000e+00> : vector<16x256xf32>
    %166 = tpu.matmul %163, %165, %cst_169 {dimension_numbers = #tpu.dot_dimension_numbers<[1], [0], [0], [1], [0, 0, 1, 1], [], []>} : vector<16x144xbf16>, vector<144x256xbf16>, vector<16x256xf32> -> vector<16x256xf32>
    %167 = arith.addf %161, %166 : vector<16x256xf32>
    %c14_170 = arith.constant 14 : index
    %c0_171 = arith.constant 0 : index
    %c0_172 = arith.constant 0 : index
    %168 = vector.load %arg1[%c14_170, %c0_171, %c0_172] : memref<36x16x144xbf16, #tpu.memory_space<vmem>>, vector<1x16x144xbf16>
    %169 = vector.shape_cast %168 : vector<1x16x144xbf16> to vector<16x144xbf16>
    %c2_173 = arith.constant 2 : index
    %c0_174 = arith.constant 0 : index
    %c0_175 = arith.constant 0 : index
    %170 = vector.load %arg2[%c2_173, %c0_174, %c0_175] : memref<8x144x256xbf16, #tpu.memory_space<vmem>>, vector<1x144x256xbf16>
    %171 = vector.shape_cast %170 : vector<1x144x256xbf16> to vector<144x256xbf16>
    %cst_176 = arith.constant dense<0.000000e+00> : vector<16x256xf32>
    %172 = tpu.matmul %169, %171, %cst_176 {dimension_numbers = #tpu.dot_dimension_numbers<[1], [0], [0], [1], [0, 0, 1, 1], [], []>} : vector<16x144xbf16>, vector<144x256xbf16>, vector<16x256xf32> -> vector<16x256xf32>
    %173 = arith.addf %167, %172 : vector<16x256xf32>
    %c15_177 = arith.constant 15 : index
    %c0_178 = arith.constant 0 : index
    %c0_179 = arith.constant 0 : index
    %174 = vector.load %arg1[%c15_177, %c0_178, %c0_179] : memref<36x16x144xbf16, #tpu.memory_space<vmem>>, vector<1x16x144xbf16>
    %175 = vector.shape_cast %174 : vector<1x16x144xbf16> to vector<16x144xbf16>
    %c3_180 = arith.constant 3 : index
    %c0_181 = arith.constant 0 : index
    %c0_182 = arith.constant 0 : index
    %176 = vector.load %arg2[%c3_180, %c0_181, %c0_182] : memref<8x144x256xbf16, #tpu.memory_space<vmem>>, vector<1x144x256xbf16>
    %177 = vector.shape_cast %176 : vector<1x144x256xbf16> to vector<144x256xbf16>
    %cst_183 = arith.constant dense<0.000000e+00> : vector<16x256xf32>
    %178 = tpu.matmul %175, %177, %cst_183 {dimension_numbers = #tpu.dot_dimension_numbers<[1], [0], [0], [1], [0, 0, 1, 1], [], []>} : vector<16x144xbf16>, vector<144x256xbf16>, vector<16x256xf32> -> vector<16x256xf32>
    %179 = arith.addf %173, %178 : vector<16x256xf32>
    %c16 = arith.constant 16 : index
    %c0_184 = arith.constant 0 : index
    %c0_185 = arith.constant 0 : index
    %180 = vector.load %arg1[%c16, %c0_184, %c0_185] : memref<36x16x144xbf16, #tpu.memory_space<vmem>>, vector<1x16x144xbf16>
    %181 = vector.shape_cast %180 : vector<1x16x144xbf16> to vector<16x144xbf16>
    %c4_186 = arith.constant 4 : index
    %c0_187 = arith.constant 0 : index
    %c0_188 = arith.constant 0 : index
    %182 = vector.load %arg2[%c4_186, %c0_187, %c0_188] : memref<8x144x256xbf16, #tpu.memory_space<vmem>>, vector<1x144x256xbf16>
    %183 = vector.shape_cast %182 : vector<1x144x256xbf16> to vector<144x256xbf16>
    %cst_189 = arith.constant dense<0.000000e+00> : vector<16x256xf32>
    %184 = tpu.matmul %181, %183, %cst_189 {dimension_numbers = #tpu.dot_dimension_numbers<[1], [0], [0], [1], [0, 0, 1, 1], [], []>} : vector<16x144xbf16>, vector<144x256xbf16>, vector<16x256xf32> -> vector<16x256xf32>
    %185 = arith.addf %179, %184 : vector<16x256xf32>
    %c17 = arith.constant 17 : index
    %c0_190 = arith.constant 0 : index
    %c0_191 = arith.constant 0 : index
    %186 = vector.load %arg1[%c17, %c0_190, %c0_191] : memref<36x16x144xbf16, #tpu.memory_space<vmem>>, vector<1x16x144xbf16>
    %187 = vector.shape_cast %186 : vector<1x16x144xbf16> to vector<16x144xbf16>
    %c5_192 = arith.constant 5 : index
    %c0_193 = arith.constant 0 : index
    %c0_194 = arith.constant 0 : index
    %188 = vector.load %arg2[%c5_192, %c0_193, %c0_194] : memref<8x144x256xbf16, #tpu.memory_space<vmem>>, vector<1x144x256xbf16>
    %189 = vector.shape_cast %188 : vector<1x144x256xbf16> to vector<144x256xbf16>
    %cst_195 = arith.constant dense<0.000000e+00> : vector<16x256xf32>
    %190 = tpu.matmul %187, %189, %cst_195 {dimension_numbers = #tpu.dot_dimension_numbers<[1], [0], [0], [1], [0, 0, 1, 1], [], []>} : vector<16x144xbf16>, vector<144x256xbf16>, vector<16x256xf32> -> vector<16x256xf32>
    %191 = arith.addf %185, %190 : vector<16x256xf32>
    %c18 = arith.constant 18 : index
    %c0_196 = arith.constant 0 : index
    %c0_197 = arith.constant 0 : index
    %192 = vector.load %arg1[%c18, %c0_196, %c0_197] : memref<36x16x144xbf16, #tpu.memory_space<vmem>>, vector<1x16x144xbf16>
    %193 = vector.shape_cast %192 : vector<1x16x144xbf16> to vector<16x144xbf16>
    %c6_198 = arith.constant 6 : index
    %c0_199 = arith.constant 0 : index
    %c0_200 = arith.constant 0 : index
    %194 = vector.load %arg2[%c6_198, %c0_199, %c0_200] : memref<8x144x256xbf16, #tpu.memory_space<vmem>>, vector<1x144x256xbf16>
    %195 = vector.shape_cast %194 : vector<1x144x256xbf16> to vector<144x256xbf16>
    %cst_201 = arith.constant dense<0.000000e+00> : vector<16x256xf32>
    %196 = tpu.matmul %193, %195, %cst_201 {dimension_numbers = #tpu.dot_dimension_numbers<[1], [0], [0], [1], [0, 0, 1, 1], [], []>} : vector<16x144xbf16>, vector<144x256xbf16>, vector<16x256xf32> -> vector<16x256xf32>
    %197 = arith.addf %191, %196 : vector<16x256xf32>
    %c19 = arith.constant 19 : index
    %c0_202 = arith.constant 0 : index
    %c0_203 = arith.constant 0 : index
    %198 = vector.load %arg1[%c19, %c0_202, %c0_203] : memref<36x16x144xbf16, #tpu.memory_space<vmem>>, vector<1x16x144xbf16>
    %199 = vector.shape_cast %198 : vector<1x16x144xbf16> to vector<16x144xbf16>
    %c7_204 = arith.constant 7 : index
    %c0_205 = arith.constant 0 : index
    %c0_206 = arith.constant 0 : index
    %200 = vector.load %arg2[%c7_204, %c0_205, %c0_206] : memref<8x144x256xbf16, #tpu.memory_space<vmem>>, vector<1x144x256xbf16>
    %201 = vector.shape_cast %200 : vector<1x144x256xbf16> to vector<144x256xbf16>
    %cst_207 = arith.constant dense<0.000000e+00> : vector<16x256xf32>
    %202 = tpu.matmul %199, %201, %cst_207 {dimension_numbers = #tpu.dot_dimension_numbers<[1], [0], [0], [1], [0, 0, 1, 1], [], []>} : vector<16x144xbf16>, vector<144x256xbf16>, vector<16x256xf32> -> vector<16x256xf32>
    %203 = arith.addf %197, %202 : vector<16x256xf32>
    %204 = vector.broadcast %0 : vector<1x256xf32> to vector<16x256xf32>
    %205 = arith.addf %203, %204 : vector<16x256xf32>
    %cst_208 = arith.constant 0.000000e+00 : f32
    %206 = vector.broadcast %cst_208 : f32 to vector<16x256xf32>
    %207 = arith.maximumf %205, %206 : vector<16x256xf32>
    %208 = arith.truncf %207 : vector<16x256xf32> to vector<16x256xbf16>
    %c16_209 = arith.constant 16 : index
    %c0_210 = arith.constant 0 : index
    %c0_211 = arith.constant 0 : index
    %209 = vector.load %arg1[%c16_209, %c0_210, %c0_211] : memref<36x16x144xbf16, #tpu.memory_space<vmem>>, vector<1x16x144xbf16>
    %210 = vector.shape_cast %209 : vector<1x16x144xbf16> to vector<16x144xbf16>
    %c0_212 = arith.constant 0 : index
    %c0_213 = arith.constant 0 : index
    %c0_214 = arith.constant 0 : index
    %211 = vector.load %arg2[%c0_212, %c0_213, %c0_214] : memref<8x144x256xbf16, #tpu.memory_space<vmem>>, vector<1x144x256xbf16>
    %212 = vector.shape_cast %211 : vector<1x144x256xbf16> to vector<144x256xbf16>
    %cst_215 = arith.constant dense<0.000000e+00> : vector<16x256xf32>
    %213 = tpu.matmul %210, %212, %cst_215 {dimension_numbers = #tpu.dot_dimension_numbers<[1], [0], [0], [1], [0, 0, 1, 1], [], []>} : vector<16x144xbf16>, vector<144x256xbf16>, vector<16x256xf32> -> vector<16x256xf32>
    %c17_216 = arith.constant 17 : index
    %c0_217 = arith.constant 0 : index
    %c0_218 = arith.constant 0 : index
    %214 = vector.load %arg1[%c17_216, %c0_217, %c0_218] : memref<36x16x144xbf16, #tpu.memory_space<vmem>>, vector<1x16x144xbf16>
    %215 = vector.shape_cast %214 : vector<1x16x144xbf16> to vector<16x144xbf16>
    %c1_219 = arith.constant 1 : index
    %c0_220 = arith.constant 0 : index
    %c0_221 = arith.constant 0 : index
    %216 = vector.load %arg2[%c1_219, %c0_220, %c0_221] : memref<8x144x256xbf16, #tpu.memory_space<vmem>>, vector<1x144x256xbf16>
    %217 = vector.shape_cast %216 : vector<1x144x256xbf16> to vector<144x256xbf16>
    %cst_222 = arith.constant dense<0.000000e+00> : vector<16x256xf32>
    %218 = tpu.matmul %215, %217, %cst_222 {dimension_numbers = #tpu.dot_dimension_numbers<[1], [0], [0], [1], [0, 0, 1, 1], [], []>} : vector<16x144xbf16>, vector<144x256xbf16>, vector<16x256xf32> -> vector<16x256xf32>
    %219 = arith.addf %213, %218 : vector<16x256xf32>
    %c18_223 = arith.constant 18 : index
    %c0_224 = arith.constant 0 : index
    %c0_225 = arith.constant 0 : index
    %220 = vector.load %arg1[%c18_223, %c0_224, %c0_225] : memref<36x16x144xbf16, #tpu.memory_space<vmem>>, vector<1x16x144xbf16>
    %221 = vector.shape_cast %220 : vector<1x16x144xbf16> to vector<16x144xbf16>
    %c2_226 = arith.constant 2 : index
    %c0_227 = arith.constant 0 : index
    %c0_228 = arith.constant 0 : index
    %222 = vector.load %arg2[%c2_226, %c0_227, %c0_228] : memref<8x144x256xbf16, #tpu.memory_space<vmem>>, vector<1x144x256xbf16>
    %223 = vector.shape_cast %222 : vector<1x144x256xbf16> to vector<144x256xbf16>
    %cst_229 = arith.constant dense<0.000000e+00> : vector<16x256xf32>
    %224 = tpu.matmul %221, %223, %cst_229 {dimension_numbers = #tpu.dot_dimension_numbers<[1], [0], [0], [1], [0, 0, 1, 1], [], []>} : vector<16x144xbf16>, vector<144x256xbf16>, vector<16x256xf32> -> vector<16x256xf32>
    %225 = arith.addf %219, %224 : vector<16x256xf32>
    %c19_230 = arith.constant 19 : index
    %c0_231 = arith.constant 0 : index
    %c0_232 = arith.constant 0 : index
    %226 = vector.load %arg1[%c19_230, %c0_231, %c0_232] : memref<36x16x144xbf16, #tpu.memory_space<vmem>>, vector<1x16x144xbf16>
    %227 = vector.shape_cast %226 : vector<1x16x144xbf16> to vector<16x144xbf16>
    %c3_233 = arith.constant 3 : index
    %c0_234 = arith.constant 0 : index
    %c0_235 = arith.constant 0 : index
    %228 = vector.load %arg2[%c3_233, %c0_234, %c0_235] : memref<8x144x256xbf16, #tpu.memory_space<vmem>>, vector<1x144x256xbf16>
    %229 = vector.shape_cast %228 : vector<1x144x256xbf16> to vector<144x256xbf16>
    %cst_236 = arith.constant dense<0.000000e+00> : vector<16x256xf32>
    %230 = tpu.matmul %227, %229, %cst_236 {dimension_numbers = #tpu.dot_dimension_numbers<[1], [0], [0], [1], [0, 0, 1, 1], [], []>} : vector<16x144xbf16>, vector<144x256xbf16>, vector<16x256xf32> -> vector<16x256xf32>
    %231 = arith.addf %225, %230 : vector<16x256xf32>
    %c20 = arith.constant 20 : index
    %c0_237 = arith.constant 0 : index
    %c0_238 = arith.constant 0 : index
    %232 = vector.load %arg1[%c20, %c0_237, %c0_238] : memref<36x16x144xbf16, #tpu.memory_space<vmem>>, vector<1x16x144xbf16>
    %233 = vector.shape_cast %232 : vector<1x16x144xbf16> to vector<16x144xbf16>
    %c4_239 = arith.constant 4 : index
    %c0_240 = arith.constant 0 : index
    %c0_241 = arith.constant 0 : index
    %234 = vector.load %arg2[%c4_239, %c0_240, %c0_241] : memref<8x144x256xbf16, #tpu.memory_space<vmem>>, vector<1x144x256xbf16>
    %235 = vector.shape_cast %234 : vector<1x144x256xbf16> to vector<144x256xbf16>
    %cst_242 = arith.constant dense<0.000000e+00> : vector<16x256xf32>
    %236 = tpu.matmul %233, %235, %cst_242 {dimension_numbers = #tpu.dot_dimension_numbers<[1], [0], [0], [1], [0, 0, 1, 1], [], []>} : vector<16x144xbf16>, vector<144x256xbf16>, vector<16x256xf32> -> vector<16x256xf32>
    %237 = arith.addf %231, %236 : vector<16x256xf32>
    %c21 = arith.constant 21 : index
    %c0_243 = arith.constant 0 : index
    %c0_244 = arith.constant 0 : index
    %238 = vector.load %arg1[%c21, %c0_243, %c0_244] : memref<36x16x144xbf16, #tpu.memory_space<vmem>>, vector<1x16x144xbf16>
    %239 = vector.shape_cast %238 : vector<1x16x144xbf16> to vector<16x144xbf16>
    %c5_245 = arith.constant 5 : index
    %c0_246 = arith.constant 0 : index
    %c0_247 = arith.constant 0 : index
    %240 = vector.load %arg2[%c5_245, %c0_246, %c0_247] : memref<8x144x256xbf16, #tpu.memory_space<vmem>>, vector<1x144x256xbf16>
    %241 = vector.shape_cast %240 : vector<1x144x256xbf16> to vector<144x256xbf16>
    %cst_248 = arith.constant dense<0.000000e+00> : vector<16x256xf32>
    %242 = tpu.matmul %239, %241, %cst_248 {dimension_numbers = #tpu.dot_dimension_numbers<[1], [0], [0], [1], [0, 0, 1, 1], [], []>} : vector<16x144xbf16>, vector<144x256xbf16>, vector<16x256xf32> -> vector<16x256xf32>
    %243 = arith.addf %237, %242 : vector<16x256xf32>
    %c22 = arith.constant 22 : index
    %c0_249 = arith.constant 0 : index
    %c0_250 = arith.constant 0 : index
    %244 = vector.load %arg1[%c22, %c0_249, %c0_250] : memref<36x16x144xbf16, #tpu.memory_space<vmem>>, vector<1x16x144xbf16>
    %245 = vector.shape_cast %244 : vector<1x16x144xbf16> to vector<16x144xbf16>
    %c6_251 = arith.constant 6 : index
    %c0_252 = arith.constant 0 : index
    %c0_253 = arith.constant 0 : index
    %246 = vector.load %arg2[%c6_251, %c0_252, %c0_253] : memref<8x144x256xbf16, #tpu.memory_space<vmem>>, vector<1x144x256xbf16>
    %247 = vector.shape_cast %246 : vector<1x144x256xbf16> to vector<144x256xbf16>
    %cst_254 = arith.constant dense<0.000000e+00> : vector<16x256xf32>
    %248 = tpu.matmul %245, %247, %cst_254 {dimension_numbers = #tpu.dot_dimension_numbers<[1], [0], [0], [1], [0, 0, 1, 1], [], []>} : vector<16x144xbf16>, vector<144x256xbf16>, vector<16x256xf32> -> vector<16x256xf32>
    %249 = arith.addf %243, %248 : vector<16x256xf32>
    %c23 = arith.constant 23 : index
    %c0_255 = arith.constant 0 : index
    %c0_256 = arith.constant 0 : index
    %250 = vector.load %arg1[%c23, %c0_255, %c0_256] : memref<36x16x144xbf16, #tpu.memory_space<vmem>>, vector<1x16x144xbf16>
    %251 = vector.shape_cast %250 : vector<1x16x144xbf16> to vector<16x144xbf16>
    %c7_257 = arith.constant 7 : index
    %c0_258 = arith.constant 0 : index
    %c0_259 = arith.constant 0 : index
    %252 = vector.load %arg2[%c7_257, %c0_258, %c0_259] : memref<8x144x256xbf16, #tpu.memory_space<vmem>>, vector<1x144x256xbf16>
    %253 = vector.shape_cast %252 : vector<1x144x256xbf16> to vector<144x256xbf16>
    %cst_260 = arith.constant dense<0.000000e+00> : vector<16x256xf32>
    %254 = tpu.matmul %251, %253, %cst_260 {dimension_numbers = #tpu.dot_dimension_numbers<[1], [0], [0], [1], [0, 0, 1, 1], [], []>} : vector<16x144xbf16>, vector<144x256xbf16>, vector<16x256xf32> -> vector<16x256xf32>
    %255 = arith.addf %249, %254 : vector<16x256xf32>
    %256 = vector.broadcast %0 : vector<1x256xf32> to vector<16x256xf32>
    %257 = arith.addf %255, %256 : vector<16x256xf32>
    %cst_261 = arith.constant 0.000000e+00 : f32
    %258 = vector.broadcast %cst_261 : f32 to vector<16x256xf32>
    %259 = arith.maximumf %257, %258 : vector<16x256xf32>
    %260 = arith.truncf %259 : vector<16x256xf32> to vector<16x256xbf16>
    %c20_262 = arith.constant 20 : index
    %c0_263 = arith.constant 0 : index
    %c0_264 = arith.constant 0 : index
    %261 = vector.load %arg1[%c20_262, %c0_263, %c0_264] : memref<36x16x144xbf16, #tpu.memory_space<vmem>>, vector<1x16x144xbf16>
    %262 = vector.shape_cast %261 : vector<1x16x144xbf16> to vector<16x144xbf16>
    %c0_265 = arith.constant 0 : index
    %c0_266 = arith.constant 0 : index
    %c0_267 = arith.constant 0 : index
    %263 = vector.load %arg2[%c0_265, %c0_266, %c0_267] : memref<8x144x256xbf16, #tpu.memory_space<vmem>>, vector<1x144x256xbf16>
    %264 = vector.shape_cast %263 : vector<1x144x256xbf16> to vector<144x256xbf16>
    %cst_268 = arith.constant dense<0.000000e+00> : vector<16x256xf32>
    %265 = tpu.matmul %262, %264, %cst_268 {dimension_numbers = #tpu.dot_dimension_numbers<[1], [0], [0], [1], [0, 0, 1, 1], [], []>} : vector<16x144xbf16>, vector<144x256xbf16>, vector<16x256xf32> -> vector<16x256xf32>
    %c21_269 = arith.constant 21 : index
    %c0_270 = arith.constant 0 : index
    %c0_271 = arith.constant 0 : index
    %266 = vector.load %arg1[%c21_269, %c0_270, %c0_271] : memref<36x16x144xbf16, #tpu.memory_space<vmem>>, vector<1x16x144xbf16>
    %267 = vector.shape_cast %266 : vector<1x16x144xbf16> to vector<16x144xbf16>
    %c1_272 = arith.constant 1 : index
    %c0_273 = arith.constant 0 : index
    %c0_274 = arith.constant 0 : index
    %268 = vector.load %arg2[%c1_272, %c0_273, %c0_274] : memref<8x144x256xbf16, #tpu.memory_space<vmem>>, vector<1x144x256xbf16>
    %269 = vector.shape_cast %268 : vector<1x144x256xbf16> to vector<144x256xbf16>
    %cst_275 = arith.constant dense<0.000000e+00> : vector<16x256xf32>
    %270 = tpu.matmul %267, %269, %cst_275 {dimension_numbers = #tpu.dot_dimension_numbers<[1], [0], [0], [1], [0, 0, 1, 1], [], []>} : vector<16x144xbf16>, vector<144x256xbf16>, vector<16x256xf32> -> vector<16x256xf32>
    %271 = arith.addf %265, %270 : vector<16x256xf32>
    %c22_276 = arith.constant 22 : index
    %c0_277 = arith.constant 0 : index
    %c0_278 = arith.constant 0 : index
    %272 = vector.load %arg1[%c22_276, %c0_277, %c0_278] : memref<36x16x144xbf16, #tpu.memory_space<vmem>>, vector<1x16x144xbf16>
    %273 = vector.shape_cast %272 : vector<1x16x144xbf16> to vector<16x144xbf16>
    %c2_279 = arith.constant 2 : index
    %c0_280 = arith.constant 0 : index
    %c0_281 = arith.constant 0 : index
    %274 = vector.load %arg2[%c2_279, %c0_280, %c0_281] : memref<8x144x256xbf16, #tpu.memory_space<vmem>>, vector<1x144x256xbf16>
    %275 = vector.shape_cast %274 : vector<1x144x256xbf16> to vector<144x256xbf16>
    %cst_282 = arith.constant dense<0.000000e+00> : vector<16x256xf32>
    %276 = tpu.matmul %273, %275, %cst_282 {dimension_numbers = #tpu.dot_dimension_numbers<[1], [0], [0], [1], [0, 0, 1, 1], [], []>} : vector<16x144xbf16>, vector<144x256xbf16>, vector<16x256xf32> -> vector<16x256xf32>
    %277 = arith.addf %271, %276 : vector<16x256xf32>
    %c23_283 = arith.constant 23 : index
    %c0_284 = arith.constant 0 : index
    %c0_285 = arith.constant 0 : index
    %278 = vector.load %arg1[%c23_283, %c0_284, %c0_285] : memref<36x16x144xbf16, #tpu.memory_space<vmem>>, vector<1x16x144xbf16>
    %279 = vector.shape_cast %278 : vector<1x16x144xbf16> to vector<16x144xbf16>
    %c3_286 = arith.constant 3 : index
    %c0_287 = arith.constant 0 : index
    %c0_288 = arith.constant 0 : index
    %280 = vector.load %arg2[%c3_286, %c0_287, %c0_288] : memref<8x144x256xbf16, #tpu.memory_space<vmem>>, vector<1x144x256xbf16>
    %281 = vector.shape_cast %280 : vector<1x144x256xbf16> to vector<144x256xbf16>
    %cst_289 = arith.constant dense<0.000000e+00> : vector<16x256xf32>
    %282 = tpu.matmul %279, %281, %cst_289 {dimension_numbers = #tpu.dot_dimension_numbers<[1], [0], [0], [1], [0, 0, 1, 1], [], []>} : vector<16x144xbf16>, vector<144x256xbf16>, vector<16x256xf32> -> vector<16x256xf32>
    %283 = arith.addf %277, %282 : vector<16x256xf32>
    %c24 = arith.constant 24 : index
    %c0_290 = arith.constant 0 : index
    %c0_291 = arith.constant 0 : index
    %284 = vector.load %arg1[%c24, %c0_290, %c0_291] : memref<36x16x144xbf16, #tpu.memory_space<vmem>>, vector<1x16x144xbf16>
    %285 = vector.shape_cast %284 : vector<1x16x144xbf16> to vector<16x144xbf16>
    %c4_292 = arith.constant 4 : index
    %c0_293 = arith.constant 0 : index
    %c0_294 = arith.constant 0 : index
    %286 = vector.load %arg2[%c4_292, %c0_293, %c0_294] : memref<8x144x256xbf16, #tpu.memory_space<vmem>>, vector<1x144x256xbf16>
    %287 = vector.shape_cast %286 : vector<1x144x256xbf16> to vector<144x256xbf16>
    %cst_295 = arith.constant dense<0.000000e+00> : vector<16x256xf32>
    %288 = tpu.matmul %285, %287, %cst_295 {dimension_numbers = #tpu.dot_dimension_numbers<[1], [0], [0], [1], [0, 0, 1, 1], [], []>} : vector<16x144xbf16>, vector<144x256xbf16>, vector<16x256xf32> -> vector<16x256xf32>
    %289 = arith.addf %283, %288 : vector<16x256xf32>
    %c25 = arith.constant 25 : index
    %c0_296 = arith.constant 0 : index
    %c0_297 = arith.constant 0 : index
    %290 = vector.load %arg1[%c25, %c0_296, %c0_297] : memref<36x16x144xbf16, #tpu.memory_space<vmem>>, vector<1x16x144xbf16>
    %291 = vector.shape_cast %290 : vector<1x16x144xbf16> to vector<16x144xbf16>
    %c5_298 = arith.constant 5 : index
    %c0_299 = arith.constant 0 : index
    %c0_300 = arith.constant 0 : index
    %292 = vector.load %arg2[%c5_298, %c0_299, %c0_300] : memref<8x144x256xbf16, #tpu.memory_space<vmem>>, vector<1x144x256xbf16>
    %293 = vector.shape_cast %292 : vector<1x144x256xbf16> to vector<144x256xbf16>
    %cst_301 = arith.constant dense<0.000000e+00> : vector<16x256xf32>
    %294 = tpu.matmul %291, %293, %cst_301 {dimension_numbers = #tpu.dot_dimension_numbers<[1], [0], [0], [1], [0, 0, 1, 1], [], []>} : vector<16x144xbf16>, vector<144x256xbf16>, vector<16x256xf32> -> vector<16x256xf32>
    %295 = arith.addf %289, %294 : vector<16x256xf32>
    %c26 = arith.constant 26 : index
    %c0_302 = arith.constant 0 : index
    %c0_303 = arith.constant 0 : index
    %296 = vector.load %arg1[%c26, %c0_302, %c0_303] : memref<36x16x144xbf16, #tpu.memory_space<vmem>>, vector<1x16x144xbf16>
    %297 = vector.shape_cast %296 : vector<1x16x144xbf16> to vector<16x144xbf16>
    %c6_304 = arith.constant 6 : index
    %c0_305 = arith.constant 0 : index
    %c0_306 = arith.constant 0 : index
    %298 = vector.load %arg2[%c6_304, %c0_305, %c0_306] : memref<8x144x256xbf16, #tpu.memory_space<vmem>>, vector<1x144x256xbf16>
    %299 = vector.shape_cast %298 : vector<1x144x256xbf16> to vector<144x256xbf16>
    %cst_307 = arith.constant dense<0.000000e+00> : vector<16x256xf32>
    %300 = tpu.matmul %297, %299, %cst_307 {dimension_numbers = #tpu.dot_dimension_numbers<[1], [0], [0], [1], [0, 0, 1, 1], [], []>} : vector<16x144xbf16>, vector<144x256xbf16>, vector<16x256xf32> -> vector<16x256xf32>
    %301 = arith.addf %295, %300 : vector<16x256xf32>
    %c27 = arith.constant 27 : index
    %c0_308 = arith.constant 0 : index
    %c0_309 = arith.constant 0 : index
    %302 = vector.load %arg1[%c27, %c0_308, %c0_309] : memref<36x16x144xbf16, #tpu.memory_space<vmem>>, vector<1x16x144xbf16>
    %303 = vector.shape_cast %302 : vector<1x16x144xbf16> to vector<16x144xbf16>
    %c7_310 = arith.constant 7 : index
    %c0_311 = arith.constant 0 : index
    %c0_312 = arith.constant 0 : index
    %304 = vector.load %arg2[%c7_310, %c0_311, %c0_312] : memref<8x144x256xbf16, #tpu.memory_space<vmem>>, vector<1x144x256xbf16>
    %305 = vector.shape_cast %304 : vector<1x144x256xbf16> to vector<144x256xbf16>
    %cst_313 = arith.constant dense<0.000000e+00> : vector<16x256xf32>
    %306 = tpu.matmul %303, %305, %cst_313 {dimension_numbers = #tpu.dot_dimension_numbers<[1], [0], [0], [1], [0, 0, 1, 1], [], []>} : vector<16x144xbf16>, vector<144x256xbf16>, vector<16x256xf32> -> vector<16x256xf32>
    %307 = arith.addf %301, %306 : vector<16x256xf32>
    %308 = vector.broadcast %0 : vector<1x256xf32> to vector<16x256xf32>
    %309 = arith.addf %307, %308 : vector<16x256xf32>
    %cst_314 = arith.constant 0.000000e+00 : f32
    %310 = vector.broadcast %cst_314 : f32 to vector<16x256xf32>
    %311 = arith.maximumf %309, %310 : vector<16x256xf32>
    %312 = arith.truncf %311 : vector<16x256xf32> to vector<16x256xbf16>
    %c24_315 = arith.constant 24 : index
    %c0_316 = arith.constant 0 : index
    %c0_317 = arith.constant 0 : index
    %313 = vector.load %arg1[%c24_315, %c0_316, %c0_317] : memref<36x16x144xbf16, #tpu.memory_space<vmem>>, vector<1x16x144xbf16>
    %314 = vector.shape_cast %313 : vector<1x16x144xbf16> to vector<16x144xbf16>
    %c0_318 = arith.constant 0 : index
    %c0_319 = arith.constant 0 : index
    %c0_320 = arith.constant 0 : index
    %315 = vector.load %arg2[%c0_318, %c0_319, %c0_320] : memref<8x144x256xbf16, #tpu.memory_space<vmem>>, vector<1x144x256xbf16>
    %316 = vector.shape_cast %315 : vector<1x144x256xbf16> to vector<144x256xbf16>
    %cst_321 = arith.constant dense<0.000000e+00> : vector<16x256xf32>
    %317 = tpu.matmul %314, %316, %cst_321 {dimension_numbers = #tpu.dot_dimension_numbers<[1], [0], [0], [1], [0, 0, 1, 1], [], []>} : vector<16x144xbf16>, vector<144x256xbf16>, vector<16x256xf32> -> vector<16x256xf32>
    %c25_322 = arith.constant 25 : index
    %c0_323 = arith.constant 0 : index
    %c0_324 = arith.constant 0 : index
    %318 = vector.load %arg1[%c25_322, %c0_323, %c0_324] : memref<36x16x144xbf16, #tpu.memory_space<vmem>>, vector<1x16x144xbf16>
    %319 = vector.shape_cast %318 : vector<1x16x144xbf16> to vector<16x144xbf16>
    %c1_325 = arith.constant 1 : index
    %c0_326 = arith.constant 0 : index
    %c0_327 = arith.constant 0 : index
    %320 = vector.load %arg2[%c1_325, %c0_326, %c0_327] : memref<8x144x256xbf16, #tpu.memory_space<vmem>>, vector<1x144x256xbf16>
    %321 = vector.shape_cast %320 : vector<1x144x256xbf16> to vector<144x256xbf16>
    %cst_328 = arith.constant dense<0.000000e+00> : vector<16x256xf32>
    %322 = tpu.matmul %319, %321, %cst_328 {dimension_numbers = #tpu.dot_dimension_numbers<[1], [0], [0], [1], [0, 0, 1, 1], [], []>} : vector<16x144xbf16>, vector<144x256xbf16>, vector<16x256xf32> -> vector<16x256xf32>
    %323 = arith.addf %317, %322 : vector<16x256xf32>
    %c26_329 = arith.constant 26 : index
    %c0_330 = arith.constant 0 : index
    %c0_331 = arith.constant 0 : index
    %324 = vector.load %arg1[%c26_329, %c0_330, %c0_331] : memref<36x16x144xbf16, #tpu.memory_space<vmem>>, vector<1x16x144xbf16>
    %325 = vector.shape_cast %324 : vector<1x16x144xbf16> to vector<16x144xbf16>
    %c2_332 = arith.constant 2 : index
    %c0_333 = arith.constant 0 : index
    %c0_334 = arith.constant 0 : index
    %326 = vector.load %arg2[%c2_332, %c0_333, %c0_334] : memref<8x144x256xbf16, #tpu.memory_space<vmem>>, vector<1x144x256xbf16>
    %327 = vector.shape_cast %326 : vector<1x144x256xbf16> to vector<144x256xbf16>
    %cst_335 = arith.constant dense<0.000000e+00> : vector<16x256xf32>
    %328 = tpu.matmul %325, %327, %cst_335 {dimension_numbers = #tpu.dot_dimension_numbers<[1], [0], [0], [1], [0, 0, 1, 1], [], []>} : vector<16x144xbf16>, vector<144x256xbf16>, vector<16x256xf32> -> vector<16x256xf32>
    %329 = arith.addf %323, %328 : vector<16x256xf32>
    %c27_336 = arith.constant 27 : index
    %c0_337 = arith.constant 0 : index
    %c0_338 = arith.constant 0 : index
    %330 = vector.load %arg1[%c27_336, %c0_337, %c0_338] : memref<36x16x144xbf16, #tpu.memory_space<vmem>>, vector<1x16x144xbf16>
    %331 = vector.shape_cast %330 : vector<1x16x144xbf16> to vector<16x144xbf16>
    %c3_339 = arith.constant 3 : index
    %c0_340 = arith.constant 0 : index
    %c0_341 = arith.constant 0 : index
    %332 = vector.load %arg2[%c3_339, %c0_340, %c0_341] : memref<8x144x256xbf16, #tpu.memory_space<vmem>>, vector<1x144x256xbf16>
    %333 = vector.shape_cast %332 : vector<1x144x256xbf16> to vector<144x256xbf16>
    %cst_342 = arith.constant dense<0.000000e+00> : vector<16x256xf32>
    %334 = tpu.matmul %331, %333, %cst_342 {dimension_numbers = #tpu.dot_dimension_numbers<[1], [0], [0], [1], [0, 0, 1, 1], [], []>} : vector<16x144xbf16>, vector<144x256xbf16>, vector<16x256xf32> -> vector<16x256xf32>
    %335 = arith.addf %329, %334 : vector<16x256xf32>
    %c28 = arith.constant 28 : index
    %c0_343 = arith.constant 0 : index
    %c0_344 = arith.constant 0 : index
    %336 = vector.load %arg1[%c28, %c0_343, %c0_344] : memref<36x16x144xbf16, #tpu.memory_space<vmem>>, vector<1x16x144xbf16>
    %337 = vector.shape_cast %336 : vector<1x16x144xbf16> to vector<16x144xbf16>
    %c4_345 = arith.constant 4 : index
    %c0_346 = arith.constant 0 : index
    %c0_347 = arith.constant 0 : index
    %338 = vector.load %arg2[%c4_345, %c0_346, %c0_347] : memref<8x144x256xbf16, #tpu.memory_space<vmem>>, vector<1x144x256xbf16>
    %339 = vector.shape_cast %338 : vector<1x144x256xbf16> to vector<144x256xbf16>
    %cst_348 = arith.constant dense<0.000000e+00> : vector<16x256xf32>
    %340 = tpu.matmul %337, %339, %cst_348 {dimension_numbers = #tpu.dot_dimension_numbers<[1], [0], [0], [1], [0, 0, 1, 1], [], []>} : vector<16x144xbf16>, vector<144x256xbf16>, vector<16x256xf32> -> vector<16x256xf32>
    %341 = arith.addf %335, %340 : vector<16x256xf32>
    %c29 = arith.constant 29 : index
    %c0_349 = arith.constant 0 : index
    %c0_350 = arith.constant 0 : index
    %342 = vector.load %arg1[%c29, %c0_349, %c0_350] : memref<36x16x144xbf16, #tpu.memory_space<vmem>>, vector<1x16x144xbf16>
    %343 = vector.shape_cast %342 : vector<1x16x144xbf16> to vector<16x144xbf16>
    %c5_351 = arith.constant 5 : index
    %c0_352 = arith.constant 0 : index
    %c0_353 = arith.constant 0 : index
    %344 = vector.load %arg2[%c5_351, %c0_352, %c0_353] : memref<8x144x256xbf16, #tpu.memory_space<vmem>>, vector<1x144x256xbf16>
    %345 = vector.shape_cast %344 : vector<1x144x256xbf16> to vector<144x256xbf16>
    %cst_354 = arith.constant dense<0.000000e+00> : vector<16x256xf32>
    %346 = tpu.matmul %343, %345, %cst_354 {dimension_numbers = #tpu.dot_dimension_numbers<[1], [0], [0], [1], [0, 0, 1, 1], [], []>} : vector<16x144xbf16>, vector<144x256xbf16>, vector<16x256xf32> -> vector<16x256xf32>
    %347 = arith.addf %341, %346 : vector<16x256xf32>
    %c30 = arith.constant 30 : index
    %c0_355 = arith.constant 0 : index
    %c0_356 = arith.constant 0 : index
    %348 = vector.load %arg1[%c30, %c0_355, %c0_356] : memref<36x16x144xbf16, #tpu.memory_space<vmem>>, vector<1x16x144xbf16>
    %349 = vector.shape_cast %348 : vector<1x16x144xbf16> to vector<16x144xbf16>
    %c6_357 = arith.constant 6 : index
    %c0_358 = arith.constant 0 : index
    %c0_359 = arith.constant 0 : index
    %350 = vector.load %arg2[%c6_357, %c0_358, %c0_359] : memref<8x144x256xbf16, #tpu.memory_space<vmem>>, vector<1x144x256xbf16>
    %351 = vector.shape_cast %350 : vector<1x144x256xbf16> to vector<144x256xbf16>
    %cst_360 = arith.constant dense<0.000000e+00> : vector<16x256xf32>
    %352 = tpu.matmul %349, %351, %cst_360 {dimension_numbers = #tpu.dot_dimension_numbers<[1], [0], [0], [1], [0, 0, 1, 1], [], []>} : vector<16x144xbf16>, vector<144x256xbf16>, vector<16x256xf32> -> vector<16x256xf32>
    %353 = arith.addf %347, %352 : vector<16x256xf32>
    %c31 = arith.constant 31 : index
    %c0_361 = arith.constant 0 : index
    %c0_362 = arith.constant 0 : index
    %354 = vector.load %arg1[%c31, %c0_361, %c0_362] : memref<36x16x144xbf16, #tpu.memory_space<vmem>>, vector<1x16x144xbf16>
    %355 = vector.shape_cast %354 : vector<1x16x144xbf16> to vector<16x144xbf16>
    %c7_363 = arith.constant 7 : index
    %c0_364 = arith.constant 0 : index
    %c0_365 = arith.constant 0 : index
    %356 = vector.load %arg2[%c7_363, %c0_364, %c0_365] : memref<8x144x256xbf16, #tpu.memory_space<vmem>>, vector<1x144x256xbf16>
    %357 = vector.shape_cast %356 : vector<1x144x256xbf16> to vector<144x256xbf16>
    %cst_366 = arith.constant dense<0.000000e+00> : vector<16x256xf32>
    %358 = tpu.matmul %355, %357, %cst_366 {dimension_numbers = #tpu.dot_dimension_numbers<[1], [0], [0], [1], [0, 0, 1, 1], [], []>} : vector<16x144xbf16>, vector<144x256xbf16>, vector<16x256xf32> -> vector<16x256xf32>
    %359 = arith.addf %353, %358 : vector<16x256xf32>
    %360 = vector.broadcast %0 : vector<1x256xf32> to vector<16x256xf32>
    %361 = arith.addf %359, %360 : vector<16x256xf32>
    %cst_367 = arith.constant 0.000000e+00 : f32
    %362 = vector.broadcast %cst_367 : f32 to vector<16x256xf32>
    %363 = arith.maximumf %361, %362 : vector<16x256xf32>
    %364 = arith.truncf %363 : vector<16x256xf32> to vector<16x256xbf16>
    %c28_368 = arith.constant 28 : index
    %c0_369 = arith.constant 0 : index
    %c0_370 = arith.constant 0 : index
    %365 = vector.load %arg1[%c28_368, %c0_369, %c0_370] : memref<36x16x144xbf16, #tpu.memory_space<vmem>>, vector<1x16x144xbf16>
    %366 = vector.shape_cast %365 : vector<1x16x144xbf16> to vector<16x144xbf16>
    %c0_371 = arith.constant 0 : index
    %c0_372 = arith.constant 0 : index
    %c0_373 = arith.constant 0 : index
    %367 = vector.load %arg2[%c0_371, %c0_372, %c0_373] : memref<8x144x256xbf16, #tpu.memory_space<vmem>>, vector<1x144x256xbf16>
    %368 = vector.shape_cast %367 : vector<1x144x256xbf16> to vector<144x256xbf16>
    %cst_374 = arith.constant dense<0.000000e+00> : vector<16x256xf32>
    %369 = tpu.matmul %366, %368, %cst_374 {dimension_numbers = #tpu.dot_dimension_numbers<[1], [0], [0], [1], [0, 0, 1, 1], [], []>} : vector<16x144xbf16>, vector<144x256xbf16>, vector<16x256xf32> -> vector<16x256xf32>
    %c29_375 = arith.constant 29 : index
    %c0_376 = arith.constant 0 : index
    %c0_377 = arith.constant 0 : index
    %370 = vector.load %arg1[%c29_375, %c0_376, %c0_377] : memref<36x16x144xbf16, #tpu.memory_space<vmem>>, vector<1x16x144xbf16>
    %371 = vector.shape_cast %370 : vector<1x16x144xbf16> to vector<16x144xbf16>
    %c1_378 = arith.constant 1 : index
    %c0_379 = arith.constant 0 : index
    %c0_380 = arith.constant 0 : index
    %372 = vector.load %arg2[%c1_378, %c0_379, %c0_380] : memref<8x144x256xbf16, #tpu.memory_space<vmem>>, vector<1x144x256xbf16>
    %373 = vector.shape_cast %372 : vector<1x144x256xbf16> to vector<144x256xbf16>
    %cst_381 = arith.constant dense<0.000000e+00> : vector<16x256xf32>
    %374 = tpu.matmul %371, %373, %cst_381 {dimension_numbers = #tpu.dot_dimension_numbers<[1], [0], [0], [1], [0, 0, 1, 1], [], []>} : vector<16x144xbf16>, vector<144x256xbf16>, vector<16x256xf32> -> vector<16x256xf32>
    %375 = arith.addf %369, %374 : vector<16x256xf32>
    %c30_382 = arith.constant 30 : index
    %c0_383 = arith.constant 0 : index
    %c0_384 = arith.constant 0 : index
    %376 = vector.load %arg1[%c30_382, %c0_383, %c0_384] : memref<36x16x144xbf16, #tpu.memory_space<vmem>>, vector<1x16x144xbf16>
    %377 = vector.shape_cast %376 : vector<1x16x144xbf16> to vector<16x144xbf16>
    %c2_385 = arith.constant 2 : index
    %c0_386 = arith.constant 0 : index
    %c0_387 = arith.constant 0 : index
    %378 = vector.load %arg2[%c2_385, %c0_386, %c0_387] : memref<8x144x256xbf16, #tpu.memory_space<vmem>>, vector<1x144x256xbf16>
    %379 = vector.shape_cast %378 : vector<1x144x256xbf16> to vector<144x256xbf16>
    %cst_388 = arith.constant dense<0.000000e+00> : vector<16x256xf32>
    %380 = tpu.matmul %377, %379, %cst_388 {dimension_numbers = #tpu.dot_dimension_numbers<[1], [0], [0], [1], [0, 0, 1, 1], [], []>} : vector<16x144xbf16>, vector<144x256xbf16>, vector<16x256xf32> -> vector<16x256xf32>
    %381 = arith.addf %375, %380 : vector<16x256xf32>
    %c31_389 = arith.constant 31 : index
    %c0_390 = arith.constant 0 : index
    %c0_391 = arith.constant 0 : index
    %382 = vector.load %arg1[%c31_389, %c0_390, %c0_391] : memref<36x16x144xbf16, #tpu.memory_space<vmem>>, vector<1x16x144xbf16>
    %383 = vector.shape_cast %382 : vector<1x16x144xbf16> to vector<16x144xbf16>
    %c3_392 = arith.constant 3 : index
    %c0_393 = arith.constant 0 : index
    %c0_394 = arith.constant 0 : index
    %384 = vector.load %arg2[%c3_392, %c0_393, %c0_394] : memref<8x144x256xbf16, #tpu.memory_space<vmem>>, vector<1x144x256xbf16>
    %385 = vector.shape_cast %384 : vector<1x144x256xbf16> to vector<144x256xbf16>
    %cst_395 = arith.constant dense<0.000000e+00> : vector<16x256xf32>
    %386 = tpu.matmul %383, %385, %cst_395 {dimension_numbers = #tpu.dot_dimension_numbers<[1], [0], [0], [1], [0, 0, 1, 1], [], []>} : vector<16x144xbf16>, vector<144x256xbf16>, vector<16x256xf32> -> vector<16x256xf32>
    %387 = arith.addf %381, %386 : vector<16x256xf32>
    %c32 = arith.constant 32 : index
    %c0_396 = arith.constant 0 : index
    %c0_397 = arith.constant 0 : index
    %388 = vector.load %arg1[%c32, %c0_396, %c0_397] : memref<36x16x144xbf16, #tpu.memory_space<vmem>>, vector<1x16x144xbf16>
    %389 = vector.shape_cast %388 : vector<1x16x144xbf16> to vector<16x144xbf16>
    %c4_398 = arith.constant 4 : index
    %c0_399 = arith.constant 0 : index
    %c0_400 = arith.constant 0 : index
    %390 = vector.load %arg2[%c4_398, %c0_399, %c0_400] : memref<8x144x256xbf16, #tpu.memory_space<vmem>>, vector<1x144x256xbf16>
    %391 = vector.shape_cast %390 : vector<1x144x256xbf16> to vector<144x256xbf16>
    %cst_401 = arith.constant dense<0.000000e+00> : vector<16x256xf32>
    %392 = tpu.matmul %389, %391, %cst_401 {dimension_numbers = #tpu.dot_dimension_numbers<[1], [0], [0], [1], [0, 0, 1, 1], [], []>} : vector<16x144xbf16>, vector<144x256xbf16>, vector<16x256xf32> -> vector<16x256xf32>
    %393 = arith.addf %387, %392 : vector<16x256xf32>
    %c33 = arith.constant 33 : index
    %c0_402 = arith.constant 0 : index
    %c0_403 = arith.constant 0 : index
    %394 = vector.load %arg1[%c33, %c0_402, %c0_403] : memref<36x16x144xbf16, #tpu.memory_space<vmem>>, vector<1x16x144xbf16>
    %395 = vector.shape_cast %394 : vector<1x16x144xbf16> to vector<16x144xbf16>
    %c5_404 = arith.constant 5 : index
    %c0_405 = arith.constant 0 : index
    %c0_406 = arith.constant 0 : index
    %396 = vector.load %arg2[%c5_404, %c0_405, %c0_406] : memref<8x144x256xbf16, #tpu.memory_space<vmem>>, vector<1x144x256xbf16>
    %397 = vector.shape_cast %396 : vector<1x144x256xbf16> to vector<144x256xbf16>
    %cst_407 = arith.constant dense<0.000000e+00> : vector<16x256xf32>
    %398 = tpu.matmul %395, %397, %cst_407 {dimension_numbers = #tpu.dot_dimension_numbers<[1], [0], [0], [1], [0, 0, 1, 1], [], []>} : vector<16x144xbf16>, vector<144x256xbf16>, vector<16x256xf32> -> vector<16x256xf32>
    %399 = arith.addf %393, %398 : vector<16x256xf32>
    %c34 = arith.constant 34 : index
    %c0_408 = arith.constant 0 : index
    %c0_409 = arith.constant 0 : index
    %400 = vector.load %arg1[%c34, %c0_408, %c0_409] : memref<36x16x144xbf16, #tpu.memory_space<vmem>>, vector<1x16x144xbf16>
    %401 = vector.shape_cast %400 : vector<1x16x144xbf16> to vector<16x144xbf16>
    %c6_410 = arith.constant 6 : index
    %c0_411 = arith.constant 0 : index
    %c0_412 = arith.constant 0 : index
    %402 = vector.load %arg2[%c6_410, %c0_411, %c0_412] : memref<8x144x256xbf16, #tpu.memory_space<vmem>>, vector<1x144x256xbf16>
    %403 = vector.shape_cast %402 : vector<1x144x256xbf16> to vector<144x256xbf16>
    %cst_413 = arith.constant dense<0.000000e+00> : vector<16x256xf32>
    %404 = tpu.matmul %401, %403, %cst_413 {dimension_numbers = #tpu.dot_dimension_numbers<[1], [0], [0], [1], [0, 0, 1, 1], [], []>} : vector<16x144xbf16>, vector<144x256xbf16>, vector<16x256xf32> -> vector<16x256xf32>
    %405 = arith.addf %399, %404 : vector<16x256xf32>
    %c35 = arith.constant 35 : index
    %c0_414 = arith.constant 0 : index
    %c0_415 = arith.constant 0 : index
    %406 = vector.load %arg1[%c35, %c0_414, %c0_415] : memref<36x16x144xbf16, #tpu.memory_space<vmem>>, vector<1x16x144xbf16>
    %407 = vector.shape_cast %406 : vector<1x16x144xbf16> to vector<16x144xbf16>
    %c7_416 = arith.constant 7 : index
    %c0_417 = arith.constant 0 : index
    %c0_418 = arith.constant 0 : index
    %408 = vector.load %arg2[%c7_416, %c0_417, %c0_418] : memref<8x144x256xbf16, #tpu.memory_space<vmem>>, vector<1x144x256xbf16>
    %409 = vector.shape_cast %408 : vector<1x144x256xbf16> to vector<144x256xbf16>
    %cst_419 = arith.constant dense<0.000000e+00> : vector<16x256xf32>
    %410 = tpu.matmul %407, %409, %cst_419 {dimension_numbers = #tpu.dot_dimension_numbers<[1], [0], [0], [1], [0, 0, 1, 1], [], []>} : vector<16x144xbf16>, vector<144x256xbf16>, vector<16x256xf32> -> vector<16x256xf32>
    %411 = arith.addf %405, %410 : vector<16x256xf32>
    %412 = vector.broadcast %0 : vector<1x256xf32> to vector<16x256xf32>
    %413 = arith.addf %411, %412 : vector<16x256xf32>
    %cst_420 = arith.constant 0.000000e+00 : f32
    %414 = vector.broadcast %cst_420 : f32 to vector<16x256xf32>
    %415 = arith.maximumf %413, %414 : vector<16x256xf32>
    %416 = arith.truncf %415 : vector<16x256xf32> to vector<16x256xbf16>
    %c0_421 = arith.constant 0 : index
    %c0_422 = arith.constant 0 : index
    %417 = vector.load %arg5[%c0_421, %c0_422] : memref<1x192xf32, #tpu.memory_space<vmem>>, vector<1x192xf32>
    %c0_423 = arith.constant 0 : index
    %c0_424 = arith.constant 0 : index
    %c0_425 = arith.constant 0 : index
    %418 = vector.load %arg4[%c0_423, %c0_424, %c0_425] : memref<4x256x192xbf16, #tpu.memory_space<vmem>>, vector<1x256x192xbf16>
    %419 = vector.shape_cast %418 : vector<1x256x192xbf16> to vector<256x192xbf16>
    %cst_426 = arith.constant dense<0.000000e+00> : vector<16x192xf32>
    %420 = tpu.matmul %52, %419, %cst_426 {dimension_numbers = #tpu.dot_dimension_numbers<[1], [0], [0], [1], [0, 0, 1, 1], [], []>} : vector<16x256xbf16>, vector<256x192xbf16>, vector<16x192xf32> -> vector<16x192xf32>
    %c1_427 = arith.constant 1 : index
    %c0_428 = arith.constant 0 : index
    %c0_429 = arith.constant 0 : index
    %421 = vector.load %arg4[%c1_427, %c0_428, %c0_429] : memref<4x256x192xbf16, #tpu.memory_space<vmem>>, vector<1x256x192xbf16>
    %422 = vector.shape_cast %421 : vector<1x256x192xbf16> to vector<256x192xbf16>
    %cst_430 = arith.constant dense<0.000000e+00> : vector<16x192xf32>
    %423 = tpu.matmul %104, %422, %cst_430 {dimension_numbers = #tpu.dot_dimension_numbers<[1], [0], [0], [1], [0, 0, 1, 1], [], []>} : vector<16x256xbf16>, vector<256x192xbf16>, vector<16x192xf32> -> vector<16x192xf32>
    %424 = arith.addf %420, %423 : vector<16x192xf32>
    %c2_431 = arith.constant 2 : index
    %c0_432 = arith.constant 0 : index
    %c0_433 = arith.constant 0 : index
    %425 = vector.load %arg4[%c2_431, %c0_432, %c0_433] : memref<4x256x192xbf16, #tpu.memory_space<vmem>>, vector<1x256x192xbf16>
    %426 = vector.shape_cast %425 : vector<1x256x192xbf16> to vector<256x192xbf16>
    %cst_434 = arith.constant dense<0.000000e+00> : vector<16x192xf32>
    %427 = tpu.matmul %156, %426, %cst_434 {dimension_numbers = #tpu.dot_dimension_numbers<[1], [0], [0], [1], [0, 0, 1, 1], [], []>} : vector<16x256xbf16>, vector<256x192xbf16>, vector<16x192xf32> -> vector<16x192xf32>
    %428 = arith.addf %424, %427 : vector<16x192xf32>
    %c3_435 = arith.constant 3 : index
    %c0_436 = arith.constant 0 : index
    %c0_437 = arith.constant 0 : index
    %429 = vector.load %arg4[%c3_435, %c0_436, %c0_437] : memref<4x256x192xbf16, #tpu.memory_space<vmem>>, vector<1x256x192xbf16>
    %430 = vector.shape_cast %429 : vector<1x256x192xbf16> to vector<256x192xbf16>
    %cst_438 = arith.constant dense<0.000000e+00> : vector<16x192xf32>
    %431 = tpu.matmul %208, %430, %cst_438 {dimension_numbers = #tpu.dot_dimension_numbers<[1], [0], [0], [1], [0, 0, 1, 1], [], []>} : vector<16x256xbf16>, vector<256x192xbf16>, vector<16x192xf32> -> vector<16x192xf32>
    %432 = arith.addf %428, %431 : vector<16x192xf32>
    %433 = vector.broadcast %417 : vector<1x192xf32> to vector<16x192xf32>
    %434 = arith.addf %432, %433 : vector<16x192xf32>
    %cst_439 = arith.constant 0.000000e+00 : f32
    %435 = vector.broadcast %cst_439 : f32 to vector<16x192xf32>
    %436 = arith.maximumf %434, %435 : vector<16x192xf32>
    %437 = arith.truncf %436 : vector<16x192xf32> to vector<16x192xbf16>
    %c0_440 = arith.constant 0 : index
    %c0_441 = arith.constant 0 : index
    %c0_442 = arith.constant 0 : index
    %438 = vector.load %arg4[%c0_440, %c0_441, %c0_442] : memref<4x256x192xbf16, #tpu.memory_space<vmem>>, vector<1x256x192xbf16>
    %439 = vector.shape_cast %438 : vector<1x256x192xbf16> to vector<256x192xbf16>
    %cst_443 = arith.constant dense<0.000000e+00> : vector<16x192xf32>
    %440 = tpu.matmul %156, %439, %cst_443 {dimension_numbers = #tpu.dot_dimension_numbers<[1], [0], [0], [1], [0, 0, 1, 1], [], []>} : vector<16x256xbf16>, vector<256x192xbf16>, vector<16x192xf32> -> vector<16x192xf32>
    %c1_444 = arith.constant 1 : index
    %c0_445 = arith.constant 0 : index
    %c0_446 = arith.constant 0 : index
    %441 = vector.load %arg4[%c1_444, %c0_445, %c0_446] : memref<4x256x192xbf16, #tpu.memory_space<vmem>>, vector<1x256x192xbf16>
    %442 = vector.shape_cast %441 : vector<1x256x192xbf16> to vector<256x192xbf16>
    %cst_447 = arith.constant dense<0.000000e+00> : vector<16x192xf32>
    %443 = tpu.matmul %208, %442, %cst_447 {dimension_numbers = #tpu.dot_dimension_numbers<[1], [0], [0], [1], [0, 0, 1, 1], [], []>} : vector<16x256xbf16>, vector<256x192xbf16>, vector<16x192xf32> -> vector<16x192xf32>
    %444 = arith.addf %440, %443 : vector<16x192xf32>
    %c2_448 = arith.constant 2 : index
    %c0_449 = arith.constant 0 : index
    %c0_450 = arith.constant 0 : index
    %445 = vector.load %arg4[%c2_448, %c0_449, %c0_450] : memref<4x256x192xbf16, #tpu.memory_space<vmem>>, vector<1x256x192xbf16>
    %446 = vector.shape_cast %445 : vector<1x256x192xbf16> to vector<256x192xbf16>
    %cst_451 = arith.constant dense<0.000000e+00> : vector<16x192xf32>
    %447 = tpu.matmul %260, %446, %cst_451 {dimension_numbers = #tpu.dot_dimension_numbers<[1], [0], [0], [1], [0, 0, 1, 1], [], []>} : vector<16x256xbf16>, vector<256x192xbf16>, vector<16x192xf32> -> vector<16x192xf32>
    %448 = arith.addf %444, %447 : vector<16x192xf32>
    %c3_452 = arith.constant 3 : index
    %c0_453 = arith.constant 0 : index
    %c0_454 = arith.constant 0 : index
    %449 = vector.load %arg4[%c3_452, %c0_453, %c0_454] : memref<4x256x192xbf16, #tpu.memory_space<vmem>>, vector<1x256x192xbf16>
    %450 = vector.shape_cast %449 : vector<1x256x192xbf16> to vector<256x192xbf16>
    %cst_455 = arith.constant dense<0.000000e+00> : vector<16x192xf32>
    %451 = tpu.matmul %312, %450, %cst_455 {dimension_numbers = #tpu.dot_dimension_numbers<[1], [0], [0], [1], [0, 0, 1, 1], [], []>} : vector<16x256xbf16>, vector<256x192xbf16>, vector<16x192xf32> -> vector<16x192xf32>
    %452 = arith.addf %448, %451 : vector<16x192xf32>
    %453 = vector.broadcast %417 : vector<1x192xf32> to vector<16x192xf32>
    %454 = arith.addf %452, %453 : vector<16x192xf32>
    %cst_456 = arith.constant 0.000000e+00 : f32
    %455 = vector.broadcast %cst_456 : f32 to vector<16x192xf32>
    %456 = arith.maximumf %454, %455 : vector<16x192xf32>
    %457 = arith.truncf %456 : vector<16x192xf32> to vector<16x192xbf16>
    %c0_457 = arith.constant 0 : index
    %c0_458 = arith.constant 0 : index
    %c0_459 = arith.constant 0 : index
    %458 = vector.load %arg4[%c0_457, %c0_458, %c0_459] : memref<4x256x192xbf16, #tpu.memory_space<vmem>>, vector<1x256x192xbf16>
    %459 = vector.shape_cast %458 : vector<1x256x192xbf16> to vector<256x192xbf16>
    %cst_460 = arith.constant dense<0.000000e+00> : vector<16x192xf32>
    %460 = tpu.matmul %260, %459, %cst_460 {dimension_numbers = #tpu.dot_dimension_numbers<[1], [0], [0], [1], [0, 0, 1, 1], [], []>} : vector<16x256xbf16>, vector<256x192xbf16>, vector<16x192xf32> -> vector<16x192xf32>
    %c1_461 = arith.constant 1 : index
    %c0_462 = arith.constant 0 : index
    %c0_463 = arith.constant 0 : index
    %461 = vector.load %arg4[%c1_461, %c0_462, %c0_463] : memref<4x256x192xbf16, #tpu.memory_space<vmem>>, vector<1x256x192xbf16>
    %462 = vector.shape_cast %461 : vector<1x256x192xbf16> to vector<256x192xbf16>
    %cst_464 = arith.constant dense<0.000000e+00> : vector<16x192xf32>
    %463 = tpu.matmul %312, %462, %cst_464 {dimension_numbers = #tpu.dot_dimension_numbers<[1], [0], [0], [1], [0, 0, 1, 1], [], []>} : vector<16x256xbf16>, vector<256x192xbf16>, vector<16x192xf32> -> vector<16x192xf32>
    %464 = arith.addf %460, %463 : vector<16x192xf32>
    %c2_465 = arith.constant 2 : index
    %c0_466 = arith.constant 0 : index
    %c0_467 = arith.constant 0 : index
    %465 = vector.load %arg4[%c2_465, %c0_466, %c0_467] : memref<4x256x192xbf16, #tpu.memory_space<vmem>>, vector<1x256x192xbf16>
    %466 = vector.shape_cast %465 : vector<1x256x192xbf16> to vector<256x192xbf16>
    %cst_468 = arith.constant dense<0.000000e+00> : vector<16x192xf32>
    %467 = tpu.matmul %364, %466, %cst_468 {dimension_numbers = #tpu.dot_dimension_numbers<[1], [0], [0], [1], [0, 0, 1, 1], [], []>} : vector<16x256xbf16>, vector<256x192xbf16>, vector<16x192xf32> -> vector<16x192xf32>
    %468 = arith.addf %464, %467 : vector<16x192xf32>
    %c3_469 = arith.constant 3 : index
    %c0_470 = arith.constant 0 : index
    %c0_471 = arith.constant 0 : index
    %469 = vector.load %arg4[%c3_469, %c0_470, %c0_471] : memref<4x256x192xbf16, #tpu.memory_space<vmem>>, vector<1x256x192xbf16>
    %470 = vector.shape_cast %469 : vector<1x256x192xbf16> to vector<256x192xbf16>
    %cst_472 = arith.constant dense<0.000000e+00> : vector<16x192xf32>
    %471 = tpu.matmul %416, %470, %cst_472 {dimension_numbers = #tpu.dot_dimension_numbers<[1], [0], [0], [1], [0, 0, 1, 1], [], []>} : vector<16x256xbf16>, vector<256x192xbf16>, vector<16x192xf32> -> vector<16x192xf32>
    %472 = arith.addf %468, %471 : vector<16x192xf32>
    %473 = vector.broadcast %417 : vector<1x192xf32> to vector<16x192xf32>
    %474 = arith.addf %472, %473 : vector<16x192xf32>
    %cst_473 = arith.constant 0.000000e+00 : f32
    %475 = vector.broadcast %cst_473 : f32 to vector<16x192xf32>
    %476 = arith.maximumf %474, %475 : vector<16x192xf32>
    %477 = arith.truncf %476 : vector<16x192xf32> to vector<16x192xbf16>
    %c0_474 = arith.constant 0 : index
    %c0_475 = arith.constant 0 : index
    %478 = vector.load %arg7[%c0_474, %c0_475] : memref<1x64xf32, #tpu.memory_space<vmem>>, vector<1x64xf32>
    %c0_476 = arith.constant 0 : index
    %c0_477 = arith.constant 0 : index
    %c0_478 = arith.constant 0 : index
    %479 = vector.load %arg6[%c0_476, %c0_477, %c0_478] : memref<3x192x64xbf16, #tpu.memory_space<vmem>>, vector<1x192x64xbf16>
    %480 = vector.shape_cast %479 : vector<1x192x64xbf16> to vector<192x64xbf16>
    %cst_479 = arith.constant dense<0.000000e+00> : vector<16x64xf32>
    %481 = tpu.matmul %437, %480, %cst_479 {dimension_numbers = #tpu.dot_dimension_numbers<[1], [0], [0], [1], [0, 0, 1, 1], [], []>} : vector<16x192xbf16>, vector<192x64xbf16>, vector<16x64xf32> -> vector<16x64xf32>
    %c1_480 = arith.constant 1 : index
    %c0_481 = arith.constant 0 : index
    %c0_482 = arith.constant 0 : index
    %482 = vector.load %arg6[%c1_480, %c0_481, %c0_482] : memref<3x192x64xbf16, #tpu.memory_space<vmem>>, vector<1x192x64xbf16>
    %483 = vector.shape_cast %482 : vector<1x192x64xbf16> to vector<192x64xbf16>
    %cst_483 = arith.constant dense<0.000000e+00> : vector<16x64xf32>
    %484 = tpu.matmul %457, %483, %cst_483 {dimension_numbers = #tpu.dot_dimension_numbers<[1], [0], [0], [1], [0, 0, 1, 1], [], []>} : vector<16x192xbf16>, vector<192x64xbf16>, vector<16x64xf32> -> vector<16x64xf32>
    %485 = arith.addf %481, %484 : vector<16x64xf32>
    %c2_484 = arith.constant 2 : index
    %c0_485 = arith.constant 0 : index
    %c0_486 = arith.constant 0 : index
    %486 = vector.load %arg6[%c2_484, %c0_485, %c0_486] : memref<3x192x64xbf16, #tpu.memory_space<vmem>>, vector<1x192x64xbf16>
    %487 = vector.shape_cast %486 : vector<1x192x64xbf16> to vector<192x64xbf16>
    %cst_487 = arith.constant dense<0.000000e+00> : vector<16x64xf32>
    %488 = tpu.matmul %477, %487, %cst_487 {dimension_numbers = #tpu.dot_dimension_numbers<[1], [0], [0], [1], [0, 0, 1, 1], [], []>} : vector<16x192xbf16>, vector<192x64xbf16>, vector<16x64xf32> -> vector<16x64xf32>
    %489 = arith.addf %485, %488 : vector<16x64xf32>
    %490 = vector.broadcast %478 : vector<1x64xf32> to vector<16x64xf32>
    %491 = arith.addf %489, %490 : vector<16x64xf32>
    %cst_488 = arith.constant 0.000000e+00 : f32
    %492 = vector.broadcast %cst_488 : f32 to vector<16x64xf32>
    %493 = arith.maximumf %491, %492 : vector<16x64xf32>
    %494 = arith.truncf %493 : vector<16x64xf32> to vector<16x64xbf16>
    %c0_489 = arith.constant 0 : index
    %c0_490 = arith.constant 0 : index
    %495 = vector.load %arg9[%c0_489, %c0_490] : memref<1x512xf32, #tpu.memory_space<vmem>>, vector<1x512xf32>
    %c0_491 = arith.constant 0 : index
    %c0_492 = arith.constant 0 : index
    %c0_493 = arith.constant 0 : index
    %496 = vector.load %arg8[%c0_491, %c0_492, %c0_493] : memref<1x64x512xbf16, #tpu.memory_space<vmem>>, vector<1x64x512xbf16>
    %497 = vector.shape_cast %496 : vector<1x64x512xbf16> to vector<64x512xbf16>
    %cst_494 = arith.constant dense<0.000000e+00> : vector<16x512xf32>
    %498 = tpu.matmul %494, %497, %cst_494 {dimension_numbers = #tpu.dot_dimension_numbers<[1], [0], [0], [1], [0, 0, 1, 1], [], []>} : vector<16x64xbf16>, vector<64x512xbf16>, vector<16x512xf32> -> vector<16x512xf32>
    %499 = vector.broadcast %495 : vector<1x512xf32> to vector<16x512xf32>
    %500 = arith.addf %498, %499 : vector<16x512xf32>
    %cst_495 = arith.constant 0.000000e+00 : f32
    %501 = vector.broadcast %cst_495 : f32 to vector<16x512xf32>
    %502 = arith.maximumf %500, %501 : vector<16x512xf32>
    %503 = arith.truncf %502 : vector<16x512xf32> to vector<16x512xbf16>
    %c0_496 = arith.constant 0 : index
    %c0_497 = arith.constant 0 : index
    %504 = vector.load %arg11[%c0_496, %c0_497] : memref<1x256xf32, #tpu.memory_space<vmem>>, vector<1x256xf32>
    %c0_498 = arith.constant 0 : index
    %c0_499 = arith.constant 0 : index
    %c0_500 = arith.constant 0 : index
    %505 = vector.load %arg10[%c0_498, %c0_499, %c0_500] : memref<1x512x256xbf16, #tpu.memory_space<vmem>>, vector<1x512x256xbf16>
    %506 = vector.shape_cast %505 : vector<1x512x256xbf16> to vector<512x256xbf16>
    %cst_501 = arith.constant dense<0.000000e+00> : vector<16x256xf32>
    %507 = tpu.matmul %503, %506, %cst_501 {dimension_numbers = #tpu.dot_dimension_numbers<[1], [0], [0], [1], [0, 0, 1, 1], [], []>} : vector<16x512xbf16>, vector<512x256xbf16>, vector<16x256xf32> -> vector<16x256xf32>
    %508 = vector.broadcast %504 : vector<1x256xf32> to vector<16x256xf32>
    %509 = arith.addf %507, %508 : vector<16x256xf32>
    %cst_502 = arith.constant 0.000000e+00 : f32
    %510 = vector.broadcast %cst_502 : f32 to vector<16x256xf32>
    %511 = arith.maximumf %509, %510 : vector<16x256xf32>
    %c0_503 = arith.constant 0 : index
    %c0_504 = arith.constant 0 : index
    %512 = vector.load %arg12[%c0_503, %c0_504] : memref<1x256xf32, #tpu.memory_space<vmem>>, vector<1x256xf32>
    %c0_505 = arith.constant 0 : index
    %c0_506 = arith.constant 0 : index
    %513 = vector.load %arg13[%c0_505, %c0_506] : memref<1x1xf32, #tpu.memory_space<vmem>>, vector<1x1xf32>
    %514 = vector.broadcast %512 : vector<1x256xf32> to vector<16x256xf32>
    %515 = arith.mulf %511, %514 : vector<16x256xf32>
    %cst_507 = arith.constant dense<0.000000e+00> : vector<16xf32>
    %516 = vector.multi_reduction <add>, %515, %cst_507 [1] : vector<16x256xf32> to vector<16xf32>
    %517 = vector.shape_cast %516 : vector<16xf32> to vector<16x1xf32>
    %518 = vector.broadcast %513 : vector<1x1xf32> to vector<16x1xf32>
    %519 = arith.addf %517, %518 : vector<16x1xf32>
    %c0_508 = arith.constant 0 : index
    %c0_509 = arith.constant 0 : index
    %520 = vector.load %arg14[%c0_508, %c0_509] : memref<16x1xf32, #tpu.memory_space<vmem>>, vector<16x1xf32>
    tpu.vector_store %arg14[%c0_508, %c0_509], %519 {strides = array<i32>} : memref<16x1xf32, #tpu.memory_space<vmem>>, vector<16x1xf32>,
    return
  }
  func.func @transform_0(%arg0: i32) -> (i32, i32, i32) {
    %c0_i32 = arith.constant 0 : i32
    %c0_i32_0 = arith.constant 0 : i32
    %c0_i32_1 = arith.constant 0 : i32
    return %c0_i32, %arg0, %c0_i32_0 : i32, i32, i32
  }
  func.func @transform_1(%arg0: i32) -> (i32, i32, i32) {
    %c0_i32 = arith.constant 0 : i32
    %c0_i32_0 = arith.constant 0 : i32
    %c0_i32_1 = arith.constant 0 : i32
    %c0_i32_2 = arith.constant 0 : i32
    return %c0_i32, %c0_i32_0, %c0_i32_1 : i32, i32, i32
  }
  func.func @transform_2(%arg0: i32) -> (i32, i32) {
    %c0_i32 = arith.constant 0 : i32
    %c0_i32_0 = arith.constant 0 : i32
    %c0_i32_1 = arith.constant 0 : i32
    return %c0_i32, %c0_i32_0 : i32, i32
  }
  func.func @transform_3(%arg0: i32) -> (i32, i32, i32) {
    %c0_i32 = arith.constant 0 : i32
    %c0_i32_0 = arith.constant 0 : i32
    %c0_i32_1 = arith.constant 0 : i32
    %c0_i32_2 = arith.constant 0 : i32
    return %c0_i32, %c0_i32_0, %c0_i32_1 : i32, i32, i32
  }
  func.func @transform_4(%arg0: i32) -> (i32, i32) {
    %c0_i32 = arith.constant 0 : i32
    %c0_i32_0 = arith.constant 0 : i32
    %c0_i32_1 = arith.constant 0 : i32
    return %c0_i32, %c0_i32_0 : i32, i32
  }
  func.func @transform_5(%arg0: i32) -> (i32, i32, i32) {
    %c0_i32 = arith.constant 0 : i32
    %c0_i32_0 = arith.constant 0 : i32
    %c0_i32_1 = arith.constant 0 : i32
    %c0_i32_2 = arith.constant 0 : i32
    return %c0_i32, %c0_i32_0, %c0_i32_1 : i32, i32, i32
  }
  func.func @transform_6(%arg0: i32) -> (i32, i32) {
    %c0_i32 = arith.constant 0 : i32
    %c0_i32_0 = arith.constant 0 : i32
    %c0_i32_1 = arith.constant 0 : i32
    return %c0_i32, %c0_i32_0 : i32, i32
  }
  func.func @transform_7(%arg0: i32) -> (i32, i32, i32) {
    %c0_i32 = arith.constant 0 : i32
    %c0_i32_0 = arith.constant 0 : i32
    %c0_i32_1 = arith.constant 0 : i32
    %c0_i32_2 = arith.constant 0 : i32
    return %c0_i32, %c0_i32_0, %c0_i32_1 : i32, i32, i32
  }
  func.func @transform_8(%arg0: i32) -> (i32, i32) {
    %c0_i32 = arith.constant 0 : i32
    %c0_i32_0 = arith.constant 0 : i32
    %c0_i32_1 = arith.constant 0 : i32
    return %c0_i32, %c0_i32_0 : i32, i32
  }
  func.func @transform_9(%arg0: i32) -> (i32, i32, i32) {
    %c0_i32 = arith.constant 0 : i32
    %c0_i32_0 = arith.constant 0 : i32
    %c0_i32_1 = arith.constant 0 : i32
    %c0_i32_2 = arith.constant 0 : i32
    return %c0_i32, %c0_i32_0, %c0_i32_1 : i32, i32, i32
  }
  func.func @transform_10(%arg0: i32) -> (i32, i32) {
    %c0_i32 = arith.constant 0 : i32
    %c0_i32_0 = arith.constant 0 : i32
    %c0_i32_1 = arith.constant 0 : i32
    return %c0_i32, %c0_i32_0 : i32, i32
  }
  func.func @transform_11(%arg0: i32) -> (i32, i32) {
    %c0_i32 = arith.constant 0 : i32
    %c0_i32_0 = arith.constant 0 : i32
    %c0_i32_1 = arith.constant 0 : i32
    return %c0_i32, %c0_i32_0 : i32, i32
  }
  func.func @transform_12(%arg0: i32) -> (i32, i32) {
    %c0_i32 = arith.constant 0 : i32
    %c0_i32_0 = arith.constant 0 : i32
    %c0_i32_1 = arith.constant 0 : i32
    return %c0_i32, %c0_i32_0 : i32, i32
  }
  func.func @transform_13(%arg0: i32) -> (i32, i32) {
    %c0_i32 = arith.constant 0 : i32
    %c0_i32_0 = arith.constant 0 : i32
    return %arg0, %c0_i32 : i32, i32
  }
}

</mosaic_0001>

<llo_original>
// kernel: _lambda_.1
$region0: #{_lambda_.1}
  #allocation0 [shape = 'u32[]', space=smem, size = 0x4, offset = 0x4, fixed_abs, tag = 'smem constant byte address 0x4 - core index']
  #allocation1 [shape = 'u32[144,128]{1,0:T(1,128)}', space=vmem, size = 0x12000, scoped, tag = 'internal scratch']
  #allocation2 [shape = 'f32[1,1]{1,0:T(1,128)S(1)}', space=vmem, size = 0x200, scoped, tag = 'scoped memory for _lambda_.1']
  %s0 = inlined_call_operand.vmem [shape: bf16[36,16,144], index: 0, kind: input, shape index: {}]
  %s1 = inlined_call_operand.vmem [shape: bf16[8,144,256], index: 1, kind: input, shape index: {}]
  %s2 = inlined_call_operand.vmem [shape: f32[1,256], index: 2, kind: input, shape index: {}]
  %s3 = inlined_call_operand.vmem [shape: bf16[4,256,192], index: 3, kind: input, shape index: {}]
  %s4 = inlined_call_operand.vmem [shape: f32[1,192], index: 4, kind: input, shape index: {}]
  %s5 = inlined_call_operand.vmem [shape: bf16[3,192,64], index: 5, kind: input, shape index: {}]
  %s6 = inlined_call_operand.vmem [shape: f32[1,64], index: 6, kind: input, shape index: {}]
  %s7 = inlined_call_operand.vmem [shape: bf16[1,64,512], index: 7, kind: input, shape index: {}]
  %s8 = inlined_call_operand.vmem [shape: f32[1,512], index: 8, kind: input, shape index: {}]
  %s9 = inlined_call_operand.vmem [shape: bf16[1,512,256], index: 9, kind: input, shape index: {}]
  %s10 = inlined_call_operand.vmem [shape: f32[1,256], index: 10, kind: input, shape index: {}]
  %s11 = inlined_call_operand.vmem [shape: f32[1,256], index: 11, kind: input, shape index: {}]
  %s12 = inlined_call_operand.<no memory space> [shape: f32[1,1], index: 12, kind: input, shape index: {}]
  %s13 = inlined_call_operand.vmem [shape: f32[16,1], index: 13, kind: output, shape index: {}]
  %s14 = sld [smem:[#allocation0]]
  $region62: #{_lambda_.1} parent=0
    _
  %s16 = ssub.s32 1, %s14
  %s17 = scalar_select 0, %s16, %s14
  %v18 = vstv %s12
  %19 = vst [vmem:[#allocation2] sm:$0x1] %v18
  // Predicated region
  $region2: #{_lambda_.1} parent=0 // pred_check
    _
  $region3: #{_lambda_.1} parent=0 // pred_check_branch
    %21 = sbr.rel (0) target = $region5
  $region4: #{_lambda_.1} parent=0 // pred_region
    _
  $region5: #{_lambda_.1} parent=0 // pred_fallthru
    _
  // Predicated region
  $region6: #{_lambda_.1} parent=0 // pred_check
    _
  $region7: #{_lambda_.1} parent=0 // pred_check_branch
    %23 = sbr.rel (0) target = $region9
  $region8: #{_lambda_.1} parent=0 // pred_region
    _
  $region9: #{_lambda_.1} parent=0 // pred_fallthru
    _
  // Predicated region
  $region10: #{_lambda_.1} parent=0 // pred_check
    _
  $region11: #{_lambda_.1} parent=0 // pred_check_branch
    %25 = sbr.rel (0) target = $region13
  $region12: #{_lambda_.1} parent=0 // pred_region
    _
  $region13: #{_lambda_.1} parent=0 // pred_fallthru
    _
  // Predicated region
  $region14: #{_lambda_.1} parent=0 // pred_check
    _
  $region15: #{_lambda_.1} parent=0 // pred_check_branch
    %27 = sbr.rel (0) target = $region17
  $region16: #{_lambda_.1} parent=0 // pred_region
    _
  $region17: #{_lambda_.1} parent=0 // pred_fallthru
    _
  // Predicated region
  $region18: #{_lambda_.1} parent=0 // pred_check
    _
  $region19: #{_lambda_.1} parent=0 // pred_check_branch
    %29 = sbr.rel (0) target = $region21
  $region20: #{_lambda_.1} parent=0 // pred_region
    _
  $region21: #{_lambda_.1} parent=0 // pred_fallthru
    _
  // Predicated region
  $region22: #{_lambda_.1} parent=0 // pred_check
    _
  $region23: #{_lambda_.1} parent=0 // pred_check_branch
    %31 = sbr.rel (0) target = $region25
  $region24: #{_lambda_.1} parent=0 // pred_region
    _
  $region25: #{_lambda_.1} parent=0 // pred_fallthru
    _
  // Predicated region
  $region26: #{_lambda_.1} parent=0 // pred_check
    _
  $region27: #{_lambda_.1} parent=0 // pred_check_branch
    %33 = sbr.rel (0) target = $region29
  $region28: #{_lambda_.1} parent=0 // pred_region
    _
  $region29: #{_lambda_.1} parent=0 // pred_fallthru
    _
  // Predicated region
  $region30: #{_lambda_.1} parent=0 // pred_check
    _
  $region31: #{_lambda_.1} parent=0 // pred_check_branch
    %35 = sbr.rel (0) target = $region33
  $region32: #{_lambda_.1} parent=0 // pred_region
    _
  $region33: #{_lambda_.1} parent=0 // pred_fallthru
    _
  // Predicated region
  $region34: #{_lambda_.1} parent=0 // pred_check
    _
  $region35: #{_lambda_.1} parent=0 // pred_check_branch
    %37 = sbr.rel (0) target = $region37
  $region36: #{_lambda_.1} parent=0 // pred_region
    _
  $region37: #{_lambda_.1} parent=0 // pred_fallthru
    _
  // Predicated region
  $region38: #{_lambda_.1} parent=0 // pred_check
    _
  $region39: #{_lambda_.1} parent=0 // pred_check_branch
    %39 = sbr.rel (0) target = $region41
  $region40: #{_lambda_.1} parent=0 // pred_region
    _
  $region41: #{_lambda_.1} parent=0 // pred_fallthru
    _
  // Predicated region
  $region42: #{_lambda_.1} parent=0 // pred_check
    _
  $region43: #{_lambda_.1} parent=0 // pred_check_branch
    %41 = sbr.rel (0) target = $region45
  $region44: #{_lambda_.1} parent=0 // pred_region
    _
  $region45: #{_lambda_.1} parent=0 // pred_fallthru
    _
  // Predicated region
  $region46: #{_lambda_.1} parent=0 // pred_check
    _
  $region47: #{_lambda_.1} parent=0 // pred_check_branch
    %43 = sbr.rel (0) target = $region49
  $region48: #{_lambda_.1} parent=0 // pred_region
    _
  $region49: #{_lambda_.1} parent=0 // pred_fallthru
    _
  // Predicated region
  $region50: #{_lambda_.1} parent=0 // pred_check
    _
  $region51: #{_lambda_.1} parent=0 // pred_check_branch
    %45 = sbr.rel (0) target = $region53
  $region52: #{_lambda_.1} parent=0 // pred_region
    _
  $region53: #{_lambda_.1} parent=0 // pred_fallthru
    _
  %v47 = vld [vmem:[%s2] sm:$0x3]
  %v48 = vld [vmem:[%s0] sm:$0xff]
  %v49 = vld [vmem:[%s0 + $0x8] sm:$0xff]
  %v50 = vld [vmem:[%s1] sm:$0xff]
  %v51 = vld [vmem:[%s1 + $0x8] sm:$0xff]
  %v52 = vld [vmem:[%s1 + $0x10] sm:$0xff]
  %v53 = vld [vmem:[%s1 + $0x18] sm:$0xff]
  %v54 = vld [vmem:[%s1 + $0x20] sm:$0xff]
  %v55 = vld [vmem:[%s1 + $0x28] sm:$0xff]
  %v56 = vld [vmem:[%s1 + $0x30] sm:$0xff]
  %v57 = vld [vmem:[%s1 + $0x38] sm:$0xff]
  %v58 = vld [vmem:[%s1 + $0x40] sm:$0xff]
  %v59 = vld [vmem:[%s1 + $0x48] sm:$0xff]
  %v60 = vld [vmem:[%s1 + $0x50] sm:$0xff]
  %v61 = vld [vmem:[%s1 + $0x58] sm:$0xff]
  %v62 = vld [vmem:[%s1 + $0x60] sm:$0xff]
  %v63 = vld [vmem:[%s1 + $0x68] sm:$0xff]
  %v64 = vld [vmem:[%s1 + $0x70] sm:$0xff]
  %v65 = vld [vmem:[%s1 + $0x78] sm:$0xff]
  %v66 = vld [vmem:[%s1 + $0x80] sm:$0xff]
  %v67 = vld [vmem:[%s1 + $0x88] sm:$0xff]
  %s68 = scalar_lea.vmem %s0, 16
  %v69 = vld [vmem:[%s68] sm:$0xff]
  %v70 = vld [vmem:[%s68 + $0x8] sm:$0xff]
  %s71 = scalar_lea.vmem %s1, 144
  %v72 = vld [vmem:[%s71] sm:$0xff]
  %v73 = vld [vmem:[%s71 + $0x8] sm:$0xff]
  %v74 = vld [vmem:[%s71 + $0x10] sm:$0xff]
  %v75 = vld [vmem:[%s71 + $0x18] sm:$0xff]
  %v76 = vld [vmem:[%s71 + $0x20] sm:$0xff]
  %v77 = vld [vmem:[%s71 + $0x28] sm:$0xff]
  %v78 = vld [vmem:[%s71 + $0x30] sm:$0xff]
  %v79 = vld [vmem:[%s71 + $0x38] sm:$0xff]
  %v80 = vld [vmem:[%s71 + $0x40] sm:$0xff]
  %v81 = vld [vmem:[%s71 + $0x48] sm:$0xff]
  %v82 = vld [vmem:[%s71 + $0x50] sm:$0xff]
  %v83 = vld [vmem:[%s71 + $0x58] sm:$0xff]
  %v84 = vld [vmem:[%s71 + $0x60] sm:$0xff]
  %v85 = vld [vmem:[%s71 + $0x68] sm:$0xff]
  %v86 = vld [vmem:[%s71 + $0x70] sm:$0xff]
  %v87 = vld [vmem:[%s71 + $0x78] sm:$0xff]
  %v88 = vld [vmem:[%s71 + $0x80] sm:$0xff]
  %v89 = vld [vmem:[%s71 + $0x88] sm:$0xff]
  %v92 = vunpack.c.l.b16 %v69
  %v93 = vunpack.c.h.b16 %v69
  %v94 = vunpack.c.l.b16 %v70
  %v95 = vunpack.c.h.b16 %v70
  %v96 = vpack.c.b16 %v94, %v92
  %v97 = vpack.c.b16 %v95, %v93
  %v117 = vunpack.c.l.b16 %v72
  %v118 = vunpack.c.h.b16 %v72
  %v119 = vunpack.c.l.b16 %v73
  %v120 = vunpack.c.h.b16 %v73
  %v121 = vunpack.c.l.b16 %v74
  %v122 = vunpack.c.h.b16 %v74
  %v123 = vunpack.c.l.b16 %v75
  %v124 = vunpack.c.h.b16 %v75
  %v125 = vunpack.c.l.b16 %v76
  %v126 = vunpack.c.h.b16 %v76
  %v127 = vunpack.c.l.b16 %v77
  %v128 = vunpack.c.h.b16 %v77
  %v129 = vunpack.c.l.b16 %v78
  %v130 = vunpack.c.h.b16 %v78
  %v131 = vunpack.c.l.b16 %v79
  %v132 = vunpack.c.h.b16 %v79
  %v133 = vunpack.c.l.b16 %v80
  %v134 = vunpack.c.h.b16 %v80
  %v135 = vunpack.c.l.b16 %v81
  %v136 = vunpack.c.h.b16 %v81
  %v137 = vunpack.c.l.b16 %v82
  %v138 = vunpack.c.h.b16 %v82
  %v139 = vunpack.c.l.b16 %v83
  %v140 = vunpack.c.h.b16 %v83
  %v141 = vunpack.c.l.b16 %v84
  %v142 = vunpack.c.h.b16 %v84
  %v143 = vunpack.c.l.b16 %v85
  %v144 = vunpack.c.h.b16 %v85
  %v145 = vunpack.c.l.b16 %v86
  %v146 = vunpack.c.h.b16 %v86
  %v147 = vunpack.c.l.b16 %v87
  %v148 = vunpack.c.h.b16 %v87
  %v149 = vunpack.c.l.b16 %v88
  %v150 = vunpack.c.h.b16 %v88
  %v151 = vunpack.c.l.b16 %v89
  %v152 = vunpack.c.h.b16 %v89
  %v153 = vpack.c.b16 %v119, %v117
  %v154 = vpack.c.b16 %v120, %v118
  %v155 = vpack.c.b16 %v123, %v121
  %v156 = vpack.c.b16 %v124, %v122
  %v157 = vpack.c.b16 %v127, %v125
  %v158 = vpack.c.b16 %v128, %v126
  %v159 = vpack.c.b16 %v131, %v129
  %v160 = vpack.c.b16 %v132, %v130
  %v161 = vpack.c.b16 %v135, %v133
  %v162 = vpack.c.b16 %v136, %v134
  %v163 = vpack.c.b16 %v139, %v137
  %v164 = vpack.c.b16 %v140, %v138
  %v165 = vpack.c.b16 %v143, %v141
  %v166 = vpack.c.b16 %v144, %v142
  %v167 = vpack.c.b16 %v147, %v145
  %v168 = vpack.c.b16 %v148, %v146
  %v169 = vpack.c.b16 %v151, %v149
  %v170 = vpack.c.b16 %v152, %v150
  %vm189 = vcmask 130048
  %v191 = vsel %vm189, %v97, 0
  %193 = vmatprep.subr.bf16.mxu0 %v154
  %194 = vmatpush1.bf16.msra.mxu0 %v153
  %195 = vmatprep.subr.bf16.mxu0 %v156
  %196 = vmatpush1.bf16.msra.mxu0 %v155
  %197 = vmatprep.subr.bf16.mxu0 %v158
  %198 = vmatpush1.bf16.msra.mxu0 %v157
  %199 = vmatprep.subr.bf16.mxu0 %v160
  %200 = vmatpush1.bf16.msra.mxu0 %v159
  %201 = vmatprep.subr.bf16.mxu0 %v162
  %202 = vmatpush1.bf16.msra.mxu0 %v161
  %203 = vmatprep.subr.bf16.mxu0 %v164
  %204 = vmatpush1.bf16.msra.mxu0 %v163
  %205 = vmatprep.subr.bf16.mxu0 %v166
  %206 = vmatpush1.bf16.msra.mxu0 %v165
  %207 = vmatprep.subr.bf16.mxu0 %v168
  %208 = vmatpush1.bf16.msra.mxu0 %v167
  %209 = vmatprep.subr.bf16.mxu0 %v170
  %210 = vmatpush1.bf16.msra.mxu0 %v169
  %211 = vmatprep.subr.bf16.mxu0 0
  %212 = vmatpush1.bf16.msra.mxu0 0
  %213 = vmatprep.subr.bf16.mxu0 0
  %214 = vmatpush1.bf16.msra.mxu0 0
  %215 = vmatprep.subr.bf16.mxu0 0
  %216 = vmatpush1.bf16.msra.mxu0 0
  %217 = vmatprep.subr.bf16.mxu0 0
  %218 = vmatpush1.bf16.msra.mxu0 0
  %219 = vmatprep.subr.bf16.mxu0 0
  %220 = vmatpush1.bf16.msra.mxu0 0
  %221 = vmatprep.subr.bf16.mxu0 0
  %222 = vmatpush1.bf16.msra.mxu0 0
  %223 = vmatprep.subr.bf16.mxu0 0
  %224 = vmatpush1.bf16.msra.mxu0 0
  %225 = vmatprep.mubr.bf16.mxu0 %v191
  %226 = vmatmul.mubr.bf16.gmra.mrb[0].mxu0 %v96
  %v227 = vpop.f32.mrb[0].mxu0
  %v228 = vadd.f32 0.0, %v227
  %v229 = vpop.f32.mrb[0].mxu0
  %v230 = vadd.f32 0.0, %v229
  %v231 = vpop.f32.mrb[0].mxu0
  %v232 = vadd.f32 0.0, %v231
  %v233 = vpop.f32.mrb[0].mxu0
  %v234 = vadd.f32 0.0, %v233
  %235 = vdwg.mxu0
  %v238 = vunpack.c.l.b16 %v48
  %v239 = vunpack.c.h.b16 %v48
  %v240 = vunpack.c.l.b16 %v49
  %v241 = vunpack.c.h.b16 %v49
  %v242 = vpack.c.b16 %v240, %v238
  %v243 = vpack.c.b16 %v241, %v239
  %v263 = vunpack.c.l.b16 %v50
  %v264 = vunpack.c.h.b16 %v50
  %v265 = vunpack.c.l.b16 %v51
  %v266 = vunpack.c.h.b16 %v51
  %v267 = vunpack.c.l.b16 %v52
  %v268 = vunpack.c.h.b16 %v52
  %v269 = vunpack.c.l.b16 %v53
  %v270 = vunpack.c.h.b16 %v53
  %v271 = vunpack.c.l.b16 %v54
  %v272 = vunpack.c.h.b16 %v54
  %v273 = vunpack.c.l.b16 %v55
  %v274 = vunpack.c.h.b16 %v55
  %v275 = vunpack.c.l.b16 %v56
  %v276 = vunpack.c.h.b16 %v56
  %v277 = vunpack.c.l.b16 %v57
  %v278 = vunpack.c.h.b16 %v57
  %v279 = vunpack.c.l.b16 %v58
  %v280 = vunpack.c.h.b16 %v58
  %v281 = vunpack.c.l.b16 %v59
  %v282 = vunpack.c.h.b16 %v59
  %v283 = vunpack.c.l.b16 %v60
  %v284 = vunpack.c.h.b16 %v60
  %v285 = vunpack.c.l.b16 %v61
  %v286 = vunpack.c.h.b16 %v61
  %v287 = vunpack.c.l.b16 %v62
  %v288 = vunpack.c.h.b16 %v62
  %v289 = vunpack.c.l.b16 %v63
  %v290 = vunpack.c.h.b16 %v63
  %v291 = vunpack.c.l.b16 %v64
  %v292 = vunpack.c.h.b16 %v64
  %v293 = vunpack.c.l.b16 %v65
  %v294 = vunpack.c.h.b16 %v65
  %v295 = vunpack.c.l.b16 %v66
  %v296 = vunpack.c.h.b16 %v66
  %v297 = vunpack.c.l.b16 %v67
  %v298 = vunpack.c.h.b16 %v67
  %v299 = vpack.c.b16 %v265, %v263
  %v300 = vpack.c.b16 %v266, %v264
  %v301 = vpack.c.b16 %v269, %v267
  %v302 = vpack.c.b16 %v270, %v268
  %v303 = vpack.c.b16 %v273, %v271
  %v304 = vpack.c.b16 %v274, %v272
  %v305 = vpack.c.b16 %v277, %v275
  %v306 = vpack.c.b16 %v278, %v276
  %v307 = vpack.c.b16 %v281, %v279
  %v308 = vpack.c.b16 %v282, %v280
  %v309 = vpack.c.b16 %v285, %v283
  %v310 = vpack.c.b16 %v286, %v284
  %v311 = vpack.c.b16 %v289, %v287
  %v312 = vpack.c.b16 %v290, %v288
  %v313 = vpack.c.b16 %v293, %v291
  %v314 = vpack.c.b16 %v294, %v292
  %v315 = vpack.c.b16 %v297, %v295
  %v316 = vpack.c.b16 %v298, %v296
  %v336 = vsel %vm189, %v243, 0
  %338 = vmatprep.subr.bf16.mxu0 %v300
  %339 = vmatpush1.bf16.msra.mxu0 %v299
  %340 = vmatprep.subr.bf16.mxu0 %v302
  %341 = vmatpush1.bf16.msra.mxu0 %v301
  %342 = vmatprep.subr.bf16.mxu0 %v304
  %343 = vmatpush1.bf16.msra.mxu0 %v303
  %344 = vmatprep.subr.bf16.mxu0 %v306
  %345 = vmatpush1.bf16.msra.mxu0 %v305
  %346 = vmatprep.subr.bf16.mxu0 %v308
  %347 = vmatpush1.bf16.msra.mxu0 %v307
  %348 = vmatprep.subr.bf16.mxu0 %v310
  %349 = vmatpush1.bf16.msra.mxu0 %v309
  %350 = vmatprep.subr.bf16.mxu0 %v312
  %351 = vmatpush1.bf16.msra.mxu0 %v311
  %352 = vmatprep.subr.bf16.mxu0 %v314
  %353 = vmatpush1.bf16.msra.mxu0 %v313
  %354 = vmatprep.subr.bf16.mxu0 %v316
  %355 = vmatpush1.bf16.msra.mxu0 %v315
  %356 = vmatprep.subr.bf16.mxu0 0
  %357 = vmatpush1.bf16.msra.mxu0 0
  %358 = vmatprep.subr.bf16.mxu0 0
  %359 = vmatpush1.bf16.msra.mxu0 0
  %360 = vmatprep.subr.bf16.mxu0 0
  %361 = vmatpush1.bf16.msra.mxu0 0
  %362 = vmatprep.subr.bf16.mxu0 0
  %363 = vmatpush1.bf16.msra.mxu0 0
  %364 = vmatprep.subr.bf16.mxu0 0
  %365 = vmatpush1.bf16.msra.mxu0 0
  %366 = vmatprep.subr.bf16.mxu0 0
  %367 = vmatpush1.bf16.msra.mxu0 0
  %368 = vmatprep.subr.bf16.mxu0 0
  %369 = vmatpush1.bf16.msra.mxu0 0
  %370 = vmatprep.mubr.bf16.mxu0 %v336
  %371 = vmatmul.mubr.bf16.gmra.mrb[0].mxu0 %v242
  %v372 = vpop.f32.mrb[0].mxu0
  %v373 = vadd.f32 %v228, %v372
  %v374 = vpop.f32.mrb[0].mxu0
  %v375 = vadd.f32 %v230, %v374
  %v376 = vpop.f32.mrb[0].mxu0
  %v377 = vadd.f32 %v232, %v376
  %v378 = vpop.f32.mrb[0].mxu0
  %v379 = vadd.f32 %v234, %v378
  %380 = vdwg.mxu0
  %s381 = scalar_lea.vmem %s0, 32
  %v382 = vld [vmem:[%s381] sm:$0xff]
  %v383 = vld [vmem:[%s381 + $0x8] sm:$0xff]
  %s384 = scalar_lea.vmem %s1, 288
  %v385 = vld [vmem:[%s384] sm:$0xff]
  %v386 = vld [vmem:[%s384 + $0x8] sm:$0xff]
  %v387 = vld [vmem:[%s384 + $0x10] sm:$0xff]
  %v388 = vld [vmem:[%s384 + $0x18] sm:$0xff]
  %v389 = vld [vmem:[%s384 + $0x20] sm:$0xff]
  %v390 = vld [vmem:[%s384 + $0x28] sm:$0xff]
  %v391 = vld [vmem:[%s384 + $0x30] sm:$0xff]
  %v392 = vld [vmem:[%s384 + $0x38] sm:$0xff]
  %v393 = vld [vmem:[%s384 + $0x40] sm:$0xff]
  %v394 = vld [vmem:[%s384 + $0x48] sm:$0xff]
  %v395 = vld [vmem:[%s384 + $0x50] sm:$0xff]
  %v396 = vld [vmem:[%s384 + $0x58] sm:$0xff]
  %v397 = vld [vmem:[%s384 + $0x60] sm:$0xff]
  %v398 = vld [vmem:[%s384 + $0x68] sm:$0xff]
  %v399 = vld [vmem:[%s384 + $0x70] sm:$0xff]
  %v400 = vld [vmem:[%s384 + $0x78] sm:$0xff]
  %v401 = vld [vmem:[%s384 + $0x80] sm:$0xff]
  %v402 = vld [vmem:[%s384 + $0x88] sm:$0xff]
  %v405 = vunpack.c.l.b16 %v382
  %v406 = vunpack.c.h.b16 %v382
  %v407 = vunpack.c.l.b16 %v383
  %v408 = vunpack.c.h.b16 %v383
  %v409 = vpack.c.b16 %v407, %v405
  %v410 = vpack.c.b16 %v408, %v406
  %v430 = vunpack.c.l.b16 %v385
  %v431 = vunpack.c.h.b16 %v385
  %v432 = vunpack.c.l.b16 %v386
  %v433 = vunpack.c.h.b16 %v386
  %v434 = vunpack.c.l.b16 %v387
  %v435 = vunpack.c.h.b16 %v387
  %v436 = vunpack.c.l.b16 %v388
  %v437 = vunpack.c.h.b16 %v388
  %v438 = vunpack.c.l.b16 %v389
  %v439 = vunpack.c.h.b16 %v389
  %v440 = vunpack.c.l.b16 %v390
  %v441 = vunpack.c.h.b16 %v390
  %v442 = vunpack.c.l.b16 %v391
  %v443 = vunpack.c.h.b16 %v391
  %v444 = vunpack.c.l.b16 %v392
  %v445 = vunpack.c.h.b16 %v392
  %v446 = vunpack.c.l.b16 %v393
  %v447 = vunpack.c.h.b16 %v393
  %v448 = vunpack.c.l.b16 %v394
  %v449 = vunpack.c.h.b16 %v394
  %v450 = vunpack.c.l.b16 %v395
  %v451 = vunpack.c.h.b16 %v395
  %v452 = vunpack.c.l.b16 %v396
  %v453 = vunpack.c.h.b16 %v396
  %v454 = vunpack.c.l.b16 %v397
  %v455 = vunpack.c.h.b16 %v397
  %v456 = vunpack.c.l.b16 %v398
  %v457 = vunpack.c.h.b16 %v398
  %v458 = vunpack.c.l.b16 %v399
  %v459 = vunpack.c.h.b16 %v399
  %v460 = vunpack.c.l.b16 %v400
  %v461 = vunpack.c.h.b16 %v400
  %v462 = vunpack.c.l.b16 %v401
  %v463 = vunpack.c.h.b16 %v401
  %v464 = vunpack.c.l.b16 %v402
  %v465 = vunpack.c.h.b16 %v402
  %v466 = vpack.c.b16 %v432, %v430
  %v467 = vpack.c.b16 %v433, %v431
  %v468 = vpack.c.b16 %v436, %v434
  %v469 = vpack.c.b16 %v437, %v435
  %v470 = vpack.c.b16 %v440, %v438
  %v471 = vpack.c.b16 %v441, %v439
  %v472 = vpack.c.b16 %v444, %v442
  %v473 = vpack.c.b16 %v445, %v443
  %v474 = vpack.c.b16 %v448, %v446
  %v475 = vpack.c.b16 %v449, %v447
  %v476 = vpack.c.b16 %v452, %v450
  %v477 = vpack.c.b16 %v453, %v451
  %v478 = vpack.c.b16 %v456, %v454
  %v479 = vpack.c.b16 %v457, %v455
  %v480 = vpack.c.b16 %v460, %v458
  %v481 = vpack.c.b16 %v461, %v459
  %v482 = vpack.c.b16 %v464, %v462
  %v483 = vpack.c.b16 %v465, %v463
  %v503 = vsel %vm189, %v410, 0
  %505 = vmatprep.subr.bf16.mxu0 %v467
  %506 = vmatpush1.bf16.msra.mxu0 %v466
  %507 = vmatprep.subr.bf16.mxu0 %v469
  %508 = vmatpush1.bf16.msra.mxu0 %v468
  %509 = vmatprep.subr.bf16.mxu0 %v471
  %510 = vmatpush1.bf16.msra.mxu0 %v470
  %511 = vmatprep.subr.bf16.mxu0 %v473
  %512 = vmatpush1.bf16.msra.mxu0 %v472
  %513 = vmatprep.subr.bf16.mxu0 %v475
  %514 = vmatpush1.bf16.msra.mxu0 %v474
  %515 = vmatprep.subr.bf16.mxu0 %v477
  %516 = vmatpush1.bf16.msra.mxu0 %v476
  %517 = vmatprep.subr.bf16.mxu0 %v479
  %518 = vmatpush1.bf16.msra.mxu0 %v478
  %519 = vmatprep.subr.bf16.mxu0 %v481
  %520 = vmatpush1.bf16.msra.mxu0 %v480
  %521 = vmatprep.subr.bf16.mxu0 %v483
  %522 = vmatpush1.bf16.msra.mxu0 %v482
  %523 = vmatprep.subr.bf16.mxu0 0
  %524 = vmatpush1.bf16.msra.mxu0 0
  %525 = vmatprep.subr.bf16.mxu0 0
  %526 = vmatpush1.bf16.msra.mxu0 0
  %527 = vmatprep.subr.bf16.mxu0 0
  %528 = vmatpush1.bf16.msra.mxu0 0
  %529 = vmatprep.subr.bf16.mxu0 0
  %530 = vmatpush1.bf16.msra.mxu0 0
  %531 = vmatprep.subr.bf16.mxu0 0
  %532 = vmatpush1.bf16.msra.mxu0 0
  %533 = vmatprep.subr.bf16.mxu0 0
  %534 = vmatpush1.bf16.msra.mxu0 0
  %535 = vmatprep.subr.bf16.mxu0 0
  %536 = vmatpush1.bf16.msra.mxu0 0
  %537 = vmatprep.mubr.bf16.mxu0 %v503
  %538 = vmatmul.mubr.bf16.gmra.mrb[0].mxu0 %v409
  %v539 = vpop.f32.mrb[0].mxu0
  %v540 = vadd.f32 0.0, %v539
  %v541 = vpop.f32.mrb[0].mxu0
  %v542 = vadd.f32 0.0, %v541
  %v543 = vpop.f32.mrb[0].mxu0
  %v544 = vadd.f32 0.0, %v543
  %v545 = vpop.f32.mrb[0].mxu0
  %v546 = vadd.f32 0.0, %v545
  %547 = vdwg.mxu0
  %v548 = vadd.f32 %v373, %v540
  %v549 = vadd.f32 %v375, %v542
  %v550 = vadd.f32 %v377, %v544
  %v551 = vadd.f32 %v379, %v546
  %s552 = scalar_lea.vmem %s0, 48
  %v553 = vld [vmem:[%s552] sm:$0xff]
  %v554 = vld [vmem:[%s552 + $0x8] sm:$0xff]
  %s555 = scalar_lea.vmem %s1, 432
  %v556 = vld [vmem:[%s555] sm:$0xff]
  %v557 = vld [vmem:[%s555 + $0x8] sm:$0xff]
  %v558 = vld [vmem:[%s555 + $0x10] sm:$0xff]
  %v559 = vld [vmem:[%s555 + $0x18] sm:$0xff]
  %v560 = vld [vmem:[%s555 + $0x20] sm:$0xff]
  %v561 = vld [vmem:[%s555 + $0x28] sm:$0xff]
  %v562 = vld [vmem:[%s555 + $0x30] sm:$0xff]
  %v563 = vld [vmem:[%s555 + $0x38] sm:$0xff]
  %v564 = vld [vmem:[%s555 + $0x40] sm:$0xff]
  %v565 = vld [vmem:[%s555 + $0x48] sm:$0xff]
  %v566 = vld [vmem:[%s555 + $0x50] sm:$0xff]
  %v567 = vld [vmem:[%s555 + $0x58] sm:$0xff]
  %v568 = vld [vmem:[%s555 + $0x60] sm:$0xff]
  %v569 = vld [vmem:[%s555 + $0x68] sm:$0xff]
  %v570 = vld [vmem:[%s555 + $0x70] sm:$0xff]
  %v571 = vld [vmem:[%s555 + $0x78] sm:$0xff]
  %v572 = vld [vmem:[%s555 + $0x80] sm:$0xff]
  %v573 = vld [vmem:[%s555 + $0x88] sm:$0xff]
  %v576 = vunpack.c.l.b16 %v553
  %v577 = vunpack.c.h.b16 %v553
  %v578 = vunpack.c.l.b16 %v554
  %v579 = vunpack.c.h.b16 %v554
  %v580 = vpack.c.b16 %v578, %v576
  %v581 = vpack.c.b16 %v579, %v577
  %v601 = vunpack.c.l.b16 %v556
  %v602 = vunpack.c.h.b16 %v556
  %v603 = vunpack.c.l.b16 %v557
  %v604 = vunpack.c.h.b16 %v557
  %v605 = vunpack.c.l.b16 %v558
  %v606 = vunpack.c.h.b16 %v558
  %v607 = vunpack.c.l.b16 %v559
  %v608 = vunpack.c.h.b16 %v559
  %v609 = vunpack.c.l.b16 %v560
  %v610 = vunpack.c.h.b16 %v560
  %v611 = vunpack.c.l.b16 %v561
  %v612 = vunpack.c.h.b16 %v561
  %v613 = vunpack.c.l.b16 %v562
  %v614 = vunpack.c.h.b16 %v562
  %v615 = vunpack.c.l.b16 %v563
  %v616 = vunpack.c.h.b16 %v563
  %v617 = vunpack.c.l.b16 %v564
  %v618 = vunpack.c.h.b16 %v564
  %v619 = vunpack.c.l.b16 %v565
  %v620 = vunpack.c.h.b16 %v565
  %v621 = vunpack.c.l.b16 %v566
  %v622 = vunpack.c.h.b16 %v566
  %v623 = vunpack.c.l.b16 %v567
  %v624 = vunpack.c.h.b16 %v567
  %v625 = vunpack.c.l.b16 %v568
  %v626 = vunpack.c.h.b16 %v568
  %v627 = vunpack.c.l.b16 %v569
  %v628 = vunpack.c.h.b16 %v569
  %v629 = vunpack.c.l.b16 %v570
  %v630 = vunpack.c.h.b16 %v570
  %v631 = vunpack.c.l.b16 %v571
  %v632 = vunpack.c.h.b16 %v571
  %v633 = vunpack.c.l.b16 %v572
  %v634 = vunpack.c.h.b16 %v572
  %v635 = vunpack.c.l.b16 %v573
  %v636 = vunpack.c.h.b16 %v573
  %v637 = vpack.c.b16 %v603, %v601
  %v638 = vpack.c.b16 %v604, %v602
  %v639 = vpack.c.b16 %v607, %v605
  %v640 = vpack.c.b16 %v608, %v606
  %v641 = vpack.c.b16 %v611, %v609
  %v642 = vpack.c.b16 %v612, %v610
  %v643 = vpack.c.b16 %v615, %v613
  %v644 = vpack.c.b16 %v616, %v614
  %v645 = vpack.c.b16 %v619, %v617
  %v646 = vpack.c.b16 %v620, %v618
  %v647 = vpack.c.b16 %v623, %v621
  %v648 = vpack.c.b16 %v624, %v622
  %v649 = vpack.c.b16 %v627, %v625
  %v650 = vpack.c.b16 %v628, %v626
  %v651 = vpack.c.b16 %v631, %v629
  %v652 = vpack.c.b16 %v632, %v630
  %v653 = vpack.c.b16 %v635, %v633
  %v654 = vpack.c.b16 %v636, %v634
  %v674 = vsel %vm189, %v581, 0
  %676 = vmatprep.subr.bf16.mxu0 %v638
  %677 = vmatpush1.bf16.msra.mxu0 %v637
  %678 = vmatprep.subr.bf16.mxu0 %v640
  %679 = vmatpush1.bf16.msra.mxu0 %v639
  %680 = vmatprep.subr.bf16.mxu0 %v642
  %681 = vmatpush1.bf16.msra.mxu0 %v641
  %682 = vmatprep.subr.bf16.mxu0 %v644
  %683 = vmatpush1.bf16.msra.mxu0 %v643
  %684 = vmatprep.subr.bf16.mxu0 %v646
  %685 = vmatpush1.bf16.msra.mxu0 %v645
  %686 = vmatprep.subr.bf16.mxu0 %v648
  %687 = vmatpush1.bf16.msra.mxu0 %v647
  %688 = vmatprep.subr.bf16.mxu0 %v650
  %689 = vmatpush1.bf16.msra.mxu0 %v649
  %690 = vmatprep.subr.bf16.mxu0 %v652
  %691 = vmatpush1.bf16.msra.mxu0 %v651
  %692 = vmatprep.subr.bf16.mxu0 %v654
  %693 = vmatpush1.bf16.msra.mxu0 %v653
  %694 = vmatprep.subr.bf16.mxu0 0
  %695 = vmatpush1.bf16.msra.mxu0 0
  %696 = vmatprep.subr.bf16.mxu0 0
  %697 = vmatpush1.bf16.msra.mxu0 0
  %698 = vmatprep.subr.bf16.mxu0 0
  %699 = vmatpush1.bf16.msra.mxu0 0
  %700 = vmatprep.subr.bf16.mxu0 0
  %701 = vmatpush1.bf16.msra.mxu0 0
  %702 = vmatprep.subr.bf16.mxu0 0
  %703 = vmatpush1.bf16.msra.mxu0 0
  %704 = vmatprep.subr.bf16.mxu0 0
  %705 = vmatpush1.bf16.msra.mxu0 0
  %706 = vmatprep.subr.bf16.mxu0 0
  %707 = vmatpush1.bf16.msra.mxu0 0
  %708 = vmatprep.mubr.bf16.mxu0 %v674
  %709 = vmatmul.mubr.bf16.gmra.mrb[0].mxu0 %v580
  %v710 = vpop.f32.mrb[0].mxu0
  %v711 = vadd.f32 0.0, %v710
  %v712 = vpop.f32.mrb[0].mxu0
  %v713 = vadd.f32 0.0, %v712
  %v714 = vpop.f32.mrb[0].mxu0
  %v715 = vadd.f32 0.0, %v714
  %v716 = vpop.f32.mrb[0].mxu0
  %v717 = vadd.f32 0.0, %v716
  %718 = vdwg.mxu0
  %v719 = vadd.f32 %v548, %v711
  %v720 = vadd.f32 %v549, %v713
  %v721 = vadd.f32 %v550, %v715
  %v722 = vadd.f32 %v551, %v717
  %s723 = scalar_lea.vmem %s0, 64
  %v724 = vld [vmem:[%s723] sm:$0xff]
  %v725 = vld [vmem:[%s723 + $0x8] sm:$0xff]
  %s726 = scalar_lea.vmem %s1, 576
  %v727 = vld [vmem:[%s726] sm:$0xff]
  %v728 = vld [vmem:[%s726 + $0x8] sm:$0xff]
  %v729 = vld [vmem:[%s726 + $0x10] sm:$0xff]
  %v730 = vld [vmem:[%s726 + $0x18] sm:$0xff]
  %v731 = vld [vmem:[%s726 + $0x20] sm:$0xff]
  %v732 = vld [vmem:[%s726 + $0x28] sm:$0xff]
  %v733 = vld [vmem:[%s726 + $0x30] sm:$0xff]
  %v734 = vld [vmem:[%s726 + $0x38] sm:$0xff]
  %v735 = vld [vmem:[%s726 + $0x40] sm:$0xff]
  %v736 = vld [vmem:[%s726 + $0x48] sm:$0xff]
  %v737 = vld [vmem:[%s726 + $0x50] sm:$0xff]
  %v738 = vld [vmem:[%s726 + $0x58] sm:$0xff]
  %v739 = vld [vmem:[%s726 + $0x60] sm:$0xff]
  %v740 = vld [vmem:[%s726 + $0x68] sm:$0xff]
  %v741 = vld [vmem:[%s726 + $0x70] sm:$0xff]
  %v742 = vld [vmem:[%s726 + $0x78] sm:$0xff]
  %v743 = vld [vmem:[%s726 + $0x80] sm:$0xff]
  %v744 = vld [vmem:[%s726 + $0x88] sm:$0xff]
  %v747 = vunpack.c.l.b16 %v724
  %v748 = vunpack.c.h.b16 %v724
  %v749 = vunpack.c.l.b16 %v725
  %v750 = vunpack.c.h.b16 %v725
  %v751 = vpack.c.b16 %v749, %v747
  %v752 = vpack.c.b16 %v750, %v748
  %v772 = vunpack.c.l.b16 %v727
  %v773 = vunpack.c.h.b16 %v727
  %v774 = vunpack.c.l.b16 %v728
  %v775 = vunpack.c.h.b16 %v728
  %v776 = vunpack.c.l.b16 %v729
  %v777 = vunpack.c.h.b16 %v729
  %v778 = vunpack.c.l.b16 %v730
  %v779 = vunpack.c.h.b16 %v730
  %v780 = vunpack.c.l.b16 %v731
  %v781 = vunpack.c.h.b16 %v731
  %v782 = vunpack.c.l.b16 %v732
  %v783 = vunpack.c.h.b16 %v732
  %v784 = vunpack.c.l.b16 %v733
  %v785 = vunpack.c.h.b16 %v733
  %v786 = vunpack.c.l.b16 %v734
  %v787 = vunpack.c.h.b16 %v734
  %v788 = vunpack.c.l.b16 %v735
  %v789 = vunpack.c.h.b16 %v735
  %v790 = vunpack.c.l.b16 %v736
  %v791 = vunpack.c.h.b16 %v736
  %v792 = vunpack.c.l.b16 %v737
  %v793 = vunpack.c.h.b16 %v737
  %v794 = vunpack.c.l.b16 %v738
  %v795 = vunpack.c.h.b16 %v738
  %v796 = vunpack.c.l.b16 %v739
  %v797 = vunpack.c.h.b16 %v739
  %v798 = vunpack.c.l.b16 %v740
  %v799 = vunpack.c.h.b16 %v740
  %v800 = vunpack.c.l.b16 %v741
  %v801 = vunpack.c.h.b16 %v741
  %v802 = vunpack.c.l.b16 %v742
  %v803 = vunpack.c.h.b16 %v742
  %v804 = vunpack.c.l.b16 %v743
  %v805 = vunpack.c.h.b16 %v743
  %v806 = vunpack.c.l.b16 %v744
  %v807 = vunpack.c.h.b16 %v744
  %v808 = vpack.c.b16 %v774, %v772
  %v809 = vpack.c.b16 %v775, %v773
  %v810 = vpack.c.b16 %v778, %v776
  %v811 = vpack.c.b16 %v779, %v777
  %v812 = vpack.c.b16 %v782, %v780
  %v813 = vpack.c.b16 %v783, %v781
  %v814 = vpack.c.b16 %v786, %v784
  %v815 = vpack.c.b16 %v787, %v785
  %v816 = vpack.c.b16 %v790, %v788
  %v817 = vpack.c.b16 %v791, %v789
  %v818 = vpack.c.b16 %v794, %v792
  %v819 = vpack.c.b16 %v795, %v793
  %v820 = vpack.c.b16 %v798, %v796
  %v821 = vpack.c.b16 %v799, %v797
  %v822 = vpack.c.b16 %v802, %v800
  %v823 = vpack.c.b16 %v803, %v801
  %v824 = vpack.c.b16 %v806, %v804
  %v825 = vpack.c.b16 %v807, %v805
  %v845 = vsel %vm189, %v752, 0
  %847 = vmatprep.subr.bf16.mxu0 %v809
  %848 = vmatpush1.bf16.msra.mxu0 %v808
  %849 = vmatprep.subr.bf16.mxu0 %v811
  %850 = vmatpush1.bf16.msra.mxu0 %v810
  %851 = vmatprep.subr.bf16.mxu0 %v813
  %852 = vmatpush1.bf16.msra.mxu0 %v812
  %853 = vmatprep.subr.bf16.mxu0 %v815
  %854 = vmatpush1.bf16.msra.mxu0 %v814
  %855 = vmatprep.subr.bf16.mxu0 %v817
  %856 = vmatpush1.bf16.msra.mxu0 %v816
  %857 = vmatprep.subr.bf16.mxu0 %v819
  %858 = vmatpush1.bf16.msra.mxu0 %v818
  %859 = vmatprep.subr.bf16.mxu0 %v821
  %860 = vmatpush1.bf16.msra.mxu0 %v820
  %861 = vmatprep.subr.bf16.mxu0 %v823
  %862 = vmatpush1.bf16.msra.mxu0 %v822
  %863 = vmatprep.subr.bf16.mxu0 %v825
  %864 = vmatpush1.bf16.msra.mxu0 %v824
  %865 = vmatprep.subr.bf16.mxu0 0
  %866 = vmatpush1.bf16.msra.mxu0 0
  %867 = vmatprep.subr.bf16.mxu0 0
  %868 = vmatpush1.bf16.msra.mxu0 0
  %869 = vmatprep.subr.bf16.mxu0 0
  %870 = vmatpush1.bf16.msra.mxu0 0
  %871 = vmatprep.subr.bf16.mxu0 0
  %872 = vmatpush1.bf16.msra.mxu0 0
  %873 = vmatprep.subr.bf16.mxu0 0
  %874 = vmatpush1.bf16.msra.mxu0 0
  %875 = vmatprep.subr.bf16.mxu0 0
  %876 = vmatpush1.bf16.msra.mxu0 0
  %877 = vmatprep.subr.bf16.mxu0 0
  %878 = vmatpush1.bf16.msra.mxu0 0
  %879 = vmatprep.mubr.bf16.mxu0 %v845
  %880 = vmatmul.mubr.bf16.gmra.mrb[0].mxu0 %v751
  %v881 = vpop.f32.mrb[0].mxu0
  %v882 = vadd.f32 0.0, %v881
  %v883 = vpop.f32.mrb[0].mxu0
  %v884 = vadd.f32 0.0, %v883
  %v885 = vpop.f32.mrb[0].mxu0
  %v886 = vadd.f32 0.0, %v885
  %v887 = vpop.f32.mrb[0].mxu0
  %v888 = vadd.f32 0.0, %v887
  %889 = vdwg.mxu0
  %v890 = vadd.f32 %v719, %v882
  %v891 = vadd.f32 %v720, %v884
  %v892 = vadd.f32 %v721, %v886
  %v893 = vadd.f32 %v722, %v888
  %s894 = scalar_lea.vmem %s0, 80
  %v895 = vld [vmem:[%s894] sm:$0xff]
  %v896 = vld [vmem:[%s894 + $0x8] sm:$0xff]
  %s897 = scalar_lea.vmem %s1, 720
  %v898 = vld [vmem:[%s897] sm:$0xff]
  %v899 = vld [vmem:[%s897 + $0x8] sm:$0xff]
  %v900 = vld [vmem:[%s897 + $0x10] sm:$0xff]
  %v901 = vld [vmem:[%s897 + $0x18] sm:$0xff]
  %v902 = vld [vmem:[%s897 + $0x20] sm:$0xff]
  %v903 = vld [vmem:[%s897 + $0x28] sm:$0xff]
  %v904 = vld [vmem:[%s897 + $0x30] sm:$0xff]
  %v905 = vld [vmem:[%s897 + $0x38] sm:$0xff]
  %v906 = vld [vmem:[%s897 + $0x40] sm:$0xff]
  %v907 = vld [vmem:[%s897 + $0x48] sm:$0xff]
  %v908 = vld [vmem:[%s897 + $0x50] sm:$0xff]
  %v909 = vld [vmem:[%s897 + $0x58] sm:$0xff]
  %v910 = vld [vmem:[%s897 + $0x60] sm:$0xff]
  %v911 = vld [vmem:[%s897 + $0x68] sm:$0xff]
  %v912 = vld [vmem:[%s897 + $0x70] sm:$0xff]
  %v913 = vld [vmem:[%s897 + $0x78] sm:$0xff]
  %v914 = vld [vmem:[%s897 + $0x80] sm:$0xff]
  %v915 = vld [vmem:[%s897 + $0x88] sm:$0xff]
  %v918 = vunpack.c.l.b16 %v895
  %v919 = vunpack.c.h.b16 %v895
  %v920 = vunpack.c.l.b16 %v896
  %v921 = vunpack.c.h.b16 %v896
  %v922 = vpack.c.b16 %v920, %v918
  %v923 = vpack.c.b16 %v921, %v919
  %v943 = vunpack.c.l.b16 %v898
  %v944 = vunpack.c.h.b16 %v898
  %v945 = vunpack.c.l.b16 %v899
  %v946 = vunpack.c.h.b16 %v899
  %v947 = vunpack.c.l.b16 %v900
  %v948 = vunpack.c.h.b16 %v900
  %v949 = vunpack.c.l.b16 %v901
  %v950 = vunpack.c.h.b16 %v901
  %v951 = vunpack.c.l.b16 %v902
  %v952 = vunpack.c.h.b16 %v902
  %v953 = vunpack.c.l.b16 %v903
  %v954 = vunpack.c.h.b16 %v903
  %v955 = vunpack.c.l.b16 %v904
  %v956 = vunpack.c.h.b16 %v904
  %v957 = vunpack.c.l.b16 %v905
  %v958 = vunpack.c.h.b16 %v905
  %v959 = vunpack.c.l.b16 %v906
  %v960 = vunpack.c.h.b16 %v906
  %v961 = vunpack.c.l.b16 %v907
  %v962 = vunpack.c.h.b16 %v907
  %v963 = vunpack.c.l.b16 %v908
  %v964 = vunpack.c.h.b16 %v908
  %v965 = vunpack.c.l.b16 %v909
  %v966 = vunpack.c.h.b16 %v909
  %v967 = vunpack.c.l.b16 %v910
  %v968 = vunpack.c.h.b16 %v910
  %v969 = vunpack.c.l.b16 %v911
  %v970 = vunpack.c.h.b16 %v911
  %v971 = vunpack.c.l.b16 %v912
  %v972 = vunpack.c.h.b16 %v912
  %v973 = vunpack.c.l.b16 %v913
  %v974 = vunpack.c.h.b16 %v913
  %v975 = vunpack.c.l.b16 %v914
  %v976 = vunpack.c.h.b16 %v914
  %v977 = vunpack.c.l.b16 %v915
  %v978 = vunpack.c.h.b16 %v915
  %v979 = vpack.c.b16 %v945, %v943
  %v980 = vpack.c.b16 %v946, %v944
  %v981 = vpack.c.b16 %v949, %v947
  %v982 = vpack.c.b16 %v950, %v948
  %v983 = vpack.c.b16 %v953, %v951
  %v984 = vpack.c.b16 %v954, %v952
  %v985 = vpack.c.b16 %v957, %v955
  %v986 = vpack.c.b16 %v958, %v956
  %v987 = vpack.c.b16 %v961, %v959
  %v988 = vpack.c.b16 %v962, %v960
  %v989 = vpack.c.b16 %v965, %v963
  %v990 = vpack.c.b16 %v966, %v964
  %v991 = vpack.c.b16 %v969, %v967
  %v992 = vpack.c.b16 %v970, %v968
  %v993 = vpack.c.b16 %v973, %v971
  %v994 = vpack.c.b16 %v974, %v972
  %v995 = vpack.c.b16 %v977, %v975
  %v996 = vpack.c.b16 %v978, %v976
  %v1016 = vsel %vm189, %v923, 0
  %1018 = vmatprep.subr.bf16.mxu0 %v980
  %1019 = vmatpush1.bf16.msra.mxu0 %v979
  %1020 = vmatprep.subr.bf16.mxu0 %v982
  %1021 = vmatpush1.bf16.msra.mxu0 %v981
  %1022 = vmatprep.subr.bf16.mxu0 %v984
  %1023 = vmatpush1.bf16.msra.mxu0 %v983
  %1024 = vmatprep.subr.bf16.mxu0 %v986
  %1025 = vmatpush1.bf16.msra.mxu0 %v985
  %1026 = vmatprep.subr.bf16.mxu0 %v988
  %1027 = vmatpush1.bf16.msra.mxu0 %v987
  %1028 = vmatprep.subr.bf16.mxu0 %v990
  %1029 = vmatpush1.bf16.msra.mxu0 %v989
  %1030 = vmatprep.subr.bf16.mxu0 %v992
  %1031 = vmatpush1.bf16.msra.mxu0 %v991
  %1032 = vmatprep.subr.bf16.mxu0 %v994
  %1033 = vmatpush1.bf16.msra.mxu0 %v993
  %1034 = vmatprep.subr.bf16.mxu0 %v996
  %1035 = vmatpush1.bf16.msra.mxu0 %v995
  %1036 = vmatprep.subr.bf16.mxu0 0
  %1037 = vmatpush1.bf16.msra.mxu0 0
  %1038 = vmatprep.subr.bf16.mxu0 0
  %1039 = vmatpush1.bf16.msra.mxu0 0
  %1040 = vmatprep.subr.bf16.mxu0 0
  %1041 = vmatpush1.bf16.msra.mxu0 0
  %1042 = vmatprep.subr.bf16.mxu0 0
  %1043 = vmatpush1.bf16.msra.mxu0 0
  %1044 = vmatprep.subr.bf16.mxu0 0
  %1045 = vmatpush1.bf16.msra.mxu0 0
  %1046 = vmatprep.subr.bf16.mxu0 0
  %1047 = vmatpush1.bf16.msra.mxu0 0
  %1048 = vmatprep.subr.bf16.mxu0 0
  %1049 = vmatpush1.bf16.msra.mxu0 0
  %1050 = vmatprep.mubr.bf16.mxu0 %v1016
  %1051 = vmatmul.mubr.bf16.gmra.mrb[0].mxu0 %v922
  %v1052 = vpop.f32.mrb[0].mxu0
  %v1053 = vadd.f32 0.0, %v1052
  %v1054 = vpop.f32.mrb[0].mxu0
  %v1055 = vadd.f32 0.0, %v1054
  %v1056 = vpop.f32.mrb[0].mxu0
  %v1057 = vadd.f32 0.0, %v1056
  %v1058 = vpop.f32.mrb[0].mxu0
  %v1059 = vadd.f32 0.0, %v1058
  %1060 = vdwg.mxu0
  %v1061 = vadd.f32 %v890, %v1053
  %v1062 = vadd.f32 %v891, %v1055
  %v1063 = vadd.f32 %v892, %v1057
  %v1064 = vadd.f32 %v893, %v1059
  %s1065 = scalar_lea.vmem %s0, 96
  %v1066 = vld [vmem:[%s1065] sm:$0xff]
  %v1067 = vld [vmem:[%s1065 + $0x8] sm:$0xff]
  %s1068 = scalar_lea.vmem %s1, 864
  %v1069 = vld [vmem:[%s1068] sm:$0xff]
  %v1070 = vld [vmem:[%s1068 + $0x8] sm:$0xff]
  %v1071 = vld [vmem:[%s1068 + $0x10] sm:$0xff]
  %v1072 = vld [vmem:[%s1068 + $0x18] sm:$0xff]
  %v1073 = vld [vmem:[%s1068 + $0x20] sm:$0xff]
  %v1074 = vld [vmem:[%s1068 + $0x28] sm:$0xff]
  %v1075 = vld [vmem:[%s1068 + $0x30] sm:$0xff]
  %v1076 = vld [vmem:[%s1068 + $0x38] sm:$0xff]
  %v1077 = vld [vmem:[%s1068 + $0x40] sm:$0xff]
  %v1078 = vld [vmem:[%s1068 + $0x48] sm:$0xff]
  %v1079 = vld [vmem:[%s1068 + $0x50] sm:$0xff]
  %v1080 = vld [vmem:[%s1068 + $0x58] sm:$0xff]
  %v1081 = vld [vmem:[%s1068 + $0x60] sm:$0xff]
  %v1082 = vld [vmem:[%s1068 + $0x68] sm:$0xff]
  %v1083 = vld [vmem:[%s1068 + $0x70] sm:$0xff]
  %v1084 = vld [vmem:[%s1068 + $0x78] sm:$0xff]
  %v1085 = vld [vmem:[%s1068 + $0x80] sm:$0xff]
  %v1086 = vld [vmem:[%s1068 + $0x88] sm:$0xff]
  %v1089 = vunpack.c.l.b16 %v1066
  %v1090 = vunpack.c.h.b16 %v1066
  %v1091 = vunpack.c.l.b16 %v1067
  %v1092 = vunpack.c.h.b16 %v1067
  %v1093 = vpack.c.b16 %v1091, %v1089
  %v1094 = vpack.c.b16 %v1092, %v1090
  %v1114 = vunpack.c.l.b16 %v1069
  %v1115 = vunpack.c.h.b16 %v1069
  %v1116 = vunpack.c.l.b16 %v1070
  %v1117 = vunpack.c.h.b16 %v1070
  %v1118 = vunpack.c.l.b16 %v1071
  %v1119 = vunpack.c.h.b16 %v1071
  %v1120 = vunpack.c.l.b16 %v1072
  %v1121 = vunpack.c.h.b16 %v1072
  %v1122 = vunpack.c.l.b16 %v1073
  %v1123 = vunpack.c.h.b16 %v1073
  %v1124 = vunpack.c.l.b16 %v1074
  %v1125 = vunpack.c.h.b16 %v1074
  %v1126 = vunpack.c.l.b16 %v1075
  %v1127 = vunpack.c.h.b16 %v1075
  %v1128 = vunpack.c.l.b16 %v1076
  %v1129 = vunpack.c.h.b16 %v1076
  %v1130 = vunpack.c.l.b16 %v1077
  %v1131 = vunpack.c.h.b16 %v1077
  %v1132 = vunpack.c.l.b16 %v1078
  %v1133 = vunpack.c.h.b16 %v1078
  %v1134 = vunpack.c.l.b16 %v1079
  %v1135 = vunpack.c.h.b16 %v1079
  %v1136 = vunpack.c.l.b16 %v1080
  %v1137 = vunpack.c.h.b16 %v1080
  %v1138 = vunpack.c.l.b16 %v1081
  %v1139 = vunpack.c.h.b16 %v1081
  %v1140 = vunpack.c.l.b16 %v1082
  %v1141 = vunpack.c.h.b16 %v1082
  %v1142 = vunpack.c.l.b16 %v1083
  %v1143 = vunpack.c.h.b16 %v1083
  %v1144 = vunpack.c.l.b16 %v1084
  %v1145 = vunpack.c.h.b16 %v1084
  %v1146 = vunpack.c.l.b16 %v1085
  %v1147 = vunpack.c.h.b16 %v1085
  %v1148 = vunpack.c.l.b16 %v1086
  %v1149 = vunpack.c.h.b16 %v1086
  %v1150 = vpack.c.b16 %v1116, %v1114
  %v1151 = vpack.c.b16 %v1117, %v1115
  %v1152 = vpack.c.b16 %v1120, %v1118
  %v1153 = vpack.c.b16 %v1121, %v1119
  %v1154 = vpack.c.b16 %v1124, %v1122
  %v1155 = vpack.c.b16 %v1125, %v1123
  %v1156 = vpack.c.b16 %v1128, %v1126
  %v1157 = vpack.c.b16 %v1129, %v1127
  %v1158 = vpack.c.b16 %v1132, %v1130
  %v1159 = vpack.c.b16 %v1133, %v1131
  %v1160 = vpack.c.b16 %v1136, %v1134
  %v1161 = vpack.c.b16 %v1137, %v1135
  %v1162 = vpack.c.b16 %v1140, %v1138
  %v1163 = vpack.c.b16 %v1141, %v1139
  %v1164 = vpack.c.b16 %v1144, %v1142
  %v1165 = vpack.c.b16 %v1145, %v1143
  %v1166 = vpack.c.b16 %v1148, %v1146
  %v1167 = vpack.c.b16 %v1149, %v1147
  %v1187 = vsel %vm189, %v1094, 0
  %1189 = vmatprep.subr.bf16.mxu0 %v1151
  %1190 = vmatpush1.bf16.msra.mxu0 %v1150
  %1191 = vmatprep.subr.bf16.mxu0 %v1153
  %1192 = vmatpush1.bf16.msra.mxu0 %v1152
  %1193 = vmatprep.subr.bf16.mxu0 %v1155
  %1194 = vmatpush1.bf16.msra.mxu0 %v1154
  %1195 = vmatprep.subr.bf16.mxu0 %v1157
  %1196 = vmatpush1.bf16.msra.mxu0 %v1156
  %1197 = vmatprep.subr.bf16.mxu0 %v1159
  %1198 = vmatpush1.bf16.msra.mxu0 %v1158
  %1199 = vmatprep.subr.bf16.mxu0 %v1161
  %1200 = vmatpush1.bf16.msra.mxu0 %v1160
  %1201 = vmatprep.subr.bf16.mxu0 %v1163
  %1202 = vmatpush1.bf16.msra.mxu0 %v1162
  %1203 = vmatprep.subr.bf16.mxu0 %v1165
  %1204 = vmatpush1.bf16.msra.mxu0 %v1164
  %1205 = vmatprep.subr.bf16.mxu0 %v1167
  %1206 = vmatpush1.bf16.msra.mxu0 %v1166
  %1207 = vmatprep.subr.bf16.mxu0 0
  %1208 = vmatpush1.bf16.msra.mxu0 0
  %1209 = vmatprep.subr.bf16.mxu0 0
  %1210 = vmatpush1.bf16.msra.mxu0 0
  %1211 = vmatprep.subr.bf16.mxu0 0
  %1212 = vmatpush1.bf16.msra.mxu0 0
  %1213 = vmatprep.subr.bf16.mxu0 0
  %1214 = vmatpush1.bf16.msra.mxu0 0
  %1215 = vmatprep.subr.bf16.mxu0 0
  %1216 = vmatpush1.bf16.msra.mxu0 0
  %1217 = vmatprep.subr.bf16.mxu0 0
  %1218 = vmatpush1.bf16.msra.mxu0 0
  %1219 = vmatprep.subr.bf16.mxu0 0
  %1220 = vmatpush1.bf16.msra.mxu0 0
  %1221 = vmatprep.mubr.bf16.mxu0 %v1187
  %1222 = vmatmul.mubr.bf16.gmra.mrb[0].mxu0 %v1093
  %v1223 = vpop.f32.mrb[0].mxu0
  %v1224 = vadd.f32 0.0, %v1223
  %v1225 = vpop.f32.mrb[0].mxu0
  %v1226 = vadd.f32 0.0, %v1225
  %v1227 = vpop.f32.mrb[0].mxu0
  %v1228 = vadd.f32 0.0, %v1227
  %v1229 = vpop.f32.mrb[0].mxu0
  %v1230 = vadd.f32 0.0, %v1229
  %1231 = vdwg.mxu0
  %v1232 = vadd.f32 %v1061, %v1224
  %v1233 = vadd.f32 %v1062, %v1226
  %v1234 = vadd.f32 %v1063, %v1228
  %v1235 = vadd.f32 %v1064, %v1230
  %s1236 = scalar_lea.vmem %s0, 112
  %v1237 = vld [vmem:[%s1236] sm:$0xff]
  %v1238 = vld [vmem:[%s1236 + $0x8] sm:$0xff]
  %s1239 = scalar_lea.vmem %s1, 1008
  %v1240 = vld [vmem:[%s1239] sm:$0xff]
  %v1241 = vld [vmem:[%s1239 + $0x8] sm:$0xff]
  %v1242 = vld [vmem:[%s1239 + $0x10] sm:$0xff]
  %v1243 = vld [vmem:[%s1239 + $0x18] sm:$0xff]
  %v1244 = vld [vmem:[%s1239 + $0x20] sm:$0xff]
  %v1245 = vld [vmem:[%s1239 + $0x28] sm:$0xff]
  %v1246 = vld [vmem:[%s1239 + $0x30] sm:$0xff]
  %v1247 = vld [vmem:[%s1239 + $0x38] sm:$0xff]
  %v1248 = vld [vmem:[%s1239 + $0x40] sm:$0xff]
  %v1249 = vld [vmem:[%s1239 + $0x48] sm:$0xff]
  %v1250 = vld [vmem:[%s1239 + $0x50] sm:$0xff]
  %v1251 = vld [vmem:[%s1239 + $0x58] sm:$0xff]
  %v1252 = vld [vmem:[%s1239 + $0x60] sm:$0xff]
  %v1253 = vld [vmem:[%s1239 + $0x68] sm:$0xff]
  %v1254 = vld [vmem:[%s1239 + $0x70] sm:$0xff]
  %v1255 = vld [vmem:[%s1239 + $0x78] sm:$0xff]
  %v1256 = vld [vmem:[%s1239 + $0x80] sm:$0xff]
  %v1257 = vld [vmem:[%s1239 + $0x88] sm:$0xff]
  %v1260 = vunpack.c.l.b16 %v1237
  %v1261 = vunpack.c.h.b16 %v1237
  %v1262 = vunpack.c.l.b16 %v1238
  %v1263 = vunpack.c.h.b16 %v1238
  %v1264 = vpack.c.b16 %v1262, %v1260
  %v1265 = vpack.c.b16 %v1263, %v1261
  %v1285 = vunpack.c.l.b16 %v1240
  %v1286 = vunpack.c.h.b16 %v1240
  %v1287 = vunpack.c.l.b16 %v1241
  %v1288 = vunpack.c.h.b16 %v1241
  %v1289 = vunpack.c.l.b16 %v1242
  %v1290 = vunpack.c.h.b16 %v1242
  %v1291 = vunpack.c.l.b16 %v1243
  %v1292 = vunpack.c.h.b16 %v1243
  %v1293 = vunpack.c.l.b16 %v1244
  %v1294 = vunpack.c.h.b16 %v1244
  %v1295 = vunpack.c.l.b16 %v1245
  %v1296 = vunpack.c.h.b16 %v1245
  %v1297 = vunpack.c.l.b16 %v1246
  %v1298 = vunpack.c.h.b16 %v1246
  %v1299 = vunpack.c.l.b16 %v1247
  %v1300 = vunpack.c.h.b16 %v1247
  %v1301 = vunpack.c.l.b16 %v1248
  %v1302 = vunpack.c.h.b16 %v1248
  %v1303 = vunpack.c.l.b16 %v1249
  %v1304 = vunpack.c.h.b16 %v1249
  %v1305 = vunpack.c.l.b16 %v1250
  %v1306 = vunpack.c.h.b16 %v1250
  %v1307 = vunpack.c.l.b16 %v1251
  %v1308 = vunpack.c.h.b16 %v1251
  %v1309 = vunpack.c.l.b16 %v1252
  %v1310 = vunpack.c.h.b16 %v1252
  %v1311 = vunpack.c.l.b16 %v1253
  %v1312 = vunpack.c.h.b16 %v1253
  %v1313 = vunpack.c.l.b16 %v1254
  %v1314 = vunpack.c.h.b16 %v1254
  %v1315 = vunpack.c.l.b16 %v1255
  %v1316 = vunpack.c.h.b16 %v1255
  %v1317 = vunpack.c.l.b16 %v1256
  %v1318 = vunpack.c.h.b16 %v1256
  %v1319 = vunpack.c.l.b16 %v1257
  %v1320 = vunpack.c.h.b16 %v1257
  %v1321 = vpack.c.b16 %v1287, %v1285
  %v1322 = vpack.c.b16 %v1288, %v1286
  %v1323 = vpack.c.b16 %v1291, %v1289
  %v1324 = vpack.c.b16 %v1292, %v1290
  %v1325 = vpack.c.b16 %v1295, %v1293
  %v1326 = vpack.c.b16 %v1296, %v1294
  %v1327 = vpack.c.b16 %v1299, %v1297
  %v1328 = vpack.c.b16 %v1300, %v1298
  %v1329 = vpack.c.b16 %v1303, %v1301
  %v1330 = vpack.c.b16 %v1304, %v1302
  %v1331 = vpack.c.b16 %v1307, %v1305
  %v1332 = vpack.c.b16 %v1308, %v1306
  %v1333 = vpack.c.b16 %v1311, %v1309
  %v1334 = vpack.c.b16 %v1312, %v1310
  %v1335 = vpack.c.b16 %v1315, %v1313
  %v1336 = vpack.c.b16 %v1316, %v1314
  %v1337 = vpack.c.b16 %v1319, %v1317
  %v1338 = vpack.c.b16 %v1320, %v1318
  %v1358 = vsel %vm189, %v1265, 0
  %1360 = vmatprep.subr.bf16.mxu0 %v1322
  %1361 = vmatpush1.bf16.msra.mxu0 %v1321
  %1362 = vmatprep.subr.bf16.mxu0 %v1324
  %1363 = vmatpush1.bf16.msra.mxu0 %v1323
  %1364 = vmatprep.subr.bf16.mxu0 %v1326
  %1365 = vmatpush1.bf16.msra.mxu0 %v1325
  %1366 = vmatprep.subr.bf16.mxu0 %v1328
  %1367 = vmatpush1.bf16.msra.mxu0 %v1327
  %1368 = vmatprep.subr.bf16.mxu0 %v1330
  %1369 = vmatpush1.bf16.msra.mxu0 %v1329
  %1370 = vmatprep.subr.bf16.mxu0 %v1332
  %1371 = vmatpush1.bf16.msra.mxu0 %v1331
  %1372 = vmatprep.subr.bf16.mxu0 %v1334
  %1373 = vmatpush1.bf16.msra.mxu0 %v1333
  %1374 = vmatprep.subr.bf16.mxu0 %v1336
  %1375 = vmatpush1.bf16.msra.mxu0 %v1335
  %1376 = vmatprep.subr.bf16.mxu0 %v1338
  %1377 = vmatpush1.bf16.msra.mxu0 %v1337
  %1378 = vmatprep.subr.bf16.mxu0 0
  %1379 = vmatpush1.bf16.msra.mxu0 0
  %1380 = vmatprep.subr.bf16.mxu0 0
  %1381 = vmatpush1.bf16.msra.mxu0 0
  %1382 = vmatprep.subr.bf16.mxu0 0
  %1383 = vmatpush1.bf16.msra.mxu0 0
  %1384 = vmatprep.subr.bf16.mxu0 0
  %1385 = vmatpush1.bf16.msra.mxu0 0
  %1386 = vmatprep.subr.bf16.mxu0 0
  %1387 = vmatpush1.bf16.msra.mxu0 0
  %1388 = vmatprep.subr.bf16.mxu0 0
  %1389 = vmatpush1.bf16.msra.mxu0 0
  %1390 = vmatprep.subr.bf16.mxu0 0
  %1391 = vmatpush1.bf16.msra.mxu0 0
  %1392 = vmatprep.mubr.bf16.mxu0 %v1358
  %1393 = vmatmul.mubr.bf16.gmra.mrb[0].mxu0 %v1264
  %v1394 = vpop.f32.mrb[0].mxu0
  %v1395 = vadd.f32 0.0, %v1394
  %v1396 = vpop.f32.mrb[0].mxu0
  %v1397 = vadd.f32 0.0, %v1396
  %v1398 = vpop.f32.mrb[0].mxu0
  %v1399 = vadd.f32 0.0, %v1398
  %v1400 = vpop.f32.mrb[0].mxu0
  %v1401 = vadd.f32 0.0, %v1400
  %1402 = vdwg.mxu0
  %v1403 = vadd.f32 %v1232, %v1395
  %v1404 = vadd.f32 %v1233, %v1397
  %v1405 = vadd.f32 %v1234, %v1399
  %v1406 = vadd.f32 %v1235, %v1401
  %v1408 = vlaneseq
  %v1409 = vshrl.u32 %v1408, 7
  %v1410 = vsub.s32 0, %v1409
  %v1411 = vrot.slane %v47, %v1410
  %v1412 = vlaneseq
  %v1413 = vshrl.u32 %v1412, 7
  %v1414 = vsub.s32 1, %v1413
  %v1415 = vrot.slane %v47, %v1414
  %v1418 = vadd.f32 %v1403, %v1411
  %v1419 = vadd.f32 %v1404, %v1415
  %v1420 = vadd.f32 %v1405, %v1411
  %v1421 = vadd.f32 %v1406, %v1415
  %v1422 = vmax.f32 %v1418, 0.0
  %v1423 = vmax.f32 %v1419, 0.0
  %v1424 = vmax.f32 %v1420, 0.0
  %v1425 = vmax.f32 %v1421, 0.0
  %v1426 = vpack.c.bf16 %v1424, %v1422
  %v1427 = vpack.c.bf16 %v1425, %v1423
  %1428 = vmatprep.subr.bf16.mxu0 %v154
  %1429 = vmatpush1.bf16.msra.mxu0 %v153
  %1430 = vmatprep.subr.bf16.mxu0 %v156
  %1431 = vmatpush1.bf16.msra.mxu0 %v155
  %1432 = vmatprep.subr.bf16.mxu0 %v158
  %1433 = vmatpush1.bf16.msra.mxu0 %v157
  %1434 = vmatprep.subr.bf16.mxu0 %v160
  %1435 = vmatpush1.bf16.msra.mxu0 %v159
  %1436 = vmatprep.subr.bf16.mxu0 %v162
  %1437 = vmatpush1.bf16.msra.mxu0 %v161
  %1438 = vmatprep.subr.bf16.mxu0 %v164
  %1439 = vmatpush1.bf16.msra.mxu0 %v163
  %1440 = vmatprep.subr.bf16.mxu0 %v166
  %1441 = vmatpush1.bf16.msra.mxu0 %v165
  %1442 = vmatprep.subr.bf16.mxu0 %v168
  %1443 = vmatpush1.bf16.msra.mxu0 %v167
  %1444 = vmatprep.subr.bf16.mxu0 %v170
  %1445 = vmatpush1.bf16.msra.mxu0 %v169
  %1446 = vmatprep.subr.bf16.mxu0 0
  %1447 = vmatpush1.bf16.msra.mxu0 0
  %1448 = vmatprep.subr.bf16.mxu0 0
  %1449 = vmatpush1.bf16.msra.mxu0 0
  %1450 = vmatprep.subr.bf16.mxu0 0
  %1451 = vmatpush1.bf16.msra.mxu0 0
  %1452 = vmatprep.subr.bf16.mxu0 0
  %1453 = vmatpush1.bf16.msra.mxu0 0
  %1454 = vmatprep.subr.bf16.mxu0 0
  %1455 = vmatpush1.bf16.msra.mxu0 0
  %1456 = vmatprep.subr.bf16.mxu0 0
  %1457 = vmatpush1.bf16.msra.mxu0 0
  %1458 = vmatprep.subr.bf16.mxu0 0
  %1459 = vmatpush1.bf16.msra.mxu0 0
  %1460 = vmatprep.mubr.bf16.mxu0 %v1016
  %1461 = vmatmul.mubr.bf16.gmra.mrb[0].mxu0 %v922
  %v1462 = vpop.f32.mrb[0].mxu0
  %v1463 = vadd.f32 0.0, %v1462
  %v1464 = vpop.f32.mrb[0].mxu0
  %v1465 = vadd.f32 0.0, %v1464
  %v1466 = vpop.f32.mrb[0].mxu0
  %v1467 = vadd.f32 0.0, %v1466
  %v1468 = vpop.f32.mrb[0].mxu0
  %v1469 = vadd.f32 0.0, %v1468
  %1470 = vdwg.mxu0
  %1471 = vmatprep.subr.bf16.mxu0 %v300
  %1472 = vmatpush1.bf16.msra.mxu0 %v299
  %1473 = vmatprep.subr.bf16.mxu0 %v302
  %1474 = vmatpush1.bf16.msra.mxu0 %v301
  %1475 = vmatprep.subr.bf16.mxu0 %v304
  %1476 = vmatpush1.bf16.msra.mxu0 %v303
  %1477 = vmatprep.subr.bf16.mxu0 %v306
  %1478 = vmatpush1.bf16.msra.mxu0 %v305
  %1479 = vmatprep.subr.bf16.mxu0 %v308
  %1480 = vmatpush1.bf16.msra.mxu0 %v307
  %1481 = vmatprep.subr.bf16.mxu0 %v310
  %1482 = vmatpush1.bf16.msra.mxu0 %v309
  %1483 = vmatprep.subr.bf16.mxu0 %v312
  %1484 = vmatpush1.bf16.msra.mxu0 %v311
  %1485 = vmatprep.subr.bf16.mxu0 %v314
  %1486 = vmatpush1.bf16.msra.mxu0 %v313
  %1487 = vmatprep.subr.bf16.mxu0 %v316
  %1488 = vmatpush1.bf16.msra.mxu0 %v315
  %1489 = vmatprep.subr.bf16.mxu0 0
  %1490 = vmatpush1.bf16.msra.mxu0 0
  %1491 = vmatprep.subr.bf16.mxu0 0
  %1492 = vmatpush1.bf16.msra.mxu0 0
  %1493 = vmatprep.subr.bf16.mxu0 0
  %1494 = vmatpush1.bf16.msra.mxu0 0
  %1495 = vmatprep.subr.bf16.mxu0 0
  %1496 = vmatpush1.bf16.msra.mxu0 0
  %1497 = vmatprep.subr.bf16.mxu0 0
  %1498 = vmatpush1.bf16.msra.mxu0 0
  %1499 = vmatprep.subr.bf16.mxu0 0
  %1500 = vmatpush1.bf16.msra.mxu0 0
  %1501 = vmatprep.subr.bf16.mxu0 0
  %1502 = vmatpush1.bf16.msra.mxu0 0
  %1503 = vmatprep.mubr.bf16.mxu0 %v845
  %1504 = vmatmul.mubr.bf16.gmra.mrb[0].mxu0 %v751
  %v1505 = vpop.f32.mrb[0].mxu0
  %v1506 = vadd.f32 %v1463, %v1505
  %v1507 = vpop.f32.mrb[0].mxu0
  %v1508 = vadd.f32 %v1465, %v1507
  %v1509 = vpop.f32.mrb[0].mxu0
  %v1510 = vadd.f32 %v1467, %v1509
  %v1511 = vpop.f32.mrb[0].mxu0
  %v1512 = vadd.f32 %v1469, %v1511
  %1513 = vdwg.mxu0
  %1514 = vmatprep.subr.bf16.mxu0 %v467
  %1515 = vmatpush1.bf16.msra.mxu0 %v466
  %1516 = vmatprep.subr.bf16.mxu0 %v469
  %1517 = vmatpush1.bf16.msra.mxu0 %v468
  %1518 = vmatprep.subr.bf16.mxu0 %v471
  %1519 = vmatpush1.bf16.msra.mxu0 %v470
  %1520 = vmatprep.subr.bf16.mxu0 %v473
  %1521 = vmatpush1.bf16.msra.mxu0 %v472
  %1522 = vmatprep.subr.bf16.mxu0 %v475
  %1523 = vmatpush1.bf16.msra.mxu0 %v474
  %1524 = vmatprep.subr.bf16.mxu0 %v477
  %1525 = vmatpush1.bf16.msra.mxu0 %v476
  %1526 = vmatprep.subr.bf16.mxu0 %v479
  %1527 = vmatpush1.bf16.msra.mxu0 %v478
  %1528 = vmatprep.subr.bf16.mxu0 %v481
  %1529 = vmatpush1.bf16.msra.mxu0 %v480
  %1530 = vmatprep.subr.bf16.mxu0 %v483
  %1531 = vmatpush1.bf16.msra.mxu0 %v482
  %1532 = vmatprep.subr.bf16.mxu0 0
  %1533 = vmatpush1.bf16.msra.mxu0 0
  %1534 = vmatprep.subr.bf16.mxu0 0
  %1535 = vmatpush1.bf16.msra.mxu0 0
  %1536 = vmatprep.subr.bf16.mxu0 0
  %1537 = vmatpush1.bf16.msra.mxu0 0
  %1538 = vmatprep.subr.bf16.mxu0 0
  %1539 = vmatpush1.bf16.msra.mxu0 0
  %1540 = vmatprep.subr.bf16.mxu0 0
  %1541 = vmatpush1.bf16.msra.mxu0 0
  %1542 = vmatprep.subr.bf16.mxu0 0
  %1543 = vmatpush1.bf16.msra.mxu0 0
  %1544 = vmatprep.subr.bf16.mxu0 0
  %1545 = vmatpush1.bf16.msra.mxu0 0
  %1546 = vmatprep.mubr.bf16.mxu0 %v1187
  %1547 = vmatmul.mubr.bf16.gmra.mrb[0].mxu0 %v1093
  %v1548 = vpop.f32.mrb[0].mxu0
  %v1549 = vadd.f32 0.0, %v1548
  %v1550 = vpop.f32.mrb[0].mxu0
  %v1551 = vadd.f32 0.0, %v1550
  %v1552 = vpop.f32.mrb[0].mxu0
  %v1553 = vadd.f32 0.0, %v1552
  %v1554 = vpop.f32.mrb[0].mxu0
  %v1555 = vadd.f32 0.0, %v1554
  %1556 = vdwg.mxu0
  %v1557 = vadd.f32 %v1506, %v1549
  %v1558 = vadd.f32 %v1508, %v1551
  %v1559 = vadd.f32 %v1510, %v1553
  %v1560 = vadd.f32 %v1512, %v1555
  %1561 = vmatprep.subr.bf16.mxu0 %v638
  %1562 = vmatpush1.bf16.msra.mxu0 %v637
  %1563 = vmatprep.subr.bf16.mxu0 %v640
  %1564 = vmatpush1.bf16.msra.mxu0 %v639
  %1565 = vmatprep.subr.bf16.mxu0 %v642
  %1566 = vmatpush1.bf16.msra.mxu0 %v641
  %1567 = vmatprep.subr.bf16.mxu0 %v644
  %1568 = vmatpush1.bf16.msra.mxu0 %v643
  %1569 = vmatprep.subr.bf16.mxu0 %v646
  %1570 = vmatpush1.bf16.msra.mxu0 %v645
  %1571 = vmatprep.subr.bf16.mxu0 %v648
  %1572 = vmatpush1.bf16.msra.mxu0 %v647
  %1573 = vmatprep.subr.bf16.mxu0 %v650
  %1574 = vmatpush1.bf16.msra.mxu0 %v649
  %1575 = vmatprep.subr.bf16.mxu0 %v652
  %1576 = vmatpush1.bf16.msra.mxu0 %v651
  %1577 = vmatprep.subr.bf16.mxu0 %v654
  %1578 = vmatpush1.bf16.msra.mxu0 %v653
  %1579 = vmatprep.subr.bf16.mxu0 0
  %1580 = vmatpush1.bf16.msra.mxu0 0
  %1581 = vmatprep.subr.bf16.mxu0 0
  %1582 = vmatpush1.bf16.msra.mxu0 0
  %1583 = vmatprep.subr.bf16.mxu0 0
  %1584 = vmatpush1.bf16.msra.mxu0 0
  %1585 = vmatprep.subr.bf16.mxu0 0
  %1586 = vmatpush1.bf16.msra.mxu0 0
  %1587 = vmatprep.subr.bf16.mxu0 0
  %1588 = vmatpush1.bf16.msra.mxu0 0
  %1589 = vmatprep.subr.bf16.mxu0 0
  %1590 = vmatpush1.bf16.msra.mxu0 0
  %1591 = vmatprep.subr.bf16.mxu0 0
  %1592 = vmatpush1.bf16.msra.mxu0 0
  %1593 = vmatprep.mubr.bf16.mxu0 %v1358
  %1594 = vmatmul.mubr.bf16.gmra.mrb[0].mxu0 %v1264
  %v1595 = vpop.f32.mrb[0].mxu0
  %v1596 = vadd.f32 0.0, %v1595
  %v1597 = vpop.f32.mrb[0].mxu0
  %v1598 = vadd.f32 0.0, %v1597
  %v1599 = vpop.f32.mrb[0].mxu0
  %v1600 = vadd.f32 0.0, %v1599
  %v1601 = vpop.f32.mrb[0].mxu0
  %v1602 = vadd.f32 0.0, %v1601
  %1603 = vdwg.mxu0
  %v1604 = vadd.f32 %v1557, %v1596
  %v1605 = vadd.f32 %v1558, %v1598
  %v1606 = vadd.f32 %v1559, %v1600
  %v1607 = vadd.f32 %v1560, %v1602
  %s1608 = scalar_lea.vmem %s0, 128
  %v1609 = vld [vmem:[%s1608] sm:$0xff]
  %v1610 = vld [vmem:[%s1608 + $0x8] sm:$0xff]
  %v1613 = vunpack.c.l.b16 %v1609
  %v1614 = vunpack.c.h.b16 %v1609
  %v1615 = vunpack.c.l.b16 %v1610
  %v1616 = vunpack.c.h.b16 %v1610
  %v1617 = vpack.c.b16 %v1615, %v1613
  %v1618 = vpack.c.b16 %v1616, %v1614
  %v1621 = vsel %vm189, %v1618, 0
  %1623 = vmatprep.subr.bf16.mxu0 %v809
  %1624 = vmatpush1.bf16.msra.mxu0 %v808
  %1625 = vmatprep.subr.bf16.mxu0 %v811
  %1626 = vmatpush1.bf16.msra.mxu0 %v810
  %1627 = vmatprep.subr.bf16.mxu0 %v813
  %1628 = vmatpush1.bf16.msra.mxu0 %v812
  %1629 = vmatprep.subr.bf16.mxu0 %v815
  %1630 = vmatpush1.bf16.msra.mxu0 %v814
  %1631 = vmatprep.subr.bf16.mxu0 %v817
  %1632 = vmatpush1.bf16.msra.mxu0 %v816
  %1633 = vmatprep.subr.bf16.mxu0 %v819
  %1634 = vmatpush1.bf16.msra.mxu0 %v818
  %1635 = vmatprep.subr.bf16.mxu0 %v821
  %1636 = vmatpush1.bf16.msra.mxu0 %v820
  %1637 = vmatprep.subr.bf16.mxu0 %v823
  %1638 = vmatpush1.bf16.msra.mxu0 %v822
  %1639 = vmatprep.subr.bf16.mxu0 %v825
  %1640 = vmatpush1.bf16.msra.mxu0 %v824
  %1641 = vmatprep.subr.bf16.mxu0 0
  %1642 = vmatpush1.bf16.msra.mxu0 0
  %1643 = vmatprep.subr.bf16.mxu0 0
  %1644 = vmatpush1.bf16.msra.mxu0 0
  %1645 = vmatprep.subr.bf16.mxu0 0
  %1646 = vmatpush1.bf16.msra.mxu0 0
  %1647 = vmatprep.subr.bf16.mxu0 0
  %1648 = vmatpush1.bf16.msra.mxu0 0
  %1649 = vmatprep.subr.bf16.mxu0 0
  %1650 = vmatpush1.bf16.msra.mxu0 0
  %1651 = vmatprep.subr.bf16.mxu0 0
  %1652 = vmatpush1.bf16.msra.mxu0 0
  %1653 = vmatprep.subr.bf16.mxu0 0
  %1654 = vmatpush1.bf16.msra.mxu0 0
  %1655 = vmatprep.mubr.bf16.mxu0 %v1621
  %1656 = vmatmul.mubr.bf16.gmra.mrb[0].mxu0 %v1617
  %v1657 = vpop.f32.mrb[0].mxu0
  %v1658 = vadd.f32 0.0, %v1657
  %v1659 = vpop.f32.mrb[0].mxu0
  %v1660 = vadd.f32 0.0, %v1659
  %v1661 = vpop.f32.mrb[0].mxu0
  %v1662 = vadd.f32 0.0, %v1661
  %v1663 = vpop.f32.mrb[0].mxu0
  %v1664 = vadd.f32 0.0, %v1663
  %1665 = vdwg.mxu0
  %v1666 = vadd.f32 %v1604, %v1658
  %v1667 = vadd.f32 %v1605, %v1660
  %v1668 = vadd.f32 %v1606, %v1662
  %v1669 = vadd.f32 %v1607, %v1664
  %s1670 = scalar_lea.vmem %s0, 144
  %v1671 = vld [vmem:[%s1670] sm:$0xff]
  %v1672 = vld [vmem:[%s1670 + $0x8] sm:$0xff]
  %v1675 = vunpack.c.l.b16 %v1671
  %v1676 = vunpack.c.h.b16 %v1671
  %v1677 = vunpack.c.l.b16 %v1672
  %v1678 = vunpack.c.h.b16 %v1672
  %v1679 = vpack.c.b16 %v1677, %v1675
  %v1680 = vpack.c.b16 %v1678, %v1676
  %v1683 = vsel %vm189, %v1680, 0
  %1685 = vmatprep.subr.bf16.mxu0 %v980
  %1686 = vmatpush1.bf16.msra.mxu0 %v979
  %1687 = vmatprep.subr.bf16.mxu0 %v982
  %1688 = vmatpush1.bf16.msra.mxu0 %v981
  %1689 = vmatprep.subr.bf16.mxu0 %v984
  %1690 = vmatpush1.bf16.msra.mxu0 %v983
  %1691 = vmatprep.subr.bf16.mxu0 %v986
  %1692 = vmatpush1.bf16.msra.mxu0 %v985
  %1693 = vmatprep.subr.bf16.mxu0 %v988
  %1694 = vmatpush1.bf16.msra.mxu0 %v987
  %1695 = vmatprep.subr.bf16.mxu0 %v990
  %1696 = vmatpush1.bf16.msra.mxu0 %v989
  %1697 = vmatprep.subr.bf16.mxu0 %v992
  %1698 = vmatpush1.bf16.msra.mxu0 %v991
  %1699 = vmatprep.subr.bf16.mxu0 %v994
  %1700 = vmatpush1.bf16.msra.mxu0 %v993
  %1701 = vmatprep.subr.bf16.mxu0 %v996
  %1702 = vmatpush1.bf16.msra.mxu0 %v995
  %1703 = vmatprep.subr.bf16.mxu0 0
  %1704 = vmatpush1.bf16.msra.mxu0 0
  %1705 = vmatprep.subr.bf16.mxu0 0
  %1706 = vmatpush1.bf16.msra.mxu0 0
  %1707 = vmatprep.subr.bf16.mxu0 0
  %1708 = vmatpush1.bf16.msra.mxu0 0
  %1709 = vmatprep.subr.bf16.mxu0 0
  %1710 = vmatpush1.bf16.msra.mxu0 0
  %1711 = vmatprep.subr.bf16.mxu0 0
  %1712 = vmatpush1.bf16.msra.mxu0 0
  %1713 = vmatprep.subr.bf16.mxu0 0
  %1714 = vmatpush1.bf16.msra.mxu0 0
  %1715 = vmatprep.subr.bf16.mxu0 0
  %1716 = vmatpush1.bf16.msra.mxu0 0
  %1717 = vmatprep.mubr.bf16.mxu0 %v1683
  %1718 = vmatmul.mubr.bf16.gmra.mrb[0].mxu0 %v1679
  %v1719 = vpop.f32.mrb[0].mxu0
  %v1720 = vadd.f32 0.0, %v1719
  %v1721 = vpop.f32.mrb[0].mxu0
  %v1722 = vadd.f32 0.0, %v1721
  %v1723 = vpop.f32.mrb[0].mxu0
  %v1724 = vadd.f32 0.0, %v1723
  %v1725 = vpop.f32.mrb[0].mxu0
  %v1726 = vadd.f32 0.0, %v1725
  %1727 = vdwg.mxu0
  %v1728 = vadd.f32 %v1666, %v1720
  %v1729 = vadd.f32 %v1667, %v1722
  %v1730 = vadd.f32 %v1668, %v1724
  %v1731 = vadd.f32 %v1669, %v1726
  %s1732 = scalar_lea.vmem %s0, 160
  %v1733 = vld [vmem:[%s1732] sm:$0xff]
  %v1734 = vld [vmem:[%s1732 + $0x8] sm:$0xff]
  %v1737 = vunpack.c.l.b16 %v1733
  %v1738 = vunpack.c.h.b16 %v1733
  %v1739 = vunpack.c.l.b16 %v1734
  %v1740 = vunpack.c.h.b16 %v1734
  %v1741 = vpack.c.b16 %v1739, %v1737
  %v1742 = vpack.c.b16 %v1740, %v1738
  %v1745 = vsel %vm189, %v1742, 0
  %1747 = vmatprep.subr.bf16.mxu0 %v1151
  %1748 = vmatpush1.bf16.msra.mxu0 %v1150
  %1749 = vmatprep.subr.bf16.mxu0 %v1153
  %1750 = vmatpush1.bf16.msra.mxu0 %v1152
  %1751 = vmatprep.subr.bf16.mxu0 %v1155
  %1752 = vmatpush1.bf16.msra.mxu0 %v1154
  %1753 = vmatprep.subr.bf16.mxu0 %v1157
  %1754 = vmatpush1.bf16.msra.mxu0 %v1156
  %1755 = vmatprep.subr.bf16.mxu0 %v1159
  %1756 = vmatpush1.bf16.msra.mxu0 %v1158
  %1757 = vmatprep.subr.bf16.mxu0 %v1161
  %1758 = vmatpush1.bf16.msra.mxu0 %v1160
  %1759 = vmatprep.subr.bf16.mxu0 %v1163
  %1760 = vmatpush1.bf16.msra.mxu0 %v1162
  %1761 = vmatprep.subr.bf16.mxu0 %v1165
  %1762 = vmatpush1.bf16.msra.mxu0 %v1164
  %1763 = vmatprep.subr.bf16.mxu0 %v1167
  %1764 = vmatpush1.bf16.msra.mxu0 %v1166
  %1765 = vmatprep.subr.bf16.mxu0 0
  %1766 = vmatpush1.bf16.msra.mxu0 0
  %1767 = vmatprep.subr.bf16.mxu0 0
  %1768 = vmatpush1.bf16.msra.mxu0 0
  %1769 = vmatprep.subr.bf16.mxu0 0
  %1770 = vmatpush1.bf16.msra.mxu0 0
  %1771 = vmatprep.subr.bf16.mxu0 0
  %1772 = vmatpush1.bf16.msra.mxu0 0
  %1773 = vmatprep.subr.bf16.mxu0 0
  %1774 = vmatpush1.bf16.msra.mxu0 0
  %1775 = vmatprep.subr.bf16.mxu0 0
  %1776 = vmatpush1.bf16.msra.mxu0 0
  %1777 = vmatprep.subr.bf16.mxu0 0
  %1778 = vmatpush1.bf16.msra.mxu0 0
  %1779 = vmatprep.mubr.bf16.mxu0 %v1745
  %1780 = vmatmul.mubr.bf16.gmra.mrb[0].mxu0 %v1741
  %v1781 = vpop.f32.mrb[0].mxu0
  %v1782 = vadd.f32 0.0, %v1781
  %v1783 = vpop.f32.mrb[0].mxu0
  %v1784 = vadd.f32 0.0, %v1783
  %v1785 = vpop.f32.mrb[0].mxu0
  %v1786 = vadd.f32 0.0, %v1785
  %v1787 = vpop.f32.mrb[0].mxu0
  %v1788 = vadd.f32 0.0, %v1787
  %1789 = vdwg.mxu0
  %v1790 = vadd.f32 %v1728, %v1782
  %v1791 = vadd.f32 %v1729, %v1784
  %v1792 = vadd.f32 %v1730, %v1786
  %v1793 = vadd.f32 %v1731, %v1788
  %s1794 = scalar_lea.vmem %s0, 176
  %v1795 = vld [vmem:[%s1794] sm:$0xff]
  %v1796 = vld [vmem:[%s1794 + $0x8] sm:$0xff]
  %v1799 = vunpack.c.l.b16 %v1795
  %v1800 = vunpack.c.h.b16 %v1795
  %v1801 = vunpack.c.l.b16 %v1796
  %v1802 = vunpack.c.h.b16 %v1796
  %v1803 = vpack.c.b16 %v1801, %v1799
  %v1804 = vpack.c.b16 %v1802, %v1800
  %v1807 = vsel %vm189, %v1804, 0
  %1809 = vmatprep.subr.bf16.mxu0 %v1322
  %1810 = vmatpush1.bf16.msra.mxu0 %v1321
  %1811 = vmatprep.subr.bf16.mxu0 %v1324
  %1812 = vmatpush1.bf16.msra.mxu0 %v1323
  %1813 = vmatprep.subr.bf16.mxu0 %v1326
  %1814 = vmatpush1.bf16.msra.mxu0 %v1325
  %1815 = vmatprep.subr.bf16.mxu0 %v1328
  %1816 = vmatpush1.bf16.msra.mxu0 %v1327
  %1817 = vmatprep.subr.bf16.mxu0 %v1330
  %1818 = vmatpush1.bf16.msra.mxu0 %v1329
  %1819 = vmatprep.subr.bf16.mxu0 %v1332
  %1820 = vmatpush1.bf16.msra.mxu0 %v1331
  %1821 = vmatprep.subr.bf16.mxu0 %v1334
  %1822 = vmatpush1.bf16.msra.mxu0 %v1333
  %1823 = vmatprep.subr.bf16.mxu0 %v1336
  %1824 = vmatpush1.bf16.msra.mxu0 %v1335
  %1825 = vmatprep.subr.bf16.mxu0 %v1338
  %1826 = vmatpush1.bf16.msra.mxu0 %v1337
  %1827 = vmatprep.subr.bf16.mxu0 0
  %1828 = vmatpush1.bf16.msra.mxu0 0
  %1829 = vmatprep.subr.bf16.mxu0 0
  %1830 = vmatpush1.bf16.msra.mxu0 0
  %1831 = vmatprep.subr.bf16.mxu0 0
  %1832 = vmatpush1.bf16.msra.mxu0 0
  %1833 = vmatprep.subr.bf16.mxu0 0
  %1834 = vmatpush1.bf16.msra.mxu0 0
  %1835 = vmatprep.subr.bf16.mxu0 0
  %1836 = vmatpush1.bf16.msra.mxu0 0
  %1837 = vmatprep.subr.bf16.mxu0 0
  %1838 = vmatpush1.bf16.msra.mxu0 0
  %1839 = vmatprep.subr.bf16.mxu0 0
  %1840 = vmatpush1.bf16.msra.mxu0 0
  %1841 = vmatprep.mubr.bf16.mxu0 %v1807
  %1842 = vmatmul.mubr.bf16.gmra.mrb[0].mxu0 %v1803
  %v1843 = vpop.f32.mrb[0].mxu0
  %v1844 = vadd.f32 0.0, %v1843
  %v1845 = vpop.f32.mrb[0].mxu0
  %v1846 = vadd.f32 0.0, %v1845
  %v1847 = vpop.f32.mrb[0].mxu0
  %v1848 = vadd.f32 0.0, %v1847
  %v1849 = vpop.f32.mrb[0].mxu0
  %v1850 = vadd.f32 0.0, %v1849
  %1851 = vdwg.mxu0
  %v1852 = vadd.f32 %v1790, %v1844
  %v1853 = vadd.f32 %v1791, %v1846
  %v1854 = vadd.f32 %v1792, %v1848
  %v1855 = vadd.f32 %v1793, %v1850
  %v1856 = vadd.f32 %v1852, %v1411
  %v1857 = vadd.f32 %v1853, %v1415
  %v1858 = vadd.f32 %v1854, %v1411
  %v1859 = vadd.f32 %v1855, %v1415
  %v1860 = vmax.f32 %v1856, 0.0
  %v1861 = vmax.f32 %v1857, 0.0
  %v1862 = vmax.f32 %v1858, 0.0
  %v1863 = vmax.f32 %v1859, 0.0
  %v1864 = vpack.c.bf16 %v1862, %v1860
  %v1865 = vpack.c.bf16 %v1863, %v1861
  %1866 = vmatprep.subr.bf16.mxu0 %v154
  %1867 = vmatpush1.bf16.msra.mxu0 %v153
  %1868 = vmatprep.subr.bf16.mxu0 %v156
  %1869 = vmatpush1.bf16.msra.mxu0 %v155
  %1870 = vmatprep.subr.bf16.mxu0 %v158
  %1871 = vmatpush1.bf16.msra.mxu0 %v157
  %1872 = vmatprep.subr.bf16.mxu0 %v160
  %1873 = vmatpush1.bf16.msra.mxu0 %v159
  %1874 = vmatprep.subr.bf16.mxu0 %v162
  %1875 = vmatpush1.bf16.msra.mxu0 %v161
  %1876 = vmatprep.subr.bf16.mxu0 %v164
  %1877 = vmatpush1.bf16.msra.mxu0 %v163
  %1878 = vmatprep.subr.bf16.mxu0 %v166
  %1879 = vmatpush1.bf16.msra.mxu0 %v165
  %1880 = vmatprep.subr.bf16.mxu0 %v168
  %1881 = vmatpush1.bf16.msra.mxu0 %v167
  %1882 = vmatprep.subr.bf16.mxu0 %v170
  %1883 = vmatpush1.bf16.msra.mxu0 %v169
  %1884 = vmatprep.subr.bf16.mxu0 0
  %1885 = vmatpush1.bf16.msra.mxu0 0
  %1886 = vmatprep.subr.bf16.mxu0 0
  %1887 = vmatpush1.bf16.msra.mxu0 0
  %1888 = vmatprep.subr.bf16.mxu0 0
  %1889 = vmatpush1.bf16.msra.mxu0 0
  %1890 = vmatprep.subr.bf16.mxu0 0
  %1891 = vmatpush1.bf16.msra.mxu0 0
  %1892 = vmatprep.subr.bf16.mxu0 0
  %1893 = vmatpush1.bf16.msra.mxu0 0
  %1894 = vmatprep.subr.bf16.mxu0 0
  %1895 = vmatpush1.bf16.msra.mxu0 0
  %1896 = vmatprep.subr.bf16.mxu0 0
  %1897 = vmatpush1.bf16.msra.mxu0 0
  %1898 = vmatprep.mubr.bf16.mxu0 %v1683
  %1899 = vmatmul.mubr.bf16.gmra.mrb[0].mxu0 %v1679
  %v1900 = vpop.f32.mrb[0].mxu0
  %v1901 = vadd.f32 0.0, %v1900
  %v1902 = vpop.f32.mrb[0].mxu0
  %v1903 = vadd.f32 0.0, %v1902
  %v1904 = vpop.f32.mrb[0].mxu0
  %v1905 = vadd.f32 0.0, %v1904
  %v1906 = vpop.f32.mrb[0].mxu0
  %v1907 = vadd.f32 0.0, %v1906
  %1908 = vdwg.mxu0
  %1909 = vmatprep.subr.bf16.mxu0 %v300
  %1910 = vmatpush1.bf16.msra.mxu0 %v299
  %1911 = vmatprep.subr.bf16.mxu0 %v302
  %1912 = vmatpush1.bf16.msra.mxu0 %v301
  %1913 = vmatprep.subr.bf16.mxu0 %v304
  %1914 = vmatpush1.bf16.msra.mxu0 %v303
  %1915 = vmatprep.subr.bf16.mxu0 %v306
  %1916 = vmatpush1.bf16.msra.mxu0 %v305
  %1917 = vmatprep.subr.bf16.mxu0 %v308
  %1918 = vmatpush1.bf16.msra.mxu0 %v307
  %1919 = vmatprep.subr.bf16.mxu0 %v310
  %1920 = vmatpush1.bf16.msra.mxu0 %v309
  %1921 = vmatprep.subr.bf16.mxu0 %v312
  %1922 = vmatpush1.bf16.msra.mxu0 %v311
  %1923 = vmatprep.subr.bf16.mxu0 %v314
  %1924 = vmatpush1.bf16.msra.mxu0 %v313
  %1925 = vmatprep.subr.bf16.mxu0 %v316
  %1926 = vmatpush1.bf16.msra.mxu0 %v315
  %1927 = vmatprep.subr.bf16.mxu0 0
  %1928 = vmatpush1.bf16.msra.mxu0 0
  %1929 = vmatprep.subr.bf16.mxu0 0
  %1930 = vmatpush1.bf16.msra.mxu0 0
  %1931 = vmatprep.subr.bf16.mxu0 0
  %1932 = vmatpush1.bf16.msra.mxu0 0
  %1933 = vmatprep.subr.bf16.mxu0 0
  %1934 = vmatpush1.bf16.msra.mxu0 0
  %1935 = vmatprep.subr.bf16.mxu0 0
  %1936 = vmatpush1.bf16.msra.mxu0 0
  %1937 = vmatprep.subr.bf16.mxu0 0
  %1938 = vmatpush1.bf16.msra.mxu0 0
  %1939 = vmatprep.subr.bf16.mxu0 0
  %1940 = vmatpush1.bf16.msra.mxu0 0
  %1941 = vmatprep.mubr.bf16.mxu0 %v1621
  %1942 = vmatmul.mubr.bf16.gmra.mrb[0].mxu0 %v1617
  %v1943 = vpop.f32.mrb[0].mxu0
  %v1944 = vadd.f32 %v1901, %v1943
  %v1945 = vpop.f32.mrb[0].mxu0
  %v1946 = vadd.f32 %v1903, %v1945
  %v1947 = vpop.f32.mrb[0].mxu0
  %v1948 = vadd.f32 %v1905, %v1947
  %v1949 = vpop.f32.mrb[0].mxu0
  %v1950 = vadd.f32 %v1907, %v1949
  %1951 = vdwg.mxu0
  %1952 = vmatprep.subr.bf16.mxu0 %v467
  %1953 = vmatpush1.bf16.msra.mxu0 %v466
  %1954 = vmatprep.subr.bf16.mxu0 %v469
  %1955 = vmatpush1.bf16.msra.mxu0 %v468
  %1956 = vmatprep.subr.bf16.mxu0 %v471
  %1957 = vmatpush1.bf16.msra.mxu0 %v470
  %1958 = vmatprep.subr.bf16.mxu0 %v473
  %1959 = vmatpush1.bf16.msra.mxu0 %v472
  %1960 = vmatprep.subr.bf16.mxu0 %v475
  %1961 = vmatpush1.bf16.msra.mxu0 %v474
  %1962 = vmatprep.subr.bf16.mxu0 %v477
  %1963 = vmatpush1.bf16.msra.mxu0 %v476
  %1964 = vmatprep.subr.bf16.mxu0 %v479
  %1965 = vmatpush1.bf16.msra.mxu0 %v478
  %1966 = vmatprep.subr.bf16.mxu0 %v481
  %1967 = vmatpush1.bf16.msra.mxu0 %v480
  %1968 = vmatprep.subr.bf16.mxu0 %v483
  %1969 = vmatpush1.bf16.msra.mxu0 %v482
  %1970 = vmatprep.subr.bf16.mxu0 0
  %1971 = vmatpush1.bf16.msra.mxu0 0
  %1972 = vmatprep.subr.bf16.mxu0 0
  %1973 = vmatpush1.bf16.msra.mxu0 0
  %1974 = vmatprep.subr.bf16.mxu0 0
  %1975 = vmatpush1.bf16.msra.mxu0 0
  %1976 = vmatprep.subr.bf16.mxu0 0
  %1977 = vmatpush1.bf16.msra.mxu0 0
  %1978 = vmatprep.subr.bf16.mxu0 0
  %1979 = vmatpush1.bf16.msra.mxu0 0
  %1980 = vmatprep.subr.bf16.mxu0 0
  %1981 = vmatpush1.bf16.msra.mxu0 0
  %1982 = vmatprep.subr.bf16.mxu0 0
  %1983 = vmatpush1.bf16.msra.mxu0 0
  %1984 = vmatprep.mubr.bf16.mxu0 %v1745
  %1985 = vmatmul.mubr.bf16.gmra.mrb[0].mxu0 %v1741
  %v1986 = vpop.f32.mrb[0].mxu0
  %v1987 = vadd.f32 0.0, %v1986
  %v1988 = vpop.f32.mrb[0].mxu0
  %v1989 = vadd.f32 0.0, %v1988
  %v1990 = vpop.f32.mrb[0].mxu0
  %v1991 = vadd.f32 0.0, %v1990
  %v1992 = vpop.f32.mrb[0].mxu0
  %v1993 = vadd.f32 0.0, %v1992
  %1994 = vdwg.mxu0
  %v1995 = vadd.f32 %v1944, %v1987
  %v1996 = vadd.f32 %v1946, %v1989
  %v1997 = vadd.f32 %v1948, %v1991
  %v1998 = vadd.f32 %v1950, %v1993
  %1999 = vmatprep.subr.bf16.mxu0 %v638
  %2000 = vmatpush1.bf16.msra.mxu0 %v637
  %2001 = vmatprep.subr.bf16.mxu0 %v640
  %2002 = vmatpush1.bf16.msra.mxu0 %v639
  %2003 = vmatprep.subr.bf16.mxu0 %v642
  %2004 = vmatpush1.bf16.msra.mxu0 %v641
  %2005 = vmatprep.subr.bf16.mxu0 %v644
  %2006 = vmatpush1.bf16.msra.mxu0 %v643
  %2007 = vmatprep.subr.bf16.mxu0 %v646
  %2008 = vmatpush1.bf16.msra.mxu0 %v645
  %2009 = vmatprep.subr.bf16.mxu0 %v648
  %2010 = vmatpush1.bf16.msra.mxu0 %v647
  %2011 = vmatprep.subr.bf16.mxu0 %v650
  %2012 = vmatpush1.bf16.msra.mxu0 %v649
  %2013 = vmatprep.subr.bf16.mxu0 %v652
  %2014 = vmatpush1.bf16.msra.mxu0 %v651
  %2015 = vmatprep.subr.bf16.mxu0 %v654
  %2016 = vmatpush1.bf16.msra.mxu0 %v653
  %2017 = vmatprep.subr.bf16.mxu0 0
  %2018 = vmatpush1.bf16.msra.mxu0 0
  %2019 = vmatprep.subr.bf16.mxu0 0
  %2020 = vmatpush1.bf16.msra.mxu0 0
  %2021 = vmatprep.subr.bf16.mxu0 0
  %2022 = vmatpush1.bf16.msra.mxu0 0
  %2023 = vmatprep.subr.bf16.mxu0 0
  %2024 = vmatpush1.bf16.msra.mxu0 0
  %2025 = vmatprep.subr.bf16.mxu0 0
  %2026 = vmatpush1.bf16.msra.mxu0 0
  %2027 = vmatprep.subr.bf16.mxu0 0
  %2028 = vmatpush1.bf16.msra.mxu0 0
  %2029 = vmatprep.subr.bf16.mxu0 0
  %2030 = vmatpush1.bf16.msra.mxu0 0
  %2031 = vmatprep.mubr.bf16.mxu0 %v1807
  %2032 = vmatmul.mubr.bf16.gmra.mrb[0].mxu0 %v1803
  %v2033 = vpop.f32.mrb[0].mxu0
  %v2034 = vadd.f32 0.0, %v2033
  %v2035 = vpop.f32.mrb[0].mxu0
  %v2036 = vadd.f32 0.0, %v2035
  %v2037 = vpop.f32.mrb[0].mxu0
  %v2038 = vadd.f32 0.0, %v2037
  %v2039 = vpop.f32.mrb[0].mxu0
  %v2040 = vadd.f32 0.0, %v2039
  %2041 = vdwg.mxu0
  %v2042 = vadd.f32 %v1995, %v2034
  %v2043 = vadd.f32 %v1996, %v2036
  %v2044 = vadd.f32 %v1997, %v2038
  %v2045 = vadd.f32 %v1998, %v2040
  %s2046 = scalar_lea.vmem %s0, 192
  %v2047 = vld [vmem:[%s2046] sm:$0xff]
  %v2048 = vld [vmem:[%s2046 + $0x8] sm:$0xff]
  %v2051 = vunpack.c.l.b16 %v2047
  %v2052 = vunpack.c.h.b16 %v2047
  %v2053 = vunpack.c.l.b16 %v2048
  %v2054 = vunpack.c.h.b16 %v2048
  %v2055 = vpack.c.b16 %v2053, %v2051
  %v2056 = vpack.c.b16 %v2054, %v2052
  %v2059 = vsel %vm189, %v2056, 0
  %2061 = vmatprep.subr.bf16.mxu0 %v809
  %2062 = vmatpush1.bf16.msra.mxu0 %v808
  %2063 = vmatprep.subr.bf16.mxu0 %v811
  %2064 = vmatpush1.bf16.msra.mxu0 %v810
  %2065 = vmatprep.subr.bf16.mxu0 %v813
  %2066 = vmatpush1.bf16.msra.mxu0 %v812
  %2067 = vmatprep.subr.bf16.mxu0 %v815
  %2068 = vmatpush1.bf16.msra.mxu0 %v814
  %2069 = vmatprep.subr.bf16.mxu0 %v817
  %2070 = vmatpush1.bf16.msra.mxu0 %v816
  %2071 = vmatprep.subr.bf16.mxu0 %v819
  %2072 = vmatpush1.bf16.msra.mxu0 %v818
  %2073 = vmatprep.subr.bf16.mxu0 %v821
  %2074 = vmatpush1.bf16.msra.mxu0 %v820
  %2075 = vmatprep.subr.bf16.mxu0 %v823
  %2076 = vmatpush1.bf16.msra.mxu0 %v822
  %2077 = vmatprep.subr.bf16.mxu0 %v825
  %2078 = vmatpush1.bf16.msra.mxu0 %v824
  %2079 = vmatprep.subr.bf16.mxu0 0
  %2080 = vmatpush1.bf16.msra.mxu0 0
  %2081 = vmatprep.subr.bf16.mxu0 0
  %2082 = vmatpush1.bf16.msra.mxu0 0
  %2083 = vmatprep.subr.bf16.mxu0 0
  %2084 = vmatpush1.bf16.msra.mxu0 0
  %2085 = vmatprep.subr.bf16.mxu0 0
  %2086 = vmatpush1.bf16.msra.mxu0 0
  %2087 = vmatprep.subr.bf16.mxu0 0
  %2088 = vmatpush1.bf16.msra.mxu0 0
  %2089 = vmatprep.subr.bf16.mxu0 0
  %2090 = vmatpush1.bf16.msra.mxu0 0
  %2091 = vmatprep.subr.bf16.mxu0 0
  %2092 = vmatpush1.bf16.msra.mxu0 0
  %2093 = vmatprep.mubr.bf16.mxu0 %v2059
  %2094 = vmatmul.mubr.bf16.gmra.mrb[0].mxu0 %v2055
  %v2095 = vpop.f32.mrb[0].mxu0
  %v2096 = vadd.f32 0.0, %v2095
  %v2097 = vpop.f32.mrb[0].mxu0
  %v2098 = vadd.f32 0.0, %v2097
  %v2099 = vpop.f32.mrb[0].mxu0
  %v2100 = vadd.f32 0.0, %v2099
  %v2101 = vpop.f32.mrb[0].mxu0
  %v2102 = vadd.f32 0.0, %v2101
  %2103 = vdwg.mxu0
  %v2104 = vadd.f32 %v2042, %v2096
  %v2105 = vadd.f32 %v2043, %v2098
  %v2106 = vadd.f32 %v2044, %v2100
  %v2107 = vadd.f32 %v2045, %v2102
  %s2108 = scalar_lea.vmem %s0, 208
  %v2109 = vld [vmem:[%s2108] sm:$0xff]
  %v2110 = vld [vmem:[%s2108 + $0x8] sm:$0xff]
  %v2113 = vunpack.c.l.b16 %v2109
  %v2114 = vunpack.c.h.b16 %v2109
  %v2115 = vunpack.c.l.b16 %v2110
  %v2116 = vunpack.c.h.b16 %v2110
  %v2117 = vpack.c.b16 %v2115, %v2113
  %v2118 = vpack.c.b16 %v2116, %v2114
  %v2121 = vsel %vm189, %v2118, 0
  %2123 = vmatprep.subr.bf16.mxu0 %v980
  %2124 = vmatpush1.bf16.msra.mxu0 %v979
  %2125 = vmatprep.subr.bf16.mxu0 %v982
  %2126 = vmatpush1.bf16.msra.mxu0 %v981
  %2127 = vmatprep.subr.bf16.mxu0 %v984
  %2128 = vmatpush1.bf16.msra.mxu0 %v983
  %2129 = vmatprep.subr.bf16.mxu0 %v986
  %2130 = vmatpush1.bf16.msra.mxu0 %v985
  %2131 = vmatprep.subr.bf16.mxu0 %v988
  %2132 = vmatpush1.bf16.msra.mxu0 %v987
  %2133 = vmatprep.subr.bf16.mxu0 %v990
  %2134 = vmatpush1.bf16.msra.mxu0 %v989
  %2135 = vmatprep.subr.bf16.mxu0 %v992
  %2136 = vmatpush1.bf16.msra.mxu0 %v991
  %2137 = vmatprep.subr.bf16.mxu0 %v994
  %2138 = vmatpush1.bf16.msra.mxu0 %v993
  %2139 = vmatprep.subr.bf16.mxu0 %v996
  %2140 = vmatpush1.bf16.msra.mxu0 %v995
  %2141 = vmatprep.subr.bf16.mxu0 0
  %2142 = vmatpush1.bf16.msra.mxu0 0
  %2143 = vmatprep.subr.bf16.mxu0 0
  %2144 = vmatpush1.bf16.msra.mxu0 0
  %2145 = vmatprep.subr.bf16.mxu0 0
  %2146 = vmatpush1.bf16.msra.mxu0 0
  %2147 = vmatprep.subr.bf16.mxu0 0
  %2148 = vmatpush1.bf16.msra.mxu0 0
  %2149 = vmatprep.subr.bf16.mxu0 0
  %2150 = vmatpush1.bf16.msra.mxu0 0
  %2151 = vmatprep.subr.bf16.mxu0 0
  %2152 = vmatpush1.bf16.msra.mxu0 0
  %2153 = vmatprep.subr.bf16.mxu0 0
  %2154 = vmatpush1.bf16.msra.mxu0 0
  %2155 = vmatprep.mubr.bf16.mxu0 %v2121
  %2156 = vmatmul.mubr.bf16.gmra.mrb[0].mxu0 %v2117
  %v2157 = vpop.f32.mrb[0].mxu0
  %v2158 = vadd.f32 0.0, %v2157
  %v2159 = vpop.f32.mrb[0].mxu0
  %v2160 = vadd.f32 0.0, %v2159
  %v2161 = vpop.f32.mrb[0].mxu0
  %v2162 = vadd.f32 0.0, %v2161
  %v2163 = vpop.f32.mrb[0].mxu0
  %v2164 = vadd.f32 0.0, %v2163
  %2165 = vdwg.mxu0
  %v2166 = vadd.f32 %v2104, %v2158
  %v2167 = vadd.f32 %v2105, %v2160
  %v2168 = vadd.f32 %v2106, %v2162
  %v2169 = vadd.f32 %v2107, %v2164
  %s2170 = scalar_lea.vmem %s0, 224
  %v2171 = vld [vmem:[%s2170] sm:$0xff]
  %v2172 = vld [vmem:[%s2170 + $0x8] sm:$0xff]
  %v2175 = vunpack.c.l.b16 %v2171
  %v2176 = vunpack.c.h.b16 %v2171
  %v2177 = vunpack.c.l.b16 %v2172
  %v2178 = vunpack.c.h.b16 %v2172
  %v2179 = vpack.c.b16 %v2177, %v2175
  %v2180 = vpack.c.b16 %v2178, %v2176
  %v2183 = vsel %vm189, %v2180, 0
  %2185 = vmatprep.subr.bf16.mxu0 %v1151
  %2186 = vmatpush1.bf16.msra.mxu0 %v1150
  %2187 = vmatprep.subr.bf16.mxu0 %v1153
  %2188 = vmatpush1.bf16.msra.mxu0 %v1152
  %2189 = vmatprep.subr.bf16.mxu0 %v1155
  %2190 = vmatpush1.bf16.msra.mxu0 %v1154
  %2191 = vmatprep.subr.bf16.mxu0 %v1157
  %2192 = vmatpush1.bf16.msra.mxu0 %v1156
  %2193 = vmatprep.subr.bf16.mxu0 %v1159
  %2194 = vmatpush1.bf16.msra.mxu0 %v1158
  %2195 = vmatprep.subr.bf16.mxu0 %v1161
  %2196 = vmatpush1.bf16.msra.mxu0 %v1160
  %2197 = vmatprep.subr.bf16.mxu0 %v1163
  %2198 = vmatpush1.bf16.msra.mxu0 %v1162
  %2199 = vmatprep.subr.bf16.mxu0 %v1165
  %2200 = vmatpush1.bf16.msra.mxu0 %v1164
  %2201 = vmatprep.subr.bf16.mxu0 %v1167
  %2202 = vmatpush1.bf16.msra.mxu0 %v1166
  %2203 = vmatprep.subr.bf16.mxu0 0
  %2204 = vmatpush1.bf16.msra.mxu0 0
  %2205 = vmatprep.subr.bf16.mxu0 0
  %2206 = vmatpush1.bf16.msra.mxu0 0
  %2207 = vmatprep.subr.bf16.mxu0 0
  %2208 = vmatpush1.bf16.msra.mxu0 0
  %2209 = vmatprep.subr.bf16.mxu0 0
  %2210 = vmatpush1.bf16.msra.mxu0 0
  %2211 = vmatprep.subr.bf16.mxu0 0
  %2212 = vmatpush1.bf16.msra.mxu0 0
  %2213 = vmatprep.subr.bf16.mxu0 0
  %2214 = vmatpush1.bf16.msra.mxu0 0
  %2215 = vmatprep.subr.bf16.mxu0 0
  %2216 = vmatpush1.bf16.msra.mxu0 0
  %2217 = vmatprep.mubr.bf16.mxu0 %v2183
  %2218 = vmatmul.mubr.bf16.gmra.mrb[0].mxu0 %v2179
  %v2219 = vpop.f32.mrb[0].mxu0
  %v2220 = vadd.f32 0.0, %v2219
  %v2221 = vpop.f32.mrb[0].mxu0
  %v2222 = vadd.f32 0.0, %v2221
  %v2223 = vpop.f32.mrb[0].mxu0
  %v2224 = vadd.f32 0.0, %v2223
  %v2225 = vpop.f32.mrb[0].mxu0
  %v2226 = vadd.f32 0.0, %v2225
  %2227 = vdwg.mxu0
  %v2228 = vadd.f32 %v2166, %v2220
  %v2229 = vadd.f32 %v2167, %v2222
  %v2230 = vadd.f32 %v2168, %v2224
  %v2231 = vadd.f32 %v2169, %v2226
  %s2232 = scalar_lea.vmem %s0, 240
  %v2233 = vld [vmem:[%s2232] sm:$0xff]
  %v2234 = vld [vmem:[%s2232 + $0x8] sm:$0xff]
  %v2237 = vunpack.c.l.b16 %v2233
  %v2238 = vunpack.c.h.b16 %v2233
  %v2239 = vunpack.c.l.b16 %v2234
  %v2240 = vunpack.c.h.b16 %v2234
  %v2241 = vpack.c.b16 %v2239, %v2237
  %v2242 = vpack.c.b16 %v2240, %v2238
  %v2245 = vsel %vm189, %v2242, 0
  %2247 = vmatprep.subr.bf16.mxu0 %v1322
  %2248 = vmatpush1.bf16.msra.mxu0 %v1321
  %2249 = vmatprep.subr.bf16.mxu0 %v1324
  %2250 = vmatpush1.bf16.msra.mxu0 %v1323
  %2251 = vmatprep.subr.bf16.mxu0 %v1326
  %2252 = vmatpush1.bf16.msra.mxu0 %v1325
  %2253 = vmatprep.subr.bf16.mxu0 %v1328
  %2254 = vmatpush1.bf16.msra.mxu0 %v1327
  %2255 = vmatprep.subr.bf16.mxu0 %v1330
  %2256 = vmatpush1.bf16.msra.mxu0 %v1329
  %2257 = vmatprep.subr.bf16.mxu0 %v1332
  %2258 = vmatpush1.bf16.msra.mxu0 %v1331
  %2259 = vmatprep.subr.bf16.mxu0 %v1334
  %2260 = vmatpush1.bf16.msra.mxu0 %v1333
  %2261 = vmatprep.subr.bf16.mxu0 %v1336
  %2262 = vmatpush1.bf16.msra.mxu0 %v1335
  %2263 = vmatprep.subr.bf16.mxu0 %v1338
  %2264 = vmatpush1.bf16.msra.mxu0 %v1337
  %2265 = vmatprep.subr.bf16.mxu0 0
  %2266 = vmatpush1.bf16.msra.mxu0 0
  %2267 = vmatprep.subr.bf16.mxu0 0
  %2268 = vmatpush1.bf16.msra.mxu0 0
  %2269 = vmatprep.subr.bf16.mxu0 0
  %2270 = vmatpush1.bf16.msra.mxu0 0
  %2271 = vmatprep.subr.bf16.mxu0 0
  %2272 = vmatpush1.bf16.msra.mxu0 0
  %2273 = vmatprep.subr.bf16.mxu0 0
  %2274 = vmatpush1.bf16.msra.mxu0 0
  %2275 = vmatprep.subr.bf16.mxu0 0
  %2276 = vmatpush1.bf16.msra.mxu0 0
  %2277 = vmatprep.subr.bf16.mxu0 0
  %2278 = vmatpush1.bf16.msra.mxu0 0
  %2279 = vmatprep.mubr.bf16.mxu0 %v2245
  %2280 = vmatmul.mubr.bf16.gmra.mrb[0].mxu0 %v2241
  %v2281 = vpop.f32.mrb[0].mxu0
  %v2282 = vadd.f32 0.0, %v2281
  %v2283 = vpop.f32.mrb[0].mxu0
  %v2284 = vadd.f32 0.0, %v2283
  %v2285 = vpop.f32.mrb[0].mxu0
  %v2286 = vadd.f32 0.0, %v2285
  %v2287 = vpop.f32.mrb[0].mxu0
  %v2288 = vadd.f32 0.0, %v2287
  %2289 = vdwg.mxu0
  %v2290 = vadd.f32 %v2228, %v2282
  %v2291 = vadd.f32 %v2229, %v2284
  %v2292 = vadd.f32 %v2230, %v2286
  %v2293 = vadd.f32 %v2231, %v2288
  %v2294 = vadd.f32 %v2290, %v1411
  %v2295 = vadd.f32 %v2291, %v1415
  %v2296 = vadd.f32 %v2292, %v1411
  %v2297 = vadd.f32 %v2293, %v1415
  %v2298 = vmax.f32 %v2294, 0.0
  %v2299 = vmax.f32 %v2295, 0.0
  %v2300 = vmax.f32 %v2296, 0.0
  %v2301 = vmax.f32 %v2297, 0.0
  %v2302 = vpack.c.bf16 %v2300, %v2298
  %v2303 = vpack.c.bf16 %v2301, %v2299
  %2304 = vmatprep.subr.bf16.mxu0 %v154
  %2305 = vmatpush1.bf16.msra.mxu0 %v153
  %2306 = vmatprep.subr.bf16.mxu0 %v156
  %2307 = vmatpush1.bf16.msra.mxu0 %v155
  %2308 = vmatprep.subr.bf16.mxu0 %v158
  %2309 = vmatpush1.bf16.msra.mxu0 %v157
  %2310 = vmatprep.subr.bf16.mxu0 %v160
  %2311 = vmatpush1.bf16.msra.mxu0 %v159
  %2312 = vmatprep.subr.bf16.mxu0 %v162
  %2313 = vmatpush1.bf16.msra.mxu0 %v161
  %2314 = vmatprep.subr.bf16.mxu0 %v164
  %2315 = vmatpush1.bf16.msra.mxu0 %v163
  %2316 = vmatprep.subr.bf16.mxu0 %v166
  %2317 = vmatpush1.bf16.msra.mxu0 %v165
  %2318 = vmatprep.subr.bf16.mxu0 %v168
  %2319 = vmatpush1.bf16.msra.mxu0 %v167
  %2320 = vmatprep.subr.bf16.mxu0 %v170
  %2321 = vmatpush1.bf16.msra.mxu0 %v169
  %2322 = vmatprep.subr.bf16.mxu0 0
  %2323 = vmatpush1.bf16.msra.mxu0 0
  %2324 = vmatprep.subr.bf16.mxu0 0
  %2325 = vmatpush1.bf16.msra.mxu0 0
  %2326 = vmatprep.subr.bf16.mxu0 0
  %2327 = vmatpush1.bf16.msra.mxu0 0
  %2328 = vmatprep.subr.bf16.mxu0 0
  %2329 = vmatpush1.bf16.msra.mxu0 0
  %2330 = vmatprep.subr.bf16.mxu0 0
  %2331 = vmatpush1.bf16.msra.mxu0 0
  %2332 = vmatprep.subr.bf16.mxu0 0
  %2333 = vmatpush1.bf16.msra.mxu0 0
  %2334 = vmatprep.subr.bf16.mxu0 0
  %2335 = vmatpush1.bf16.msra.mxu0 0
  %2336 = vmatprep.mubr.bf16.mxu0 %v2121
  %2337 = vmatmul.mubr.bf16.gmra.mrb[0].mxu0 %v2117
  %v2338 = vpop.f32.mrb[0].mxu0
  %v2339 = vadd.f32 0.0, %v2338
  %v2340 = vpop.f32.mrb[0].mxu0
  %v2341 = vadd.f32 0.0, %v2340
  %v2342 = vpop.f32.mrb[0].mxu0
  %v2343 = vadd.f32 0.0, %v2342
  %v2344 = vpop.f32.mrb[0].mxu0
  %v2345 = vadd.f32 0.0, %v2344
  %2346 = vdwg.mxu0
  %2347 = vmatprep.subr.bf16.mxu0 %v300
  %2348 = vmatpush1.bf16.msra.mxu0 %v299
  %2349 = vmatprep.subr.bf16.mxu0 %v302
  %2350 = vmatpush1.bf16.msra.mxu0 %v301
  %2351 = vmatprep.subr.bf16.mxu0 %v304
  %2352 = vmatpush1.bf16.msra.mxu0 %v303
  %2353 = vmatprep.subr.bf16.mxu0 %v306
  %2354 = vmatpush1.bf16.msra.mxu0 %v305
  %2355 = vmatprep.subr.bf16.mxu0 %v308
  %2356 = vmatpush1.bf16.msra.mxu0 %v307
  %2357 = vmatprep.subr.bf16.mxu0 %v310
  %2358 = vmatpush1.bf16.msra.mxu0 %v309
  %2359 = vmatprep.subr.bf16.mxu0 %v312
  %2360 = vmatpush1.bf16.msra.mxu0 %v311
  %2361 = vmatprep.subr.bf16.mxu0 %v314
  %2362 = vmatpush1.bf16.msra.mxu0 %v313
  %2363 = vmatprep.subr.bf16.mxu0 %v316
  %2364 = vmatpush1.bf16.msra.mxu0 %v315
  %2365 = vmatprep.subr.bf16.mxu0 0
  %2366 = vmatpush1.bf16.msra.mxu0 0
  %2367 = vmatprep.subr.bf16.mxu0 0
  %2368 = vmatpush1.bf16.msra.mxu0 0
  %2369 = vmatprep.subr.bf16.mxu0 0
  %2370 = vmatpush1.bf16.msra.mxu0 0
  %2371 = vmatprep.subr.bf16.mxu0 0
  %2372 = vmatpush1.bf16.msra.mxu0 0
  %2373 = vmatprep.subr.bf16.mxu0 0
  %2374 = vmatpush1.bf16.msra.mxu0 0
  %2375 = vmatprep.subr.bf16.mxu0 0
  %2376 = vmatpush1.bf16.msra.mxu0 0
  %2377 = vmatprep.subr.bf16.mxu0 0
  %2378 = vmatpush1.bf16.msra.mxu0 0
  %2379 = vmatprep.mubr.bf16.mxu0 %v2059
  %2380 = vmatmul.mubr.bf16.gmra.mrb[0].mxu0 %v2055
  %v2381 = vpop.f32.mrb[0].mxu0
  %v2382 = vadd.f32 %v2339, %v2381
  %v2383 = vpop.f32.mrb[0].mxu0
  %v2384 = vadd.f32 %v2341, %v2383
  %v2385 = vpop.f32.mrb[0].mxu0
  %v2386 = vadd.f32 %v2343, %v2385
  %v2387 = vpop.f32.mrb[0].mxu0
  %v2388 = vadd.f32 %v2345, %v2387
  %2389 = vdwg.mxu0
  %2390 = vmatprep.subr.bf16.mxu0 %v467
  %2391 = vmatpush1.bf16.msra.mxu0 %v466
  %2392 = vmatprep.subr.bf16.mxu0 %v469
  %2393 = vmatpush1.bf16.msra.mxu0 %v468
  %2394 = vmatprep.subr.bf16.mxu0 %v471
  %2395 = vmatpush1.bf16.msra.mxu0 %v470
  %2396 = vmatprep.subr.bf16.mxu0 %v473
  %2397 = vmatpush1.bf16.msra.mxu0 %v472
  %2398 = vmatprep.subr.bf16.mxu0 %v475
  %2399 = vmatpush1.bf16.msra.mxu0 %v474
  %2400 = vmatprep.subr.bf16.mxu0 %v477
  %2401 = vmatpush1.bf16.msra.mxu0 %v476
  %2402 = vmatprep.subr.bf16.mxu0 %v479
  %2403 = vmatpush1.bf16.msra.mxu0 %v478
  %2404 = vmatprep.subr.bf16.mxu0 %v481
  %2405 = vmatpush1.bf16.msra.mxu0 %v480
  %2406 = vmatprep.subr.bf16.mxu0 %v483
  %2407 = vmatpush1.bf16.msra.mxu0 %v482
  %2408 = vmatprep.subr.bf16.mxu0 0
  %2409 = vmatpush1.bf16.msra.mxu0 0
  %2410 = vmatprep.subr.bf16.mxu0 0
  %2411 = vmatpush1.bf16.msra.mxu0 0
  %2412 = vmatprep.subr.bf16.mxu0 0
  %2413 = vmatpush1.bf16.msra.mxu0 0
  %2414 = vmatprep.subr.bf16.mxu0 0
  %2415 = vmatpush1.bf16.msra.mxu0 0
  %2416 = vmatprep.subr.bf16.mxu0 0
  %2417 = vmatpush1.bf16.msra.mxu0 0
  %2418 = vmatprep.subr.bf16.mxu0 0
  %2419 = vmatpush1.bf16.msra.mxu0 0
  %2420 = vmatprep.subr.bf16.mxu0 0
  %2421 = vmatpush1.bf16.msra.mxu0 0
  %2422 = vmatprep.mubr.bf16.mxu0 %v2183
  %2423 = vmatmul.mubr.bf16.gmra.mrb[0].mxu0 %v2179
  %v2424 = vpop.f32.mrb[0].mxu0
  %v2425 = vadd.f32 0.0, %v2424
  %v2426 = vpop.f32.mrb[0].mxu0
  %v2427 = vadd.f32 0.0, %v2426
  %v2428 = vpop.f32.mrb[0].mxu0
  %v2429 = vadd.f32 0.0, %v2428
  %v2430 = vpop.f32.mrb[0].mxu0
  %v2431 = vadd.f32 0.0, %v2430
  %2432 = vdwg.mxu0
  %v2433 = vadd.f32 %v2382, %v2425
  %v2434 = vadd.f32 %v2384, %v2427
  %v2435 = vadd.f32 %v2386, %v2429
  %v2436 = vadd.f32 %v2388, %v2431
  %2437 = vmatprep.subr.bf16.mxu0 %v638
  %2438 = vmatpush1.bf16.msra.mxu0 %v637
  %2439 = vmatprep.subr.bf16.mxu0 %v640
  %2440 = vmatpush1.bf16.msra.mxu0 %v639
  %2441 = vmatprep.subr.bf16.mxu0 %v642
  %2442 = vmatpush1.bf16.msra.mxu0 %v641
  %2443 = vmatprep.subr.bf16.mxu0 %v644
  %2444 = vmatpush1.bf16.msra.mxu0 %v643
  %2445 = vmatprep.subr.bf16.mxu0 %v646
  %2446 = vmatpush1.bf16.msra.mxu0 %v645
  %2447 = vmatprep.subr.bf16.mxu0 %v648
  %2448 = vmatpush1.bf16.msra.mxu0 %v647
  %2449 = vmatprep.subr.bf16.mxu0 %v650
  %2450 = vmatpush1.bf16.msra.mxu0 %v649
  %2451 = vmatprep.subr.bf16.mxu0 %v652
  %2452 = vmatpush1.bf16.msra.mxu0 %v651
  %2453 = vmatprep.subr.bf16.mxu0 %v654
  %2454 = vmatpush1.bf16.msra.mxu0 %v653
  %2455 = vmatprep.subr.bf16.mxu0 0
  %2456 = vmatpush1.bf16.msra.mxu0 0
  %2457 = vmatprep.subr.bf16.mxu0 0
  %2458 = vmatpush1.bf16.msra.mxu0 0
  %2459 = vmatprep.subr.bf16.mxu0 0
  %2460 = vmatpush1.bf16.msra.mxu0 0
  %2461 = vmatprep.subr.bf16.mxu0 0
  %2462 = vmatpush1.bf16.msra.mxu0 0
  %2463 = vmatprep.subr.bf16.mxu0 0
  %2464 = vmatpush1.bf16.msra.mxu0 0
  %2465 = vmatprep.subr.bf16.mxu0 0
  %2466 = vmatpush1.bf16.msra.mxu0 0
  %2467 = vmatprep.subr.bf16.mxu0 0
  %2468 = vmatpush1.bf16.msra.mxu0 0
  %2469 = vmatprep.mubr.bf16.mxu0 %v2245
  %2470 = vmatmul.mubr.bf16.gmra.mrb[0].mxu0 %v2241
  %v2471 = vpop.f32.mrb[0].mxu0
  %v2472 = vadd.f32 0.0, %v2471
  %v2473 = vpop.f32.mrb[0].mxu0
  %v2474 = vadd.f32 0.0, %v2473
  %v2475 = vpop.f32.mrb[0].mxu0
  %v2476 = vadd.f32 0.0, %v2475
  %v2477 = vpop.f32.mrb[0].mxu0
  %v2478 = vadd.f32 0.0, %v2477
  %2479 = vdwg.mxu0
  %v2480 = vadd.f32 %v2433, %v2472
  %v2481 = vadd.f32 %v2434, %v2474
  %v2482 = vadd.f32 %v2435, %v2476
  %v2483 = vadd.f32 %v2436, %v2478
  %s2484 = scalar_lea.vmem %s0, 256
  %v2485 = vld [vmem:[%s2484] sm:$0xff]
  %v2486 = vld [vmem:[%s2484 + $0x8] sm:$0xff]
  %v2489 = vunpack.c.l.b16 %v2485
  %v2490 = vunpack.c.h.b16 %v2485
  %v2491 = vunpack.c.l.b16 %v2486
  %v2492 = vunpack.c.h.b16 %v2486
  %v2493 = vpack.c.b16 %v2491, %v2489
  %v2494 = vpack.c.b16 %v2492, %v2490
  %v2497 = vsel %vm189, %v2494, 0
  %2499 = vmatprep.subr.bf16.mxu0 %v809
  %2500 = vmatpush1.bf16.msra.mxu0 %v808
  %2501 = vmatprep.subr.bf16.mxu0 %v811
  %2502 = vmatpush1.bf16.msra.mxu0 %v810
  %2503 = vmatprep.subr.bf16.mxu0 %v813
  %2504 = vmatpush1.bf16.msra.mxu0 %v812
  %2505 = vmatprep.subr.bf16.mxu0 %v815
  %2506 = vmatpush1.bf16.msra.mxu0 %v814
  %2507 = vmatprep.subr.bf16.mxu0 %v817
  %2508 = vmatpush1.bf16.msra.mxu0 %v816
  %2509 = vmatprep.subr.bf16.mxu0 %v819
  %2510 = vmatpush1.bf16.msra.mxu0 %v818
  %2511 = vmatprep.subr.bf16.mxu0 %v821
  %2512 = vmatpush1.bf16.msra.mxu0 %v820
  %2513 = vmatprep.subr.bf16.mxu0 %v823
  %2514 = vmatpush1.bf16.msra.mxu0 %v822
  %2515 = vmatprep.subr.bf16.mxu0 %v825
  %2516 = vmatpush1.bf16.msra.mxu0 %v824
  %2517 = vmatprep.subr.bf16.mxu0 0
  %2518 = vmatpush1.bf16.msra.mxu0 0
  %2519 = vmatprep.subr.bf16.mxu0 0
  %2520 = vmatpush1.bf16.msra.mxu0 0
  %2521 = vmatprep.subr.bf16.mxu0 0
  %2522 = vmatpush1.bf16.msra.mxu0 0
  %2523 = vmatprep.subr.bf16.mxu0 0
  %2524 = vmatpush1.bf16.msra.mxu0 0
  %2525 = vmatprep.subr.bf16.mxu0 0
  %2526 = vmatpush1.bf16.msra.mxu0 0
  %2527 = vmatprep.subr.bf16.mxu0 0
  %2528 = vmatpush1.bf16.msra.mxu0 0
  %2529 = vmatprep.subr.bf16.mxu0 0
  %2530 = vmatpush1.bf16.msra.mxu0 0
  %2531 = vmatprep.mubr.bf16.mxu0 %v2497
  %2532 = vmatmul.mubr.bf16.gmra.mrb[0].mxu0 %v2493
  %v2533 = vpop.f32.mrb[0].mxu0
  %v2534 = vadd.f32 0.0, %v2533
  %v2535 = vpop.f32.mrb[0].mxu0
  %v2536 = vadd.f32 0.0, %v2535
  %v2537 = vpop.f32.mrb[0].mxu0
  %v2538 = vadd.f32 0.0, %v2537
  %v2539 = vpop.f32.mrb[0].mxu0
  %v2540 = vadd.f32 0.0, %v2539
  %2541 = vdwg.mxu0
  %v2542 = vadd.f32 %v2480, %v2534
  %v2543 = vadd.f32 %v2481, %v2536
  %v2544 = vadd.f32 %v2482, %v2538
  %v2545 = vadd.f32 %v2483, %v2540
  %s2546 = scalar_lea.vmem %s0, 272
  %v2547 = vld [vmem:[%s2546] sm:$0xff]
  %v2548 = vld [vmem:[%s2546 + $0x8] sm:$0xff]
  %v2551 = vunpack.c.l.b16 %v2547
  %v2552 = vunpack.c.h.b16 %v2547
  %v2553 = vunpack.c.l.b16 %v2548
  %v2554 = vunpack.c.h.b16 %v2548
  %v2555 = vpack.c.b16 %v2553, %v2551
  %v2556 = vpack.c.b16 %v2554, %v2552
  %v2559 = vsel %vm189, %v2556, 0
  %2561 = vmatprep.subr.bf16.mxu0 %v980
  %2562 = vmatpush1.bf16.msra.mxu0 %v979
  %2563 = vmatprep.subr.bf16.mxu0 %v982
  %2564 = vmatpush1.bf16.msra.mxu0 %v981
  %2565 = vmatprep.subr.bf16.mxu0 %v984
  %2566 = vmatpush1.bf16.msra.mxu0 %v983
  %2567 = vmatprep.subr.bf16.mxu0 %v986
  %2568 = vmatpush1.bf16.msra.mxu0 %v985
  %2569 = vmatprep.subr.bf16.mxu0 %v988
  %2570 = vmatpush1.bf16.msra.mxu0 %v987
  %2571 = vmatprep.subr.bf16.mxu0 %v990
  %2572 = vmatpush1.bf16.msra.mxu0 %v989
  %2573 = vmatprep.subr.bf16.mxu0 %v992
  %2574 = vmatpush1.bf16.msra.mxu0 %v991
  %2575 = vmatprep.subr.bf16.mxu0 %v994
  %2576 = vmatpush1.bf16.msra.mxu0 %v993
  %2577 = vmatprep.subr.bf16.mxu0 %v996
  %2578 = vmatpush1.bf16.msra.mxu0 %v995
  %2579 = vmatprep.subr.bf16.mxu0 0
  %2580 = vmatpush1.bf16.msra.mxu0 0
  %2581 = vmatprep.subr.bf16.mxu0 0
  %2582 = vmatpush1.bf16.msra.mxu0 0
  %2583 = vmatprep.subr.bf16.mxu0 0
  %2584 = vmatpush1.bf16.msra.mxu0 0
  %2585 = vmatprep.subr.bf16.mxu0 0
  %2586 = vmatpush1.bf16.msra.mxu0 0
  %2587 = vmatprep.subr.bf16.mxu0 0
  %2588 = vmatpush1.bf16.msra.mxu0 0
  %2589 = vmatprep.subr.bf16.mxu0 0
  %2590 = vmatpush1.bf16.msra.mxu0 0
  %2591 = vmatprep.subr.bf16.mxu0 0
  %2592 = vmatpush1.bf16.msra.mxu0 0
  %2593 = vmatprep.mubr.bf16.mxu0 %v2559
  %2594 = vmatmul.mubr.bf16.gmra.mrb[0].mxu0 %v2555
  %v2595 = vpop.f32.mrb[0].mxu0
  %v2596 = vadd.f32 0.0, %v2595
  %v2597 = vpop.f32.mrb[0].mxu0
  %v2598 = vadd.f32 0.0, %v2597
  %v2599 = vpop.f32.mrb[0].mxu0
  %v2600 = vadd.f32 0.0, %v2599
  %v2601 = vpop.f32.mrb[0].mxu0
  %v2602 = vadd.f32 0.0, %v2601
  %2603 = vdwg.mxu0
  %v2604 = vadd.f32 %v2542, %v2596
  %v2605 = vadd.f32 %v2543, %v2598
  %v2606 = vadd.f32 %v2544, %v2600
  %v2607 = vadd.f32 %v2545, %v2602
  %s2608 = scalar_lea.vmem %s0, 288
  %v2609 = vld [vmem:[%s2608] sm:$0xff]
  %v2610 = vld [vmem:[%s2608 + $0x8] sm:$0xff]
  %v2613 = vunpack.c.l.b16 %v2609
  %v2614 = vunpack.c.h.b16 %v2609
  %v2615 = vunpack.c.l.b16 %v2610
  %v2616 = vunpack.c.h.b16 %v2610
  %v2617 = vpack.c.b16 %v2615, %v2613
  %v2618 = vpack.c.b16 %v2616, %v2614
  %v2621 = vsel %vm189, %v2618, 0
  %2623 = vmatprep.subr.bf16.mxu0 %v1151
  %2624 = vmatpush1.bf16.msra.mxu0 %v1150
  %2625 = vmatprep.subr.bf16.mxu0 %v1153
  %2626 = vmatpush1.bf16.msra.mxu0 %v1152
  %2627 = vmatprep.subr.bf16.mxu0 %v1155
  %2628 = vmatpush1.bf16.msra.mxu0 %v1154
  %2629 = vmatprep.subr.bf16.mxu0 %v1157
  %2630 = vmatpush1.bf16.msra.mxu0 %v1156
  %2631 = vmatprep.subr.bf16.mxu0 %v1159
  %2632 = vmatpush1.bf16.msra.mxu0 %v1158
  %2633 = vmatprep.subr.bf16.mxu0 %v1161
  %2634 = vmatpush1.bf16.msra.mxu0 %v1160
  %2635 = vmatprep.subr.bf16.mxu0 %v1163
  %2636 = vmatpush1.bf16.msra.mxu0 %v1162
  %2637 = vmatprep.subr.bf16.mxu0 %v1165
  %2638 = vmatpush1.bf16.msra.mxu0 %v1164
  %2639 = vmatprep.subr.bf16.mxu0 %v1167
  %2640 = vmatpush1.bf16.msra.mxu0 %v1166
  %2641 = vmatprep.subr.bf16.mxu0 0
  %2642 = vmatpush1.bf16.msra.mxu0 0
  %2643 = vmatprep.subr.bf16.mxu0 0
  %2644 = vmatpush1.bf16.msra.mxu0 0
  %2645 = vmatprep.subr.bf16.mxu0 0
  %2646 = vmatpush1.bf16.msra.mxu0 0
  %2647 = vmatprep.subr.bf16.mxu0 0
  %2648 = vmatpush1.bf16.msra.mxu0 0
  %2649 = vmatprep.subr.bf16.mxu0 0
  %2650 = vmatpush1.bf16.msra.mxu0 0
  %2651 = vmatprep.subr.bf16.mxu0 0
  %2652 = vmatpush1.bf16.msra.mxu0 0
  %2653 = vmatprep.subr.bf16.mxu0 0
  %2654 = vmatpush1.bf16.msra.mxu0 0
  %2655 = vmatprep.mubr.bf16.mxu0 %v2621
  %2656 = vmatmul.mubr.bf16.gmra.mrb[0].mxu0 %v2617
  %v2657 = vpop.f32.mrb[0].mxu0
  %v2658 = vadd.f32 0.0, %v2657
  %v2659 = vpop.f32.mrb[0].mxu0
  %v2660 = vadd.f32 0.0, %v2659
  %v2661 = vpop.f32.mrb[0].mxu0
  %v2662 = vadd.f32 0.0, %v2661
  %v2663 = vpop.f32.mrb[0].mxu0
  %v2664 = vadd.f32 0.0, %v2663
  %2665 = vdwg.mxu0
  %v2666 = vadd.f32 %v2604, %v2658
  %v2667 = vadd.f32 %v2605, %v2660
  %v2668 = vadd.f32 %v2606, %v2662
  %v2669 = vadd.f32 %v2607, %v2664
  %s2670 = scalar_lea.vmem %s0, 304
  %v2671 = vld [vmem:[%s2670] sm:$0xff]
  %v2672 = vld [vmem:[%s2670 + $0x8] sm:$0xff]
  %v2675 = vunpack.c.l.b16 %v2671
  %v2676 = vunpack.c.h.b16 %v2671
  %v2677 = vunpack.c.l.b16 %v2672
  %v2678 = vunpack.c.h.b16 %v2672
  %v2679 = vpack.c.b16 %v2677, %v2675
  %v2680 = vpack.c.b16 %v2678, %v2676
  %v2683 = vsel %vm189, %v2680, 0
  %2685 = vmatprep.subr.bf16.mxu0 %v1322
  %2686 = vmatpush1.bf16.msra.mxu0 %v1321
  %2687 = vmatprep.subr.bf16.mxu0 %v1324
  %2688 = vmatpush1.bf16.msra.mxu0 %v1323
  %2689 = vmatprep.subr.bf16.mxu0 %v1326
  %2690 = vmatpush1.bf16.msra.mxu0 %v1325
  %2691 = vmatprep.subr.bf16.mxu0 %v1328
  %2692 = vmatpush1.bf16.msra.mxu0 %v1327
  %2693 = vmatprep.subr.bf16.mxu0 %v1330
  %2694 = vmatpush1.bf16.msra.mxu0 %v1329
  %2695 = vmatprep.subr.bf16.mxu0 %v1332
  %2696 = vmatpush1.bf16.msra.mxu0 %v1331
  %2697 = vmatprep.subr.bf16.mxu0 %v1334
  %2698 = vmatpush1.bf16.msra.mxu0 %v1333
  %2699 = vmatprep.subr.bf16.mxu0 %v1336
  %2700 = vmatpush1.bf16.msra.mxu0 %v1335
  %2701 = vmatprep.subr.bf16.mxu0 %v1338
  %2702 = vmatpush1.bf16.msra.mxu0 %v1337
  %2703 = vmatprep.subr.bf16.mxu0 0
  %2704 = vmatpush1.bf16.msra.mxu0 0
  %2705 = vmatprep.subr.bf16.mxu0 0
  %2706 = vmatpush1.bf16.msra.mxu0 0
  %2707 = vmatprep.subr.bf16.mxu0 0
  %2708 = vmatpush1.bf16.msra.mxu0 0
  %2709 = vmatprep.subr.bf16.mxu0 0
  %2710 = vmatpush1.bf16.msra.mxu0 0
  %2711 = vmatprep.subr.bf16.mxu0 0
  %2712 = vmatpush1.bf16.msra.mxu0 0
  %2713 = vmatprep.subr.bf16.mxu0 0
  %2714 = vmatpush1.bf16.msra.mxu0 0
  %2715 = vmatprep.subr.bf16.mxu0 0
  %2716 = vmatpush1.bf16.msra.mxu0 0
  %2717 = vmatprep.mubr.bf16.mxu0 %v2683
  %2718 = vmatmul.mubr.bf16.gmra.mrb[0].mxu0 %v2679
  %v2719 = vpop.f32.mrb[0].mxu0
  %v2720 = vadd.f32 0.0, %v2719
  %v2721 = vpop.f32.mrb[0].mxu0
  %v2722 = vadd.f32 0.0, %v2721
  %v2723 = vpop.f32.mrb[0].mxu0
  %v2724 = vadd.f32 0.0, %v2723
  %v2725 = vpop.f32.mrb[0].mxu0
  %v2726 = vadd.f32 0.0, %v2725
  %2727 = vdwg.mxu0
  %v2728 = vadd.f32 %v2666, %v2720
  %v2729 = vadd.f32 %v2667, %v2722
  %v2730 = vadd.f32 %v2668, %v2724
  %v2731 = vadd.f32 %v2669, %v2726
  %v2732 = vadd.f32 %v2728, %v1411
  %v2733 = vadd.f32 %v2729, %v1415
  %v2734 = vadd.f32 %v2730, %v1411
  %v2735 = vadd.f32 %v2731, %v1415
  %v2736 = vmax.f32 %v2732, 0.0
  %v2737 = vmax.f32 %v2733, 0.0
  %v2738 = vmax.f32 %v2734, 0.0
  %v2739 = vmax.f32 %v2735, 0.0
  %v2740 = vpack.c.bf16 %v2738, %v2736
  %v2741 = vpack.c.bf16 %v2739, %v2737
  %2742 = vmatprep.subr.bf16.mxu0 %v154
  %2743 = vmatpush1.bf16.msra.mxu0 %v153
  %2744 = vmatprep.subr.bf16.mxu0 %v156
  %2745 = vmatpush1.bf16.msra.mxu0 %v155
  %2746 = vmatprep.subr.bf16.mxu0 %v158
  %2747 = vmatpush1.bf16.msra.mxu0 %v157
  %2748 = vmatprep.subr.bf16.mxu0 %v160
  %2749 = vmatpush1.bf16.msra.mxu0 %v159
  %2750 = vmatprep.subr.bf16.mxu0 %v162
  %2751 = vmatpush1.bf16.msra.mxu0 %v161
  %2752 = vmatprep.subr.bf16.mxu0 %v164
  %2753 = vmatpush1.bf16.msra.mxu0 %v163
  %2754 = vmatprep.subr.bf16.mxu0 %v166
  %2755 = vmatpush1.bf16.msra.mxu0 %v165
  %2756 = vmatprep.subr.bf16.mxu0 %v168
  %2757 = vmatpush1.bf16.msra.mxu0 %v167
  %2758 = vmatprep.subr.bf16.mxu0 %v170
  %2759 = vmatpush1.bf16.msra.mxu0 %v169
  %2760 = vmatprep.subr.bf16.mxu0 0
  %2761 = vmatpush1.bf16.msra.mxu0 0
  %2762 = vmatprep.subr.bf16.mxu0 0
  %2763 = vmatpush1.bf16.msra.mxu0 0
  %2764 = vmatprep.subr.bf16.mxu0 0
  %2765 = vmatpush1.bf16.msra.mxu0 0
  %2766 = vmatprep.subr.bf16.mxu0 0
  %2767 = vmatpush1.bf16.msra.mxu0 0
  %2768 = vmatprep.subr.bf16.mxu0 0
  %2769 = vmatpush1.bf16.msra.mxu0 0
  %2770 = vmatprep.subr.bf16.mxu0 0
  %2771 = vmatpush1.bf16.msra.mxu0 0
  %2772 = vmatprep.subr.bf16.mxu0 0
  %2773 = vmatpush1.bf16.msra.mxu0 0
  %2774 = vmatprep.mubr.bf16.mxu0 %v2559
  %2775 = vmatmul.mubr.bf16.gmra.mrb[0].mxu0 %v2555
  %v2776 = vpop.f32.mrb[0].mxu0
  %v2777 = vadd.f32 0.0, %v2776
  %v2778 = vpop.f32.mrb[0].mxu0
  %v2779 = vadd.f32 0.0, %v2778
  %v2780 = vpop.f32.mrb[0].mxu0
  %v2781 = vadd.f32 0.0, %v2780
  %v2782 = vpop.f32.mrb[0].mxu0
  %v2783 = vadd.f32 0.0, %v2782
  %2784 = vdwg.mxu0
  %2785 = vmatprep.subr.bf16.mxu0 %v300
  %2786 = vmatpush1.bf16.msra.mxu0 %v299
  %2787 = vmatprep.subr.bf16.mxu0 %v302
  %2788 = vmatpush1.bf16.msra.mxu0 %v301
  %2789 = vmatprep.subr.bf16.mxu0 %v304
  %2790 = vmatpush1.bf16.msra.mxu0 %v303
  %2791 = vmatprep.subr.bf16.mxu0 %v306
  %2792 = vmatpush1.bf16.msra.mxu0 %v305
  %2793 = vmatprep.subr.bf16.mxu0 %v308
  %2794 = vmatpush1.bf16.msra.mxu0 %v307
  %2795 = vmatprep.subr.bf16.mxu0 %v310
  %2796 = vmatpush1.bf16.msra.mxu0 %v309
  %2797 = vmatprep.subr.bf16.mxu0 %v312
  %2798 = vmatpush1.bf16.msra.mxu0 %v311
  %2799 = vmatprep.subr.bf16.mxu0 %v314
  %2800 = vmatpush1.bf16.msra.mxu0 %v313
  %2801 = vmatprep.subr.bf16.mxu0 %v316
  %2802 = vmatpush1.bf16.msra.mxu0 %v315
  %2803 = vmatprep.subr.bf16.mxu0 0
  %2804 = vmatpush1.bf16.msra.mxu0 0
  %2805 = vmatprep.subr.bf16.mxu0 0
  %2806 = vmatpush1.bf16.msra.mxu0 0
  %2807 = vmatprep.subr.bf16.mxu0 0
  %2808 = vmatpush1.bf16.msra.mxu0 0
  %2809 = vmatprep.subr.bf16.mxu0 0
  %2810 = vmatpush1.bf16.msra.mxu0 0
  %2811 = vmatprep.subr.bf16.mxu0 0
  %2812 = vmatpush1.bf16.msra.mxu0 0
  %2813 = vmatprep.subr.bf16.mxu0 0
  %2814 = vmatpush1.bf16.msra.mxu0 0
  %2815 = vmatprep.subr.bf16.mxu0 0
  %2816 = vmatpush1.bf16.msra.mxu0 0
  %2817 = vmatprep.mubr.bf16.mxu0 %v2497
  %2818 = vmatmul.mubr.bf16.gmra.mrb[0].mxu0 %v2493
  %v2819 = vpop.f32.mrb[0].mxu0
  %v2820 = vadd.f32 %v2777, %v2819
  %v2821 = vpop.f32.mrb[0].mxu0
  %v2822 = vadd.f32 %v2779, %v2821
  %v2823 = vpop.f32.mrb[0].mxu0
  %v2824 = vadd.f32 %v2781, %v2823
  %v2825 = vpop.f32.mrb[0].mxu0
  %v2826 = vadd.f32 %v2783, %v2825
  %2827 = vdwg.mxu0
  %2828 = vmatprep.subr.bf16.mxu0 %v467
  %2829 = vmatpush1.bf16.msra.mxu0 %v466
  %2830 = vmatprep.subr.bf16.mxu0 %v469
  %2831 = vmatpush1.bf16.msra.mxu0 %v468
  %2832 = vmatprep.subr.bf16.mxu0 %v471
  %2833 = vmatpush1.bf16.msra.mxu0 %v470
  %2834 = vmatprep.subr.bf16.mxu0 %v473
  %2835 = vmatpush1.bf16.msra.mxu0 %v472
  %2836 = vmatprep.subr.bf16.mxu0 %v475
  %2837 = vmatpush1.bf16.msra.mxu0 %v474
  %2838 = vmatprep.subr.bf16.mxu0 %v477
  %2839 = vmatpush1.bf16.msra.mxu0 %v476
  %2840 = vmatprep.subr.bf16.mxu0 %v479
  %2841 = vmatpush1.bf16.msra.mxu0 %v478
  %2842 = vmatprep.subr.bf16.mxu0 %v481
  %2843 = vmatpush1.bf16.msra.mxu0 %v480
  %2844 = vmatprep.subr.bf16.mxu0 %v483
  %2845 = vmatpush1.bf16.msra.mxu0 %v482
  %2846 = vmatprep.subr.bf16.mxu0 0
  %2847 = vmatpush1.bf16.msra.mxu0 0
  %2848 = vmatprep.subr.bf16.mxu0 0
  %2849 = vmatpush1.bf16.msra.mxu0 0
  %2850 = vmatprep.subr.bf16.mxu0 0
  %2851 = vmatpush1.bf16.msra.mxu0 0
  %2852 = vmatprep.subr.bf16.mxu0 0
  %2853 = vmatpush1.bf16.msra.mxu0 0
  %2854 = vmatprep.subr.bf16.mxu0 0
  %2855 = vmatpush1.bf16.msra.mxu0 0
  %2856 = vmatprep.subr.bf16.mxu0 0
  %2857 = vmatpush1.bf16.msra.mxu0 0
  %2858 = vmatprep.subr.bf16.mxu0 0
  %2859 = vmatpush1.bf16.msra.mxu0 0
  %2860 = vmatprep.mubr.bf16.mxu0 %v2621
  %2861 = vmatmul.mubr.bf16.gmra.mrb[0].mxu0 %v2617
  %v2862 = vpop.f32.mrb[0].mxu0
  %v2863 = vadd.f32 0.0, %v2862
  %v2864 = vpop.f32.mrb[0].mxu0
  %v2865 = vadd.f32 0.0, %v2864
  %v2866 = vpop.f32.mrb[0].mxu0
  %v2867 = vadd.f32 0.0, %v2866
  %v2868 = vpop.f32.mrb[0].mxu0
  %v2869 = vadd.f32 0.0, %v2868
  %2870 = vdwg.mxu0
  %v2871 = vadd.f32 %v2820, %v2863
  %v2872 = vadd.f32 %v2822, %v2865
  %v2873 = vadd.f32 %v2824, %v2867
  %v2874 = vadd.f32 %v2826, %v2869
  %2875 = vmatprep.subr.bf16.mxu0 %v638
  %2876 = vmatpush1.bf16.msra.mxu0 %v637
  %2877 = vmatprep.subr.bf16.mxu0 %v640
  %2878 = vmatpush1.bf16.msra.mxu0 %v639
  %2879 = vmatprep.subr.bf16.mxu0 %v642
  %2880 = vmatpush1.bf16.msra.mxu0 %v641
  %2881 = vmatprep.subr.bf16.mxu0 %v644
  %2882 = vmatpush1.bf16.msra.mxu0 %v643
  %2883 = vmatprep.subr.bf16.mxu0 %v646
  %2884 = vmatpush1.bf16.msra.mxu0 %v645
  %2885 = vmatprep.subr.bf16.mxu0 %v648
  %2886 = vmatpush1.bf16.msra.mxu0 %v647
  %2887 = vmatprep.subr.bf16.mxu0 %v650
  %2888 = vmatpush1.bf16.msra.mxu0 %v649
  %2889 = vmatprep.subr.bf16.mxu0 %v652
  %2890 = vmatpush1.bf16.msra.mxu0 %v651
  %2891 = vmatprep.subr.bf16.mxu0 %v654
  %2892 = vmatpush1.bf16.msra.mxu0 %v653
  %2893 = vmatprep.subr.bf16.mxu0 0
  %2894 = vmatpush1.bf16.msra.mxu0 0
  %2895 = vmatprep.subr.bf16.mxu0 0
  %2896 = vmatpush1.bf16.msra.mxu0 0
  %2897 = vmatprep.subr.bf16.mxu0 0
  %2898 = vmatpush1.bf16.msra.mxu0 0
  %2899 = vmatprep.subr.bf16.mxu0 0
  %2900 = vmatpush1.bf16.msra.mxu0 0
  %2901 = vmatprep.subr.bf16.mxu0 0
  %2902 = vmatpush1.bf16.msra.mxu0 0
  %2903 = vmatprep.subr.bf16.mxu0 0
  %2904 = vmatpush1.bf16.msra.mxu0 0
  %2905 = vmatprep.subr.bf16.mxu0 0
  %2906 = vmatpush1.bf16.msra.mxu0 0
  %2907 = vmatprep.mubr.bf16.mxu0 %v2683
  %2908 = vmatmul.mubr.bf16.gmra.mrb[0].mxu0 %v2679
  %v2909 = vpop.f32.mrb[0].mxu0
  %v2910 = vadd.f32 0.0, %v2909
  %v2911 = vpop.f32.mrb[0].mxu0
  %v2912 = vadd.f32 0.0, %v2911
  %v2913 = vpop.f32.mrb[0].mxu0
  %v2914 = vadd.f32 0.0, %v2913
  %v2915 = vpop.f32.mrb[0].mxu0
  %v2916 = vadd.f32 0.0, %v2915
  %2917 = vdwg.mxu0
  %v2918 = vadd.f32 %v2871, %v2910
  %v2919 = vadd.f32 %v2872, %v2912
  %v2920 = vadd.f32 %v2873, %v2914
  %v2921 = vadd.f32 %v2874, %v2916
  %s2922 = scalar_lea.vmem %s0, 320
  %v2923 = vld [vmem:[%s2922] sm:$0xff]
  %v2924 = vld [vmem:[%s2922 + $0x8] sm:$0xff]
  %v2927 = vunpack.c.l.b16 %v2923
  %v2928 = vunpack.c.h.b16 %v2923
  %v2929 = vunpack.c.l.b16 %v2924
  %v2930 = vunpack.c.h.b16 %v2924
  %v2931 = vpack.c.b16 %v2929, %v2927
  %v2932 = vpack.c.b16 %v2930, %v2928
  %v2935 = vsel %vm189, %v2932, 0
  %2937 = vmatprep.subr.bf16.mxu0 %v809
  %2938 = vmatpush1.bf16.msra.mxu0 %v808
  %2939 = vmatprep.subr.bf16.mxu0 %v811
  %2940 = vmatpush1.bf16.msra.mxu0 %v810
  %2941 = vmatprep.subr.bf16.mxu0 %v813
  %2942 = vmatpush1.bf16.msra.mxu0 %v812
  %2943 = vmatprep.subr.bf16.mxu0 %v815
  %2944 = vmatpush1.bf16.msra.mxu0 %v814
  %2945 = vmatprep.subr.bf16.mxu0 %v817
  %2946 = vmatpush1.bf16.msra.mxu0 %v816
  %2947 = vmatprep.subr.bf16.mxu0 %v819
  %2948 = vmatpush1.bf16.msra.mxu0 %v818
  %2949 = vmatprep.subr.bf16.mxu0 %v821
  %2950 = vmatpush1.bf16.msra.mxu0 %v820
  %2951 = vmatprep.subr.bf16.mxu0 %v823
  %2952 = vmatpush1.bf16.msra.mxu0 %v822
  %2953 = vmatprep.subr.bf16.mxu0 %v825
  %2954 = vmatpush1.bf16.msra.mxu0 %v824
  %2955 = vmatprep.subr.bf16.mxu0 0
  %2956 = vmatpush1.bf16.msra.mxu0 0
  %2957 = vmatprep.subr.bf16.mxu0 0
  %2958 = vmatpush1.bf16.msra.mxu0 0
  %2959 = vmatprep.subr.bf16.mxu0 0
  %2960 = vmatpush1.bf16.msra.mxu0 0
  %2961 = vmatprep.subr.bf16.mxu0 0
  %2962 = vmatpush1.bf16.msra.mxu0 0
  %2963 = vmatprep.subr.bf16.mxu0 0
  %2964 = vmatpush1.bf16.msra.mxu0 0
  %2965 = vmatprep.subr.bf16.mxu0 0
  %2966 = vmatpush1.bf16.msra.mxu0 0
  %2967 = vmatprep.subr.bf16.mxu0 0
  %2968 = vmatpush1.bf16.msra.mxu0 0
  %2969 = vmatprep.mubr.bf16.mxu0 %v2935
  %2970 = vmatmul.mubr.bf16.gmra.mrb[0].mxu0 %v2931
  %v2971 = vpop.f32.mrb[0].mxu0
  %v2972 = vadd.f32 0.0, %v2971
  %v2973 = vpop.f32.mrb[0].mxu0
  %v2974 = vadd.f32 0.0, %v2973
  %v2975 = vpop.f32.mrb[0].mxu0
  %v2976 = vadd.f32 0.0, %v2975
  %v2977 = vpop.f32.mrb[0].mxu0
  %v2978 = vadd.f32 0.0, %v2977
  %2979 = vdwg.mxu0
  %v2980 = vadd.f32 %v2918, %v2972
  %v2981 = vadd.f32 %v2919, %v2974
  %v2982 = vadd.f32 %v2920, %v2976
  %v2983 = vadd.f32 %v2921, %v2978
  %s2984 = scalar_lea.vmem %s0, 336
  %v2985 = vld [vmem:[%s2984] sm:$0xff]
  %v2986 = vld [vmem:[%s2984 + $0x8] sm:$0xff]
  %v2989 = vunpack.c.l.b16 %v2985
  %v2990 = vunpack.c.h.b16 %v2985
  %v2991 = vunpack.c.l.b16 %v2986
  %v2992 = vunpack.c.h.b16 %v2986
  %v2993 = vpack.c.b16 %v2991, %v2989
  %v2994 = vpack.c.b16 %v2992, %v2990
  %v2997 = vsel %vm189, %v2994, 0
  %2999 = vmatprep.subr.bf16.mxu0 %v980
  %3000 = vmatpush1.bf16.msra.mxu0 %v979
  %3001 = vmatprep.subr.bf16.mxu0 %v982
  %3002 = vmatpush1.bf16.msra.mxu0 %v981
  %3003 = vmatprep.subr.bf16.mxu0 %v984
  %3004 = vmatpush1.bf16.msra.mxu0 %v983
  %3005 = vmatprep.subr.bf16.mxu0 %v986
  %3006 = vmatpush1.bf16.msra.mxu0 %v985
  %3007 = vmatprep.subr.bf16.mxu0 %v988
  %3008 = vmatpush1.bf16.msra.mxu0 %v987
  %3009 = vmatprep.subr.bf16.mxu0 %v990
  %3010 = vmatpush1.bf16.msra.mxu0 %v989
  %3011 = vmatprep.subr.bf16.mxu0 %v992
  %3012 = vmatpush1.bf16.msra.mxu0 %v991
  %3013 = vmatprep.subr.bf16.mxu0 %v994
  %3014 = vmatpush1.bf16.msra.mxu0 %v993
  %3015 = vmatprep.subr.bf16.mxu0 %v996
  %3016 = vmatpush1.bf16.msra.mxu0 %v995
  %3017 = vmatprep.subr.bf16.mxu0 0
  %3018 = vmatpush1.bf16.msra.mxu0 0
  %3019 = vmatprep.subr.bf16.mxu0 0
  %3020 = vmatpush1.bf16.msra.mxu0 0
  %3021 = vmatprep.subr.bf16.mxu0 0
  %3022 = vmatpush1.bf16.msra.mxu0 0
  %3023 = vmatprep.subr.bf16.mxu0 0
  %3024 = vmatpush1.bf16.msra.mxu0 0
  %3025 = vmatprep.subr.bf16.mxu0 0
  %3026 = vmatpush1.bf16.msra.mxu0 0
  %3027 = vmatprep.subr.bf16.mxu0 0
  %3028 = vmatpush1.bf16.msra.mxu0 0
  %3029 = vmatprep.subr.bf16.mxu0 0
  %3030 = vmatpush1.bf16.msra.mxu0 0
  %3031 = vmatprep.mubr.bf16.mxu0 %v2997
  %3032 = vmatmul.mubr.bf16.gmra.mrb[0].mxu0 %v2993
  %v3033 = vpop.f32.mrb[0].mxu0
  %v3034 = vadd.f32 0.0, %v3033
  %v3035 = vpop.f32.mrb[0].mxu0
  %v3036 = vadd.f32 0.0, %v3035
  %v3037 = vpop.f32.mrb[0].mxu0
  %v3038 = vadd.f32 0.0, %v3037
  %v3039 = vpop.f32.mrb[0].mxu0
  %v3040 = vadd.f32 0.0, %v3039
  %3041 = vdwg.mxu0
  %v3042 = vadd.f32 %v2980, %v3034
  %v3043 = vadd.f32 %v2981, %v3036
  %v3044 = vadd.f32 %v2982, %v3038
  %v3045 = vadd.f32 %v2983, %v3040
  %s3046 = scalar_lea.vmem %s0, 352
  %v3047 = vld [vmem:[%s3046] sm:$0xff]
  %v3048 = vld [vmem:[%s3046 + $0x8] sm:$0xff]
  %v3051 = vunpack.c.l.b16 %v3047
  %v3052 = vunpack.c.h.b16 %v3047
  %v3053 = vunpack.c.l.b16 %v3048
  %v3054 = vunpack.c.h.b16 %v3048
  %v3055 = vpack.c.b16 %v3053, %v3051
  %v3056 = vpack.c.b16 %v3054, %v3052
  %v3059 = vsel %vm189, %v3056, 0
  %3061 = vmatprep.subr.bf16.mxu0 %v1151
  %3062 = vmatpush1.bf16.msra.mxu0 %v1150
  %3063 = vmatprep.subr.bf16.mxu0 %v1153
  %3064 = vmatpush1.bf16.msra.mxu0 %v1152
  %3065 = vmatprep.subr.bf16.mxu0 %v1155
  %3066 = vmatpush1.bf16.msra.mxu0 %v1154
  %3067 = vmatprep.subr.bf16.mxu0 %v1157
  %3068 = vmatpush1.bf16.msra.mxu0 %v1156
  %3069 = vmatprep.subr.bf16.mxu0 %v1159
  %3070 = vmatpush1.bf16.msra.mxu0 %v1158
  %3071 = vmatprep.subr.bf16.mxu0 %v1161
  %3072 = vmatpush1.bf16.msra.mxu0 %v1160
  %3073 = vmatprep.subr.bf16.mxu0 %v1163
  %3074 = vmatpush1.bf16.msra.mxu0 %v1162
  %3075 = vmatprep.subr.bf16.mxu0 %v1165
  %3076 = vmatpush1.bf16.msra.mxu0 %v1164
  %3077 = vmatprep.subr.bf16.mxu0 %v1167
  %3078 = vmatpush1.bf16.msra.mxu0 %v1166
  %3079 = vmatprep.subr.bf16.mxu0 0
  %3080 = vmatpush1.bf16.msra.mxu0 0
  %3081 = vmatprep.subr.bf16.mxu0 0
  %3082 = vmatpush1.bf16.msra.mxu0 0
  %3083 = vmatprep.subr.bf16.mxu0 0
  %3084 = vmatpush1.bf16.msra.mxu0 0
  %3085 = vmatprep.subr.bf16.mxu0 0
  %3086 = vmatpush1.bf16.msra.mxu0 0
  %3087 = vmatprep.subr.bf16.mxu0 0
  %3088 = vmatpush1.bf16.msra.mxu0 0
  %3089 = vmatprep.subr.bf16.mxu0 0
  %3090 = vmatpush1.bf16.msra.mxu0 0
  %3091 = vmatprep.subr.bf16.mxu0 0
  %3092 = vmatpush1.bf16.msra.mxu0 0
  %3093 = vmatprep.mubr.bf16.mxu0 %v3059
  %3094 = vmatmul.mubr.bf16.gmra.mrb[0].mxu0 %v3055
  %v3095 = vpop.f32.mrb[0].mxu0
  %v3096 = vadd.f32 0.0, %v3095
  %v3097 = vpop.f32.mrb[0].mxu0
  %v3098 = vadd.f32 0.0, %v3097
  %v3099 = vpop.f32.mrb[0].mxu0
  %v3100 = vadd.f32 0.0, %v3099
  %v3101 = vpop.f32.mrb[0].mxu0
  %v3102 = vadd.f32 0.0, %v3101
  %3103 = vdwg.mxu0
  %v3104 = vadd.f32 %v3042, %v3096
  %v3105 = vadd.f32 %v3043, %v3098
  %v3106 = vadd.f32 %v3044, %v3100
  %v3107 = vadd.f32 %v3045, %v3102
  %s3108 = scalar_lea.vmem %s0, 368
  %v3109 = vld [vmem:[%s3108] sm:$0xff]
  %v3110 = vld [vmem:[%s3108 + $0x8] sm:$0xff]
  %v3113 = vunpack.c.l.b16 %v3109
  %v3114 = vunpack.c.h.b16 %v3109
  %v3115 = vunpack.c.l.b16 %v3110
  %v3116 = vunpack.c.h.b16 %v3110
  %v3117 = vpack.c.b16 %v3115, %v3113
  %v3118 = vpack.c.b16 %v3116, %v3114
  %v3121 = vsel %vm189, %v3118, 0
  %3123 = vmatprep.subr.bf16.mxu0 %v1322
  %3124 = vmatpush1.bf16.msra.mxu0 %v1321
  %3125 = vmatprep.subr.bf16.mxu0 %v1324
  %3126 = vmatpush1.bf16.msra.mxu0 %v1323
  %3127 = vmatprep.subr.bf16.mxu0 %v1326
  %3128 = vmatpush1.bf16.msra.mxu0 %v1325
  %3129 = vmatprep.subr.bf16.mxu0 %v1328
  %3130 = vmatpush1.bf16.msra.mxu0 %v1327
  %3131 = vmatprep.subr.bf16.mxu0 %v1330
  %3132 = vmatpush1.bf16.msra.mxu0 %v1329
  %3133 = vmatprep.subr.bf16.mxu0 %v1332
  %3134 = vmatpush1.bf16.msra.mxu0 %v1331
  %3135 = vmatprep.subr.bf16.mxu0 %v1334
  %3136 = vmatpush1.bf16.msra.mxu0 %v1333
  %3137 = vmatprep.subr.bf16.mxu0 %v1336
  %3138 = vmatpush1.bf16.msra.mxu0 %v1335
  %3139 = vmatprep.subr.bf16.mxu0 %v1338
  %3140 = vmatpush1.bf16.msra.mxu0 %v1337
  %3141 = vmatprep.subr.bf16.mxu0 0
  %3142 = vmatpush1.bf16.msra.mxu0 0
  %3143 = vmatprep.subr.bf16.mxu0 0
  %3144 = vmatpush1.bf16.msra.mxu0 0
  %3145 = vmatprep.subr.bf16.mxu0 0
  %3146 = vmatpush1.bf16.msra.mxu0 0
  %3147 = vmatprep.subr.bf16.mxu0 0
  %3148 = vmatpush1.bf16.msra.mxu0 0
  %3149 = vmatprep.subr.bf16.mxu0 0
  %3150 = vmatpush1.bf16.msra.mxu0 0
  %3151 = vmatprep.subr.bf16.mxu0 0
  %3152 = vmatpush1.bf16.msra.mxu0 0
  %3153 = vmatprep.subr.bf16.mxu0 0
  %3154 = vmatpush1.bf16.msra.mxu0 0
  %3155 = vmatprep.mubr.bf16.mxu0 %v3121
  %3156 = vmatmul.mubr.bf16.gmra.mrb[0].mxu0 %v3117
  %v3157 = vpop.f32.mrb[0].mxu0
  %v3158 = vadd.f32 0.0, %v3157
  %v3159 = vpop.f32.mrb[0].mxu0
  %v3160 = vadd.f32 0.0, %v3159
  %v3161 = vpop.f32.mrb[0].mxu0
  %v3162 = vadd.f32 0.0, %v3161
  %v3163 = vpop.f32.mrb[0].mxu0
  %v3164 = vadd.f32 0.0, %v3163
  %3165 = vdwg.mxu0
  %v3166 = vadd.f32 %v3104, %v3158
  %v3167 = vadd.f32 %v3105, %v3160
  %v3168 = vadd.f32 %v3106, %v3162
  %v3169 = vadd.f32 %v3107, %v3164
  %v3170 = vadd.f32 %v3166, %v1411
  %v3171 = vadd.f32 %v3167, %v1415
  %v3172 = vadd.f32 %v3168, %v1411
  %v3173 = vadd.f32 %v3169, %v1415
  %v3174 = vmax.f32 %v3170, 0.0
  %v3175 = vmax.f32 %v3171, 0.0
  %v3176 = vmax.f32 %v3172, 0.0
  %v3177 = vmax.f32 %v3173, 0.0
  %v3178 = vpack.c.bf16 %v3176, %v3174
  %v3179 = vpack.c.bf16 %v3177, %v3175
  %3180 = vmatprep.subr.bf16.mxu0 %v154
  %3181 = vmatpush1.bf16.msra.mxu0 %v153
  %3182 = vmatprep.subr.bf16.mxu0 %v156
  %3183 = vmatpush1.bf16.msra.mxu0 %v155
  %3184 = vmatprep.subr.bf16.mxu0 %v158
  %3185 = vmatpush1.bf16.msra.mxu0 %v157
  %3186 = vmatprep.subr.bf16.mxu0 %v160
  %3187 = vmatpush1.bf16.msra.mxu0 %v159
  %3188 = vmatprep.subr.bf16.mxu0 %v162
  %3189 = vmatpush1.bf16.msra.mxu0 %v161
  %3190 = vmatprep.subr.bf16.mxu0 %v164
  %3191 = vmatpush1.bf16.msra.mxu0 %v163
  %3192 = vmatprep.subr.bf16.mxu0 %v166
  %3193 = vmatpush1.bf16.msra.mxu0 %v165
  %3194 = vmatprep.subr.bf16.mxu0 %v168
  %3195 = vmatpush1.bf16.msra.mxu0 %v167
  %3196 = vmatprep.subr.bf16.mxu0 %v170
  %3197 = vmatpush1.bf16.msra.mxu0 %v169
  %3198 = vmatprep.subr.bf16.mxu0 0
  %3199 = vmatpush1.bf16.msra.mxu0 0
  %3200 = vmatprep.subr.bf16.mxu0 0
  %3201 = vmatpush1.bf16.msra.mxu0 0
  %3202 = vmatprep.subr.bf16.mxu0 0
  %3203 = vmatpush1.bf16.msra.mxu0 0
  %3204 = vmatprep.subr.bf16.mxu0 0
  %3205 = vmatpush1.bf16.msra.mxu0 0
  %3206 = vmatprep.subr.bf16.mxu0 0
  %3207 = vmatpush1.bf16.msra.mxu0 0
  %3208 = vmatprep.subr.bf16.mxu0 0
  %3209 = vmatpush1.bf16.msra.mxu0 0
  %3210 = vmatprep.subr.bf16.mxu0 0
  %3211 = vmatpush1.bf16.msra.mxu0 0
  %3212 = vmatprep.mubr.bf16.mxu0 %v2997
  %3213 = vmatmul.mubr.bf16.gmra.mrb[0].mxu0 %v2993
  %v3214 = vpop.f32.mrb[0].mxu0
  %v3215 = vadd.f32 0.0, %v3214
  %v3216 = vpop.f32.mrb[0].mxu0
  %v3217 = vadd.f32 0.0, %v3216
  %v3218 = vpop.f32.mrb[0].mxu0
  %v3219 = vadd.f32 0.0, %v3218
  %v3220 = vpop.f32.mrb[0].mxu0
  %v3221 = vadd.f32 0.0, %v3220
  %3222 = vdwg.mxu0
  %3223 = vmatprep.subr.bf16.mxu0 %v300
  %3224 = vmatpush1.bf16.msra.mxu0 %v299
  %3225 = vmatprep.subr.bf16.mxu0 %v302
  %3226 = vmatpush1.bf16.msra.mxu0 %v301
  %3227 = vmatprep.subr.bf16.mxu0 %v304
  %3228 = vmatpush1.bf16.msra.mxu0 %v303
  %3229 = vmatprep.subr.bf16.mxu0 %v306
  %3230 = vmatpush1.bf16.msra.mxu0 %v305
  %3231 = vmatprep.subr.bf16.mxu0 %v308
  %3232 = vmatpush1.bf16.msra.mxu0 %v307
  %3233 = vmatprep.subr.bf16.mxu0 %v310
  %3234 = vmatpush1.bf16.msra.mxu0 %v309
  %3235 = vmatprep.subr.bf16.mxu0 %v312
  %3236 = vmatpush1.bf16.msra.mxu0 %v311
  %3237 = vmatprep.subr.bf16.mxu0 %v314
  %3238 = vmatpush1.bf16.msra.mxu0 %v313
  %3239 = vmatprep.subr.bf16.mxu0 %v316
  %3240 = vmatpush1.bf16.msra.mxu0 %v315
  %3241 = vmatprep.subr.bf16.mxu0 0
  %3242 = vmatpush1.bf16.msra.mxu0 0
  %3243 = vmatprep.subr.bf16.mxu0 0
  %3244 = vmatpush1.bf16.msra.mxu0 0
  %3245 = vmatprep.subr.bf16.mxu0 0
  %3246 = vmatpush1.bf16.msra.mxu0 0
  %3247 = vmatprep.subr.bf16.mxu0 0
  %3248 = vmatpush1.bf16.msra.mxu0 0
  %3249 = vmatprep.subr.bf16.mxu0 0
  %3250 = vmatpush1.bf16.msra.mxu0 0
  %3251 = vmatprep.subr.bf16.mxu0 0
  %3252 = vmatpush1.bf16.msra.mxu0 0
  %3253 = vmatprep.subr.bf16.mxu0 0
  %3254 = vmatpush1.bf16.msra.mxu0 0
  %3255 = vmatprep.mubr.bf16.mxu0 %v2935
  %3256 = vmatmul.mubr.bf16.gmra.mrb[0].mxu0 %v2931
  %v3257 = vpop.f32.mrb[0].mxu0
  %v3258 = vadd.f32 %v3215, %v3257
  %v3259 = vpop.f32.mrb[0].mxu0
  %v3260 = vadd.f32 %v3217, %v3259
  %v3261 = vpop.f32.mrb[0].mxu0
  %v3262 = vadd.f32 %v3219, %v3261
  %v3263 = vpop.f32.mrb[0].mxu0
  %v3264 = vadd.f32 %v3221, %v3263
  %3265 = vdwg.mxu0
  %3266 = vmatprep.subr.bf16.mxu0 %v467
  %3267 = vmatpush1.bf16.msra.mxu0 %v466
  %3268 = vmatprep.subr.bf16.mxu0 %v469
  %3269 = vmatpush1.bf16.msra.mxu0 %v468
  %3270 = vmatprep.subr.bf16.mxu0 %v471
  %3271 = vmatpush1.bf16.msra.mxu0 %v470
  %3272 = vmatprep.subr.bf16.mxu0 %v473
  %3273 = vmatpush1.bf16.msra.mxu0 %v472
  %3274 = vmatprep.subr.bf16.mxu0 %v475
  %3275 = vmatpush1.bf16.msra.mxu0 %v474
  %3276 = vmatprep.subr.bf16.mxu0 %v477
  %3277 = vmatpush1.bf16.msra.mxu0 %v476
  %3278 = vmatprep.subr.bf16.mxu0 %v479
  %3279 = vmatpush1.bf16.msra.mxu0 %v478
  %3280 = vmatprep.subr.bf16.mxu0 %v481
  %3281 = vmatpush1.bf16.msra.mxu0 %v480
  %3282 = vmatprep.subr.bf16.mxu0 %v483
  %3283 = vmatpush1.bf16.msra.mxu0 %v482
  %3284 = vmatprep.subr.bf16.mxu0 0
  %3285 = vmatpush1.bf16.msra.mxu0 0
  %3286 = vmatprep.subr.bf16.mxu0 0
  %3287 = vmatpush1.bf16.msra.mxu0 0
  %3288 = vmatprep.subr.bf16.mxu0 0
  %3289 = vmatpush1.bf16.msra.mxu0 0
  %3290 = vmatprep.subr.bf16.mxu0 0
  %3291 = vmatpush1.bf16.msra.mxu0 0
  %3292 = vmatprep.subr.bf16.mxu0 0
  %3293 = vmatpush1.bf16.msra.mxu0 0
  %3294 = vmatprep.subr.bf16.mxu0 0
  %3295 = vmatpush1.bf16.msra.mxu0 0
  %3296 = vmatprep.subr.bf16.mxu0 0
  %3297 = vmatpush1.bf16.msra.mxu0 0
  %3298 = vmatprep.mubr.bf16.mxu0 %v3059
  %3299 = vmatmul.mubr.bf16.gmra.mrb[0].mxu0 %v3055
  %v3300 = vpop.f32.mrb[0].mxu0
  %v3301 = vadd.f32 0.0, %v3300
  %v3302 = vpop.f32.mrb[0].mxu0
  %v3303 = vadd.f32 0.0, %v3302
  %v3304 = vpop.f32.mrb[0].mxu0
  %v3305 = vadd.f32 0.0, %v3304
  %v3306 = vpop.f32.mrb[0].mxu0
  %v3307 = vadd.f32 0.0, %v3306
  %3308 = vdwg.mxu0
  %v3309 = vadd.f32 %v3258, %v3301
  %v3310 = vadd.f32 %v3260, %v3303
  %v3311 = vadd.f32 %v3262, %v3305
  %v3312 = vadd.f32 %v3264, %v3307
  %3313 = vmatprep.subr.bf16.mxu0 %v638
  %3314 = vmatpush1.bf16.msra.mxu0 %v637
  %3315 = vmatprep.subr.bf16.mxu0 %v640
  %3316 = vmatpush1.bf16.msra.mxu0 %v639
  %3317 = vmatprep.subr.bf16.mxu0 %v642
  %3318 = vmatpush1.bf16.msra.mxu0 %v641
  %3319 = vmatprep.subr.bf16.mxu0 %v644
  %3320 = vmatpush1.bf16.msra.mxu0 %v643
  %3321 = vmatprep.subr.bf16.mxu0 %v646
  %3322 = vmatpush1.bf16.msra.mxu0 %v645
  %3323 = vmatprep.subr.bf16.mxu0 %v648
  %3324 = vmatpush1.bf16.msra.mxu0 %v647
  %3325 = vmatprep.subr.bf16.mxu0 %v650
  %3326 = vmatpush1.bf16.msra.mxu0 %v649
  %3327 = vmatprep.subr.bf16.mxu0 %v652
  %3328 = vmatpush1.bf16.msra.mxu0 %v651
  %3329 = vmatprep.subr.bf16.mxu0 %v654
  %3330 = vmatpush1.bf16.msra.mxu0 %v653
  %3331 = vmatprep.subr.bf16.mxu0 0
  %3332 = vmatpush1.bf16.msra.mxu0 0
  %3333 = vmatprep.subr.bf16.mxu0 0
  %3334 = vmatpush1.bf16.msra.mxu0 0
  %3335 = vmatprep.subr.bf16.mxu0 0
  %3336 = vmatpush1.bf16.msra.mxu0 0
  %3337 = vmatprep.subr.bf16.mxu0 0
  %3338 = vmatpush1.bf16.msra.mxu0 0
  %3339 = vmatprep.subr.bf16.mxu0 0
  %3340 = vmatpush1.bf16.msra.mxu0 0
  %3341 = vmatprep.subr.bf16.mxu0 0
  %3342 = vmatpush1.bf16.msra.mxu0 0
  %3343 = vmatprep.subr.bf16.mxu0 0
  %3344 = vmatpush1.bf16.msra.mxu0 0
  %3345 = vmatprep.mubr.bf16.mxu0 %v3121
  %3346 = vmatmul.mubr.bf16.gmra.mrb[0].mxu0 %v3117
  %v3347 = vpop.f32.mrb[0].mxu0
  %v3348 = vadd.f32 0.0, %v3347
  %v3349 = vpop.f32.mrb[0].mxu0
  %v3350 = vadd.f32 0.0, %v3349
  %v3351 = vpop.f32.mrb[0].mxu0
  %v3352 = vadd.f32 0.0, %v3351
  %v3353 = vpop.f32.mrb[0].mxu0
  %v3354 = vadd.f32 0.0, %v3353
  %3355 = vdwg.mxu0
  %v3356 = vadd.f32 %v3309, %v3348
  %v3357 = vadd.f32 %v3310, %v3350
  %v3358 = vadd.f32 %v3311, %v3352
  %v3359 = vadd.f32 %v3312, %v3354
  %s3360 = scalar_lea.vmem %s0, 384
  %v3361 = vld [vmem:[%s3360] sm:$0xff]
  %v3362 = vld [vmem:[%s3360 + $0x8] sm:$0xff]
  %v3365 = vunpack.c.l.b16 %v3361
  %v3366 = vunpack.c.h.b16 %v3361
  %v3367 = vunpack.c.l.b16 %v3362
  %v3368 = vunpack.c.h.b16 %v3362
  %v3369 = vpack.c.b16 %v3367, %v3365
  %v3370 = vpack.c.b16 %v3368, %v3366
  %v3373 = vsel %vm189, %v3370, 0
  %3375 = vmatprep.subr.bf16.mxu0 %v809
  %3376 = vmatpush1.bf16.msra.mxu0 %v808
  %3377 = vmatprep.subr.bf16.mxu0 %v811
  %3378 = vmatpush1.bf16.msra.mxu0 %v810
  %3379 = vmatprep.subr.bf16.mxu0 %v813
  %3380 = vmatpush1.bf16.msra.mxu0 %v812
  %3381 = vmatprep.subr.bf16.mxu0 %v815
  %3382 = vmatpush1.bf16.msra.mxu0 %v814
  %3383 = vmatprep.subr.bf16.mxu0 %v817
  %3384 = vmatpush1.bf16.msra.mxu0 %v816
  %3385 = vmatprep.subr.bf16.mxu0 %v819
  %3386 = vmatpush1.bf16.msra.mxu0 %v818
  %3387 = vmatprep.subr.bf16.mxu0 %v821
  %3388 = vmatpush1.bf16.msra.mxu0 %v820
  %3389 = vmatprep.subr.bf16.mxu0 %v823
  %3390 = vmatpush1.bf16.msra.mxu0 %v822
  %3391 = vmatprep.subr.bf16.mxu0 %v825
  %3392 = vmatpush1.bf16.msra.mxu0 %v824
  %3393 = vmatprep.subr.bf16.mxu0 0
  %3394 = vmatpush1.bf16.msra.mxu0 0
  %3395 = vmatprep.subr.bf16.mxu0 0
  %3396 = vmatpush1.bf16.msra.mxu0 0
  %3397 = vmatprep.subr.bf16.mxu0 0
  %3398 = vmatpush1.bf16.msra.mxu0 0
  %3399 = vmatprep.subr.bf16.mxu0 0
  %3400 = vmatpush1.bf16.msra.mxu0 0
  %3401 = vmatprep.subr.bf16.mxu0 0
  %3402 = vmatpush1.bf16.msra.mxu0 0
  %3403 = vmatprep.subr.bf16.mxu0 0
  %3404 = vmatpush1.bf16.msra.mxu0 0
  %3405 = vmatprep.subr.bf16.mxu0 0
  %3406 = vmatpush1.bf16.msra.mxu0 0
  %3407 = vmatprep.mubr.bf16.mxu0 %v3373
  %3408 = vmatmul.mubr.bf16.gmra.mrb[0].mxu0 %v3369
  %v3409 = vpop.f32.mrb[0].mxu0
  %v3410 = vadd.f32 0.0, %v3409
  %v3411 = vpop.f32.mrb[0].mxu0
  %v3412 = vadd.f32 0.0, %v3411
  %v3413 = vpop.f32.mrb[0].mxu0
  %v3414 = vadd.f32 0.0, %v3413
  %v3415 = vpop.f32.mrb[0].mxu0
  %v3416 = vadd.f32 0.0, %v3415
  %3417 = vdwg.mxu0
  %v3418 = vadd.f32 %v3356, %v3410
  %v3419 = vadd.f32 %v3357, %v3412
  %v3420 = vadd.f32 %v3358, %v3414
  %v3421 = vadd.f32 %v3359, %v3416
  %s3422 = scalar_lea.vmem %s0, 400
  %v3423 = vld [vmem:[%s3422] sm:$0xff]
  %v3424 = vld [vmem:[%s3422 + $0x8] sm:$0xff]
  %v3427 = vunpack.c.l.b16 %v3423
  %v3428 = vunpack.c.h.b16 %v3423
  %v3429 = vunpack.c.l.b16 %v3424
  %v3430 = vunpack.c.h.b16 %v3424
  %v3431 = vpack.c.b16 %v3429, %v3427
  %v3432 = vpack.c.b16 %v3430, %v3428
  %v3435 = vsel %vm189, %v3432, 0
  %3437 = vmatprep.subr.bf16.mxu0 %v980
  %3438 = vmatpush1.bf16.msra.mxu0 %v979
  %3439 = vmatprep.subr.bf16.mxu0 %v982
  %3440 = vmatpush1.bf16.msra.mxu0 %v981
  %3441 = vmatprep.subr.bf16.mxu0 %v984
  %3442 = vmatpush1.bf16.msra.mxu0 %v983
  %3443 = vmatprep.subr.bf16.mxu0 %v986
  %3444 = vmatpush1.bf16.msra.mxu0 %v985
  %3445 = vmatprep.subr.bf16.mxu0 %v988
  %3446 = vmatpush1.bf16.msra.mxu0 %v987
  %3447 = vmatprep.subr.bf16.mxu0 %v990
  %3448 = vmatpush1.bf16.msra.mxu0 %v989
  %3449 = vmatprep.subr.bf16.mxu0 %v992
  %3450 = vmatpush1.bf16.msra.mxu0 %v991
  %3451 = vmatprep.subr.bf16.mxu0 %v994
  %3452 = vmatpush1.bf16.msra.mxu0 %v993
  %3453 = vmatprep.subr.bf16.mxu0 %v996
  %3454 = vmatpush1.bf16.msra.mxu0 %v995
  %3455 = vmatprep.subr.bf16.mxu0 0
  %3456 = vmatpush1.bf16.msra.mxu0 0
  %3457 = vmatprep.subr.bf16.mxu0 0
  %3458 = vmatpush1.bf16.msra.mxu0 0
  %3459 = vmatprep.subr.bf16.mxu0 0
  %3460 = vmatpush1.bf16.msra.mxu0 0
  %3461 = vmatprep.subr.bf16.mxu0 0
  %3462 = vmatpush1.bf16.msra.mxu0 0
  %3463 = vmatprep.subr.bf16.mxu0 0
  %3464 = vmatpush1.bf16.msra.mxu0 0
  %3465 = vmatprep.subr.bf16.mxu0 0
  %3466 = vmatpush1.bf16.msra.mxu0 0
  %3467 = vmatprep.subr.bf16.mxu0 0
  %3468 = vmatpush1.bf16.msra.mxu0 0
  %3469 = vmatprep.mubr.bf16.mxu0 %v3435
  %3470 = vmatmul.mubr.bf16.gmra.mrb[0].mxu0 %v3431
  %v3471 = vpop.f32.mrb[0].mxu0
  %v3472 = vadd.f32 0.0, %v3471
  %v3473 = vpop.f32.mrb[0].mxu0
  %v3474 = vadd.f32 0.0, %v3473
  %v3475 = vpop.f32.mrb[0].mxu0
  %v3476 = vadd.f32 0.0, %v3475
  %v3477 = vpop.f32.mrb[0].mxu0
  %v3478 = vadd.f32 0.0, %v3477
  %3479 = vdwg.mxu0
  %v3480 = vadd.f32 %v3418, %v3472
  %v3481 = vadd.f32 %v3419, %v3474
  %v3482 = vadd.f32 %v3420, %v3476
  %v3483 = vadd.f32 %v3421, %v3478
  %s3484 = scalar_lea.vmem %s0, 416
  %v3485 = vld [vmem:[%s3484] sm:$0xff]
  %v3486 = vld [vmem:[%s3484 + $0x8] sm:$0xff]
  %v3489 = vunpack.c.l.b16 %v3485
  %v3490 = vunpack.c.h.b16 %v3485
  %v3491 = vunpack.c.l.b16 %v3486
  %v3492 = vunpack.c.h.b16 %v3486
  %v3493 = vpack.c.b16 %v3491, %v3489
  %v3494 = vpack.c.b16 %v3492, %v3490
  %v3497 = vsel %vm189, %v3494, 0
  %3499 = vmatprep.subr.bf16.mxu0 %v1151
  %3500 = vmatpush1.bf16.msra.mxu0 %v1150
  %3501 = vmatprep.subr.bf16.mxu0 %v1153
  %3502 = vmatpush1.bf16.msra.mxu0 %v1152
  %3503 = vmatprep.subr.bf16.mxu0 %v1155
  %3504 = vmatpush1.bf16.msra.mxu0 %v1154
  %3505 = vmatprep.subr.bf16.mxu0 %v1157
  %3506 = vmatpush1.bf16.msra.mxu0 %v1156
  %3507 = vmatprep.subr.bf16.mxu0 %v1159
  %3508 = vmatpush1.bf16.msra.mxu0 %v1158
  %3509 = vmatprep.subr.bf16.mxu0 %v1161
  %3510 = vmatpush1.bf16.msra.mxu0 %v1160
  %3511 = vmatprep.subr.bf16.mxu0 %v1163
  %3512 = vmatpush1.bf16.msra.mxu0 %v1162
  %3513 = vmatprep.subr.bf16.mxu0 %v1165
  %3514 = vmatpush1.bf16.msra.mxu0 %v1164
  %3515 = vmatprep.subr.bf16.mxu0 %v1167
  %3516 = vmatpush1.bf16.msra.mxu0 %v1166
  %3517 = vmatprep.subr.bf16.mxu0 0
  %3518 = vmatpush1.bf16.msra.mxu0 0
  %3519 = vmatprep.subr.bf16.mxu0 0
  %3520 = vmatpush1.bf16.msra.mxu0 0
  %3521 = vmatprep.subr.bf16.mxu0 0
  %3522 = vmatpush1.bf16.msra.mxu0 0
  %3523 = vmatprep.subr.bf16.mxu0 0
  %3524 = vmatpush1.bf16.msra.mxu0 0
  %3525 = vmatprep.subr.bf16.mxu0 0
  %3526 = vmatpush1.bf16.msra.mxu0 0
  %3527 = vmatprep.subr.bf16.mxu0 0
  %3528 = vmatpush1.bf16.msra.mxu0 0
  %3529 = vmatprep.subr.bf16.mxu0 0
  %3530 = vmatpush1.bf16.msra.mxu0 0
  %3531 = vmatprep.mubr.bf16.mxu0 %v3497
  %3532 = vmatmul.mubr.bf16.gmra.mrb[0].mxu0 %v3493
  %v3533 = vpop.f32.mrb[0].mxu0
  %v3534 = vadd.f32 0.0, %v3533
  %v3535 = vpop.f32.mrb[0].mxu0
  %v3536 = vadd.f32 0.0, %v3535
  %v3537 = vpop.f32.mrb[0].mxu0
  %v3538 = vadd.f32 0.0, %v3537
  %v3539 = vpop.f32.mrb[0].mxu0
  %v3540 = vadd.f32 0.0, %v3539
  %3541 = vdwg.mxu0
  %v3542 = vadd.f32 %v3480, %v3534
  %v3543 = vadd.f32 %v3481, %v3536
  %v3544 = vadd.f32 %v3482, %v3538
  %v3545 = vadd.f32 %v3483, %v3540
  %s3546 = scalar_lea.vmem %s0, 432
  %v3547 = vld [vmem:[%s3546] sm:$0xff]
  %v3548 = vld [vmem:[%s3546 + $0x8] sm:$0xff]
  %v3551 = vunpack.c.l.b16 %v3547
  %v3552 = vunpack.c.h.b16 %v3547
  %v3553 = vunpack.c.l.b16 %v3548
  %v3554 = vunpack.c.h.b16 %v3548
  %v3555 = vpack.c.b16 %v3553, %v3551
  %v3556 = vpack.c.b16 %v3554, %v3552
  %v3559 = vsel %vm189, %v3556, 0
  %3561 = vmatprep.subr.bf16.mxu0 %v1322
  %3562 = vmatpush1.bf16.msra.mxu0 %v1321
  %3563 = vmatprep.subr.bf16.mxu0 %v1324
  %3564 = vmatpush1.bf16.msra.mxu0 %v1323
  %3565 = vmatprep.subr.bf16.mxu0 %v1326
  %3566 = vmatpush1.bf16.msra.mxu0 %v1325
  %3567 = vmatprep.subr.bf16.mxu0 %v1328
  %3568 = vmatpush1.bf16.msra.mxu0 %v1327
  %3569 = vmatprep.subr.bf16.mxu0 %v1330
  %3570 = vmatpush1.bf16.msra.mxu0 %v1329
  %3571 = vmatprep.subr.bf16.mxu0 %v1332
  %3572 = vmatpush1.bf16.msra.mxu0 %v1331
  %3573 = vmatprep.subr.bf16.mxu0 %v1334
  %3574 = vmatpush1.bf16.msra.mxu0 %v1333
  %3575 = vmatprep.subr.bf16.mxu0 %v1336
  %3576 = vmatpush1.bf16.msra.mxu0 %v1335
  %3577 = vmatprep.subr.bf16.mxu0 %v1338
  %3578 = vmatpush1.bf16.msra.mxu0 %v1337
  %3579 = vmatprep.subr.bf16.mxu0 0
  %3580 = vmatpush1.bf16.msra.mxu0 0
  %3581 = vmatprep.subr.bf16.mxu0 0
  %3582 = vmatpush1.bf16.msra.mxu0 0
  %3583 = vmatprep.subr.bf16.mxu0 0
  %3584 = vmatpush1.bf16.msra.mxu0 0
  %3585 = vmatprep.subr.bf16.mxu0 0
  %3586 = vmatpush1.bf16.msra.mxu0 0
  %3587 = vmatprep.subr.bf16.mxu0 0
  %3588 = vmatpush1.bf16.msra.mxu0 0
  %3589 = vmatprep.subr.bf16.mxu0 0
  %3590 = vmatpush1.bf16.msra.mxu0 0
  %3591 = vmatprep.subr.bf16.mxu0 0
  %3592 = vmatpush1.bf16.msra.mxu0 0
  %3593 = vmatprep.mubr.bf16.mxu0 %v3559
  %3594 = vmatmul.mubr.bf16.gmra.mrb[0].mxu0 %v3555
  %v3595 = vpop.f32.mrb[0].mxu0
  %v3596 = vadd.f32 0.0, %v3595
  %v3597 = vpop.f32.mrb[0].mxu0
  %v3598 = vadd.f32 0.0, %v3597
  %v3599 = vpop.f32.mrb[0].mxu0
  %v3600 = vadd.f32 0.0, %v3599
  %v3601 = vpop.f32.mrb[0].mxu0
  %v3602 = vadd.f32 0.0, %v3601
  %3603 = vdwg.mxu0
  %v3604 = vadd.f32 %v3542, %v3596
  %v3605 = vadd.f32 %v3543, %v3598
  %v3606 = vadd.f32 %v3544, %v3600
  %v3607 = vadd.f32 %v3545, %v3602
  %v3608 = vadd.f32 %v3604, %v1411
  %v3609 = vadd.f32 %v3605, %v1415
  %v3610 = vadd.f32 %v3606, %v1411
  %v3611 = vadd.f32 %v3607, %v1415
  %v3612 = vmax.f32 %v3608, 0.0
  %v3613 = vmax.f32 %v3609, 0.0
  %v3614 = vmax.f32 %v3610, 0.0
  %v3615 = vmax.f32 %v3611, 0.0
  %v3616 = vpack.c.bf16 %v3614, %v3612
  %v3617 = vpack.c.bf16 %v3615, %v3613
  %3618 = vmatprep.subr.bf16.mxu0 %v154
  %3619 = vmatpush1.bf16.msra.mxu0 %v153
  %3620 = vmatprep.subr.bf16.mxu0 %v156
  %3621 = vmatpush1.bf16.msra.mxu0 %v155
  %3622 = vmatprep.subr.bf16.mxu0 %v158
  %3623 = vmatpush1.bf16.msra.mxu0 %v157
  %3624 = vmatprep.subr.bf16.mxu0 %v160
  %3625 = vmatpush1.bf16.msra.mxu0 %v159
  %3626 = vmatprep.subr.bf16.mxu0 %v162
  %3627 = vmatpush1.bf16.msra.mxu0 %v161
  %3628 = vmatprep.subr.bf16.mxu0 %v164
  %3629 = vmatpush1.bf16.msra.mxu0 %v163
  %3630 = vmatprep.subr.bf16.mxu0 %v166
  %3631 = vmatpush1.bf16.msra.mxu0 %v165
  %3632 = vmatprep.subr.bf16.mxu0 %v168
  %3633 = vmatpush1.bf16.msra.mxu0 %v167
  %3634 = vmatprep.subr.bf16.mxu0 %v170
  %3635 = vmatpush1.bf16.msra.mxu0 %v169
  %3636 = vmatprep.subr.bf16.mxu0 0
  %3637 = vmatpush1.bf16.msra.mxu0 0
  %3638 = vmatprep.subr.bf16.mxu0 0
  %3639 = vmatpush1.bf16.msra.mxu0 0
  %3640 = vmatprep.subr.bf16.mxu0 0
  %3641 = vmatpush1.bf16.msra.mxu0 0
  %3642 = vmatprep.subr.bf16.mxu0 0
  %3643 = vmatpush1.bf16.msra.mxu0 0
  %3644 = vmatprep.subr.bf16.mxu0 0
  %3645 = vmatpush1.bf16.msra.mxu0 0
  %3646 = vmatprep.subr.bf16.mxu0 0
  %3647 = vmatpush1.bf16.msra.mxu0 0
  %3648 = vmatprep.subr.bf16.mxu0 0
  %3649 = vmatpush1.bf16.msra.mxu0 0
  %3650 = vmatprep.mubr.bf16.mxu0 %v3435
  %3651 = vmatmul.mubr.bf16.gmra.mrb[0].mxu0 %v3431
  %v3652 = vpop.f32.mrb[0].mxu0
  %v3653 = vadd.f32 0.0, %v3652
  %v3654 = vpop.f32.mrb[0].mxu0
  %v3655 = vadd.f32 0.0, %v3654
  %v3656 = vpop.f32.mrb[0].mxu0
  %v3657 = vadd.f32 0.0, %v3656
  %v3658 = vpop.f32.mrb[0].mxu0
  %v3659 = vadd.f32 0.0, %v3658
  %3660 = vdwg.mxu0
  %3661 = vmatprep.subr.bf16.mxu0 %v300
  %3662 = vmatpush1.bf16.msra.mxu0 %v299
  %3663 = vmatprep.subr.bf16.mxu0 %v302
  %3664 = vmatpush1.bf16.msra.mxu0 %v301
  %3665 = vmatprep.subr.bf16.mxu0 %v304
  %3666 = vmatpush1.bf16.msra.mxu0 %v303
  %3667 = vmatprep.subr.bf16.mxu0 %v306
  %3668 = vmatpush1.bf16.msra.mxu0 %v305
  %3669 = vmatprep.subr.bf16.mxu0 %v308
  %3670 = vmatpush1.bf16.msra.mxu0 %v307
  %3671 = vmatprep.subr.bf16.mxu0 %v310
  %3672 = vmatpush1.bf16.msra.mxu0 %v309
  %3673 = vmatprep.subr.bf16.mxu0 %v312
  %3674 = vmatpush1.bf16.msra.mxu0 %v311
  %3675 = vmatprep.subr.bf16.mxu0 %v314
  %3676 = vmatpush1.bf16.msra.mxu0 %v313
  %3677 = vmatprep.subr.bf16.mxu0 %v316
  %3678 = vmatpush1.bf16.msra.mxu0 %v315
  %3679 = vmatprep.subr.bf16.mxu0 0
  %3680 = vmatpush1.bf16.msra.mxu0 0
  %3681 = vmatprep.subr.bf16.mxu0 0
  %3682 = vmatpush1.bf16.msra.mxu0 0
  %3683 = vmatprep.subr.bf16.mxu0 0
  %3684 = vmatpush1.bf16.msra.mxu0 0
  %3685 = vmatprep.subr.bf16.mxu0 0
  %3686 = vmatpush1.bf16.msra.mxu0 0
  %3687 = vmatprep.subr.bf16.mxu0 0
  %3688 = vmatpush1.bf16.msra.mxu0 0
  %3689 = vmatprep.subr.bf16.mxu0 0
  %3690 = vmatpush1.bf16.msra.mxu0 0
  %3691 = vmatprep.subr.bf16.mxu0 0
  %3692 = vmatpush1.bf16.msra.mxu0 0
  %3693 = vmatprep.mubr.bf16.mxu0 %v3373
  %3694 = vmatmul.mubr.bf16.gmra.mrb[0].mxu0 %v3369
  %v3695 = vpop.f32.mrb[0].mxu0
  %v3696 = vadd.f32 %v3653, %v3695
  %v3697 = vpop.f32.mrb[0].mxu0
  %v3698 = vadd.f32 %v3655, %v3697
  %v3699 = vpop.f32.mrb[0].mxu0
  %v3700 = vadd.f32 %v3657, %v3699
  %v3701 = vpop.f32.mrb[0].mxu0
  %v3702 = vadd.f32 %v3659, %v3701
  %3703 = vdwg.mxu0
  %3704 = vmatprep.subr.bf16.mxu0 %v467
  %3705 = vmatpush1.bf16.msra.mxu0 %v466
  %3706 = vmatprep.subr.bf16.mxu0 %v469
  %3707 = vmatpush1.bf16.msra.mxu0 %v468
  %3708 = vmatprep.subr.bf16.mxu0 %v471
  %3709 = vmatpush1.bf16.msra.mxu0 %v470
  %3710 = vmatprep.subr.bf16.mxu0 %v473
  %3711 = vmatpush1.bf16.msra.mxu0 %v472
  %3712 = vmatprep.subr.bf16.mxu0 %v475
  %3713 = vmatpush1.bf16.msra.mxu0 %v474
  %3714 = vmatprep.subr.bf16.mxu0 %v477
  %3715 = vmatpush1.bf16.msra.mxu0 %v476
  %3716 = vmatprep.subr.bf16.mxu0 %v479
  %3717 = vmatpush1.bf16.msra.mxu0 %v478
  %3718 = vmatprep.subr.bf16.mxu0 %v481
  %3719 = vmatpush1.bf16.msra.mxu0 %v480
  %3720 = vmatprep.subr.bf16.mxu0 %v483
  %3721 = vmatpush1.bf16.msra.mxu0 %v482
  %3722 = vmatprep.subr.bf16.mxu0 0
  %3723 = vmatpush1.bf16.msra.mxu0 0
  %3724 = vmatprep.subr.bf16.mxu0 0
  %3725 = vmatpush1.bf16.msra.mxu0 0
  %3726 = vmatprep.subr.bf16.mxu0 0
  %3727 = vmatpush1.bf16.msra.mxu0 0
  %3728 = vmatprep.subr.bf16.mxu0 0
  %3729 = vmatpush1.bf16.msra.mxu0 0
  %3730 = vmatprep.subr.bf16.mxu0 0
  %3731 = vmatpush1.bf16.msra.mxu0 0
  %3732 = vmatprep.subr.bf16.mxu0 0
  %3733 = vmatpush1.bf16.msra.mxu0 0
  %3734 = vmatprep.subr.bf16.mxu0 0
  %3735 = vmatpush1.bf16.msra.mxu0 0
  %3736 = vmatprep.mubr.bf16.mxu0 %v3497
  %3737 = vmatmul.mubr.bf16.gmra.mrb[0].mxu0 %v3493
  %v3738 = vpop.f32.mrb[0].mxu0
  %v3739 = vadd.f32 0.0, %v3738
  %v3740 = vpop.f32.mrb[0].mxu0
  %v3741 = vadd.f32 0.0, %v3740
  %v3742 = vpop.f32.mrb[0].mxu0
  %v3743 = vadd.f32 0.0, %v3742
  %v3744 = vpop.f32.mrb[0].mxu0
  %v3745 = vadd.f32 0.0, %v3744
  %3746 = vdwg.mxu0
  %v3747 = vadd.f32 %v3696, %v3739
  %v3748 = vadd.f32 %v3698, %v3741
  %v3749 = vadd.f32 %v3700, %v3743
  %v3750 = vadd.f32 %v3702, %v3745
  %3751 = vmatprep.subr.bf16.mxu0 %v638
  %3752 = vmatpush1.bf16.msra.mxu0 %v637
  %3753 = vmatprep.subr.bf16.mxu0 %v640
  %3754 = vmatpush1.bf16.msra.mxu0 %v639
  %3755 = vmatprep.subr.bf16.mxu0 %v642
  %3756 = vmatpush1.bf16.msra.mxu0 %v641
  %3757 = vmatprep.subr.bf16.mxu0 %v644
  %3758 = vmatpush1.bf16.msra.mxu0 %v643
  %3759 = vmatprep.subr.bf16.mxu0 %v646
  %3760 = vmatpush1.bf16.msra.mxu0 %v645
  %3761 = vmatprep.subr.bf16.mxu0 %v648
  %3762 = vmatpush1.bf16.msra.mxu0 %v647
  %3763 = vmatprep.subr.bf16.mxu0 %v650
  %3764 = vmatpush1.bf16.msra.mxu0 %v649
  %3765 = vmatprep.subr.bf16.mxu0 %v652
  %3766 = vmatpush1.bf16.msra.mxu0 %v651
  %3767 = vmatprep.subr.bf16.mxu0 %v654
  %3768 = vmatpush1.bf16.msra.mxu0 %v653
  %3769 = vmatprep.subr.bf16.mxu0 0
  %3770 = vmatpush1.bf16.msra.mxu0 0
  %3771 = vmatprep.subr.bf16.mxu0 0
  %3772 = vmatpush1.bf16.msra.mxu0 0
  %3773 = vmatprep.subr.bf16.mxu0 0
  %3774 = vmatpush1.bf16.msra.mxu0 0
  %3775 = vmatprep.subr.bf16.mxu0 0
  %3776 = vmatpush1.bf16.msra.mxu0 0
  %3777 = vmatprep.subr.bf16.mxu0 0
  %3778 = vmatpush1.bf16.msra.mxu0 0
  %3779 = vmatprep.subr.bf16.mxu0 0
  %3780 = vmatpush1.bf16.msra.mxu0 0
  %3781 = vmatprep.subr.bf16.mxu0 0
  %3782 = vmatpush1.bf16.msra.mxu0 0
  %3783 = vmatprep.mubr.bf16.mxu0 %v3559
  %3784 = vmatmul.mubr.bf16.gmra.mrb[0].mxu0 %v3555
  %v3785 = vpop.f32.mrb[0].mxu0
  %v3786 = vadd.f32 0.0, %v3785
  %v3787 = vpop.f32.mrb[0].mxu0
  %v3788 = vadd.f32 0.0, %v3787
  %v3789 = vpop.f32.mrb[0].mxu0
  %v3790 = vadd.f32 0.0, %v3789
  %v3791 = vpop.f32.mrb[0].mxu0
  %v3792 = vadd.f32 0.0, %v3791
  %3793 = vdwg.mxu0
  %v3794 = vadd.f32 %v3747, %v3786
  %v3795 = vadd.f32 %v3748, %v3788
  %v3796 = vadd.f32 %v3749, %v3790
  %v3797 = vadd.f32 %v3750, %v3792
  %s3798 = scalar_lea.vmem %s0, 448
  %v3799 = vld [vmem:[%s3798] sm:$0xff]
  %v3800 = vld [vmem:[%s3798 + $0x8] sm:$0xff]
  %v3803 = vunpack.c.l.b16 %v3799
  %v3804 = vunpack.c.h.b16 %v3799
  %v3805 = vunpack.c.l.b16 %v3800
  %v3806 = vunpack.c.h.b16 %v3800
  %v3807 = vpack.c.b16 %v3805, %v3803
  %v3808 = vpack.c.b16 %v3806, %v3804
  %v3811 = vsel %vm189, %v3808, 0
  %3813 = vmatprep.subr.bf16.mxu0 %v809
  %3814 = vmatpush1.bf16.msra.mxu0 %v808
  %3815 = vmatprep.subr.bf16.mxu0 %v811
  %3816 = vmatpush1.bf16.msra.mxu0 %v810
  %3817 = vmatprep.subr.bf16.mxu0 %v813
  %3818 = vmatpush1.bf16.msra.mxu0 %v812
  %3819 = vmatprep.subr.bf16.mxu0 %v815
  %3820 = vmatpush1.bf16.msra.mxu0 %v814
  %3821 = vmatprep.subr.bf16.mxu0 %v817
  %3822 = vmatpush1.bf16.msra.mxu0 %v816
  %3823 = vmatprep.subr.bf16.mxu0 %v819
  %3824 = vmatpush1.bf16.msra.mxu0 %v818
  %3825 = vmatprep.subr.bf16.mxu0 %v821
  %3826 = vmatpush1.bf16.msra.mxu0 %v820
  %3827 = vmatprep.subr.bf16.mxu0 %v823
  %3828 = vmatpush1.bf16.msra.mxu0 %v822
  %3829 = vmatprep.subr.bf16.mxu0 %v825
  %3830 = vmatpush1.bf16.msra.mxu0 %v824
  %3831 = vmatprep.subr.bf16.mxu0 0
  %3832 = vmatpush1.bf16.msra.mxu0 0
  %3833 = vmatprep.subr.bf16.mxu0 0
  %3834 = vmatpush1.bf16.msra.mxu0 0
  %3835 = vmatprep.subr.bf16.mxu0 0
  %3836 = vmatpush1.bf16.msra.mxu0 0
  %3837 = vmatprep.subr.bf16.mxu0 0
  %3838 = vmatpush1.bf16.msra.mxu0 0
  %3839 = vmatprep.subr.bf16.mxu0 0
  %3840 = vmatpush1.bf16.msra.mxu0 0
  %3841 = vmatprep.subr.bf16.mxu0 0
  %3842 = vmatpush1.bf16.msra.mxu0 0
  %3843 = vmatprep.subr.bf16.mxu0 0
  %3844 = vmatpush1.bf16.msra.mxu0 0
  %3845 = vmatprep.mubr.bf16.mxu0 %v3811
  %3846 = vmatmul.mubr.bf16.gmra.mrb[0].mxu0 %v3807
  %v3847 = vpop.f32.mrb[0].mxu0
  %v3848 = vadd.f32 0.0, %v3847
  %v3849 = vpop.f32.mrb[0].mxu0
  %v3850 = vadd.f32 0.0, %v3849
  %v3851 = vpop.f32.mrb[0].mxu0
  %v3852 = vadd.f32 0.0, %v3851
  %v3853 = vpop.f32.mrb[0].mxu0
  %v3854 = vadd.f32 0.0, %v3853
  %3855 = vdwg.mxu0
  %v3856 = vadd.f32 %v3794, %v3848
  %v3857 = vadd.f32 %v3795, %v3850
  %v3858 = vadd.f32 %v3796, %v3852
  %v3859 = vadd.f32 %v3797, %v3854
  %s3860 = scalar_lea.vmem %s0, 464
  %v3861 = vld [vmem:[%s3860] sm:$0xff]
  %v3862 = vld [vmem:[%s3860 + $0x8] sm:$0xff]
  %v3865 = vunpack.c.l.b16 %v3861
  %v3866 = vunpack.c.h.b16 %v3861
  %v3867 = vunpack.c.l.b16 %v3862
  %v3868 = vunpack.c.h.b16 %v3862
  %v3869 = vpack.c.b16 %v3867, %v3865
  %v3870 = vpack.c.b16 %v3868, %v3866
  %v3873 = vsel %vm189, %v3870, 0
  %3875 = vmatprep.subr.bf16.mxu0 %v980
  %3876 = vmatpush1.bf16.msra.mxu0 %v979
  %3877 = vmatprep.subr.bf16.mxu0 %v982
  %3878 = vmatpush1.bf16.msra.mxu0 %v981
  %3879 = vmatprep.subr.bf16.mxu0 %v984
  %3880 = vmatpush1.bf16.msra.mxu0 %v983
  %3881 = vmatprep.subr.bf16.mxu0 %v986
  %3882 = vmatpush1.bf16.msra.mxu0 %v985
  %3883 = vmatprep.subr.bf16.mxu0 %v988
  %3884 = vmatpush1.bf16.msra.mxu0 %v987
  %3885 = vmatprep.subr.bf16.mxu0 %v990
  %3886 = vmatpush1.bf16.msra.mxu0 %v989
  %3887 = vmatprep.subr.bf16.mxu0 %v992
  %3888 = vmatpush1.bf16.msra.mxu0 %v991
  %3889 = vmatprep.subr.bf16.mxu0 %v994
  %3890 = vmatpush1.bf16.msra.mxu0 %v993
  %3891 = vmatprep.subr.bf16.mxu0 %v996
  %3892 = vmatpush1.bf16.msra.mxu0 %v995
  %3893 = vmatprep.subr.bf16.mxu0 0
  %3894 = vmatpush1.bf16.msra.mxu0 0
  %3895 = vmatprep.subr.bf16.mxu0 0
  %3896 = vmatpush1.bf16.msra.mxu0 0
  %3897 = vmatprep.subr.bf16.mxu0 0
  %3898 = vmatpush1.bf16.msra.mxu0 0
  %3899 = vmatprep.subr.bf16.mxu0 0
  %3900 = vmatpush1.bf16.msra.mxu0 0
  %3901 = vmatprep.subr.bf16.mxu0 0
  %3902 = vmatpush1.bf16.msra.mxu0 0
  %3903 = vmatprep.subr.bf16.mxu0 0
  %3904 = vmatpush1.bf16.msra.mxu0 0
  %3905 = vmatprep.subr.bf16.mxu0 0
  %3906 = vmatpush1.bf16.msra.mxu0 0
  %3907 = vmatprep.mubr.bf16.mxu0 %v3873
  %3908 = vmatmul.mubr.bf16.gmra.mrb[0].mxu0 %v3869
  %v3909 = vpop.f32.mrb[0].mxu0
  %v3910 = vadd.f32 0.0, %v3909
  %v3911 = vpop.f32.mrb[0].mxu0
  %v3912 = vadd.f32 0.0, %v3911
  %v3913 = vpop.f32.mrb[0].mxu0
  %v3914 = vadd.f32 0.0, %v3913
  %v3915 = vpop.f32.mrb[0].mxu0
  %v3916 = vadd.f32 0.0, %v3915
  %3917 = vdwg.mxu0
  %v3918 = vadd.f32 %v3856, %v3910
  %v3919 = vadd.f32 %v3857, %v3912
  %v3920 = vadd.f32 %v3858, %v3914
  %v3921 = vadd.f32 %v3859, %v3916
  %s3922 = scalar_lea.vmem %s0, 480
  %v3923 = vld [vmem:[%s3922] sm:$0xff]
  %v3924 = vld [vmem:[%s3922 + $0x8] sm:$0xff]
  %v3927 = vunpack.c.l.b16 %v3923
  %v3928 = vunpack.c.h.b16 %v3923
  %v3929 = vunpack.c.l.b16 %v3924
  %v3930 = vunpack.c.h.b16 %v3924
  %v3931 = vpack.c.b16 %v3929, %v3927
  %v3932 = vpack.c.b16 %v3930, %v3928
  %v3935 = vsel %vm189, %v3932, 0
  %3937 = vmatprep.subr.bf16.mxu0 %v1151
  %3938 = vmatpush1.bf16.msra.mxu0 %v1150
  %3939 = vmatprep.subr.bf16.mxu0 %v1153
  %3940 = vmatpush1.bf16.msra.mxu0 %v1152
  %3941 = vmatprep.subr.bf16.mxu0 %v1155
  %3942 = vmatpush1.bf16.msra.mxu0 %v1154
  %3943 = vmatprep.subr.bf16.mxu0 %v1157
  %3944 = vmatpush1.bf16.msra.mxu0 %v1156
  %3945 = vmatprep.subr.bf16.mxu0 %v1159
  %3946 = vmatpush1.bf16.msra.mxu0 %v1158
  %3947 = vmatprep.subr.bf16.mxu0 %v1161
  %3948 = vmatpush1.bf16.msra.mxu0 %v1160
  %3949 = vmatprep.subr.bf16.mxu0 %v1163
  %3950 = vmatpush1.bf16.msra.mxu0 %v1162
  %3951 = vmatprep.subr.bf16.mxu0 %v1165
  %3952 = vmatpush1.bf16.msra.mxu0 %v1164
  %3953 = vmatprep.subr.bf16.mxu0 %v1167
  %3954 = vmatpush1.bf16.msra.mxu0 %v1166
  %3955 = vmatprep.subr.bf16.mxu0 0
  %3956 = vmatpush1.bf16.msra.mxu0 0
  %3957 = vmatprep.subr.bf16.mxu0 0
  %3958 = vmatpush1.bf16.msra.mxu0 0
  %3959 = vmatprep.subr.bf16.mxu0 0
  %3960 = vmatpush1.bf16.msra.mxu0 0
  %3961 = vmatprep.subr.bf16.mxu0 0
  %3962 = vmatpush1.bf16.msra.mxu0 0
  %3963 = vmatprep.subr.bf16.mxu0 0
  %3964 = vmatpush1.bf16.msra.mxu0 0
  %3965 = vmatprep.subr.bf16.mxu0 0
  %3966 = vmatpush1.bf16.msra.mxu0 0
  %3967 = vmatprep.subr.bf16.mxu0 0
  %3968 = vmatpush1.bf16.msra.mxu0 0
  %3969 = vmatprep.mubr.bf16.mxu0 %v3935
  %3970 = vmatmul.mubr.bf16.gmra.mrb[0].mxu0 %v3931
  %v3971 = vpop.f32.mrb[0].mxu0
  %v3972 = vadd.f32 0.0, %v3971
  %v3973 = vpop.f32.mrb[0].mxu0
  %v3974 = vadd.f32 0.0, %v3973
  %v3975 = vpop.f32.mrb[0].mxu0
  %v3976 = vadd.f32 0.0, %v3975
  %v3977 = vpop.f32.mrb[0].mxu0
  %v3978 = vadd.f32 0.0, %v3977
  %3979 = vdwg.mxu0
  %v3980 = vadd.f32 %v3918, %v3972
  %v3981 = vadd.f32 %v3919, %v3974
  %v3982 = vadd.f32 %v3920, %v3976
  %v3983 = vadd.f32 %v3921, %v3978
  %s3984 = scalar_lea.vmem %s0, 496
  %v3985 = vld [vmem:[%s3984] sm:$0xff]
  %v3986 = vld [vmem:[%s3984 + $0x8] sm:$0xff]
  %v3989 = vunpack.c.l.b16 %v3985
  %v3990 = vunpack.c.h.b16 %v3985
  %v3991 = vunpack.c.l.b16 %v3986
  %v3992 = vunpack.c.h.b16 %v3986
  %v3993 = vpack.c.b16 %v3991, %v3989
  %v3994 = vpack.c.b16 %v3992, %v3990
  %v3997 = vsel %vm189, %v3994, 0
  %3999 = vmatprep.subr.bf16.mxu0 %v1322
  %4000 = vmatpush1.bf16.msra.mxu0 %v1321
  %4001 = vmatprep.subr.bf16.mxu0 %v1324
  %4002 = vmatpush1.bf16.msra.mxu0 %v1323
  %4003 = vmatprep.subr.bf16.mxu0 %v1326
  %4004 = vmatpush1.bf16.msra.mxu0 %v1325
  %4005 = vmatprep.subr.bf16.mxu0 %v1328
  %4006 = vmatpush1.bf16.msra.mxu0 %v1327
  %4007 = vmatprep.subr.bf16.mxu0 %v1330
  %4008 = vmatpush1.bf16.msra.mxu0 %v1329
  %4009 = vmatprep.subr.bf16.mxu0 %v1332
  %4010 = vmatpush1.bf16.msra.mxu0 %v1331
  %4011 = vmatprep.subr.bf16.mxu0 %v1334
  %4012 = vmatpush1.bf16.msra.mxu0 %v1333
  %4013 = vmatprep.subr.bf16.mxu0 %v1336
  %4014 = vmatpush1.bf16.msra.mxu0 %v1335
  %4015 = vmatprep.subr.bf16.mxu0 %v1338
  %4016 = vmatpush1.bf16.msra.mxu0 %v1337
  %4017 = vmatprep.subr.bf16.mxu0 0
  %4018 = vmatpush1.bf16.msra.mxu0 0
  %4019 = vmatprep.subr.bf16.mxu0 0
  %4020 = vmatpush1.bf16.msra.mxu0 0
  %4021 = vmatprep.subr.bf16.mxu0 0
  %4022 = vmatpush1.bf16.msra.mxu0 0
  %4023 = vmatprep.subr.bf16.mxu0 0
  %4024 = vmatpush1.bf16.msra.mxu0 0
  %4025 = vmatprep.subr.bf16.mxu0 0
  %4026 = vmatpush1.bf16.msra.mxu0 0
  %4027 = vmatprep.subr.bf16.mxu0 0
  %4028 = vmatpush1.bf16.msra.mxu0 0
  %4029 = vmatprep.subr.bf16.mxu0 0
  %4030 = vmatpush1.bf16.msra.mxu0 0
  %4031 = vmatprep.mubr.bf16.mxu0 %v3997
  %4032 = vmatmul.mubr.bf16.gmra.mrb[0].mxu0 %v3993
  %v4033 = vpop.f32.mrb[0].mxu0
  %v4034 = vadd.f32 0.0, %v4033
  %v4035 = vpop.f32.mrb[0].mxu0
  %v4036 = vadd.f32 0.0, %v4035
  %v4037 = vpop.f32.mrb[0].mxu0
  %v4038 = vadd.f32 0.0, %v4037
  %v4039 = vpop.f32.mrb[0].mxu0
  %v4040 = vadd.f32 0.0, %v4039
  %4041 = vdwg.mxu0
  %v4042 = vadd.f32 %v3980, %v4034
  %v4043 = vadd.f32 %v3981, %v4036
  %v4044 = vadd.f32 %v3982, %v4038
  %v4045 = vadd.f32 %v3983, %v4040
  %v4046 = vadd.f32 %v4042, %v1411
  %v4047 = vadd.f32 %v4043, %v1415
  %v4048 = vadd.f32 %v4044, %v1411
  %v4049 = vadd.f32 %v4045, %v1415
  %v4050 = vmax.f32 %v4046, 0.0
  %v4051 = vmax.f32 %v4047, 0.0
  %v4052 = vmax.f32 %v4048, 0.0
  %v4053 = vmax.f32 %v4049, 0.0
  %v4054 = vpack.c.bf16 %v4052, %v4050
  %v4055 = vpack.c.bf16 %v4053, %v4051
  %4056 = vmatprep.subr.bf16.mxu0 %v154
  %4057 = vmatpush1.bf16.msra.mxu0 %v153
  %4058 = vmatprep.subr.bf16.mxu0 %v156
  %4059 = vmatpush1.bf16.msra.mxu0 %v155
  %4060 = vmatprep.subr.bf16.mxu0 %v158
  %4061 = vmatpush1.bf16.msra.mxu0 %v157
  %4062 = vmatprep.subr.bf16.mxu0 %v160
  %4063 = vmatpush1.bf16.msra.mxu0 %v159
  %4064 = vmatprep.subr.bf16.mxu0 %v162
  %4065 = vmatpush1.bf16.msra.mxu0 %v161
  %4066 = vmatprep.subr.bf16.mxu0 %v164
  %4067 = vmatpush1.bf16.msra.mxu0 %v163
  %4068 = vmatprep.subr.bf16.mxu0 %v166
  %4069 = vmatpush1.bf16.msra.mxu0 %v165
  %4070 = vmatprep.subr.bf16.mxu0 %v168
  %4071 = vmatpush1.bf16.msra.mxu0 %v167
  %4072 = vmatprep.subr.bf16.mxu0 %v170
  %4073 = vmatpush1.bf16.msra.mxu0 %v169
  %4074 = vmatprep.subr.bf16.mxu0 0
  %4075 = vmatpush1.bf16.msra.mxu0 0
  %4076 = vmatprep.subr.bf16.mxu0 0
  %4077 = vmatpush1.bf16.msra.mxu0 0
  %4078 = vmatprep.subr.bf16.mxu0 0
  %4079 = vmatpush1.bf16.msra.mxu0 0
  %4080 = vmatprep.subr.bf16.mxu0 0
  %4081 = vmatpush1.bf16.msra.mxu0 0
  %4082 = vmatprep.subr.bf16.mxu0 0
  %4083 = vmatpush1.bf16.msra.mxu0 0
  %4084 = vmatprep.subr.bf16.mxu0 0
  %4085 = vmatpush1.bf16.msra.mxu0 0
  %4086 = vmatprep.subr.bf16.mxu0 0
  %4087 = vmatpush1.bf16.msra.mxu0 0
  %4088 = vmatprep.mubr.bf16.mxu0 %v3873
  %4089 = vmatmul.mubr.bf16.gmra.mrb[0].mxu0 %v3869
  %v4090 = vpop.f32.mrb[0].mxu0
  %v4091 = vadd.f32 0.0, %v4090
  %v4092 = vpop.f32.mrb[0].mxu0
  %v4093 = vadd.f32 0.0, %v4092
  %v4094 = vpop.f32.mrb[0].mxu0
  %v4095 = vadd.f32 0.0, %v4094
  %v4096 = vpop.f32.mrb[0].mxu0
  %v4097 = vadd.f32 0.0, %v4096
  %4098 = vdwg.mxu0
  %4099 = vmatprep.subr.bf16.mxu0 %v300
  %4100 = vmatpush1.bf16.msra.mxu0 %v299
  %4101 = vmatprep.subr.bf16.mxu0 %v302
  %4102 = vmatpush1.bf16.msra.mxu0 %v301
  %4103 = vmatprep.subr.bf16.mxu0 %v304
  %4104 = vmatpush1.bf16.msra.mxu0 %v303
  %4105 = vmatprep.subr.bf16.mxu0 %v306
  %4106 = vmatpush1.bf16.msra.mxu0 %v305
  %4107 = vmatprep.subr.bf16.mxu0 %v308
  %4108 = vmatpush1.bf16.msra.mxu0 %v307
  %4109 = vmatprep.subr.bf16.mxu0 %v310
  %4110 = vmatpush1.bf16.msra.mxu0 %v309
  %4111 = vmatprep.subr.bf16.mxu0 %v312
  %4112 = vmatpush1.bf16.msra.mxu0 %v311
  %4113 = vmatprep.subr.bf16.mxu0 %v314
  %4114 = vmatpush1.bf16.msra.mxu0 %v313
  %4115 = vmatprep.subr.bf16.mxu0 %v316
  %4116 = vmatpush1.bf16.msra.mxu0 %v315
  %4117 = vmatprep.subr.bf16.mxu0 0
  %4118 = vmatpush1.bf16.msra.mxu0 0
  %4119 = vmatprep.subr.bf16.mxu0 0
  %4120 = vmatpush1.bf16.msra.mxu0 0
  %4121 = vmatprep.subr.bf16.mxu0 0
  %4122 = vmatpush1.bf16.msra.mxu0 0
  %4123 = vmatprep.subr.bf16.mxu0 0
  %4124 = vmatpush1.bf16.msra.mxu0 0
  %4125 = vmatprep.subr.bf16.mxu0 0
  %4126 = vmatpush1.bf16.msra.mxu0 0
  %4127 = vmatprep.subr.bf16.mxu0 0
  %4128 = vmatpush1.bf16.msra.mxu0 0
  %4129 = vmatprep.subr.bf16.mxu0 0
  %4130 = vmatpush1.bf16.msra.mxu0 0
  %4131 = vmatprep.mubr.bf16.mxu0 %v3811
  %4132 = vmatmul.mubr.bf16.gmra.mrb[0].mxu0 %v3807
  %v4133 = vpop.f32.mrb[0].mxu0
  %v4134 = vadd.f32 %v4091, %v4133
  %v4135 = vpop.f32.mrb[0].mxu0
  %v4136 = vadd.f32 %v4093, %v4135
  %v4137 = vpop.f32.mrb[0].mxu0
  %v4138 = vadd.f32 %v4095, %v4137
  %v4139 = vpop.f32.mrb[0].mxu0
  %v4140 = vadd.f32 %v4097, %v4139
  %4141 = vdwg.mxu0
  %4142 = vmatprep.subr.bf16.mxu0 %v467
  %4143 = vmatpush1.bf16.msra.mxu0 %v466
  %4144 = vmatprep.subr.bf16.mxu0 %v469
  %4145 = vmatpush1.bf16.msra.mxu0 %v468
  %4146 = vmatprep.subr.bf16.mxu0 %v471
  %4147 = vmatpush1.bf16.msra.mxu0 %v470
  %4148 = vmatprep.subr.bf16.mxu0 %v473
  %4149 = vmatpush1.bf16.msra.mxu0 %v472
  %4150 = vmatprep.subr.bf16.mxu0 %v475
  %4151 = vmatpush1.bf16.msra.mxu0 %v474
  %4152 = vmatprep.subr.bf16.mxu0 %v477
  %4153 = vmatpush1.bf16.msra.mxu0 %v476
  %4154 = vmatprep.subr.bf16.mxu0 %v479
  %4155 = vmatpush1.bf16.msra.mxu0 %v478
  %4156 = vmatprep.subr.bf16.mxu0 %v481
  %4157 = vmatpush1.bf16.msra.mxu0 %v480
  %4158 = vmatprep.subr.bf16.mxu0 %v483
  %4159 = vmatpush1.bf16.msra.mxu0 %v482
  %4160 = vmatprep.subr.bf16.mxu0 0
  %4161 = vmatpush1.bf16.msra.mxu0 0
  %4162 = vmatprep.subr.bf16.mxu0 0
  %4163 = vmatpush1.bf16.msra.mxu0 0
  %4164 = vmatprep.subr.bf16.mxu0 0
  %4165 = vmatpush1.bf16.msra.mxu0 0
  %4166 = vmatprep.subr.bf16.mxu0 0
  %4167 = vmatpush1.bf16.msra.mxu0 0
  %4168 = vmatprep.subr.bf16.mxu0 0
  %4169 = vmatpush1.bf16.msra.mxu0 0
  %4170 = vmatprep.subr.bf16.mxu0 0
  %4171 = vmatpush1.bf16.msra.mxu0 0
  %4172 = vmatprep.subr.bf16.mxu0 0
  %4173 = vmatpush1.bf16.msra.mxu0 0
  %4174 = vmatprep.mubr.bf16.mxu0 %v3935
  %4175 = vmatmul.mubr.bf16.gmra.mrb[0].mxu0 %v3931
  %v4176 = vpop.f32.mrb[0].mxu0
  %v4177 = vadd.f32 0.0, %v4176
  %v4178 = vpop.f32.mrb[0].mxu0
  %v4179 = vadd.f32 0.0, %v4178
  %v4180 = vpop.f32.mrb[0].mxu0
  %v4181 = vadd.f32 0.0, %v4180
  %v4182 = vpop.f32.mrb[0].mxu0
  %v4183 = vadd.f32 0.0, %v4182
  %4184 = vdwg.mxu0
  %v4185 = vadd.f32 %v4134, %v4177
  %v4186 = vadd.f32 %v4136, %v4179
  %v4187 = vadd.f32 %v4138, %v4181
  %v4188 = vadd.f32 %v4140, %v4183
  %4189 = vmatprep.subr.bf16.mxu0 %v638
  %4190 = vmatpush1.bf16.msra.mxu0 %v637
  %4191 = vmatprep.subr.bf16.mxu0 %v640
  %4192 = vmatpush1.bf16.msra.mxu0 %v639
  %4193 = vmatprep.subr.bf16.mxu0 %v642
  %4194 = vmatpush1.bf16.msra.mxu0 %v641
  %4195 = vmatprep.subr.bf16.mxu0 %v644
  %4196 = vmatpush1.bf16.msra.mxu0 %v643
  %4197 = vmatprep.subr.bf16.mxu0 %v646
  %4198 = vmatpush1.bf16.msra.mxu0 %v645
  %4199 = vmatprep.subr.bf16.mxu0 %v648
  %4200 = vmatpush1.bf16.msra.mxu0 %v647
  %4201 = vmatprep.subr.bf16.mxu0 %v650
  %4202 = vmatpush1.bf16.msra.mxu0 %v649
  %4203 = vmatprep.subr.bf16.mxu0 %v652
  %4204 = vmatpush1.bf16.msra.mxu0 %v651
  %4205 = vmatprep.subr.bf16.mxu0 %v654
  %4206 = vmatpush1.bf16.msra.mxu0 %v653
  %4207 = vmatprep.subr.bf16.mxu0 0
  %4208 = vmatpush1.bf16.msra.mxu0 0
  %4209 = vmatprep.subr.bf16.mxu0 0
  %4210 = vmatpush1.bf16.msra.mxu0 0
  %4211 = vmatprep.subr.bf16.mxu0 0
  %4212 = vmatpush1.bf16.msra.mxu0 0
  %4213 = vmatprep.subr.bf16.mxu0 0
  %4214 = vmatpush1.bf16.msra.mxu0 0
  %4215 = vmatprep.subr.bf16.mxu0 0
  %4216 = vmatpush1.bf16.msra.mxu0 0
  %4217 = vmatprep.subr.bf16.mxu0 0
  %4218 = vmatpush1.bf16.msra.mxu0 0
  %4219 = vmatprep.subr.bf16.mxu0 0
  %4220 = vmatpush1.bf16.msra.mxu0 0
  %4221 = vmatprep.mubr.bf16.mxu0 %v3997
  %4222 = vmatmul.mubr.bf16.gmra.mrb[0].mxu0 %v3993
  %v4223 = vpop.f32.mrb[0].mxu0
  %v4224 = vadd.f32 0.0, %v4223
  %v4225 = vpop.f32.mrb[0].mxu0
  %v4226 = vadd.f32 0.0, %v4225
  %v4227 = vpop.f32.mrb[0].mxu0
  %v4228 = vadd.f32 0.0, %v4227
  %v4229 = vpop.f32.mrb[0].mxu0
  %v4230 = vadd.f32 0.0, %v4229
  %4231 = vdwg.mxu0
  %v4232 = vadd.f32 %v4185, %v4224
  %v4233 = vadd.f32 %v4186, %v4226
  %v4234 = vadd.f32 %v4187, %v4228
  %v4235 = vadd.f32 %v4188, %v4230
  %s4236 = scalar_lea.vmem %s0, 512
  %v4237 = vld [vmem:[%s4236] sm:$0xff]
  %v4238 = vld [vmem:[%s4236 + $0x8] sm:$0xff]
  %v4241 = vunpack.c.l.b16 %v4237
  %v4242 = vunpack.c.h.b16 %v4237
  %v4243 = vunpack.c.l.b16 %v4238
  %v4244 = vunpack.c.h.b16 %v4238
  %v4245 = vpack.c.b16 %v4243, %v4241
  %v4246 = vpack.c.b16 %v4244, %v4242
  %v4249 = vsel %vm189, %v4246, 0
  %4251 = vmatprep.subr.bf16.mxu0 %v809
  %4252 = vmatpush1.bf16.msra.mxu0 %v808
  %4253 = vmatprep.subr.bf16.mxu0 %v811
  %4254 = vmatpush1.bf16.msra.mxu0 %v810
  %4255 = vmatprep.subr.bf16.mxu0 %v813
  %4256 = vmatpush1.bf16.msra.mxu0 %v812
  %4257 = vmatprep.subr.bf16.mxu0 %v815
  %4258 = vmatpush1.bf16.msra.mxu0 %v814
  %4259 = vmatprep.subr.bf16.mxu0 %v817
  %4260 = vmatpush1.bf16.msra.mxu0 %v816
  %4261 = vmatprep.subr.bf16.mxu0 %v819
  %4262 = vmatpush1.bf16.msra.mxu0 %v818
  %4263 = vmatprep.subr.bf16.mxu0 %v821
  %4264 = vmatpush1.bf16.msra.mxu0 %v820
  %4265 = vmatprep.subr.bf16.mxu0 %v823
  %4266 = vmatpush1.bf16.msra.mxu0 %v822
  %4267 = vmatprep.subr.bf16.mxu0 %v825
  %4268 = vmatpush1.bf16.msra.mxu0 %v824
  %4269 = vmatprep.subr.bf16.mxu0 0
  %4270 = vmatpush1.bf16.msra.mxu0 0
  %4271 = vmatprep.subr.bf16.mxu0 0
  %4272 = vmatpush1.bf16.msra.mxu0 0
  %4273 = vmatprep.subr.bf16.mxu0 0
  %4274 = vmatpush1.bf16.msra.mxu0 0
  %4275 = vmatprep.subr.bf16.mxu0 0
  %4276 = vmatpush1.bf16.msra.mxu0 0
  %4277 = vmatprep.subr.bf16.mxu0 0
  %4278 = vmatpush1.bf16.msra.mxu0 0
  %4279 = vmatprep.subr.bf16.mxu0 0
  %4280 = vmatpush1.bf16.msra.mxu0 0
  %4281 = vmatprep.subr.bf16.mxu0 0
  %4282 = vmatpush1.bf16.msra.mxu0 0
  %4283 = vmatprep.mubr.bf16.mxu0 %v4249
  %4284 = vmatmul.mubr.bf16.gmra.mrb[0].mxu0 %v4245
  %v4285 = vpop.f32.mrb[0].mxu0
  %v4286 = vadd.f32 0.0, %v4285
  %v4287 = vpop.f32.mrb[0].mxu0
  %v4288 = vadd.f32 0.0, %v4287
  %v4289 = vpop.f32.mrb[0].mxu0
  %v4290 = vadd.f32 0.0, %v4289
  %v4291 = vpop.f32.mrb[0].mxu0
  %v4292 = vadd.f32 0.0, %v4291
  %4293 = vdwg.mxu0
  %v4294 = vadd.f32 %v4232, %v4286
  %v4295 = vadd.f32 %v4233, %v4288
  %v4296 = vadd.f32 %v4234, %v4290
  %v4297 = vadd.f32 %v4235, %v4292
  %s4298 = scalar_lea.vmem %s0, 528
  %v4299 = vld [vmem:[%s4298] sm:$0xff]
  %v4300 = vld [vmem:[%s4298 + $0x8] sm:$0xff]
  %v4303 = vunpack.c.l.b16 %v4299
  %v4304 = vunpack.c.h.b16 %v4299
  %v4305 = vunpack.c.l.b16 %v4300
  %v4306 = vunpack.c.h.b16 %v4300
  %v4307 = vpack.c.b16 %v4305, %v4303
  %v4308 = vpack.c.b16 %v4306, %v4304
  %v4311 = vsel %vm189, %v4308, 0
  %4313 = vmatprep.subr.bf16.mxu0 %v980
  %4314 = vmatpush1.bf16.msra.mxu0 %v979
  %4315 = vmatprep.subr.bf16.mxu0 %v982
  %4316 = vmatpush1.bf16.msra.mxu0 %v981
  %4317 = vmatprep.subr.bf16.mxu0 %v984
  %4318 = vmatpush1.bf16.msra.mxu0 %v983
  %4319 = vmatprep.subr.bf16.mxu0 %v986
  %4320 = vmatpush1.bf16.msra.mxu0 %v985
  %4321 = vmatprep.subr.bf16.mxu0 %v988
  %4322 = vmatpush1.bf16.msra.mxu0 %v987
  %4323 = vmatprep.subr.bf16.mxu0 %v990
  %4324 = vmatpush1.bf16.msra.mxu0 %v989
  %4325 = vmatprep.subr.bf16.mxu0 %v992
  %4326 = vmatpush1.bf16.msra.mxu0 %v991
  %4327 = vmatprep.subr.bf16.mxu0 %v994
  %4328 = vmatpush1.bf16.msra.mxu0 %v993
  %4329 = vmatprep.subr.bf16.mxu0 %v996
  %4330 = vmatpush1.bf16.msra.mxu0 %v995
  %4331 = vmatprep.subr.bf16.mxu0 0
  %4332 = vmatpush1.bf16.msra.mxu0 0
  %4333 = vmatprep.subr.bf16.mxu0 0
  %4334 = vmatpush1.bf16.msra.mxu0 0
  %4335 = vmatprep.subr.bf16.mxu0 0
  %4336 = vmatpush1.bf16.msra.mxu0 0
  %4337 = vmatprep.subr.bf16.mxu0 0
  %4338 = vmatpush1.bf16.msra.mxu0 0
  %4339 = vmatprep.subr.bf16.mxu0 0
  %4340 = vmatpush1.bf16.msra.mxu0 0
  %4341 = vmatprep.subr.bf16.mxu0 0
  %4342 = vmatpush1.bf16.msra.mxu0 0
  %4343 = vmatprep.subr.bf16.mxu0 0
  %4344 = vmatpush1.bf16.msra.mxu0 0
  %4345 = vmatprep.mubr.bf16.mxu0 %v4311
  %4346 = vmatmul.mubr.bf16.gmra.mrb[0].mxu0 %v4307
  %v4347 = vpop.f32.mrb[0].mxu0
  %v4348 = vadd.f32 0.0, %v4347
  %v4349 = vpop.f32.mrb[0].mxu0
  %v4350 = vadd.f32 0.0, %v4349
  %v4351 = vpop.f32.mrb[0].mxu0
  %v4352 = vadd.f32 0.0, %v4351
  %v4353 = vpop.f32.mrb[0].mxu0
  %v4354 = vadd.f32 0.0, %v4353
  %4355 = vdwg.mxu0
  %v4356 = vadd.f32 %v4294, %v4348
  %v4357 = vadd.f32 %v4295, %v4350
  %v4358 = vadd.f32 %v4296, %v4352
  %v4359 = vadd.f32 %v4297, %v4354
  %s4360 = scalar_lea.vmem %s0, 544
  %v4361 = vld [vmem:[%s4360] sm:$0xff]
  %v4362 = vld [vmem:[%s4360 + $0x8] sm:$0xff]
  %v4365 = vunpack.c.l.b16 %v4361
  %v4366 = vunpack.c.h.b16 %v4361
  %v4367 = vunpack.c.l.b16 %v4362
  %v4368 = vunpack.c.h.b16 %v4362
  %v4369 = vpack.c.b16 %v4367, %v4365
  %v4370 = vpack.c.b16 %v4368, %v4366
  %v4373 = vsel %vm189, %v4370, 0
  %4375 = vmatprep.subr.bf16.mxu0 %v1151
  %4376 = vmatpush1.bf16.msra.mxu0 %v1150
  %4377 = vmatprep.subr.bf16.mxu0 %v1153
  %4378 = vmatpush1.bf16.msra.mxu0 %v1152
  %4379 = vmatprep.subr.bf16.mxu0 %v1155
  %4380 = vmatpush1.bf16.msra.mxu0 %v1154
  %4381 = vmatprep.subr.bf16.mxu0 %v1157
  %4382 = vmatpush1.bf16.msra.mxu0 %v1156
  %4383 = vmatprep.subr.bf16.mxu0 %v1159
  %4384 = vmatpush1.bf16.msra.mxu0 %v1158
  %4385 = vmatprep.subr.bf16.mxu0 %v1161
  %4386 = vmatpush1.bf16.msra.mxu0 %v1160
  %4387 = vmatprep.subr.bf16.mxu0 %v1163
  %4388 = vmatpush1.bf16.msra.mxu0 %v1162
  %4389 = vmatprep.subr.bf16.mxu0 %v1165
  %4390 = vmatpush1.bf16.msra.mxu0 %v1164
  %4391 = vmatprep.subr.bf16.mxu0 %v1167
  %4392 = vmatpush1.bf16.msra.mxu0 %v1166
  %4393 = vmatprep.subr.bf16.mxu0 0
  %4394 = vmatpush1.bf16.msra.mxu0 0
  %4395 = vmatprep.subr.bf16.mxu0 0
  %4396 = vmatpush1.bf16.msra.mxu0 0
  %4397 = vmatprep.subr.bf16.mxu0 0
  %4398 = vmatpush1.bf16.msra.mxu0 0
  %4399 = vmatprep.subr.bf16.mxu0 0
  %4400 = vmatpush1.bf16.msra.mxu0 0
  %4401 = vmatprep.subr.bf16.mxu0 0
  %4402 = vmatpush1.bf16.msra.mxu0 0
  %4403 = vmatprep.subr.bf16.mxu0 0
  %4404 = vmatpush1.bf16.msra.mxu0 0
  %4405 = vmatprep.subr.bf16.mxu0 0
  %4406 = vmatpush1.bf16.msra.mxu0 0
  %4407 = vmatprep.mubr.bf16.mxu0 %v4373
  %4408 = vmatmul.mubr.bf16.gmra.mrb[0].mxu0 %v4369
  %v4409 = vpop.f32.mrb[0].mxu0
  %v4410 = vadd.f32 0.0, %v4409
  %v4411 = vpop.f32.mrb[0].mxu0
  %v4412 = vadd.f32 0.0, %v4411
  %v4413 = vpop.f32.mrb[0].mxu0
  %v4414 = vadd.f32 0.0, %v4413
  %v4415 = vpop.f32.mrb[0].mxu0
  %v4416 = vadd.f32 0.0, %v4415
  %4417 = vdwg.mxu0
  %v4418 = vadd.f32 %v4356, %v4410
  %v4419 = vadd.f32 %v4357, %v4412
  %v4420 = vadd.f32 %v4358, %v4414
  %v4421 = vadd.f32 %v4359, %v4416
  %s4422 = scalar_lea.vmem %s0, 560
  %v4423 = vld [vmem:[%s4422] sm:$0xff]
  %v4424 = vld [vmem:[%s4422 + $0x8] sm:$0xff]
  %v4427 = vunpack.c.l.b16 %v4423
  %v4428 = vunpack.c.h.b16 %v4423
  %v4429 = vunpack.c.l.b16 %v4424
  %v4430 = vunpack.c.h.b16 %v4424
  %v4431 = vpack.c.b16 %v4429, %v4427
  %v4432 = vpack.c.b16 %v4430, %v4428
  %v4435 = vsel %vm189, %v4432, 0
  %4437 = vmatprep.subr.bf16.mxu0 %v1322
  %4438 = vmatpush1.bf16.msra.mxu0 %v1321
  %4439 = vmatprep.subr.bf16.mxu0 %v1324
  %4440 = vmatpush1.bf16.msra.mxu0 %v1323
  %4441 = vmatprep.subr.bf16.mxu0 %v1326
  %4442 = vmatpush1.bf16.msra.mxu0 %v1325
  %4443 = vmatprep.subr.bf16.mxu0 %v1328
  %4444 = vmatpush1.bf16.msra.mxu0 %v1327
  %4445 = vmatprep.subr.bf16.mxu0 %v1330
  %4446 = vmatpush1.bf16.msra.mxu0 %v1329
  %4447 = vmatprep.subr.bf16.mxu0 %v1332
  %4448 = vmatpush1.bf16.msra.mxu0 %v1331
  %4449 = vmatprep.subr.bf16.mxu0 %v1334
  %4450 = vmatpush1.bf16.msra.mxu0 %v1333
  %4451 = vmatprep.subr.bf16.mxu0 %v1336
  %4452 = vmatpush1.bf16.msra.mxu0 %v1335
  %4453 = vmatprep.subr.bf16.mxu0 %v1338
  %4454 = vmatpush1.bf16.msra.mxu0 %v1337
  %4455 = vmatprep.subr.bf16.mxu0 0
  %4456 = vmatpush1.bf16.msra.mxu0 0
  %4457 = vmatprep.subr.bf16.mxu0 0
  %4458 = vmatpush1.bf16.msra.mxu0 0
  %4459 = vmatprep.subr.bf16.mxu0 0
  %4460 = vmatpush1.bf16.msra.mxu0 0
  %4461 = vmatprep.subr.bf16.mxu0 0
  %4462 = vmatpush1.bf16.msra.mxu0 0
  %4463 = vmatprep.subr.bf16.mxu0 0
  %4464 = vmatpush1.bf16.msra.mxu0 0
  %4465 = vmatprep.subr.bf16.mxu0 0
  %4466 = vmatpush1.bf16.msra.mxu0 0
  %4467 = vmatprep.subr.bf16.mxu0 0
  %4468 = vmatpush1.bf16.msra.mxu0 0
  %4469 = vmatprep.mubr.bf16.mxu0 %v4435
  %4470 = vmatmul.mubr.bf16.gmra.mrb[0].mxu0 %v4431
  %v4471 = vpop.f32.mrb[0].mxu0
  %v4472 = vadd.f32 0.0, %v4471
  %v4473 = vpop.f32.mrb[0].mxu0
  %v4474 = vadd.f32 0.0, %v4473
  %v4475 = vpop.f32.mrb[0].mxu0
  %v4476 = vadd.f32 0.0, %v4475
  %v4477 = vpop.f32.mrb[0].mxu0
  %v4478 = vadd.f32 0.0, %v4477
  %4479 = vdwg.mxu0
  %v4480 = vadd.f32 %v4418, %v4472
  %v4481 = vadd.f32 %v4419, %v4474
  %v4482 = vadd.f32 %v4420, %v4476
  %v4483 = vadd.f32 %v4421, %v4478
  %v4484 = vadd.f32 %v4480, %v1411
  %v4485 = vadd.f32 %v4481, %v1415
  %v4486 = vadd.f32 %v4482, %v1411
  %v4487 = vadd.f32 %v4483, %v1415
  %v4488 = vmax.f32 %v4484, 0.0
  %v4489 = vmax.f32 %v4485, 0.0
  %v4490 = vmax.f32 %v4486, 0.0
  %v4491 = vmax.f32 %v4487, 0.0
  %v4492 = vpack.c.bf16 %v4490, %v4488
  %v4493 = vpack.c.bf16 %v4491, %v4489
  %v4494 = vld [vmem:[%s4] sm:$0x3]
  %v4495 = vld [vmem:[%s3] sm:$0xff]
  %v4496 = vld [vmem:[%s3 + $0x8] sm:$0xff]
  %v4497 = vld [vmem:[%s3 + $0x10] sm:$0xff]
  %v4498 = vld [vmem:[%s3 + $0x18] sm:$0xff]
  %v4499 = vld [vmem:[%s3 + $0x20] sm:$0xff]
  %v4500 = vld [vmem:[%s3 + $0x28] sm:$0xff]
  %v4501 = vld [vmem:[%s3 + $0x30] sm:$0xff]
  %v4502 = vld [vmem:[%s3 + $0x38] sm:$0xff]
  %v4503 = vld [vmem:[%s3 + $0x40] sm:$0xff]
  %v4504 = vld [vmem:[%s3 + $0x48] sm:$0xff]
  %v4505 = vld [vmem:[%s3 + $0x50] sm:$0xff]
  %v4506 = vld [vmem:[%s3 + $0x58] sm:$0xff]
  %v4507 = vld [vmem:[%s3 + $0x60] sm:$0xff]
  %v4508 = vld [vmem:[%s3 + $0x68] sm:$0xff]
  %v4509 = vld [vmem:[%s3 + $0x70] sm:$0xff]
  %v4510 = vld [vmem:[%s3 + $0x78] sm:$0xff]
  %v4511 = vld [vmem:[%s3 + $0x80] sm:$0xff]
  %v4512 = vld [vmem:[%s3 + $0x88] sm:$0xff]
  %v4513 = vld [vmem:[%s3 + $0x90] sm:$0xff]
  %v4514 = vld [vmem:[%s3 + $0x98] sm:$0xff]
  %v4515 = vld [vmem:[%s3 + $0xa0] sm:$0xff]
  %v4516 = vld [vmem:[%s3 + $0xa8] sm:$0xff]
  %v4517 = vld [vmem:[%s3 + $0xb0] sm:$0xff]
  %v4518 = vld [vmem:[%s3 + $0xb8] sm:$0xff]
  %v4519 = vld [vmem:[%s3 + $0xc0] sm:$0xff]
  %v4520 = vld [vmem:[%s3 + $0xc8] sm:$0xff]
  %v4521 = vld [vmem:[%s3 + $0xd0] sm:$0xff]
  %v4522 = vld [vmem:[%s3 + $0xd8] sm:$0xff]
  %v4523 = vld [vmem:[%s3 + $0xe0] sm:$0xff]
  %v4524 = vld [vmem:[%s3 + $0xe8] sm:$0xff]
  %v4525 = vld [vmem:[%s3 + $0xf0] sm:$0xff]
  %v4526 = vld [vmem:[%s3 + $0xf8] sm:$0xff]
  %s4527 = scalar_lea.vmem %s3, 256
  %v4528 = vld [vmem:[%s4527] sm:$0xff]
  %v4529 = vld [vmem:[%s4527 + $0x8] sm:$0xff]
  %v4530 = vld [vmem:[%s4527 + $0x10] sm:$0xff]
  %v4531 = vld [vmem:[%s4527 + $0x18] sm:$0xff]
  %v4532 = vld [vmem:[%s4527 + $0x20] sm:$0xff]
  %v4533 = vld [vmem:[%s4527 + $0x28] sm:$0xff]
  %v4534 = vld [vmem:[%s4527 + $0x30] sm:$0xff]
  %v4535 = vld [vmem:[%s4527 + $0x38] sm:$0xff]
  %v4536 = vld [vmem:[%s4527 + $0x40] sm:$0xff]
  %v4537 = vld [vmem:[%s4527 + $0x48] sm:$0xff]
  %v4538 = vld [vmem:[%s4527 + $0x50] sm:$0xff]
  %v4539 = vld [vmem:[%s4527 + $0x58] sm:$0xff]
  %v4540 = vld [vmem:[%s4527 + $0x60] sm:$0xff]
  %v4541 = vld [vmem:[%s4527 + $0x68] sm:$0xff]
  %v4542 = vld [vmem:[%s4527 + $0x70] sm:$0xff]
  %v4543 = vld [vmem:[%s4527 + $0x78] sm:$0xff]
  %v4544 = vld [vmem:[%s4527 + $0x80] sm:$0xff]
  %v4545 = vld [vmem:[%s4527 + $0x88] sm:$0xff]
  %v4546 = vld [vmem:[%s4527 + $0x90] sm:$0xff]
  %v4547 = vld [vmem:[%s4527 + $0x98] sm:$0xff]
  %v4548 = vld [vmem:[%s4527 + $0xa0] sm:$0xff]
  %v4549 = vld [vmem:[%s4527 + $0xa8] sm:$0xff]
  %v4550 = vld [vmem:[%s4527 + $0xb0] sm:$0xff]
  %v4551 = vld [vmem:[%s4527 + $0xb8] sm:$0xff]
  %v4552 = vld [vmem:[%s4527 + $0xc0] sm:$0xff]
  %v4553 = vld [vmem:[%s4527 + $0xc8] sm:$0xff]
  %v4554 = vld [vmem:[%s4527 + $0xd0] sm:$0xff]
  %v4555 = vld [vmem:[%s4527 + $0xd8] sm:$0xff]
  %v4556 = vld [vmem:[%s4527 + $0xe0] sm:$0xff]
  %v4557 = vld [vmem:[%s4527 + $0xe8] sm:$0xff]
  %v4558 = vld [vmem:[%s4527 + $0xf0] sm:$0xff]
  %v4559 = vld [vmem:[%s4527 + $0xf8] sm:$0xff]
  %v4592 = vunpack.c.l.b16 %v4528
  %v4593 = vunpack.c.h.b16 %v4528
  %v4594 = vunpack.c.l.b16 %v4529
  %v4595 = vunpack.c.h.b16 %v4529
  %v4596 = vunpack.c.l.b16 %v4530
  %v4597 = vunpack.c.h.b16 %v4530
  %v4598 = vunpack.c.l.b16 %v4531
  %v4599 = vunpack.c.h.b16 %v4531
  %v4600 = vunpack.c.l.b16 %v4532
  %v4601 = vunpack.c.h.b16 %v4532
  %v4602 = vunpack.c.l.b16 %v4533
  %v4603 = vunpack.c.h.b16 %v4533
  %v4604 = vunpack.c.l.b16 %v4534
  %v4605 = vunpack.c.h.b16 %v4534
  %v4606 = vunpack.c.l.b16 %v4535
  %v4607 = vunpack.c.h.b16 %v4535
  %v4608 = vunpack.c.l.b16 %v4536
  %v4609 = vunpack.c.h.b16 %v4536
  %v4610 = vunpack.c.l.b16 %v4537
  %v4611 = vunpack.c.h.b16 %v4537
  %v4612 = vunpack.c.l.b16 %v4538
  %v4613 = vunpack.c.h.b16 %v4538
  %v4614 = vunpack.c.l.b16 %v4539
  %v4615 = vunpack.c.h.b16 %v4539
  %v4616 = vunpack.c.l.b16 %v4540
  %v4617 = vunpack.c.h.b16 %v4540
  %v4618 = vunpack.c.l.b16 %v4541
  %v4619 = vunpack.c.h.b16 %v4541
  %v4620 = vunpack.c.l.b16 %v4542
  %v4621 = vunpack.c.h.b16 %v4542
  %v4622 = vunpack.c.l.b16 %v4543
  %v4623 = vunpack.c.h.b16 %v4543
  %v4624 = vunpack.c.l.b16 %v4544
  %v4625 = vunpack.c.h.b16 %v4544
  %v4626 = vunpack.c.l.b16 %v4545
  %v4627 = vunpack.c.h.b16 %v4545
  %v4628 = vunpack.c.l.b16 %v4546
  %v4629 = vunpack.c.h.b16 %v4546
  %v4630 = vunpack.c.l.b16 %v4547
  %v4631 = vunpack.c.h.b16 %v4547
  %v4632 = vunpack.c.l.b16 %v4548
  %v4633 = vunpack.c.h.b16 %v4548
  %v4634 = vunpack.c.l.b16 %v4549
  %v4635 = vunpack.c.h.b16 %v4549
  %v4636 = vunpack.c.l.b16 %v4550
  %v4637 = vunpack.c.h.b16 %v4550
  %v4638 = vunpack.c.l.b16 %v4551
  %v4639 = vunpack.c.h.b16 %v4551
  %v4640 = vunpack.c.l.b16 %v4552
  %v4641 = vunpack.c.h.b16 %v4552
  %v4642 = vunpack.c.l.b16 %v4553
  %v4643 = vunpack.c.h.b16 %v4553
  %v4644 = vunpack.c.l.b16 %v4554
  %v4645 = vunpack.c.h.b16 %v4554
  %v4646 = vunpack.c.l.b16 %v4555
  %v4647 = vunpack.c.h.b16 %v4555
  %v4648 = vunpack.c.l.b16 %v4556
  %v4649 = vunpack.c.h.b16 %v4556
  %v4650 = vunpack.c.l.b16 %v4557
  %v4651 = vunpack.c.h.b16 %v4557
  %v4652 = vunpack.c.l.b16 %v4558
  %v4653 = vunpack.c.h.b16 %v4558
  %v4654 = vunpack.c.l.b16 %v4559
  %v4655 = vunpack.c.h.b16 %v4559
  %v4656 = vpack.c.b16 %v4594, %v4592
  %v4657 = vpack.c.b16 %v4595, %v4593
  %v4658 = vpack.c.b16 %v4598, %v4596
  %v4659 = vpack.c.b16 %v4599, %v4597
  %v4660 = vpack.c.b16 %v4602, %v4600
  %v4661 = vpack.c.b16 %v4603, %v4601
  %v4662 = vpack.c.b16 %v4606, %v4604
  %v4663 = vpack.c.b16 %v4607, %v4605
  %v4664 = vpack.c.b16 %v4610, %v4608
  %v4665 = vpack.c.b16 %v4611, %v4609
  %v4666 = vpack.c.b16 %v4614, %v4612
  %v4667 = vpack.c.b16 %v4615, %v4613
  %v4668 = vpack.c.b16 %v4618, %v4616
  %v4669 = vpack.c.b16 %v4619, %v4617
  %v4670 = vpack.c.b16 %v4622, %v4620
  %v4671 = vpack.c.b16 %v4623, %v4621
  %v4672 = vpack.c.b16 %v4626, %v4624
  %v4673 = vpack.c.b16 %v4627, %v4625
  %v4674 = vpack.c.b16 %v4630, %v4628
  %v4675 = vpack.c.b16 %v4631, %v4629
  %v4676 = vpack.c.b16 %v4634, %v4632
  %v4677 = vpack.c.b16 %v4635, %v4633
  %v4678 = vpack.c.b16 %v4638, %v4636
  %v4679 = vpack.c.b16 %v4639, %v4637
  %v4680 = vpack.c.b16 %v4642, %v4640
  %v4681 = vpack.c.b16 %v4643, %v4641
  %v4682 = vpack.c.b16 %v4646, %v4644
  %v4683 = vpack.c.b16 %v4647, %v4645
  %v4684 = vpack.c.b16 %v4650, %v4648
  %v4685 = vpack.c.b16 %v4651, %v4649
  %v4686 = vpack.c.b16 %v4654, %v4652
  %v4687 = vpack.c.b16 %v4655, %v4653
  %4720 = vmatprep.subr.bf16.mxu0 %v4657
  %4721 = vmatpush1.bf16.msra.mxu0 %v4656
  %4722 = vmatprep.subr.bf16.mxu0 %v4659
  %4723 = vmatpush1.bf16.msra.mxu0 %v4658
  %4724 = vmatprep.subr.bf16.mxu0 %v4661
  %4725 = vmatpush1.bf16.msra.mxu0 %v4660
  %4726 = vmatprep.subr.bf16.mxu0 %v4663
  %4727 = vmatpush1.bf16.msra.mxu0 %v4662
  %4728 = vmatprep.subr.bf16.mxu0 %v4665
  %4729 = vmatpush1.bf16.msra.mxu0 %v4664
  %4730 = vmatprep.subr.bf16.mxu0 %v4667
  %4731 = vmatpush1.bf16.msra.mxu0 %v4666
  %4732 = vmatprep.subr.bf16.mxu0 %v4669
  %4733 = vmatpush1.bf16.msra.mxu0 %v4668
  %4734 = vmatprep.subr.bf16.mxu0 %v4671
  %4735 = vmatpush1.bf16.msra.mxu0 %v4670
  %4736 = vmatprep.subr.bf16.mxu0 %v4673
  %4737 = vmatpush1.bf16.msra.mxu0 %v4672
  %4738 = vmatprep.subr.bf16.mxu0 %v4675
  %4739 = vmatpush1.bf16.msra.mxu0 %v4674
  %4740 = vmatprep.subr.bf16.mxu0 %v4677
  %4741 = vmatpush1.bf16.msra.mxu0 %v4676
  %4742 = vmatprep.subr.bf16.mxu0 %v4679
  %4743 = vmatpush1.bf16.msra.mxu0 %v4678
  %4744 = vmatprep.subr.bf16.mxu0 %v4681
  %4745 = vmatpush1.bf16.msra.mxu0 %v4680
  %4746 = vmatprep.subr.bf16.mxu0 %v4683
  %4747 = vmatpush1.bf16.msra.mxu0 %v4682
  %4748 = vmatprep.subr.bf16.mxu0 %v4685
  %4749 = vmatpush1.bf16.msra.mxu0 %v4684
  %4750 = vmatprep.subr.bf16.mxu0 %v4687
  %4751 = vmatpush1.bf16.msra.mxu0 %v4686
  %4752 = vmatprep.mubr.bf16.mxu0 %v1865
  %4753 = vmatmul.mubr.bf16.gmra.mrb[0].mxu0 %v1864
  %v4754 = vpop.f32.mrb[0].mxu0
  %v4755 = vadd.f32 0.0, %v4754
  %v4756 = vpop.f32.mrb[0].mxu0
  %v4757 = vadd.f32 0.0, %v4756
  %v4758 = vpop.f32.mrb[0].mxu0
  %v4759 = vadd.f32 0.0, %v4758
  %v4760 = vpop.f32.mrb[0].mxu0
  %v4761 = vadd.f32 0.0, %v4760
  %4762 = vdwg.mxu0
  %v4795 = vunpack.c.l.b16 %v4495
  %v4796 = vunpack.c.h.b16 %v4495
  %v4797 = vunpack.c.l.b16 %v4496
  %v4798 = vunpack.c.h.b16 %v4496
  %v4799 = vunpack.c.l.b16 %v4497
  %v4800 = vunpack.c.h.b16 %v4497
  %v4801 = vunpack.c.l.b16 %v4498
  %v4802 = vunpack.c.h.b16 %v4498
  %v4803 = vunpack.c.l.b16 %v4499
  %v4804 = vunpack.c.h.b16 %v4499
  %v4805 = vunpack.c.l.b16 %v4500
  %v4806 = vunpack.c.h.b16 %v4500
  %v4807 = vunpack.c.l.b16 %v4501
  %v4808 = vunpack.c.h.b16 %v4501
  %v4809 = vunpack.c.l.b16 %v4502
  %v4810 = vunpack.c.h.b16 %v4502
  %v4811 = vunpack.c.l.b16 %v4503
  %v4812 = vunpack.c.h.b16 %v4503
  %v4813 = vunpack.c.l.b16 %v4504
  %v4814 = vunpack.c.h.b16 %v4504
  %v4815 = vunpack.c.l.b16 %v4505
  %v4816 = vunpack.c.h.b16 %v4505
  %v4817 = vunpack.c.l.b16 %v4506
  %v4818 = vunpack.c.h.b16 %v4506
  %v4819 = vunpack.c.l.b16 %v4507
  %v4820 = vunpack.c.h.b16 %v4507
  %v4821 = vunpack.c.l.b16 %v4508
  %v4822 = vunpack.c.h.b16 %v4508
  %v4823 = vunpack.c.l.b16 %v4509
  %v4824 = vunpack.c.h.b16 %v4509
  %v4825 = vunpack.c.l.b16 %v4510
  %v4826 = vunpack.c.h.b16 %v4510
  %v4827 = vunpack.c.l.b16 %v4511
  %v4828 = vunpack.c.h.b16 %v4511
  %v4829 = vunpack.c.l.b16 %v4512
  %v4830 = vunpack.c.h.b16 %v4512
  %v4831 = vunpack.c.l.b16 %v4513
  %v4832 = vunpack.c.h.b16 %v4513
  %v4833 = vunpack.c.l.b16 %v4514
  %v4834 = vunpack.c.h.b16 %v4514
  %v4835 = vunpack.c.l.b16 %v4515
  %v4836 = vunpack.c.h.b16 %v4515
  %v4837 = vunpack.c.l.b16 %v4516
  %v4838 = vunpack.c.h.b16 %v4516
  %v4839 = vunpack.c.l.b16 %v4517
  %v4840 = vunpack.c.h.b16 %v4517
  %v4841 = vunpack.c.l.b16 %v4518
  %v4842 = vunpack.c.h.b16 %v4518
  %v4843 = vunpack.c.l.b16 %v4519
  %v4844 = vunpack.c.h.b16 %v4519
  %v4845 = vunpack.c.l.b16 %v4520
  %v4846 = vunpack.c.h.b16 %v4520
  %v4847 = vunpack.c.l.b16 %v4521
  %v4848 = vunpack.c.h.b16 %v4521
  %v4849 = vunpack.c.l.b16 %v4522
  %v4850 = vunpack.c.h.b16 %v4522
  %v4851 = vunpack.c.l.b16 %v4523
  %v4852 = vunpack.c.h.b16 %v4523
  %v4853 = vunpack.c.l.b16 %v4524
  %v4854 = vunpack.c.h.b16 %v4524
  %v4855 = vunpack.c.l.b16 %v4525
  %v4856 = vunpack.c.h.b16 %v4525
  %v4857 = vunpack.c.l.b16 %v4526
  %v4858 = vunpack.c.h.b16 %v4526
  %v4859 = vpack.c.b16 %v4797, %v4795
  %v4860 = vpack.c.b16 %v4798, %v4796
  %v4861 = vpack.c.b16 %v4801, %v4799
  %v4862 = vpack.c.b16 %v4802, %v4800
  %v4863 = vpack.c.b16 %v4805, %v4803
  %v4864 = vpack.c.b16 %v4806, %v4804
  %v4865 = vpack.c.b16 %v4809, %v4807
  %v4866 = vpack.c.b16 %v4810, %v4808
  %v4867 = vpack.c.b16 %v4813, %v4811
  %v4868 = vpack.c.b16 %v4814, %v4812
  %v4869 = vpack.c.b16 %v4817, %v4815
  %v4870 = vpack.c.b16 %v4818, %v4816
  %v4871 = vpack.c.b16 %v4821, %v4819
  %v4872 = vpack.c.b16 %v4822, %v4820
  %v4873 = vpack.c.b16 %v4825, %v4823
  %v4874 = vpack.c.b16 %v4826, %v4824
  %v4875 = vpack.c.b16 %v4829, %v4827
  %v4876 = vpack.c.b16 %v4830, %v4828
  %v4877 = vpack.c.b16 %v4833, %v4831
  %v4878 = vpack.c.b16 %v4834, %v4832
  %v4879 = vpack.c.b16 %v4837, %v4835
  %v4880 = vpack.c.b16 %v4838, %v4836
  %v4881 = vpack.c.b16 %v4841, %v4839
  %v4882 = vpack.c.b16 %v4842, %v4840
  %v4883 = vpack.c.b16 %v4845, %v4843
  %v4884 = vpack.c.b16 %v4846, %v4844
  %v4885 = vpack.c.b16 %v4849, %v4847
  %v4886 = vpack.c.b16 %v4850, %v4848
  %v4887 = vpack.c.b16 %v4853, %v4851
  %v4888 = vpack.c.b16 %v4854, %v4852
  %v4889 = vpack.c.b16 %v4857, %v4855
  %v4890 = vpack.c.b16 %v4858, %v4856
  %4923 = vmatprep.subr.bf16.mxu0 %v4860
  %4924 = vmatpush1.bf16.msra.mxu0 %v4859
  %4925 = vmatprep.subr.bf16.mxu0 %v4862
  %4926 = vmatpush1.bf16.msra.mxu0 %v4861
  %4927 = vmatprep.subr.bf16.mxu0 %v4864
  %4928 = vmatpush1.bf16.msra.mxu0 %v4863
  %4929 = vmatprep.subr.bf16.mxu0 %v4866
  %4930 = vmatpush1.bf16.msra.mxu0 %v4865
  %4931 = vmatprep.subr.bf16.mxu0 %v4868
  %4932 = vmatpush1.bf16.msra.mxu0 %v4867
  %4933 = vmatprep.subr.bf16.mxu0 %v4870
  %4934 = vmatpush1.bf16.msra.mxu0 %v4869
  %4935 = vmatprep.subr.bf16.mxu0 %v4872
  %4936 = vmatpush1.bf16.msra.mxu0 %v4871
  %4937 = vmatprep.subr.bf16.mxu0 %v4874
  %4938 = vmatpush1.bf16.msra.mxu0 %v4873
  %4939 = vmatprep.subr.bf16.mxu0 %v4876
  %4940 = vmatpush1.bf16.msra.mxu0 %v4875
  %4941 = vmatprep.subr.bf16.mxu0 %v4878
  %4942 = vmatpush1.bf16.msra.mxu0 %v4877
  %4943 = vmatprep.subr.bf16.mxu0 %v4880
  %4944 = vmatpush1.bf16.msra.mxu0 %v4879
  %4945 = vmatprep.subr.bf16.mxu0 %v4882
  %4946 = vmatpush1.bf16.msra.mxu0 %v4881
  %4947 = vmatprep.subr.bf16.mxu0 %v4884
  %4948 = vmatpush1.bf16.msra.mxu0 %v4883
  %4949 = vmatprep.subr.bf16.mxu0 %v4886
  %4950 = vmatpush1.bf16.msra.mxu0 %v4885
  %4951 = vmatprep.subr.bf16.mxu0 %v4888
  %4952 = vmatpush1.bf16.msra.mxu0 %v4887
  %4953 = vmatprep.subr.bf16.mxu0 %v4890
  %4954 = vmatpush1.bf16.msra.mxu0 %v4889
  %4955 = vmatprep.mubr.bf16.mxu0 %v1427
  %4956 = vmatmul.mubr.bf16.gmra.mrb[0].mxu0 %v1426
  %v4957 = vpop.f32.mrb[0].mxu0
  %v4958 = vadd.f32 %v4755, %v4957
  %v4959 = vpop.f32.mrb[0].mxu0
  %v4960 = vadd.f32 %v4757, %v4959
  %v4961 = vpop.f32.mrb[0].mxu0
  %v4962 = vadd.f32 %v4759, %v4961
  %v4963 = vpop.f32.mrb[0].mxu0
  %v4964 = vadd.f32 %v4761, %v4963
  %4965 = vdwg.mxu0
  %s4966 = scalar_lea.vmem %s3, 512
  %v4967 = vld [vmem:[%s4966] sm:$0xff]
  %v4968 = vld [vmem:[%s4966 + $0x8] sm:$0xff]
  %v4969 = vld [vmem:[%s4966 + $0x10] sm:$0xff]
  %v4970 = vld [vmem:[%s4966 + $0x18] sm:$0xff]
  %v4971 = vld [vmem:[%s4966 + $0x20] sm:$0xff]
  %v4972 = vld [vmem:[%s4966 + $0x28] sm:$0xff]
  %v4973 = vld [vmem:[%s4966 + $0x30] sm:$0xff]
  %v4974 = vld [vmem:[%s4966 + $0x38] sm:$0xff]
  %v4975 = vld [vmem:[%s4966 + $0x40] sm:$0xff]
  %v4976 = vld [vmem:[%s4966 + $0x48] sm:$0xff]
  %v4977 = vld [vmem:[%s4966 + $0x50] sm:$0xff]
  %v4978 = vld [vmem:[%s4966 + $0x58] sm:$0xff]
  %v4979 = vld [vmem:[%s4966 + $0x60] sm:$0xff]
  %v4980 = vld [vmem:[%s4966 + $0x68] sm:$0xff]
  %v4981 = vld [vmem:[%s4966 + $0x70] sm:$0xff]
  %v4982 = vld [vmem:[%s4966 + $0x78] sm:$0xff]
  %v4983 = vld [vmem:[%s4966 + $0x80] sm:$0xff]
  %v4984 = vld [vmem:[%s4966 + $0x88] sm:$0xff]
  %v4985 = vld [vmem:[%s4966 + $0x90] sm:$0xff]
  %v4986 = vld [vmem:[%s4966 + $0x98] sm:$0xff]
  %v4987 = vld [vmem:[%s4966 + $0xa0] sm:$0xff]
  %v4988 = vld [vmem:[%s4966 + $0xa8] sm:$0xff]
  %v4989 = vld [vmem:[%s4966 + $0xb0] sm:$0xff]
  %v4990 = vld [vmem:[%s4966 + $0xb8] sm:$0xff]
  %v4991 = vld [vmem:[%s4966 + $0xc0] sm:$0xff]
  %v4992 = vld [vmem:[%s4966 + $0xc8] sm:$0xff]
  %v4993 = vld [vmem:[%s4966 + $0xd0] sm:$0xff]
  %v4994 = vld [vmem:[%s4966 + $0xd8] sm:$0xff]
  %v4995 = vld [vmem:[%s4966 + $0xe0] sm:$0xff]
  %v4996 = vld [vmem:[%s4966 + $0xe8] sm:$0xff]
  %v4997 = vld [vmem:[%s4966 + $0xf0] sm:$0xff]
  %v4998 = vld [vmem:[%s4966 + $0xf8] sm:$0xff]
  %v5031 = vunpack.c.l.b16 %v4967
  %v5032 = vunpack.c.h.b16 %v4967
  %v5033 = vunpack.c.l.b16 %v4968
  %v5034 = vunpack.c.h.b16 %v4968
  %v5035 = vunpack.c.l.b16 %v4969
  %v5036 = vunpack.c.h.b16 %v4969
  %v5037 = vunpack.c.l.b16 %v4970
  %v5038 = vunpack.c.h.b16 %v4970
  %v5039 = vunpack.c.l.b16 %v4971
  %v5040 = vunpack.c.h.b16 %v4971
  %v5041 = vunpack.c.l.b16 %v4972
  %v5042 = vunpack.c.h.b16 %v4972
  %v5043 = vunpack.c.l.b16 %v4973
  %v5044 = vunpack.c.h.b16 %v4973
  %v5045 = vunpack.c.l.b16 %v4974
  %v5046 = vunpack.c.h.b16 %v4974
  %v5047 = vunpack.c.l.b16 %v4975
  %v5048 = vunpack.c.h.b16 %v4975
  %v5049 = vunpack.c.l.b16 %v4976
  %v5050 = vunpack.c.h.b16 %v4976
  %v5051 = vunpack.c.l.b16 %v4977
  %v5052 = vunpack.c.h.b16 %v4977
  %v5053 = vunpack.c.l.b16 %v4978
  %v5054 = vunpack.c.h.b16 %v4978
  %v5055 = vunpack.c.l.b16 %v4979
  %v5056 = vunpack.c.h.b16 %v4979
  %v5057 = vunpack.c.l.b16 %v4980
  %v5058 = vunpack.c.h.b16 %v4980
  %v5059 = vunpack.c.l.b16 %v4981
  %v5060 = vunpack.c.h.b16 %v4981
  %v5061 = vunpack.c.l.b16 %v4982
  %v5062 = vunpack.c.h.b16 %v4982
  %v5063 = vunpack.c.l.b16 %v4983
  %v5064 = vunpack.c.h.b16 %v4983
  %v5065 = vunpack.c.l.b16 %v4984
  %v5066 = vunpack.c.h.b16 %v4984
  %v5067 = vunpack.c.l.b16 %v4985
  %v5068 = vunpack.c.h.b16 %v4985
  %v5069 = vunpack.c.l.b16 %v4986
  %v5070 = vunpack.c.h.b16 %v4986
  %v5071 = vunpack.c.l.b16 %v4987
  %v5072 = vunpack.c.h.b16 %v4987
  %v5073 = vunpack.c.l.b16 %v4988
  %v5074 = vunpack.c.h.b16 %v4988
  %v5075 = vunpack.c.l.b16 %v4989
  %v5076 = vunpack.c.h.b16 %v4989
  %v5077 = vunpack.c.l.b16 %v4990
  %v5078 = vunpack.c.h.b16 %v4990
  %v5079 = vunpack.c.l.b16 %v4991
  %v5080 = vunpack.c.h.b16 %v4991
  %v5081 = vunpack.c.l.b16 %v4992
  %v5082 = vunpack.c.h.b16 %v4992
  %v5083 = vunpack.c.l.b16 %v4993
  %v5084 = vunpack.c.h.b16 %v4993
  %v5085 = vunpack.c.l.b16 %v4994
  %v5086 = vunpack.c.h.b16 %v4994
  %v5087 = vunpack.c.l.b16 %v4995
  %v5088 = vunpack.c.h.b16 %v4995
  %v5089 = vunpack.c.l.b16 %v4996
  %v5090 = vunpack.c.h.b16 %v4996
  %v5091 = vunpack.c.l.b16 %v4997
  %v5092 = vunpack.c.h.b16 %v4997
  %v5093 = vunpack.c.l.b16 %v4998
  %v5094 = vunpack.c.h.b16 %v4998
  %v5095 = vpack.c.b16 %v5033, %v5031
  %v5096 = vpack.c.b16 %v5034, %v5032
  %v5097 = vpack.c.b16 %v5037, %v5035
  %v5098 = vpack.c.b16 %v5038, %v5036
  %v5099 = vpack.c.b16 %v5041, %v5039
  %v5100 = vpack.c.b16 %v5042, %v5040
  %v5101 = vpack.c.b16 %v5045, %v5043
  %v5102 = vpack.c.b16 %v5046, %v5044
  %v5103 = vpack.c.b16 %v5049, %v5047
  %v5104 = vpack.c.b16 %v5050, %v5048
  %v5105 = vpack.c.b16 %v5053, %v5051
  %v5106 = vpack.c.b16 %v5054, %v5052
  %v5107 = vpack.c.b16 %v5057, %v5055
  %v5108 = vpack.c.b16 %v5058, %v5056
  %v5109 = vpack.c.b16 %v5061, %v5059
  %v5110 = vpack.c.b16 %v5062, %v5060
  %v5111 = vpack.c.b16 %v5065, %v5063
  %v5112 = vpack.c.b16 %v5066, %v5064
  %v5113 = vpack.c.b16 %v5069, %v5067
  %v5114 = vpack.c.b16 %v5070, %v5068
  %v5115 = vpack.c.b16 %v5073, %v5071
  %v5116 = vpack.c.b16 %v5074, %v5072
  %v5117 = vpack.c.b16 %v5077, %v5075
  %v5118 = vpack.c.b16 %v5078, %v5076
  %v5119 = vpack.c.b16 %v5081, %v5079
  %v5120 = vpack.c.b16 %v5082, %v5080
  %v5121 = vpack.c.b16 %v5085, %v5083
  %v5122 = vpack.c.b16 %v5086, %v5084
  %v5123 = vpack.c.b16 %v5089, %v5087
  %v5124 = vpack.c.b16 %v5090, %v5088
  %v5125 = vpack.c.b16 %v5093, %v5091
  %v5126 = vpack.c.b16 %v5094, %v5092
  %5159 = vmatprep.subr.bf16.mxu0 %v5096
  %5160 = vmatpush1.bf16.msra.mxu0 %v5095
  %5161 = vmatprep.subr.bf16.mxu0 %v5098
  %5162 = vmatpush1.bf16.msra.mxu0 %v5097
  %5163 = vmatprep.subr.bf16.mxu0 %v5100
  %5164 = vmatpush1.bf16.msra.mxu0 %v5099
  %5165 = vmatprep.subr.bf16.mxu0 %v5102
  %5166 = vmatpush1.bf16.msra.mxu0 %v5101
  %5167 = vmatprep.subr.bf16.mxu0 %v5104
  %5168 = vmatpush1.bf16.msra.mxu0 %v5103
  %5169 = vmatprep.subr.bf16.mxu0 %v5106
  %5170 = vmatpush1.bf16.msra.mxu0 %v5105
  %5171 = vmatprep.subr.bf16.mxu0 %v5108
  %5172 = vmatpush1.bf16.msra.mxu0 %v5107
  %5173 = vmatprep.subr.bf16.mxu0 %v5110
  %5174 = vmatpush1.bf16.msra.mxu0 %v5109
  %5175 = vmatprep.subr.bf16.mxu0 %v5112
  %5176 = vmatpush1.bf16.msra.mxu0 %v5111
  %5177 = vmatprep.subr.bf16.mxu0 %v5114
  %5178 = vmatpush1.bf16.msra.mxu0 %v5113
  %5179 = vmatprep.subr.bf16.mxu0 %v5116
  %5180 = vmatpush1.bf16.msra.mxu0 %v5115
  %5181 = vmatprep.subr.bf16.mxu0 %v5118
  %5182 = vmatpush1.bf16.msra.mxu0 %v5117
  %5183 = vmatprep.subr.bf16.mxu0 %v5120
  %5184 = vmatpush1.bf16.msra.mxu0 %v5119
  %5185 = vmatprep.subr.bf16.mxu0 %v5122
  %5186 = vmatpush1.bf16.msra.mxu0 %v5121
  %5187 = vmatprep.subr.bf16.mxu0 %v5124
  %5188 = vmatpush1.bf16.msra.mxu0 %v5123
  %5189 = vmatprep.subr.bf16.mxu0 %v5126
  %5190 = vmatpush1.bf16.msra.mxu0 %v5125
  %5191 = vmatprep.mubr.bf16.mxu0 %v2303
  %5192 = vmatmul.mubr.bf16.gmra.mrb[0].mxu0 %v2302
  %v5193 = vpop.f32.mrb[0].mxu0
  %v5194 = vadd.f32 0.0, %v5193
  %v5195 = vpop.f32.mrb[0].mxu0
  %v5196 = vadd.f32 0.0, %v5195
  %v5197 = vpop.f32.mrb[0].mxu0
  %v5198 = vadd.f32 0.0, %v5197
  %v5199 = vpop.f32.mrb[0].mxu0
  %v5200 = vadd.f32 0.0, %v5199
  %5201 = vdwg.mxu0
  %v5202 = vadd.f32 %v4958, %v5194
  %v5203 = vadd.f32 %v4960, %v5196
  %v5204 = vadd.f32 %v4962, %v5198
  %v5205 = vadd.f32 %v4964, %v5200
  %s5206 = scalar_lea.vmem %s3, 768
  %v5207 = vld [vmem:[%s5206] sm:$0xff]
  %v5208 = vld [vmem:[%s5206 + $0x8] sm:$0xff]
  %v5209 = vld [vmem:[%s5206 + $0x10] sm:$0xff]
  %v5210 = vld [vmem:[%s5206 + $0x18] sm:$0xff]
  %v5211 = vld [vmem:[%s5206 + $0x20] sm:$0xff]
  %v5212 = vld [vmem:[%s5206 + $0x28] sm:$0xff]
  %v5213 = vld [vmem:[%s5206 + $0x30] sm:$0xff]
  %v5214 = vld [vmem:[%s5206 + $0x38] sm:$0xff]
  %v5215 = vld [vmem:[%s5206 + $0x40] sm:$0xff]
  %v5216 = vld [vmem:[%s5206 + $0x48] sm:$0xff]
  %v5217 = vld [vmem:[%s5206 + $0x50] sm:$0xff]
  %v5218 = vld [vmem:[%s5206 + $0x58] sm:$0xff]
  %v5219 = vld [vmem:[%s5206 + $0x60] sm:$0xff]
  %v5220 = vld [vmem:[%s5206 + $0x68] sm:$0xff]
  %v5221 = vld [vmem:[%s5206 + $0x70] sm:$0xff]
  %v5222 = vld [vmem:[%s5206 + $0x78] sm:$0xff]
  %v5223 = vld [vmem:[%s5206 + $0x80] sm:$0xff]
  %v5224 = vld [vmem:[%s5206 + $0x88] sm:$0xff]
  %v5225 = vld [vmem:[%s5206 + $0x90] sm:$0xff]
  %v5226 = vld [vmem:[%s5206 + $0x98] sm:$0xff]
  %v5227 = vld [vmem:[%s5206 + $0xa0] sm:$0xff]
  %v5228 = vld [vmem:[%s5206 + $0xa8] sm:$0xff]
  %v5229 = vld [vmem:[%s5206 + $0xb0] sm:$0xff]
  %v5230 = vld [vmem:[%s5206 + $0xb8] sm:$0xff]
  %v5231 = vld [vmem:[%s5206 + $0xc0] sm:$0xff]
  %v5232 = vld [vmem:[%s5206 + $0xc8] sm:$0xff]
  %v5233 = vld [vmem:[%s5206 + $0xd0] sm:$0xff]
  %v5234 = vld [vmem:[%s5206 + $0xd8] sm:$0xff]
  %v5235 = vld [vmem:[%s5206 + $0xe0] sm:$0xff]
  %v5236 = vld [vmem:[%s5206 + $0xe8] sm:$0xff]
  %v5237 = vld [vmem:[%s5206 + $0xf0] sm:$0xff]
  %v5238 = vld [vmem:[%s5206 + $0xf8] sm:$0xff]
  %v5271 = vunpack.c.l.b16 %v5207
  %v5272 = vunpack.c.h.b16 %v5207
  %v5273 = vunpack.c.l.b16 %v5208
  %v5274 = vunpack.c.h.b16 %v5208
  %v5275 = vunpack.c.l.b16 %v5209
  %v5276 = vunpack.c.h.b16 %v5209
  %v5277 = vunpack.c.l.b16 %v5210
  %v5278 = vunpack.c.h.b16 %v5210
  %v5279 = vunpack.c.l.b16 %v5211
  %v5280 = vunpack.c.h.b16 %v5211
  %v5281 = vunpack.c.l.b16 %v5212
  %v5282 = vunpack.c.h.b16 %v5212
  %v5283 = vunpack.c.l.b16 %v5213
  %v5284 = vunpack.c.h.b16 %v5213
  %v5285 = vunpack.c.l.b16 %v5214
  %v5286 = vunpack.c.h.b16 %v5214
  %v5287 = vunpack.c.l.b16 %v5215
  %v5288 = vunpack.c.h.b16 %v5215
  %v5289 = vunpack.c.l.b16 %v5216
  %v5290 = vunpack.c.h.b16 %v5216
  %v5291 = vunpack.c.l.b16 %v5217
  %v5292 = vunpack.c.h.b16 %v5217
  %v5293 = vunpack.c.l.b16 %v5218
  %v5294 = vunpack.c.h.b16 %v5218
  %v5295 = vunpack.c.l.b16 %v5219
  %v5296 = vunpack.c.h.b16 %v5219
  %v5297 = vunpack.c.l.b16 %v5220
  %v5298 = vunpack.c.h.b16 %v5220
  %v5299 = vunpack.c.l.b16 %v5221
  %v5300 = vunpack.c.h.b16 %v5221
  %v5301 = vunpack.c.l.b16 %v5222
  %v5302 = vunpack.c.h.b16 %v5222
  %v5303 = vunpack.c.l.b16 %v5223
  %v5304 = vunpack.c.h.b16 %v5223
  %v5305 = vunpack.c.l.b16 %v5224
  %v5306 = vunpack.c.h.b16 %v5224
  %v5307 = vunpack.c.l.b16 %v5225
  %v5308 = vunpack.c.h.b16 %v5225
  %v5309 = vunpack.c.l.b16 %v5226
  %v5310 = vunpack.c.h.b16 %v5226
  %v5311 = vunpack.c.l.b16 %v5227
  %v5312 = vunpack.c.h.b16 %v5227
  %v5313 = vunpack.c.l.b16 %v5228
  %v5314 = vunpack.c.h.b16 %v5228
  %v5315 = vunpack.c.l.b16 %v5229
  %v5316 = vunpack.c.h.b16 %v5229
  %v5317 = vunpack.c.l.b16 %v5230
  %v5318 = vunpack.c.h.b16 %v5230
  %v5319 = vunpack.c.l.b16 %v5231
  %v5320 = vunpack.c.h.b16 %v5231
  %v5321 = vunpack.c.l.b16 %v5232
  %v5322 = vunpack.c.h.b16 %v5232
  %v5323 = vunpack.c.l.b16 %v5233
  %v5324 = vunpack.c.h.b16 %v5233
  %v5325 = vunpack.c.l.b16 %v5234
  %v5326 = vunpack.c.h.b16 %v5234
  %v5327 = vunpack.c.l.b16 %v5235
  %v5328 = vunpack.c.h.b16 %v5235
  %v5329 = vunpack.c.l.b16 %v5236
  %v5330 = vunpack.c.h.b16 %v5236
  %v5331 = vunpack.c.l.b16 %v5237
  %v5332 = vunpack.c.h.b16 %v5237
  %v5333 = vunpack.c.l.b16 %v5238
  %v5334 = vunpack.c.h.b16 %v5238
  %v5335 = vpack.c.b16 %v5273, %v5271
  %v5336 = vpack.c.b16 %v5274, %v5272
  %v5337 = vpack.c.b16 %v5277, %v5275
  %v5338 = vpack.c.b16 %v5278, %v5276
  %v5339 = vpack.c.b16 %v5281, %v5279
  %v5340 = vpack.c.b16 %v5282, %v5280
  %v5341 = vpack.c.b16 %v5285, %v5283
  %v5342 = vpack.c.b16 %v5286, %v5284
  %v5343 = vpack.c.b16 %v5289, %v5287
  %v5344 = vpack.c.b16 %v5290, %v5288
  %v5345 = vpack.c.b16 %v5293, %v5291
  %v5346 = vpack.c.b16 %v5294, %v5292
  %v5347 = vpack.c.b16 %v5297, %v5295
  %v5348 = vpack.c.b16 %v5298, %v5296
  %v5349 = vpack.c.b16 %v5301, %v5299
  %v5350 = vpack.c.b16 %v5302, %v5300
  %v5351 = vpack.c.b16 %v5305, %v5303
  %v5352 = vpack.c.b16 %v5306, %v5304
  %v5353 = vpack.c.b16 %v5309, %v5307
  %v5354 = vpack.c.b16 %v5310, %v5308
  %v5355 = vpack.c.b16 %v5313, %v5311
  %v5356 = vpack.c.b16 %v5314, %v5312
  %v5357 = vpack.c.b16 %v5317, %v5315
  %v5358 = vpack.c.b16 %v5318, %v5316
  %v5359 = vpack.c.b16 %v5321, %v5319
  %v5360 = vpack.c.b16 %v5322, %v5320
  %v5361 = vpack.c.b16 %v5325, %v5323
  %v5362 = vpack.c.b16 %v5326, %v5324
  %v5363 = vpack.c.b16 %v5329, %v5327
  %v5364 = vpack.c.b16 %v5330, %v5328
  %v5365 = vpack.c.b16 %v5333, %v5331
  %v5366 = vpack.c.b16 %v5334, %v5332
  %5399 = vmatprep.subr.bf16.mxu0 %v5336
  %5400 = vmatpush1.bf16.msra.mxu0 %v5335
  %5401 = vmatprep.subr.bf16.mxu0 %v5338
  %5402 = vmatpush1.bf16.msra.mxu0 %v5337
  %5403 = vmatprep.subr.bf16.mxu0 %v5340
  %5404 = vmatpush1.bf16.msra.mxu0 %v5339
  %5405 = vmatprep.subr.bf16.mxu0 %v5342
  %5406 = vmatpush1.bf16.msra.mxu0 %v5341
  %5407 = vmatprep.subr.bf16.mxu0 %v5344
  %5408 = vmatpush1.bf16.msra.mxu0 %v5343
  %5409 = vmatprep.subr.bf16.mxu0 %v5346
  %5410 = vmatpush1.bf16.msra.mxu0 %v5345
  %5411 = vmatprep.subr.bf16.mxu0 %v5348
  %5412 = vmatpush1.bf16.msra.mxu0 %v5347
  %5413 = vmatprep.subr.bf16.mxu0 %v5350
  %5414 = vmatpush1.bf16.msra.mxu0 %v5349
  %5415 = vmatprep.subr.bf16.mxu0 %v5352
  %5416 = vmatpush1.bf16.msra.mxu0 %v5351
  %5417 = vmatprep.subr.bf16.mxu0 %v5354
  %5418 = vmatpush1.bf16.msra.mxu0 %v5353
  %5419 = vmatprep.subr.bf16.mxu0 %v5356
  %5420 = vmatpush1.bf16.msra.mxu0 %v5355
  %5421 = vmatprep.subr.bf16.mxu0 %v5358
  %5422 = vmatpush1.bf16.msra.mxu0 %v5357
  %5423 = vmatprep.subr.bf16.mxu0 %v5360
  %5424 = vmatpush1.bf16.msra.mxu0 %v5359
  %5425 = vmatprep.subr.bf16.mxu0 %v5362
  %5426 = vmatpush1.bf16.msra.mxu0 %v5361
  %5427 = vmatprep.subr.bf16.mxu0 %v5364
  %5428 = vmatpush1.bf16.msra.mxu0 %v5363
  %5429 = vmatprep.subr.bf16.mxu0 %v5366
  %5430 = vmatpush1.bf16.msra.mxu0 %v5365
  %5431 = vmatprep.mubr.bf16.mxu0 %v2741
  %5432 = vmatmul.mubr.bf16.gmra.mrb[0].mxu0 %v2740
  %v5433 = vpop.f32.mrb[0].mxu0
  %v5434 = vadd.f32 0.0, %v5433
  %v5435 = vpop.f32.mrb[0].mxu0
  %v5436 = vadd.f32 0.0, %v5435
  %v5437 = vpop.f32.mrb[0].mxu0
  %v5438 = vadd.f32 0.0, %v5437
  %v5439 = vpop.f32.mrb[0].mxu0
  %v5440 = vadd.f32 0.0, %v5439
  %5441 = vdwg.mxu0
  %v5442 = vadd.f32 %v5202, %v5434
  %v5443 = vadd.f32 %v5203, %v5436
  %v5444 = vadd.f32 %v5204, %v5438
  %v5445 = vadd.f32 %v5205, %v5440
  %v5447 = vlaneseq
  %v5448 = vshrl.u32 %v5447, 7
  %v5449 = vsub.s32 0, %v5448
  %v5450 = vrot.slane %v4494, %v5449
  %v5451 = vlaneseq
  %v5452 = vshrl.u32 %v5451, 7
  %v5453 = vsub.s32 1, %v5452
  %v5454 = vrot.slane %v4494, %v5453
  %v5457 = vadd.f32 %v5442, %v5450
  %v5458 = vadd.f32 %v5443, %v5454
  %v5459 = vadd.f32 %v5444, %v5450
  %v5460 = vadd.f32 %v5445, %v5454
  %v5461 = vmax.f32 %v5457, 0.0
  %v5462 = vmax.f32 %v5458, 0.0
  %v5463 = vmax.f32 %v5459, 0.0
  %v5464 = vmax.f32 %v5460, 0.0
  %v5465 = vpack.c.bf16 %v5463, %v5461
  %v5466 = vpack.c.bf16 %v5464, %v5462
  %5467 = vmatprep.subr.bf16.mxu0 %v4657
  %5468 = vmatpush1.bf16.msra.mxu0 %v4656
  %5469 = vmatprep.subr.bf16.mxu0 %v4659
  %5470 = vmatpush1.bf16.msra.mxu0 %v4658
  %5471 = vmatprep.subr.bf16.mxu0 %v4661
  %5472 = vmatpush1.bf16.msra.mxu0 %v4660
  %5473 = vmatprep.subr.bf16.mxu0 %v4663
  %5474 = vmatpush1.bf16.msra.mxu0 %v4662
  %5475 = vmatprep.subr.bf16.mxu0 %v4665
  %5476 = vmatpush1.bf16.msra.mxu0 %v4664
  %5477 = vmatprep.subr.bf16.mxu0 %v4667
  %5478 = vmatpush1.bf16.msra.mxu0 %v4666
  %5479 = vmatprep.subr.bf16.mxu0 %v4669
  %5480 = vmatpush1.bf16.msra.mxu0 %v4668
  %5481 = vmatprep.subr.bf16.mxu0 %v4671
  %5482 = vmatpush1.bf16.msra.mxu0 %v4670
  %5483 = vmatprep.subr.bf16.mxu0 %v4673
  %5484 = vmatpush1.bf16.msra.mxu0 %v4672
  %5485 = vmatprep.subr.bf16.mxu0 %v4675
  %5486 = vmatpush1.bf16.msra.mxu0 %v4674
  %5487 = vmatprep.subr.bf16.mxu0 %v4677
  %5488 = vmatpush1.bf16.msra.mxu0 %v4676
  %5489 = vmatprep.subr.bf16.mxu0 %v4679
  %5490 = vmatpush1.bf16.msra.mxu0 %v4678
  %5491 = vmatprep.subr.bf16.mxu0 %v4681
  %5492 = vmatpush1.bf16.msra.mxu0 %v4680
  %5493 = vmatprep.subr.bf16.mxu0 %v4683
  %5494 = vmatpush1.bf16.msra.mxu0 %v4682
  %5495 = vmatprep.subr.bf16.mxu0 %v4685
  %5496 = vmatpush1.bf16.msra.mxu0 %v4684
  %5497 = vmatprep.subr.bf16.mxu0 %v4687
  %5498 = vmatpush1.bf16.msra.mxu0 %v4686
  %5499 = vmatprep.mubr.bf16.mxu0 %v2741
  %5500 = vmatmul.mubr.bf16.gmra.mrb[0].mxu0 %v2740
  %v5501 = vpop.f32.mrb[0].mxu0
  %v5502 = vadd.f32 0.0, %v5501
  %v5503 = vpop.f32.mrb[0].mxu0
  %v5504 = vadd.f32 0.0, %v5503
  %v5505 = vpop.f32.mrb[0].mxu0
  %v5506 = vadd.f32 0.0, %v5505
  %v5507 = vpop.f32.mrb[0].mxu0
  %v5508 = vadd.f32 0.0, %v5507
  %5509 = vdwg.mxu0
  %5510 = vmatprep.subr.bf16.mxu0 %v4860
  %5511 = vmatpush1.bf16.msra.mxu0 %v4859
  %5512 = vmatprep.subr.bf16.mxu0 %v4862
  %5513 = vmatpush1.bf16.msra.mxu0 %v4861
  %5514 = vmatprep.subr.bf16.mxu0 %v4864
  %5515 = vmatpush1.bf16.msra.mxu0 %v4863
  %5516 = vmatprep.subr.bf16.mxu0 %v4866
  %5517 = vmatpush1.bf16.msra.mxu0 %v4865
  %5518 = vmatprep.subr.bf16.mxu0 %v4868
  %5519 = vmatpush1.bf16.msra.mxu0 %v4867
  %5520 = vmatprep.subr.bf16.mxu0 %v4870
  %5521 = vmatpush1.bf16.msra.mxu0 %v4869
  %5522 = vmatprep.subr.bf16.mxu0 %v4872
  %5523 = vmatpush1.bf16.msra.mxu0 %v4871
  %5524 = vmatprep.subr.bf16.mxu0 %v4874
  %5525 = vmatpush1.bf16.msra.mxu0 %v4873
  %5526 = vmatprep.subr.bf16.mxu0 %v4876
  %5527 = vmatpush1.bf16.msra.mxu0 %v4875
  %5528 = vmatprep.subr.bf16.mxu0 %v4878
  %5529 = vmatpush1.bf16.msra.mxu0 %v4877
  %5530 = vmatprep.subr.bf16.mxu0 %v4880
  %5531 = vmatpush1.bf16.msra.mxu0 %v4879
  %5532 = vmatprep.subr.bf16.mxu0 %v4882
  %5533 = vmatpush1.bf16.msra.mxu0 %v4881
  %5534 = vmatprep.subr.bf16.mxu0 %v4884
  %5535 = vmatpush1.bf16.msra.mxu0 %v4883
  %5536 = vmatprep.subr.bf16.mxu0 %v4886
  %5537 = vmatpush1.bf16.msra.mxu0 %v4885
  %5538 = vmatprep.subr.bf16.mxu0 %v4888
  %5539 = vmatpush1.bf16.msra.mxu0 %v4887
  %5540 = vmatprep.subr.bf16.mxu0 %v4890
  %5541 = vmatpush1.bf16.msra.mxu0 %v4889
  %5542 = vmatprep.mubr.bf16.mxu0 %v2303
  %5543 = vmatmul.mubr.bf16.gmra.mrb[0].mxu0 %v2302
  %v5544 = vpop.f32.mrb[0].mxu0
  %v5545 = vadd.f32 %v5502, %v5544
  %v5546 = vpop.f32.mrb[0].mxu0
  %v5547 = vadd.f32 %v5504, %v5546
  %v5548 = vpop.f32.mrb[0].mxu0
  %v5549 = vadd.f32 %v5506, %v5548
  %v5550 = vpop.f32.mrb[0].mxu0
  %v5551 = vadd.f32 %v5508, %v5550
  %5552 = vdwg.mxu0
  %5553 = vmatprep.subr.bf16.mxu0 %v5096
  %5554 = vmatpush1.bf16.msra.mxu0 %v5095
  %5555 = vmatprep.subr.bf16.mxu0 %v5098
  %5556 = vmatpush1.bf16.msra.mxu0 %v5097
  %5557 = vmatprep.subr.bf16.mxu0 %v5100
  %5558 = vmatpush1.bf16.msra.mxu0 %v5099
  %5559 = vmatprep.subr.bf16.mxu0 %v5102
  %5560 = vmatpush1.bf16.msra.mxu0 %v5101
  %5561 = vmatprep.subr.bf16.mxu0 %v5104
  %5562 = vmatpush1.bf16.msra.mxu0 %v5103
  %5563 = vmatprep.subr.bf16.mxu0 %v5106
  %5564 = vmatpush1.bf16.msra.mxu0 %v5105
  %5565 = vmatprep.subr.bf16.mxu0 %v5108
  %5566 = vmatpush1.bf16.msra.mxu0 %v5107
  %5567 = vmatprep.subr.bf16.mxu0 %v5110
  %5568 = vmatpush1.bf16.msra.mxu0 %v5109
  %5569 = vmatprep.subr.bf16.mxu0 %v5112
  %5570 = vmatpush1.bf16.msra.mxu0 %v5111
  %5571 = vmatprep.subr.bf16.mxu0 %v5114
  %5572 = vmatpush1.bf16.msra.mxu0 %v5113
  %5573 = vmatprep.subr.bf16.mxu0 %v5116
  %5574 = vmatpush1.bf16.msra.mxu0 %v5115
  %5575 = vmatprep.subr.bf16.mxu0 %v5118
  %5576 = vmatpush1.bf16.msra.mxu0 %v5117
  %5577 = vmatprep.subr.bf16.mxu0 %v5120
  %5578 = vmatpush1.bf16.msra.mxu0 %v5119
  %5579 = vmatprep.subr.bf16.mxu0 %v5122
  %5580 = vmatpush1.bf16.msra.mxu0 %v5121
  %5581 = vmatprep.subr.bf16.mxu0 %v5124
  %5582 = vmatpush1.bf16.msra.mxu0 %v5123
  %5583 = vmatprep.subr.bf16.mxu0 %v5126
  %5584 = vmatpush1.bf16.msra.mxu0 %v5125
  %5585 = vmatprep.mubr.bf16.mxu0 %v3179
  %5586 = vmatmul.mubr.bf16.gmra.mrb[0].mxu0 %v3178
  %v5587 = vpop.f32.mrb[0].mxu0
  %v5588 = vadd.f32 0.0, %v5587
  %v5589 = vpop.f32.mrb[0].mxu0
  %v5590 = vadd.f32 0.0, %v5589
  %v5591 = vpop.f32.mrb[0].mxu0
  %v5592 = vadd.f32 0.0, %v5591
  %v5593 = vpop.f32.mrb[0].mxu0
  %v5594 = vadd.f32 0.0, %v5593
  %5595 = vdwg.mxu0
  %v5596 = vadd.f32 %v5545, %v5588
  %v5597 = vadd.f32 %v5547, %v5590
  %v5598 = vadd.f32 %v5549, %v5592
  %v5599 = vadd.f32 %v5551, %v5594
  %5600 = vmatprep.subr.bf16.mxu0 %v5336
  %5601 = vmatpush1.bf16.msra.mxu0 %v5335
  %5602 = vmatprep.subr.bf16.mxu0 %v5338
  %5603 = vmatpush1.bf16.msra.mxu0 %v5337
  %5604 = vmatprep.subr.bf16.mxu0 %v5340
  %5605 = vmatpush1.bf16.msra.mxu0 %v5339
  %5606 = vmatprep.subr.bf16.mxu0 %v5342
  %5607 = vmatpush1.bf16.msra.mxu0 %v5341
  %5608 = vmatprep.subr.bf16.mxu0 %v5344
  %5609 = vmatpush1.bf16.msra.mxu0 %v5343
  %5610 = vmatprep.subr.bf16.mxu0 %v5346
  %5611 = vmatpush1.bf16.msra.mxu0 %v5345
  %5612 = vmatprep.subr.bf16.mxu0 %v5348
  %5613 = vmatpush1.bf16.msra.mxu0 %v5347
  %5614 = vmatprep.subr.bf16.mxu0 %v5350
  %5615 = vmatpush1.bf16.msra.mxu0 %v5349
  %5616 = vmatprep.subr.bf16.mxu0 %v5352
  %5617 = vmatpush1.bf16.msra.mxu0 %v5351
  %5618 = vmatprep.subr.bf16.mxu0 %v5354
  %5619 = vmatpush1.bf16.msra.mxu0 %v5353
  %5620 = vmatprep.subr.bf16.mxu0 %v5356
  %5621 = vmatpush1.bf16.msra.mxu0 %v5355
  %5622 = vmatprep.subr.bf16.mxu0 %v5358
  %5623 = vmatpush1.bf16.msra.mxu0 %v5357
  %5624 = vmatprep.subr.bf16.mxu0 %v5360
  %5625 = vmatpush1.bf16.msra.mxu0 %v5359
  %5626 = vmatprep.subr.bf16.mxu0 %v5362
  %5627 = vmatpush1.bf16.msra.mxu0 %v5361
  %5628 = vmatprep.subr.bf16.mxu0 %v5364
  %5629 = vmatpush1.bf16.msra.mxu0 %v5363
  %5630 = vmatprep.subr.bf16.mxu0 %v5366
  %5631 = vmatpush1.bf16.msra.mxu0 %v5365
  %5632 = vmatprep.mubr.bf16.mxu0 %v3617
  %5633 = vmatmul.mubr.bf16.gmra.mrb[0].mxu0 %v3616
  %v5634 = vpop.f32.mrb[0].mxu0
  %v5635 = vadd.f32 0.0, %v5634
  %v5636 = vpop.f32.mrb[0].mxu0
  %v5637 = vadd.f32 0.0, %v5636
  %v5638 = vpop.f32.mrb[0].mxu0
  %v5639 = vadd.f32 0.0, %v5638
  %v5640 = vpop.f32.mrb[0].mxu0
  %v5641 = vadd.f32 0.0, %v5640
  %5642 = vdwg.mxu0
  %v5643 = vadd.f32 %v5596, %v5635
  %v5644 = vadd.f32 %v5597, %v5637
  %v5645 = vadd.f32 %v5598, %v5639
  %v5646 = vadd.f32 %v5599, %v5641
  %v5647 = vadd.f32 %v5643, %v5450
  %v5648 = vadd.f32 %v5644, %v5454
  %v5649 = vadd.f32 %v5645, %v5450
  %v5650 = vadd.f32 %v5646, %v5454
  %v5651 = vmax.f32 %v5647, 0.0
  %v5652 = vmax.f32 %v5648, 0.0
  %v5653 = vmax.f32 %v5649, 0.0
  %v5654 = vmax.f32 %v5650, 0.0
  %v5655 = vpack.c.bf16 %v5653, %v5651
  %v5656 = vpack.c.bf16 %v5654, %v5652
  %5657 = vmatprep.subr.bf16.mxu0 %v4657
  %5658 = vmatpush1.bf16.msra.mxu0 %v4656
  %5659 = vmatprep.subr.bf16.mxu0 %v4659
  %5660 = vmatpush1.bf16.msra.mxu0 %v4658
  %5661 = vmatprep.subr.bf16.mxu0 %v4661
  %5662 = vmatpush1.bf16.msra.mxu0 %v4660
  %5663 = vmatprep.subr.bf16.mxu0 %v4663
  %5664 = vmatpush1.bf16.msra.mxu0 %v4662
  %5665 = vmatprep.subr.bf16.mxu0 %v4665
  %5666 = vmatpush1.bf16.msra.mxu0 %v4664
  %5667 = vmatprep.subr.bf16.mxu0 %v4667
  %5668 = vmatpush1.bf16.msra.mxu0 %v4666
  %5669 = vmatprep.subr.bf16.mxu0 %v4669
  %5670 = vmatpush1.bf16.msra.mxu0 %v4668
  %5671 = vmatprep.subr.bf16.mxu0 %v4671
  %5672 = vmatpush1.bf16.msra.mxu0 %v4670
  %5673 = vmatprep.subr.bf16.mxu0 %v4673
  %5674 = vmatpush1.bf16.msra.mxu0 %v4672
  %5675 = vmatprep.subr.bf16.mxu0 %v4675
  %5676 = vmatpush1.bf16.msra.mxu0 %v4674
  %5677 = vmatprep.subr.bf16.mxu0 %v4677
  %5678 = vmatpush1.bf16.msra.mxu0 %v4676
  %5679 = vmatprep.subr.bf16.mxu0 %v4679
  %5680 = vmatpush1.bf16.msra.mxu0 %v4678
  %5681 = vmatprep.subr.bf16.mxu0 %v4681
  %5682 = vmatpush1.bf16.msra.mxu0 %v4680
  %5683 = vmatprep.subr.bf16.mxu0 %v4683
  %5684 = vmatpush1.bf16.msra.mxu0 %v4682
  %5685 = vmatprep.subr.bf16.mxu0 %v4685
  %5686 = vmatpush1.bf16.msra.mxu0 %v4684
  %5687 = vmatprep.subr.bf16.mxu0 %v4687
  %5688 = vmatpush1.bf16.msra.mxu0 %v4686
  %5689 = vmatprep.mubr.bf16.mxu0 %v3617
  %5690 = vmatmul.mubr.bf16.gmra.mrb[0].mxu0 %v3616
  %v5691 = vpop.f32.mrb[0].mxu0
  %v5692 = vadd.f32 0.0, %v5691
  %v5693 = vpop.f32.mrb[0].mxu0
  %v5694 = vadd.f32 0.0, %v5693
  %v5695 = vpop.f32.mrb[0].mxu0
  %v5696 = vadd.f32 0.0, %v5695
  %v5697 = vpop.f32.mrb[0].mxu0
  %v5698 = vadd.f32 0.0, %v5697
  %5699 = vdwg.mxu0
  %5700 = vmatprep.subr.bf16.mxu0 %v4860
  %5701 = vmatpush1.bf16.msra.mxu0 %v4859
  %5702 = vmatprep.subr.bf16.mxu0 %v4862
  %5703 = vmatpush1.bf16.msra.mxu0 %v4861
  %5704 = vmatprep.subr.bf16.mxu0 %v4864
  %5705 = vmatpush1.bf16.msra.mxu0 %v4863
  %5706 = vmatprep.subr.bf16.mxu0 %v4866
  %5707 = vmatpush1.bf16.msra.mxu0 %v4865
  %5708 = vmatprep.subr.bf16.mxu0 %v4868
  %5709 = vmatpush1.bf16.msra.mxu0 %v4867
  %5710 = vmatprep.subr.bf16.mxu0 %v4870
  %5711 = vmatpush1.bf16.msra.mxu0 %v4869
  %5712 = vmatprep.subr.bf16.mxu0 %v4872
  %5713 = vmatpush1.bf16.msra.mxu0 %v4871
  %5714 = vmatprep.subr.bf16.mxu0 %v4874
  %5715 = vmatpush1.bf16.msra.mxu0 %v4873
  %5716 = vmatprep.subr.bf16.mxu0 %v4876
  %5717 = vmatpush1.bf16.msra.mxu0 %v4875
  %5718 = vmatprep.subr.bf16.mxu0 %v4878
  %5719 = vmatpush1.bf16.msra.mxu0 %v4877
  %5720 = vmatprep.subr.bf16.mxu0 %v4880
  %5721 = vmatpush1.bf16.msra.mxu0 %v4879
  %5722 = vmatprep.subr.bf16.mxu0 %v4882
  %5723 = vmatpush1.bf16.msra.mxu0 %v4881
  %5724 = vmatprep.subr.bf16.mxu0 %v4884
  %5725 = vmatpush1.bf16.msra.mxu0 %v4883
  %5726 = vmatprep.subr.bf16.mxu0 %v4886
  %5727 = vmatpush1.bf16.msra.mxu0 %v4885
  %5728 = vmatprep.subr.bf16.mxu0 %v4888
  %5729 = vmatpush1.bf16.msra.mxu0 %v4887
  %5730 = vmatprep.subr.bf16.mxu0 %v4890
  %5731 = vmatpush1.bf16.msra.mxu0 %v4889
  %5732 = vmatprep.mubr.bf16.mxu0 %v3179
  %5733 = vmatmul.mubr.bf16.gmra.mrb[0].mxu0 %v3178
  %v5734 = vpop.f32.mrb[0].mxu0
  %v5735 = vadd.f32 %v5692, %v5734
  %v5736 = vpop.f32.mrb[0].mxu0
  %v5737 = vadd.f32 %v5694, %v5736
  %v5738 = vpop.f32.mrb[0].mxu0
  %v5739 = vadd.f32 %v5696, %v5738
  %v5740 = vpop.f32.mrb[0].mxu0
  %v5741 = vadd.f32 %v5698, %v5740
  %5742 = vdwg.mxu0
  %5743 = vmatprep.subr.bf16.mxu0 %v5096
  %5744 = vmatpush1.bf16.msra.mxu0 %v5095
  %5745 = vmatprep.subr.bf16.mxu0 %v5098
  %5746 = vmatpush1.bf16.msra.mxu0 %v5097
  %5747 = vmatprep.subr.bf16.mxu0 %v5100
  %5748 = vmatpush1.bf16.msra.mxu0 %v5099
  %5749 = vmatprep.subr.bf16.mxu0 %v5102
  %5750 = vmatpush1.bf16.msra.mxu0 %v5101
  %5751 = vmatprep.subr.bf16.mxu0 %v5104
  %5752 = vmatpush1.bf16.msra.mxu0 %v5103
  %5753 = vmatprep.subr.bf16.mxu0 %v5106
  %5754 = vmatpush1.bf16.msra.mxu0 %v5105
  %5755 = vmatprep.subr.bf16.mxu0 %v5108
  %5756 = vmatpush1.bf16.msra.mxu0 %v5107
  %5757 = vmatprep.subr.bf16.mxu0 %v5110
  %5758 = vmatpush1.bf16.msra.mxu0 %v5109
  %5759 = vmatprep.subr.bf16.mxu0 %v5112
  %5760 = vmatpush1.bf16.msra.mxu0 %v5111
  %5761 = vmatprep.subr.bf16.mxu0 %v5114
  %5762 = vmatpush1.bf16.msra.mxu0 %v5113
  %5763 = vmatprep.subr.bf16.mxu0 %v5116
  %5764 = vmatpush1.bf16.msra.mxu0 %v5115
  %5765 = vmatprep.subr.bf16.mxu0 %v5118
  %5766 = vmatpush1.bf16.msra.mxu0 %v5117
  %5767 = vmatprep.subr.bf16.mxu0 %v5120
  %5768 = vmatpush1.bf16.msra.mxu0 %v5119
  %5769 = vmatprep.subr.bf16.mxu0 %v5122
  %5770 = vmatpush1.bf16.msra.mxu0 %v5121
  %5771 = vmatprep.subr.bf16.mxu0 %v5124
  %5772 = vmatpush1.bf16.msra.mxu0 %v5123
  %5773 = vmatprep.subr.bf16.mxu0 %v5126
  %5774 = vmatpush1.bf16.msra.mxu0 %v5125
  %5775 = vmatprep.mubr.bf16.mxu0 %v4055
  %5776 = vmatmul.mubr.bf16.gmra.mrb[0].mxu0 %v4054
  %v5777 = vpop.f32.mrb[0].mxu0
  %v5778 = vadd.f32 0.0, %v5777
  %v5779 = vpop.f32.mrb[0].mxu0
  %v5780 = vadd.f32 0.0, %v5779
  %v5781 = vpop.f32.mrb[0].mxu0
  %v5782 = vadd.f32 0.0, %v5781
  %v5783 = vpop.f32.mrb[0].mxu0
  %v5784 = vadd.f32 0.0, %v5783
  %5785 = vdwg.mxu0
  %v5786 = vadd.f32 %v5735, %v5778
  %v5787 = vadd.f32 %v5737, %v5780
  %v5788 = vadd.f32 %v5739, %v5782
  %v5789 = vadd.f32 %v5741, %v5784
  %5790 = vmatprep.subr.bf16.mxu0 %v5336
  %5791 = vmatpush1.bf16.msra.mxu0 %v5335
  %5792 = vmatprep.subr.bf16.mxu0 %v5338
  %5793 = vmatpush1.bf16.msra.mxu0 %v5337
  %5794 = vmatprep.subr.bf16.mxu0 %v5340
  %5795 = vmatpush1.bf16.msra.mxu0 %v5339
  %5796 = vmatprep.subr.bf16.mxu0 %v5342
  %5797 = vmatpush1.bf16.msra.mxu0 %v5341
  %5798 = vmatprep.subr.bf16.mxu0 %v5344
  %5799 = vmatpush1.bf16.msra.mxu0 %v5343
  %5800 = vmatprep.subr.bf16.mxu0 %v5346
  %5801 = vmatpush1.bf16.msra.mxu0 %v5345
  %5802 = vmatprep.subr.bf16.mxu0 %v5348
  %5803 = vmatpush1.bf16.msra.mxu0 %v5347
  %5804 = vmatprep.subr.bf16.mxu0 %v5350
  %5805 = vmatpush1.bf16.msra.mxu0 %v5349
  %5806 = vmatprep.subr.bf16.mxu0 %v5352
  %5807 = vmatpush1.bf16.msra.mxu0 %v5351
  %5808 = vmatprep.subr.bf16.mxu0 %v5354
  %5809 = vmatpush1.bf16.msra.mxu0 %v5353
  %5810 = vmatprep.subr.bf16.mxu0 %v5356
  %5811 = vmatpush1.bf16.msra.mxu0 %v5355
  %5812 = vmatprep.subr.bf16.mxu0 %v5358
  %5813 = vmatpush1.bf16.msra.mxu0 %v5357
  %5814 = vmatprep.subr.bf16.mxu0 %v5360
  %5815 = vmatpush1.bf16.msra.mxu0 %v5359
  %5816 = vmatprep.subr.bf16.mxu0 %v5362
  %5817 = vmatpush1.bf16.msra.mxu0 %v5361
  %5818 = vmatprep.subr.bf16.mxu0 %v5364
  %5819 = vmatpush1.bf16.msra.mxu0 %v5363
  %5820 = vmatprep.subr.bf16.mxu0 %v5366
  %5821 = vmatpush1.bf16.msra.mxu0 %v5365
  %5822 = vmatprep.mubr.bf16.mxu0 %v4493
  %5823 = vmatmul.mubr.bf16.gmra.mrb[0].mxu0 %v4492
  %v5824 = vpop.f32.mrb[0].mxu0
  %v5825 = vadd.f32 0.0, %v5824
  %v5826 = vpop.f32.mrb[0].mxu0
  %v5827 = vadd.f32 0.0, %v5826
  %v5828 = vpop.f32.mrb[0].mxu0
  %v5829 = vadd.f32 0.0, %v5828
  %v5830 = vpop.f32.mrb[0].mxu0
  %v5831 = vadd.f32 0.0, %v5830
  %5832 = vdwg.mxu0
  %v5833 = vadd.f32 %v5786, %v5825
  %v5834 = vadd.f32 %v5787, %v5827
  %v5835 = vadd.f32 %v5788, %v5829
  %v5836 = vadd.f32 %v5789, %v5831
  %v5837 = vadd.f32 %v5833, %v5450
  %v5838 = vadd.f32 %v5834, %v5454
  %v5839 = vadd.f32 %v5835, %v5450
  %v5840 = vadd.f32 %v5836, %v5454
  %v5841 = vmax.f32 %v5837, 0.0
  %v5842 = vmax.f32 %v5838, 0.0
  %v5843 = vmax.f32 %v5839, 0.0
  %v5844 = vmax.f32 %v5840, 0.0
  %v5845 = vpack.c.bf16 %v5843, %v5841
  %v5846 = vpack.c.bf16 %v5844, %v5842
  %v5847 = vld [vmem:[%s6] sm:$0x1]
  %v5848 = vld [vmem:[%s5] sm:$0xf]
  %v5849 = vld [vmem:[%s5 + $0x4] sm:$0xf]
  %v5850 = vld [vmem:[%s5 + $0x8] sm:$0xf]
  %v5851 = vld [vmem:[%s5 + $0xc] sm:$0xf]
  %v5852 = vld [vmem:[%s5 + $0x10] sm:$0xf]
  %v5853 = vld [vmem:[%s5 + $0x14] sm:$0xf]
  %v5854 = vld [vmem:[%s5 + $0x18] sm:$0xf]
  %v5855 = vld [vmem:[%s5 + $0x1c] sm:$0xf]
  %v5856 = vld [vmem:[%s5 + $0x20] sm:$0xf]
  %v5857 = vld [vmem:[%s5 + $0x24] sm:$0xf]
  %v5858 = vld [vmem:[%s5 + $0x28] sm:$0xf]
  %v5859 = vld [vmem:[%s5 + $0x2c] sm:$0xf]
  %v5860 = vld [vmem:[%s5 + $0x30] sm:$0xf]
  %v5861 = vld [vmem:[%s5 + $0x34] sm:$0xf]
  %v5862 = vld [vmem:[%s5 + $0x38] sm:$0xf]
  %v5863 = vld [vmem:[%s5 + $0x3c] sm:$0xf]
  %v5864 = vld [vmem:[%s5 + $0x40] sm:$0xf]
  %v5865 = vld [vmem:[%s5 + $0x44] sm:$0xf]
  %v5866 = vld [vmem:[%s5 + $0x48] sm:$0xf]
  %v5867 = vld [vmem:[%s5 + $0x4c] sm:$0xf]
  %v5868 = vld [vmem:[%s5 + $0x50] sm:$0xf]
  %v5869 = vld [vmem:[%s5 + $0x54] sm:$0xf]
  %v5870 = vld [vmem:[%s5 + $0x58] sm:$0xf]
  %v5871 = vld [vmem:[%s5 + $0x5c] sm:$0xf]
  %s5872 = scalar_lea.vmem %s5, 96
  %v5873 = vld [vmem:[%s5872] sm:$0xf]
  %v5874 = vld [vmem:[%s5872 + $0x4] sm:$0xf]
  %v5875 = vld [vmem:[%s5872 + $0x8] sm:$0xf]
  %v5876 = vld [vmem:[%s5872 + $0xc] sm:$0xf]
  %v5877 = vld [vmem:[%s5872 + $0x10] sm:$0xf]
  %v5878 = vld [vmem:[%s5872 + $0x14] sm:$0xf]
  %v5879 = vld [vmem:[%s5872 + $0x18] sm:$0xf]
  %v5880 = vld [vmem:[%s5872 + $0x1c] sm:$0xf]
  %v5881 = vld [vmem:[%s5872 + $0x20] sm:$0xf]
  %v5882 = vld [vmem:[%s5872 + $0x24] sm:$0xf]
  %v5883 = vld [vmem:[%s5872 + $0x28] sm:$0xf]
  %v5884 = vld [vmem:[%s5872 + $0x2c] sm:$0xf]
  %v5885 = vld [vmem:[%s5872 + $0x30] sm:$0xf]
  %v5886 = vld [vmem:[%s5872 + $0x34] sm:$0xf]
  %v5887 = vld [vmem:[%s5872 + $0x38] sm:$0xf]
  %v5888 = vld [vmem:[%s5872 + $0x3c] sm:$0xf]
  %v5889 = vld [vmem:[%s5872 + $0x40] sm:$0xf]
  %v5890 = vld [vmem:[%s5872 + $0x44] sm:$0xf]
  %v5891 = vld [vmem:[%s5872 + $0x48] sm:$0xf]
  %v5892 = vld [vmem:[%s5872 + $0x4c] sm:$0xf]
  %v5893 = vld [vmem:[%s5872 + $0x50] sm:$0xf]
  %v5894 = vld [vmem:[%s5872 + $0x54] sm:$0xf]
  %v5895 = vld [vmem:[%s5872 + $0x58] sm:$0xf]
  %v5896 = vld [vmem:[%s5872 + $0x5c] sm:$0xf]
  %v5921 = vunpack.c.l.b16 %v5873
  %v5922 = vunpack.c.l.b16 %v5874
  %v5923 = vunpack.c.l.b16 %v5875
  %v5924 = vunpack.c.l.b16 %v5876
  %v5925 = vunpack.c.l.b16 %v5877
  %v5926 = vunpack.c.l.b16 %v5878
  %v5927 = vunpack.c.l.b16 %v5879
  %v5928 = vunpack.c.l.b16 %v5880
  %v5929 = vunpack.c.l.b16 %v5881
  %v5930 = vunpack.c.l.b16 %v5882
  %v5931 = vunpack.c.l.b16 %v5883
  %v5932 = vunpack.c.l.b16 %v5884
  %v5933 = vunpack.c.l.b16 %v5885
  %v5934 = vunpack.c.l.b16 %v5886
  %v5935 = vunpack.c.l.b16 %v5887
  %v5936 = vunpack.c.l.b16 %v5888
  %v5937 = vunpack.c.l.b16 %v5889
  %v5938 = vunpack.c.l.b16 %v5890
  %v5939 = vunpack.c.l.b16 %v5891
  %v5940 = vunpack.c.l.b16 %v5892
  %v5941 = vunpack.c.l.b16 %v5893
  %v5942 = vunpack.c.l.b16 %v5894
  %v5943 = vunpack.c.l.b16 %v5895
  %v5944 = vunpack.c.l.b16 %v5896
  %v5945 = vpack.c.b16 %v5922, %v5921
  %v5946 = vpack.c.b16 %v5924, %v5923
  %v5947 = vpack.c.b16 %v5926, %v5925
  %v5948 = vpack.c.b16 %v5928, %v5927
  %v5949 = vpack.c.b16 %v5930, %v5929
  %v5950 = vpack.c.b16 %v5932, %v5931
  %v5951 = vpack.c.b16 %v5934, %v5933
  %v5952 = vpack.c.b16 %v5936, %v5935
  %v5953 = vpack.c.b16 %v5938, %v5937
  %v5954 = vpack.c.b16 %v5940, %v5939
  %v5955 = vpack.c.b16 %v5942, %v5941
  %v5956 = vpack.c.b16 %v5944, %v5943
  %vm5969 = vcmask 523264
  %v5971 = vsel %vm5969, %v5656, 0
  %5973 = vmatprep.subr.bf16.mxu0 0
  %5974 = vmatpush1.bf16.msra.mxu0 %v5945
  %5975 = vmatprep.subr.bf16.mxu0 0
  %5976 = vmatpush1.bf16.msra.mxu0 %v5946
  %5977 = vmatprep.subr.bf16.mxu0 0
  %5978 = vmatpush1.bf16.msra.mxu0 %v5947
  %5979 = vmatprep.subr.bf16.mxu0 0
  %5980 = vmatpush1.bf16.msra.mxu0 %v5948
  %5981 = vmatprep.subr.bf16.mxu0 0
  %5982 = vmatpush1.bf16.msra.mxu0 %v5949
  %5983 = vmatprep.subr.bf16.mxu0 0
  %5984 = vmatpush1.bf16.msra.mxu0 %v5950
  %5985 = vmatprep.subr.bf16.mxu0 0
  %5986 = vmatpush1.bf16.msra.mxu0 %v5951
  %5987 = vmatprep.subr.bf16.mxu0 0
  %5988 = vmatpush1.bf16.msra.mxu0 %v5952
  %5989 = vmatprep.subr.bf16.mxu0 0
  %5990 = vmatpush1.bf16.msra.mxu0 %v5953
  %5991 = vmatprep.subr.bf16.mxu0 0
  %5992 = vmatpush1.bf16.msra.mxu0 %v5954
  %5993 = vmatprep.subr.bf16.mxu0 0
  %5994 = vmatpush1.bf16.msra.mxu0 %v5955
  %5995 = vmatprep.subr.bf16.mxu0 0
  %5996 = vmatpush1.bf16.msra.mxu0 %v5956
  %5997 = vmatprep.subr.bf16.mxu0 0
  %5998 = vmatpush1.bf16.msra.mxu0 0
  %5999 = vmatprep.subr.bf16.mxu0 0
  %6000 = vmatpush1.bf16.msra.mxu0 0
  %6001 = vmatprep.subr.bf16.mxu0 0
  %6002 = vmatpush1.bf16.msra.mxu0 0
  %6003 = vmatprep.subr.bf16.mxu0 0
  %6004 = vmatpush1.bf16.msra.mxu0 0
  %6005 = vmatprep.mubr.bf16.mxu0 %v5971
  %6006 = vmatmul.mubr.bf16.gmra.mrb[0].mxu0 %v5655
  %v6007 = vpop.f32.mrb[0].mxu0
  %v6008 = vadd.f32 0.0, %v6007
  %v6009 = vpop.f32.mrb[0].mxu0
  %v6010 = vpop.f32.mrb[0].mxu0
  %v6011 = vadd.f32 0.0, %v6010
  %v6012 = vpop.f32.mrb[0].mxu0
  %6013 = vdwg.mxu0
  %v6038 = vunpack.c.l.b16 %v5848
  %v6039 = vunpack.c.l.b16 %v5849
  %v6040 = vunpack.c.l.b16 %v5850
  %v6041 = vunpack.c.l.b16 %v5851
  %v6042 = vunpack.c.l.b16 %v5852
  %v6043 = vunpack.c.l.b16 %v5853
  %v6044 = vunpack.c.l.b16 %v5854
  %v6045 = vunpack.c.l.b16 %v5855
  %v6046 = vunpack.c.l.b16 %v5856
  %v6047 = vunpack.c.l.b16 %v5857
  %v6048 = vunpack.c.l.b16 %v5858
  %v6049 = vunpack.c.l.b16 %v5859
  %v6050 = vunpack.c.l.b16 %v5860
  %v6051 = vunpack.c.l.b16 %v5861
  %v6052 = vunpack.c.l.b16 %v5862
  %v6053 = vunpack.c.l.b16 %v5863
  %v6054 = vunpack.c.l.b16 %v5864
  %v6055 = vunpack.c.l.b16 %v5865
  %v6056 = vunpack.c.l.b16 %v5866
  %v6057 = vunpack.c.l.b16 %v5867
  %v6058 = vunpack.c.l.b16 %v5868
  %v6059 = vunpack.c.l.b16 %v5869
  %v6060 = vunpack.c.l.b16 %v5870
  %v6061 = vunpack.c.l.b16 %v5871
  %v6062 = vpack.c.b16 %v6039, %v6038
  %v6063 = vpack.c.b16 %v6041, %v6040
  %v6064 = vpack.c.b16 %v6043, %v6042
  %v6065 = vpack.c.b16 %v6045, %v6044
  %v6066 = vpack.c.b16 %v6047, %v6046
  %v6067 = vpack.c.b16 %v6049, %v6048
  %v6068 = vpack.c.b16 %v6051, %v6050
  %v6069 = vpack.c.b16 %v6053, %v6052
  %v6070 = vpack.c.b16 %v6055, %v6054
  %v6071 = vpack.c.b16 %v6057, %v6056
  %v6072 = vpack.c.b16 %v6059, %v6058
  %v6073 = vpack.c.b16 %v6061, %v6060
  %v6087 = vsel %vm5969, %v5466, 0
  %6089 = vmatprep.subr.bf16.mxu0 0
  %6090 = vmatpush1.bf16.msra.mxu0 %v6062
  %6091 = vmatprep.subr.bf16.mxu0 0
  %6092 = vmatpush1.bf16.msra.mxu0 %v6063
  %6093 = vmatprep.subr.bf16.mxu0 0
  %6094 = vmatpush1.bf16.msra.mxu0 %v6064
  %6095 = vmatprep.subr.bf16.mxu0 0
  %6096 = vmatpush1.bf16.msra.mxu0 %v6065
  %6097 = vmatprep.subr.bf16.mxu0 0
  %6098 = vmatpush1.bf16.msra.mxu0 %v6066
  %6099 = vmatprep.subr.bf16.mxu0 0
  %6100 = vmatpush1.bf16.msra.mxu0 %v6067
  %6101 = vmatprep.subr.bf16.mxu0 0
  %6102 = vmatpush1.bf16.msra.mxu0 %v6068
  %6103 = vmatprep.subr.bf16.mxu0 0
  %6104 = vmatpush1.bf16.msra.mxu0 %v6069
  %6105 = vmatprep.subr.bf16.mxu0 0
  %6106 = vmatpush1.bf16.msra.mxu0 %v6070
  %6107 = vmatprep.subr.bf16.mxu0 0
  %6108 = vmatpush1.bf16.msra.mxu0 %v6071
  %6109 = vmatprep.subr.bf16.mxu0 0
  %6110 = vmatpush1.bf16.msra.mxu0 %v6072
  %6111 = vmatprep.subr.bf16.mxu0 0
  %6112 = vmatpush1.bf16.msra.mxu0 %v6073
  %6113 = vmatprep.subr.bf16.mxu0 0
  %6114 = vmatpush1.bf16.msra.mxu0 0
  %6115 = vmatprep.subr.bf16.mxu0 0
  %6116 = vmatpush1.bf16.msra.mxu0 0
  %6117 = vmatprep.subr.bf16.mxu0 0
  %6118 = vmatpush1.bf16.msra.mxu0 0
  %6119 = vmatprep.subr.bf16.mxu0 0
  %6120 = vmatpush1.bf16.msra.mxu0 0
  %6121 = vmatprep.mubr.bf16.mxu0 %v6087
  %6122 = vmatmul.mubr.bf16.gmra.mrb[0].mxu0 %v5465
  %v6123 = vpop.f32.mrb[0].mxu0
  %v6124 = vadd.f32 %v6008, %v6123
  %v6125 = vpop.f32.mrb[0].mxu0
  %v6126 = vpop.f32.mrb[0].mxu0
  %v6127 = vadd.f32 %v6011, %v6126
  %v6128 = vpop.f32.mrb[0].mxu0
  %6129 = vdwg.mxu0
  %s6130 = scalar_lea.vmem %s5, 192
  %v6131 = vld [vmem:[%s6130] sm:$0xf]
  %v6132 = vld [vmem:[%s6130 + $0x4] sm:$0xf]
  %v6133 = vld [vmem:[%s6130 + $0x8] sm:$0xf]
  %v6134 = vld [vmem:[%s6130 + $0xc] sm:$0xf]
  %v6135 = vld [vmem:[%s6130 + $0x10] sm:$0xf]
  %v6136 = vld [vmem:[%s6130 + $0x14] sm:$0xf]
  %v6137 = vld [vmem:[%s6130 + $0x18] sm:$0xf]
  %v6138 = vld [vmem:[%s6130 + $0x1c] sm:$0xf]
  %v6139 = vld [vmem:[%s6130 + $0x20] sm:$0xf]
  %v6140 = vld [vmem:[%s6130 + $0x24] sm:$0xf]
  %v6141 = vld [vmem:[%s6130 + $0x28] sm:$0xf]
  %v6142 = vld [vmem:[%s6130 + $0x2c] sm:$0xf]
  %v6143 = vld [vmem:[%s6130 + $0x30] sm:$0xf]
  %v6144 = vld [vmem:[%s6130 + $0x34] sm:$0xf]
  %v6145 = vld [vmem:[%s6130 + $0x38] sm:$0xf]
  %v6146 = vld [vmem:[%s6130 + $0x3c] sm:$0xf]
  %v6147 = vld [vmem:[%s6130 + $0x40] sm:$0xf]
  %v6148 = vld [vmem:[%s6130 + $0x44] sm:$0xf]
  %v6149 = vld [vmem:[%s6130 + $0x48] sm:$0xf]
  %v6150 = vld [vmem:[%s6130 + $0x4c] sm:$0xf]
  %v6151 = vld [vmem:[%s6130 + $0x50] sm:$0xf]
  %v6152 = vld [vmem:[%s6130 + $0x54] sm:$0xf]
  %v6153 = vld [vmem:[%s6130 + $0x58] sm:$0xf]
  %v6154 = vld [vmem:[%s6130 + $0x5c] sm:$0xf]
  %v6179 = vunpack.c.l.b16 %v6131
  %v6180 = vunpack.c.l.b16 %v6132
  %v6181 = vunpack.c.l.b16 %v6133
  %v6182 = vunpack.c.l.b16 %v6134
  %v6183 = vunpack.c.l.b16 %v6135
  %v6184 = vunpack.c.l.b16 %v6136
  %v6185 = vunpack.c.l.b16 %v6137
  %v6186 = vunpack.c.l.b16 %v6138
  %v6187 = vunpack.c.l.b16 %v6139
  %v6188 = vunpack.c.l.b16 %v6140
  %v6189 = vunpack.c.l.b16 %v6141
  %v6190 = vunpack.c.l.b16 %v6142
  %v6191 = vunpack.c.l.b16 %v6143
  %v6192 = vunpack.c.l.b16 %v6144
  %v6193 = vunpack.c.l.b16 %v6145
  %v6194 = vunpack.c.l.b16 %v6146
  %v6195 = vunpack.c.l.b16 %v6147
  %v6196 = vunpack.c.l.b16 %v6148
  %v6197 = vunpack.c.l.b16 %v6149
  %v6198 = vunpack.c.l.b16 %v6150
  %v6199 = vunpack.c.l.b16 %v6151
  %v6200 = vunpack.c.l.b16 %v6152
  %v6201 = vunpack.c.l.b16 %v6153
  %v6202 = vunpack.c.l.b16 %v6154
  %v6203 = vpack.c.b16 %v6180, %v6179
  %v6204 = vpack.c.b16 %v6182, %v6181
  %v6205 = vpack.c.b16 %v6184, %v6183
  %v6206 = vpack.c.b16 %v6186, %v6185
  %v6207 = vpack.c.b16 %v6188, %v6187
  %v6208 = vpack.c.b16 %v6190, %v6189
  %v6209 = vpack.c.b16 %v6192, %v6191
  %v6210 = vpack.c.b16 %v6194, %v6193
  %v6211 = vpack.c.b16 %v6196, %v6195
  %v6212 = vpack.c.b16 %v6198, %v6197
  %v6213 = vpack.c.b16 %v6200, %v6199
  %v6214 = vpack.c.b16 %v6202, %v6201
  %v6228 = vsel %vm5969, %v5846, 0
  %6230 = vmatprep.subr.bf16.mxu0 0
  %6231 = vmatpush1.bf16.msra.mxu0 %v6203
  %6232 = vmatprep.subr.bf16.mxu0 0
  %6233 = vmatpush1.bf16.msra.mxu0 %v6204
  %6234 = vmatprep.subr.bf16.mxu0 0
  %6235 = vmatpush1.bf16.msra.mxu0 %v6205
  %6236 = vmatprep.subr.bf16.mxu0 0
  %6237 = vmatpush1.bf16.msra.mxu0 %v6206
  %6238 = vmatprep.subr.bf16.mxu0 0
  %6239 = vmatpush1.bf16.msra.mxu0 %v6207
  %6240 = vmatprep.subr.bf16.mxu0 0
  %6241 = vmatpush1.bf16.msra.mxu0 %v6208
  %6242 = vmatprep.subr.bf16.mxu0 0
  %6243 = vmatpush1.bf16.msra.mxu0 %v6209
  %6244 = vmatprep.subr.bf16.mxu0 0
  %6245 = vmatpush1.bf16.msra.mxu0 %v6210
  %6246 = vmatprep.subr.bf16.mxu0 0
  %6247 = vmatpush1.bf16.msra.mxu0 %v6211
  %6248 = vmatprep.subr.bf16.mxu0 0
  %6249 = vmatpush1.bf16.msra.mxu0 %v6212
  %6250 = vmatprep.subr.bf16.mxu0 0
  %6251 = vmatpush1.bf16.msra.mxu0 %v6213
  %6252 = vmatprep.subr.bf16.mxu0 0
  %6253 = vmatpush1.bf16.msra.mxu0 %v6214
  %6254 = vmatprep.subr.bf16.mxu0 0
  %6255 = vmatpush1.bf16.msra.mxu0 0
  %6256 = vmatprep.subr.bf16.mxu0 0
  %6257 = vmatpush1.bf16.msra.mxu0 0
  %6258 = vmatprep.subr.bf16.mxu0 0
  %6259 = vmatpush1.bf16.msra.mxu0 0
  %6260 = vmatprep.subr.bf16.mxu0 0
  %6261 = vmatpush1.bf16.msra.mxu0 0
  %6262 = vmatprep.mubr.bf16.mxu0 %v6228
  %6263 = vmatmul.mubr.bf16.gmra.mrb[0].mxu0 %v5845
  %v6264 = vpop.f32.mrb[0].mxu0
  %v6265 = vadd.f32 0.0, %v6264
  %v6266 = vpop.f32.mrb[0].mxu0
  %v6267 = vpop.f32.mrb[0].mxu0
  %v6268 = vadd.f32 0.0, %v6267
  %v6269 = vpop.f32.mrb[0].mxu0
  %6270 = vdwg.mxu0
  %v6271 = vadd.f32 %v6124, %v6265
  %v6272 = vadd.f32 %v6127, %v6268
  %v6274 = vlaneseq
  %v6275 = vshrl.u32 %v6274, 7
  %v6276 = vsub.s32 0, %v6275
  %v6277 = vrot.slane %v5847, %v6276
  %v6279 = vadd.f32 %v6271, %v6277
  %v6280 = vadd.f32 %v6272, %v6277
  %v6281 = vmax.f32 %v6279, 0.0
  %v6282 = vmax.f32 %v6280, 0.0
  %v6283 = vpack.c.bf16 %v6282, %v6281
  %v6284 = vld [vmem:[%s8] sm:$0xf]
  %v6285 = vld [vmem:[%s7] sm:$0xff]
  %v6286 = vld [vmem:[%s7 + $0x8] sm:$0xff]
  %v6287 = vld [vmem:[%s7 + $0x10] sm:$0xff]
  %v6288 = vld [vmem:[%s7 + $0x18] sm:$0xff]
  %v6289 = vld [vmem:[%s7 + $0x20] sm:$0xff]
  %v6290 = vld [vmem:[%s7 + $0x28] sm:$0xff]
  %v6291 = vld [vmem:[%s7 + $0x30] sm:$0xff]
  %v6292 = vld [vmem:[%s7 + $0x38] sm:$0xff]
  %v6293 = vld [vmem:[%s7 + $0x40] sm:$0xff]
  %v6294 = vld [vmem:[%s7 + $0x48] sm:$0xff]
  %v6295 = vld [vmem:[%s7 + $0x50] sm:$0xff]
  %v6296 = vld [vmem:[%s7 + $0x58] sm:$0xff]
  %v6297 = vld [vmem:[%s7 + $0x60] sm:$0xff]
  %v6298 = vld [vmem:[%s7 + $0x68] sm:$0xff]
  %v6299 = vld [vmem:[%s7 + $0x70] sm:$0xff]
  %v6300 = vld [vmem:[%s7 + $0x78] sm:$0xff]
  %v6302 = vlaneseq
  %v6303 = vshrl.u32 %v6302, 7
  %v6304 = vsub.s32 0, %v6303
  %v6305 = vrot.slane %v6284, %v6304
  %v6306 = vlaneseq
  %v6307 = vshrl.u32 %v6306, 7
  %v6308 = vsub.s32 1, %v6307
  %v6309 = vrot.slane %v6284, %v6308
  %v6310 = vlaneseq
  %v6311 = vshrl.u32 %v6310, 7
  %v6312 = vsub.s32 2, %v6311
  %v6313 = vrot.slane %v6284, %v6312
  %v6314 = vlaneseq
  %v6315 = vshrl.u32 %v6314, 7
  %v6316 = vsub.s32 3, %v6315
  %v6317 = vrot.slane %v6284, %v6316
  %v6338 = vunpack.c.l.b16 %v6285
  %v6339 = vunpack.c.h.b16 %v6285
  %v6340 = vunpack.c.l.b16 %v6286
  %v6341 = vunpack.c.h.b16 %v6286
  %v6342 = vunpack.c.l.b16 %v6287
  %v6343 = vunpack.c.h.b16 %v6287
  %v6344 = vunpack.c.l.b16 %v6288
  %v6345 = vunpack.c.h.b16 %v6288
  %v6346 = vunpack.c.l.b16 %v6289
  %v6347 = vunpack.c.h.b16 %v6289
  %v6348 = vunpack.c.l.b16 %v6290
  %v6349 = vunpack.c.h.b16 %v6290
  %v6350 = vunpack.c.l.b16 %v6291
  %v6351 = vunpack.c.h.b16 %v6291
  %v6352 = vunpack.c.l.b16 %v6292
  %v6353 = vunpack.c.h.b16 %v6292
  %v6354 = vunpack.c.l.b16 %v6293
  %v6355 = vunpack.c.h.b16 %v6293
  %v6356 = vunpack.c.l.b16 %v6294
  %v6357 = vunpack.c.h.b16 %v6294
  %v6358 = vunpack.c.l.b16 %v6295
  %v6359 = vunpack.c.h.b16 %v6295
  %v6360 = vunpack.c.l.b16 %v6296
  %v6361 = vunpack.c.h.b16 %v6296
  %v6362 = vunpack.c.l.b16 %v6297
  %v6363 = vunpack.c.h.b16 %v6297
  %v6364 = vunpack.c.l.b16 %v6298
  %v6365 = vunpack.c.h.b16 %v6298
  %v6366 = vunpack.c.l.b16 %v6299
  %v6367 = vunpack.c.h.b16 %v6299
  %v6368 = vunpack.c.l.b16 %v6300
  %v6369 = vunpack.c.h.b16 %v6300
  %v6370 = vpack.c.b16 %v6342, %v6338
  %v6371 = vpack.c.b16 %v6343, %v6339
  %v6372 = vpack.c.b16 %v6344, %v6340
  %v6373 = vpack.c.b16 %v6345, %v6341
  %v6374 = vpack.c.b16 %v6350, %v6346
  %v6375 = vpack.c.b16 %v6351, %v6347
  %v6376 = vpack.c.b16 %v6352, %v6348
  %v6377 = vpack.c.b16 %v6353, %v6349
  %v6378 = vpack.c.b16 %v6358, %v6354
  %v6379 = vpack.c.b16 %v6359, %v6355
  %v6380 = vpack.c.b16 %v6360, %v6356
  %v6381 = vpack.c.b16 %v6361, %v6357
  %v6382 = vpack.c.b16 %v6366, %v6362
  %v6383 = vpack.c.b16 %v6367, %v6363
  %v6384 = vpack.c.b16 %v6368, %v6364
  %v6385 = vpack.c.b16 %v6369, %v6365
  %v6403 = vsel %vm5969, %v6283, 0
  %6405 = vmatprep.subr.bf16.mxu0 %v6371
  %6406 = vmatpush1.bf16.msra.mxu0 %v6370
  %6407 = vmatprep.subr.bf16.mxu0 %v6375
  %6408 = vmatpush1.bf16.msra.mxu0 %v6374
  %6409 = vmatprep.subr.bf16.mxu0 %v6379
  %6410 = vmatpush1.bf16.msra.mxu0 %v6378
  %6411 = vmatprep.subr.bf16.mxu0 %v6383
  %6412 = vmatpush1.bf16.msra.mxu0 %v6382
  %6413 = vmatprep.subr.bf16.mxu0 0
  %6414 = vmatpush1.bf16.msra.mxu0 0
  %6415 = vmatprep.subr.bf16.mxu0 0
  %6416 = vmatpush1.bf16.msra.mxu0 0
  %6417 = vmatprep.subr.bf16.mxu0 0
  %6418 = vmatpush1.bf16.msra.mxu0 0
  %6419 = vmatprep.subr.bf16.mxu0 0
  %6420 = vmatpush1.bf16.msra.mxu0 0
  %6421 = vmatprep.subr.bf16.mxu0 0
  %6422 = vmatpush1.bf16.msra.mxu0 0
  %6423 = vmatprep.subr.bf16.mxu0 0
  %6424 = vmatpush1.bf16.msra.mxu0 0
  %6425 = vmatprep.subr.bf16.mxu0 0
  %6426 = vmatpush1.bf16.msra.mxu0 0
  %6427 = vmatprep.subr.bf16.mxu0 0
  %6428 = vmatpush1.bf16.msra.mxu0 0
  %6429 = vmatprep.subr.bf16.mxu0 0
  %6430 = vmatpush1.bf16.msra.mxu0 0
  %6431 = vmatprep.subr.bf16.mxu0 0
  %6432 = vmatpush1.bf16.msra.mxu0 0
  %6433 = vmatprep.subr.bf16.mxu0 0
  %6434 = vmatpush1.bf16.msra.mxu0 0
  %6435 = vmatprep.subr.bf16.mxu0 0
  %6436 = vmatpush1.bf16.msra.mxu0 0
  %6437 = vmatprep.mubr.bf16.mxu0 0
  %6438 = vmatmul.mubr.bf16.gmra.mrb[0].mxu0 %v6403
  %v6439 = vpop.f32.mrb[0].mxu0
  %v6440 = vadd.f32 %v6305, %v6439
  %v6441 = vpop.f32.mrb[0].mxu0
  %v6442 = vadd.f32 %v6309, %v6441
  %v6443 = vpop.f32.mrb[0].mxu0
  %v6444 = vadd.f32 %v6305, %v6443
  %v6445 = vpop.f32.mrb[0].mxu0
  %v6446 = vadd.f32 %v6309, %v6445
  %6447 = vdwg.mxu0
  %6448 = vmatprep.subr.bf16.mxu0 %v6373
  %6449 = vmatpush1.bf16.msra.mxu0 %v6372
  %6450 = vmatprep.subr.bf16.mxu0 %v6377
  %6451 = vmatpush1.bf16.msra.mxu0 %v6376
  %6452 = vmatprep.subr.bf16.mxu0 %v6381
  %6453 = vmatpush1.bf16.msra.mxu0 %v6380
  %6454 = vmatprep.subr.bf16.mxu0 %v6385
  %6455 = vmatpush1.bf16.msra.mxu0 %v6384
  %6456 = vmatprep.subr.bf16.mxu0 0
  %6457 = vmatpush1.bf16.msra.mxu0 0
  %6458 = vmatprep.subr.bf16.mxu0 0
  %6459 = vmatpush1.bf16.msra.mxu0 0
  %6460 = vmatprep.subr.bf16.mxu0 0
  %6461 = vmatpush1.bf16.msra.mxu0 0
  %6462 = vmatprep.subr.bf16.mxu0 0
  %6463 = vmatpush1.bf16.msra.mxu0 0
  %6464 = vmatprep.subr.bf16.mxu0 0
  %6465 = vmatpush1.bf16.msra.mxu0 0
  %6466 = vmatprep.subr.bf16.mxu0 0
  %6467 = vmatpush1.bf16.msra.mxu0 0
  %6468 = vmatprep.subr.bf16.mxu0 0
  %6469 = vmatpush1.bf16.msra.mxu0 0
  %6470 = vmatprep.subr.bf16.mxu0 0
  %6471 = vmatpush1.bf16.msra.mxu0 0
  %6472 = vmatprep.subr.bf16.mxu0 0
  %6473 = vmatpush1.bf16.msra.mxu0 0
  %6474 = vmatprep.subr.bf16.mxu0 0
  %6475 = vmatpush1.bf16.msra.mxu0 0
  %6476 = vmatprep.subr.bf16.mxu0 0
  %6477 = vmatpush1.bf16.msra.mxu0 0
  %6478 = vmatprep.subr.bf16.mxu0 0
  %6479 = vmatpush1.bf16.msra.mxu0 0
  %6480 = vmatprep.mubr.bf16.mxu0 0
  %6481 = vmatmul.mubr.bf16.gmra.mrb[0].mxu0 %v6403
  %v6482 = vpop.f32.mrb[0].mxu0
  %v6483 = vadd.f32 %v6313, %v6482
  %v6484 = vpop.f32.mrb[0].mxu0
  %v6485 = vadd.f32 %v6317, %v6484
  %v6486 = vpop.f32.mrb[0].mxu0
  %v6487 = vadd.f32 %v6313, %v6486
  %v6488 = vpop.f32.mrb[0].mxu0
  %v6489 = vadd.f32 %v6317, %v6488
  %6490 = vdwg.mxu0
  %v6491 = vmax.f32 %v6440, 0.0
  %v6492 = vmax.f32 %v6442, 0.0
  %v6493 = vmax.f32 %v6483, 0.0
  %v6494 = vmax.f32 %v6485, 0.0
  %v6495 = vmax.f32 %v6444, 0.0
  %v6496 = vmax.f32 %v6446, 0.0
  %v6497 = vmax.f32 %v6487, 0.0
  %v6498 = vmax.f32 %v6489, 0.0
  %v6499 = vpack.c.bf16 %v6495, %v6491
  %v6500 = vpack.c.bf16 %v6496, %v6492
  %v6501 = vpack.c.bf16 %v6497, %v6493
  %v6502 = vpack.c.bf16 %v6498, %v6494
  %v6503 = vld [vmem:[%s10] sm:$0x3]
  %v6504 = vld [vmem:[%s9] sm:$0xff]
  %v6505 = vld [vmem:[%s9 + $0x8] sm:$0xff]
  %v6506 = vld [vmem:[%s9 + $0x10] sm:$0xff]
  %v6507 = vld [vmem:[%s9 + $0x18] sm:$0xff]
  %v6508 = vld [vmem:[%s9 + $0x20] sm:$0xff]
  %v6509 = vld [vmem:[%s9 + $0x28] sm:$0xff]
  %v6510 = vld [vmem:[%s9 + $0x30] sm:$0xff]
  %v6511 = vld [vmem:[%s9 + $0x38] sm:$0xff]
  %v6512 = vld [vmem:[%s9 + $0x40] sm:$0xff]
  %v6513 = vld [vmem:[%s9 + $0x48] sm:$0xff]
  %v6514 = vld [vmem:[%s9 + $0x50] sm:$0xff]
  %v6515 = vld [vmem:[%s9 + $0x58] sm:$0xff]
  %v6516 = vld [vmem:[%s9 + $0x60] sm:$0xff]
  %v6517 = vld [vmem:[%s9 + $0x68] sm:$0xff]
  %v6518 = vld [vmem:[%s9 + $0x70] sm:$0xff]
  %v6519 = vld [vmem:[%s9 + $0x78] sm:$0xff]
  %v6520 = vld [vmem:[%s9 + $0x80] sm:$0xff]
  %v6521 = vld [vmem:[%s9 + $0x88] sm:$0xff]
  %v6522 = vld [vmem:[%s9 + $0x90] sm:$0xff]
  %v6523 = vld [vmem:[%s9 + $0x98] sm:$0xff]
  %v6524 = vld [vmem:[%s9 + $0xa0] sm:$0xff]
  %v6525 = vld [vmem:[%s9 + $0xa8] sm:$0xff]
  %v6526 = vld [vmem:[%s9 + $0xb0] sm:$0xff]
  %v6527 = vld [vmem:[%s9 + $0xb8] sm:$0xff]
  %v6528 = vld [vmem:[%s9 + $0xc0] sm:$0xff]
  %v6529 = vld [vmem:[%s9 + $0xc8] sm:$0xff]
  %v6530 = vld [vmem:[%s9 + $0xd0] sm:$0xff]
  %v6531 = vld [vmem:[%s9 + $0xd8] sm:$0xff]
  %v6532 = vld [vmem:[%s9 + $0xe0] sm:$0xff]
  %v6533 = vld [vmem:[%s9 + $0xe8] sm:$0xff]
  %v6534 = vld [vmem:[%s9 + $0xf0] sm:$0xff]
  %v6535 = vld [vmem:[%s9 + $0xf8] sm:$0xff]
  %v6536 = vld [vmem:[%s9 + $0x100] sm:$0xff]
  %v6537 = vld [vmem:[%s9 + $0x108] sm:$0xff]
  %v6538 = vld [vmem:[%s9 + $0x110] sm:$0xff]
  %v6539 = vld [vmem:[%s9 + $0x118] sm:$0xff]
  %v6540 = vld [vmem:[%s9 + $0x120] sm:$0xff]
  %v6541 = vld [vmem:[%s9 + $0x128] sm:$0xff]
  %v6542 = vld [vmem:[%s9 + $0x130] sm:$0xff]
  %v6543 = vld [vmem:[%s9 + $0x138] sm:$0xff]
  %v6544 = vld [vmem:[%s9 + $0x140] sm:$0xff]
  %v6545 = vld [vmem:[%s9 + $0x148] sm:$0xff]
  %v6546 = vld [vmem:[%s9 + $0x150] sm:$0xff]
  %v6547 = vld [vmem:[%s9 + $0x158] sm:$0xff]
  %v6548 = vld [vmem:[%s9 + $0x160] sm:$0xff]
  %v6549 = vld [vmem:[%s9 + $0x168] sm:$0xff]
  %v6550 = vld [vmem:[%s9 + $0x170] sm:$0xff]
  %v6551 = vld [vmem:[%s9 + $0x178] sm:$0xff]
  %v6552 = vld [vmem:[%s9 + $0x180] sm:$0xff]
  %v6553 = vld [vmem:[%s9 + $0x188] sm:$0xff]
  %v6554 = vld [vmem:[%s9 + $0x190] sm:$0xff]
  %v6555 = vld [vmem:[%s9 + $0x198] sm:$0xff]
  %v6556 = vld [vmem:[%s9 + $0x1a0] sm:$0xff]
  %v6557 = vld [vmem:[%s9 + $0x1a8] sm:$0xff]
  %v6558 = vld [vmem:[%s9 + $0x1b0] sm:$0xff]
  %v6559 = vld [vmem:[%s9 + $0x1b8] sm:$0xff]
  %v6560 = vld [vmem:[%s9 + $0x1c0] sm:$0xff]
  %v6561 = vld [vmem:[%s9 + $0x1c8] sm:$0xff]
  %v6562 = vld [vmem:[%s9 + $0x1d0] sm:$0xff]
  %v6563 = vld [vmem:[%s9 + $0x1d8] sm:$0xff]
  %v6564 = vld [vmem:[%s9 + $0x1e0] sm:$0xff]
  %v6565 = vld [vmem:[%s9 + $0x1e8] sm:$0xff]
  %v6566 = vld [vmem:[%s9 + $0x1f0] sm:$0xff]
  %v6567 = vld [vmem:[%s9 + $0x1f8] sm:$0xff]
  %v6569 = vlaneseq
  %v6570 = vshrl.u32 %v6569, 7
  %v6571 = vsub.s32 0, %v6570
  %v6572 = vrot.slane %v6503, %v6571
  %v6573 = vlaneseq
  %v6574 = vshrl.u32 %v6573, 7
  %v6575 = vsub.s32 1, %v6574
  %v6576 = vrot.slane %v6503, %v6575
  %v6643 = vunpack.c.l.b16 %v6504
  %v6644 = vunpack.c.h.b16 %v6504
  %v6645 = vunpack.c.l.b16 %v6505
  %v6646 = vunpack.c.h.b16 %v6505
  %v6647 = vunpack.c.l.b16 %v6506
  %v6648 = vunpack.c.h.b16 %v6506
  %v6649 = vunpack.c.l.b16 %v6507
  %v6650 = vunpack.c.h.b16 %v6507
  %v6651 = vunpack.c.l.b16 %v6508
  %v6652 = vunpack.c.h.b16 %v6508
  %v6653 = vunpack.c.l.b16 %v6509
  %v6654 = vunpack.c.h.b16 %v6509
  %v6655 = vunpack.c.l.b16 %v6510
  %v6656 = vunpack.c.h.b16 %v6510
  %v6657 = vunpack.c.l.b16 %v6511
  %v6658 = vunpack.c.h.b16 %v6511
  %v6659 = vunpack.c.l.b16 %v6512
  %v6660 = vunpack.c.h.b16 %v6512
  %v6661 = vunpack.c.l.b16 %v6513
  %v6662 = vunpack.c.h.b16 %v6513
  %v6663 = vunpack.c.l.b16 %v6514
  %v6664 = vunpack.c.h.b16 %v6514
  %v6665 = vunpack.c.l.b16 %v6515
  %v6666 = vunpack.c.h.b16 %v6515
  %v6667 = vunpack.c.l.b16 %v6516
  %v6668 = vunpack.c.h.b16 %v6516
  %v6669 = vunpack.c.l.b16 %v6517
  %v6670 = vunpack.c.h.b16 %v6517
  %v6671 = vunpack.c.l.b16 %v6518
  %v6672 = vunpack.c.h.b16 %v6518
  %v6673 = vunpack.c.l.b16 %v6519
  %v6674 = vunpack.c.h.b16 %v6519
  %v6675 = vunpack.c.l.b16 %v6520
  %v6676 = vunpack.c.h.b16 %v6520
  %v6677 = vunpack.c.l.b16 %v6521
  %v6678 = vunpack.c.h.b16 %v6521
  %v6679 = vunpack.c.l.b16 %v6522
  %v6680 = vunpack.c.h.b16 %v6522
  %v6681 = vunpack.c.l.b16 %v6523
  %v6682 = vunpack.c.h.b16 %v6523
  %v6683 = vunpack.c.l.b16 %v6524
  %v6684 = vunpack.c.h.b16 %v6524
  %v6685 = vunpack.c.l.b16 %v6525
  %v6686 = vunpack.c.h.b16 %v6525
  %v6687 = vunpack.c.l.b16 %v6526
  %v6688 = vunpack.c.h.b16 %v6526
  %v6689 = vunpack.c.l.b16 %v6527
  %v6690 = vunpack.c.h.b16 %v6527
  %v6691 = vunpack.c.l.b16 %v6528
  %v6692 = vunpack.c.h.b16 %v6528
  %v6693 = vunpack.c.l.b16 %v6529
  %v6694 = vunpack.c.h.b16 %v6529
  %v6695 = vunpack.c.l.b16 %v6530
  %v6696 = vunpack.c.h.b16 %v6530
  %v6697 = vunpack.c.l.b16 %v6531
  %v6698 = vunpack.c.h.b16 %v6531
  %v6699 = vunpack.c.l.b16 %v6532
  %v6700 = vunpack.c.h.b16 %v6532
  %v6701 = vunpack.c.l.b16 %v6533
  %v6702 = vunpack.c.h.b16 %v6533
  %v6703 = vunpack.c.l.b16 %v6534
  %v6704 = vunpack.c.h.b16 %v6534
  %v6705 = vunpack.c.l.b16 %v6535
  %v6706 = vunpack.c.h.b16 %v6535
  %v6707 = vunpack.c.l.b16 %v6536
  %v6708 = vunpack.c.h.b16 %v6536
  %v6709 = vunpack.c.l.b16 %v6537
  %v6710 = vunpack.c.h.b16 %v6537
  %v6711 = vunpack.c.l.b16 %v6538
  %v6712 = vunpack.c.h.b16 %v6538
  %v6713 = vunpack.c.l.b16 %v6539
  %v6714 = vunpack.c.h.b16 %v6539
  %v6715 = vunpack.c.l.b16 %v6540
  %v6716 = vunpack.c.h.b16 %v6540
  %v6717 = vunpack.c.l.b16 %v6541
  %v6718 = vunpack.c.h.b16 %v6541
  %v6719 = vunpack.c.l.b16 %v6542
  %v6720 = vunpack.c.h.b16 %v6542
  %v6721 = vunpack.c.l.b16 %v6543
  %v6722 = vunpack.c.h.b16 %v6543
  %v6723 = vunpack.c.l.b16 %v6544
  %v6724 = vunpack.c.h.b16 %v6544
  %v6725 = vunpack.c.l.b16 %v6545
  %v6726 = vunpack.c.h.b16 %v6545
  %v6727 = vunpack.c.l.b16 %v6546
  %v6728 = vunpack.c.h.b16 %v6546
  %v6729 = vunpack.c.l.b16 %v6547
  %v6730 = vunpack.c.h.b16 %v6547
  %v6731 = vunpack.c.l.b16 %v6548
  %v6732 = vunpack.c.h.b16 %v6548
  %v6733 = vunpack.c.l.b16 %v6549
  %v6734 = vunpack.c.h.b16 %v6549
  %v6735 = vunpack.c.l.b16 %v6550
  %v6736 = vunpack.c.h.b16 %v6550
  %v6737 = vunpack.c.l.b16 %v6551
  %v6738 = vunpack.c.h.b16 %v6551
  %v6739 = vunpack.c.l.b16 %v6552
  %v6740 = vunpack.c.h.b16 %v6552
  %v6741 = vunpack.c.l.b16 %v6553
  %v6742 = vunpack.c.h.b16 %v6553
  %v6743 = vunpack.c.l.b16 %v6554
  %v6744 = vunpack.c.h.b16 %v6554
  %v6745 = vunpack.c.l.b16 %v6555
  %v6746 = vunpack.c.h.b16 %v6555
  %v6747 = vunpack.c.l.b16 %v6556
  %v6748 = vunpack.c.h.b16 %v6556
  %v6749 = vunpack.c.l.b16 %v6557
  %v6750 = vunpack.c.h.b16 %v6557
  %v6751 = vunpack.c.l.b16 %v6558
  %v6752 = vunpack.c.h.b16 %v6558
  %v6753 = vunpack.c.l.b16 %v6559
  %v6754 = vunpack.c.h.b16 %v6559
  %v6755 = vunpack.c.l.b16 %v6560
  %v6756 = vunpack.c.h.b16 %v6560
  %v6757 = vunpack.c.l.b16 %v6561
  %v6758 = vunpack.c.h.b16 %v6561
  %v6759 = vunpack.c.l.b16 %v6562
  %v6760 = vunpack.c.h.b16 %v6562
  %v6761 = vunpack.c.l.b16 %v6563
  %v6762 = vunpack.c.h.b16 %v6563
  %v6763 = vunpack.c.l.b16 %v6564
  %v6764 = vunpack.c.h.b16 %v6564
  %v6765 = vunpack.c.l.b16 %v6565
  %v6766 = vunpack.c.h.b16 %v6565
  %v6767 = vunpack.c.l.b16 %v6566
  %v6768 = vunpack.c.h.b16 %v6566
  %v6769 = vunpack.c.l.b16 %v6567
  %v6770 = vunpack.c.h.b16 %v6567
  %v6771 = vpack.c.b16 %v6645, %v6643
  %v6772 = vpack.c.b16 %v6646, %v6644
  %v6773 = vpack.c.b16 %v6649, %v6647
  %v6774 = vpack.c.b16 %v6650, %v6648
  %v6775 = vpack.c.b16 %v6653, %v6651
  %v6776 = vpack.c.b16 %v6654, %v6652
  %v6777 = vpack.c.b16 %v6657, %v6655
  %v6778 = vpack.c.b16 %v6658, %v6656
  %v6779 = vpack.c.b16 %v6661, %v6659
  %v6780 = vpack.c.b16 %v6662, %v6660
  %v6781 = vpack.c.b16 %v6665, %v6663
  %v6782 = vpack.c.b16 %v6666, %v6664
  %v6783 = vpack.c.b16 %v6669, %v6667
  %v6784 = vpack.c.b16 %v6670, %v6668
  %v6785 = vpack.c.b16 %v6673, %v6671
  %v6786 = vpack.c.b16 %v6674, %v6672
  %v6787 = vpack.c.b16 %v6677, %v6675
  %v6788 = vpack.c.b16 %v6678, %v6676
  %v6789 = vpack.c.b16 %v6681, %v6679
  %v6790 = vpack.c.b16 %v6682, %v6680
  %v6791 = vpack.c.b16 %v6685, %v6683
  %v6792 = vpack.c.b16 %v6686, %v6684
  %v6793 = vpack.c.b16 %v6689, %v6687
  %v6794 = vpack.c.b16 %v6690, %v6688
  %v6795 = vpack.c.b16 %v6693, %v6691
  %v6796 = vpack.c.b16 %v6694, %v6692
  %v6797 = vpack.c.b16 %v6697, %v6695
  %v6798 = vpack.c.b16 %v6698, %v6696
  %v6799 = vpack.c.b16 %v6701, %v6699
  %v6800 = vpack.c.b16 %v6702, %v6700
  %v6801 = vpack.c.b16 %v6705, %v6703
  %v6802 = vpack.c.b16 %v6706, %v6704
  %v6803 = vpack.c.b16 %v6709, %v6707
  %v6804 = vpack.c.b16 %v6710, %v6708
  %v6805 = vpack.c.b16 %v6713, %v6711
  %v6806 = vpack.c.b16 %v6714, %v6712
  %v6807 = vpack.c.b16 %v6717, %v6715
  %v6808 = vpack.c.b16 %v6718, %v6716
  %v6809 = vpack.c.b16 %v6721, %v6719
  %v6810 = vpack.c.b16 %v6722, %v6720
  %v6811 = vpack.c.b16 %v6725, %v6723
  %v6812 = vpack.c.b16 %v6726, %v6724
  %v6813 = vpack.c.b16 %v6729, %v6727
  %v6814 = vpack.c.b16 %v6730, %v6728
  %v6815 = vpack.c.b16 %v6733, %v6731
  %v6816 = vpack.c.b16 %v6734, %v6732
  %v6817 = vpack.c.b16 %v6737, %v6735
  %v6818 = vpack.c.b16 %v6738, %v6736
  %v6819 = vpack.c.b16 %v6741, %v6739
  %v6820 = vpack.c.b16 %v6742, %v6740
  %v6821 = vpack.c.b16 %v6745, %v6743
  %v6822 = vpack.c.b16 %v6746, %v6744
  %v6823 = vpack.c.b16 %v6749, %v6747
  %v6824 = vpack.c.b16 %v6750, %v6748
  %v6825 = vpack.c.b16 %v6753, %v6751
  %v6826 = vpack.c.b16 %v6754, %v6752
  %v6827 = vpack.c.b16 %v6757, %v6755
  %v6828 = vpack.c.b16 %v6758, %v6756
  %v6829 = vpack.c.b16 %v6761, %v6759
  %v6830 = vpack.c.b16 %v6762, %v6760
  %v6831 = vpack.c.b16 %v6765, %v6763
  %v6832 = vpack.c.b16 %v6766, %v6764
  %v6833 = vpack.c.b16 %v6769, %v6767
  %v6834 = vpack.c.b16 %v6770, %v6768
  %6899 = vmatprep.subr.bf16.mxu0 %v6772
  %6900 = vmatpush1.bf16.msra.mxu0 %v6771
  %6901 = vmatprep.subr.bf16.mxu0 %v6774
  %6902 = vmatpush1.bf16.msra.mxu0 %v6773
  %6903 = vmatprep.subr.bf16.mxu0 %v6776
  %6904 = vmatpush1.bf16.msra.mxu0 %v6775
  %6905 = vmatprep.subr.bf16.mxu0 %v6778
  %6906 = vmatpush1.bf16.msra.mxu0 %v6777
  %6907 = vmatprep.subr.bf16.mxu0 %v6780
  %6908 = vmatpush1.bf16.msra.mxu0 %v6779
  %6909 = vmatprep.subr.bf16.mxu0 %v6782
  %6910 = vmatpush1.bf16.msra.mxu0 %v6781
  %6911 = vmatprep.subr.bf16.mxu0 %v6784
  %6912 = vmatpush1.bf16.msra.mxu0 %v6783
  %6913 = vmatprep.subr.bf16.mxu0 %v6786
  %6914 = vmatpush1.bf16.msra.mxu0 %v6785
  %6915 = vmatprep.subr.bf16.mxu0 %v6788
  %6916 = vmatpush1.bf16.msra.mxu0 %v6787
  %6917 = vmatprep.subr.bf16.mxu0 %v6790
  %6918 = vmatpush1.bf16.msra.mxu0 %v6789
  %6919 = vmatprep.subr.bf16.mxu0 %v6792
  %6920 = vmatpush1.bf16.msra.mxu0 %v6791
  %6921 = vmatprep.subr.bf16.mxu0 %v6794
  %6922 = vmatpush1.bf16.msra.mxu0 %v6793
  %6923 = vmatprep.subr.bf16.mxu0 %v6796
  %6924 = vmatpush1.bf16.msra.mxu0 %v6795
  %6925 = vmatprep.subr.bf16.mxu0 %v6798
  %6926 = vmatpush1.bf16.msra.mxu0 %v6797
  %6927 = vmatprep.subr.bf16.mxu0 %v6800
  %6928 = vmatpush1.bf16.msra.mxu0 %v6799
  %6929 = vmatprep.subr.bf16.mxu0 %v6802
  %6930 = vmatpush1.bf16.msra.mxu0 %v6801
  %6931 = vmatprep.mubr.bf16.mxu0 %v6500
  %6932 = vmatmul.mubr.bf16.gmra.mrb[0].mxu0 %v6499
  %v6933 = vpop.f32.mrb[0].mxu0
  %v6934 = vadd.f32 %v6572, %v6933
  %v6935 = vpop.f32.mrb[0].mxu0
  %v6936 = vadd.f32 %v6576, %v6935
  %v6937 = vpop.f32.mrb[0].mxu0
  %v6938 = vadd.f32 %v6572, %v6937
  %v6939 = vpop.f32.mrb[0].mxu0
  %v6940 = vadd.f32 %v6576, %v6939
  %6941 = vdwg.mxu0
  %6942 = vmatprep.subr.bf16.mxu0 %v6804
  %6943 = vmatpush1.bf16.msra.mxu0 %v6803
  %6944 = vmatprep.subr.bf16.mxu0 %v6806
  %6945 = vmatpush1.bf16.msra.mxu0 %v6805
  %6946 = vmatprep.subr.bf16.mxu0 %v6808
  %6947 = vmatpush1.bf16.msra.mxu0 %v6807
  %6948 = vmatprep.subr.bf16.mxu0 %v6810
  %6949 = vmatpush1.bf16.msra.mxu0 %v6809
  %6950 = vmatprep.subr.bf16.mxu0 %v6812
  %6951 = vmatpush1.bf16.msra.mxu0 %v6811
  %6952 = vmatprep.subr.bf16.mxu0 %v6814
  %6953 = vmatpush1.bf16.msra.mxu0 %v6813
  %6954 = vmatprep.subr.bf16.mxu0 %v6816
  %6955 = vmatpush1.bf16.msra.mxu0 %v6815
  %6956 = vmatprep.subr.bf16.mxu0 %v6818
  %6957 = vmatpush1.bf16.msra.mxu0 %v6817
  %6958 = vmatprep.subr.bf16.mxu0 %v6820
  %6959 = vmatpush1.bf16.msra.mxu0 %v6819
  %6960 = vmatprep.subr.bf16.mxu0 %v6822
  %6961 = vmatpush1.bf16.msra.mxu0 %v6821
  %6962 = vmatprep.subr.bf16.mxu0 %v6824
  %6963 = vmatpush1.bf16.msra.mxu0 %v6823
  %6964 = vmatprep.subr.bf16.mxu0 %v6826
  %6965 = vmatpush1.bf16.msra.mxu0 %v6825
  %6966 = vmatprep.subr.bf16.mxu0 %v6828
  %6967 = vmatpush1.bf16.msra.mxu0 %v6827
  %6968 = vmatprep.subr.bf16.mxu0 %v6830
  %6969 = vmatpush1.bf16.msra.mxu0 %v6829
  %6970 = vmatprep.subr.bf16.mxu0 %v6832
  %6971 = vmatpush1.bf16.msra.mxu0 %v6831
  %6972 = vmatprep.subr.bf16.mxu0 %v6834
  %6973 = vmatpush1.bf16.msra.mxu0 %v6833
  %6974 = vmatprep.mubr.bf16.mxu0 %v6502
  %6975 = vmatmul.mubr.bf16.gmra.mrb[0].mxu0 %v6501
  %v6976 = vpop.f32.mrb[0].mxu0
  %v6977 = vadd.f32 %v6934, %v6976
  %v6978 = vpop.f32.mrb[0].mxu0
  %v6979 = vadd.f32 %v6936, %v6978
  %v6980 = vpop.f32.mrb[0].mxu0
  %v6981 = vadd.f32 %v6938, %v6980
  %v6982 = vpop.f32.mrb[0].mxu0
  %v6983 = vadd.f32 %v6940, %v6982
  %6984 = vdwg.mxu0
  %v6985 = vmax.f32 %v6977, 0.0
  %v6986 = vmax.f32 %v6979, 0.0
  %v6987 = vmax.f32 %v6981, 0.0
  %v6988 = vmax.f32 %v6983, 0.0
  %v6989 = vld [vmem:[%s11] sm:$0x3]
  %v6990 = vld [vmem:[#allocation2] sm:$0x1]
  %v6992 = vlaneseq
  %v6993 = vshrl.u32 %v6992, 7
  %v6994 = vsub.s32 0, %v6993
  %v6995 = vrot.slane %v6989, %v6994
  %v6996 = vlaneseq
  %v6997 = vshrl.u32 %v6996, 7
  %v6998 = vsub.s32 1, %v6997
  %v6999 = vrot.slane %v6989, %v6998
  %v7002 = vmul.f32 %v6985, %v6995
  %v7003 = vmul.f32 %v6986, %v6999
  %v7004 = vmul.f32 %v6987, %v6995
  %v7005 = vmul.f32 %v6988, %v6999
  %v7006 = vadd.f32 %v7002, %v7003
  %7007 = vadd.xlane.f32.xlu0 %v7006
  %v7008 = vpop.xlane.xlu0 %7007
  %v7009 = vadd.f32 %v7004, %v7005
  %7010 = vadd.xlane.f32.xlu0 %v7009
  %v7011 = vpop.xlane.xlu0 %7010
  %v7013 = vlaneseq
  %v7014 = vshrl.u32 %v7013, 7
  %v7015 = vsub.s32 0, %v7014
  %v7016 = vrot.slane %v6990, %v7015
  %v7018 = vadd.f32 %v7008, %v7016
  %v7019 = vadd.f32 %v7011, %v7016
  %vm7020 = vcmask 7168
  %7021 = vst.msk [vmem:[%s13] sm:$0xff] %vm7020, %v7018
  %7022 = vst.msk [vmem:[%s13 + $0x8] sm:$0xff] %vm7020, %v7019
  // Predicated region
  $region54: #{_lambda_.1} parent=0 // pred_check
    _
  $region55: #{_lambda_.1} parent=0 // pred_check_branch
    %7024 = sbr.rel (0) target = $region57
  $region56: #{_lambda_.1} parent=0 // pred_region
    _
  $region57: #{_lambda_.1} parent=0 // pred_fallthru
    _
  // Predicated region
  $region58: #{_lambda_.1} parent=0 // pred_check
    _
  $region59: #{_lambda_.1} parent=0 // pred_check_branch
    %7026 = sbr.rel (0) target = $region61
  $region60: #{_lambda_.1} parent=0 // pred_region
    _
  $region61: #{_lambda_.1} parent=0 // pred_fallthru
    _

</llo_original>
